<compile_context>
chip_gen: v7x
topology: tpu7x:2x2x1
jax: 0.10.0
libtpu: 0.0.40
codegen_flags: <defaults>
</compile_context>

<pallas_src>
import jax
import jax.numpy as jnp
from jax.experimental import pallas as pl
from jax.experimental.pallas import tpu as pltpu

# ---- hyper-params (ModuleSNN(n_steps=2, lif_beta=0.2)) ----
N_STEPS    = 2
LIF_BETA   = 0.2
LIF_THRESH = 1.0          # snnTorch Leaky default threshold

B, C_IN, H, W = 2, 4, 16, 16      # input (PyTorch NCHW: [2, 4, 16, 16])
C1, C2        = 8, 16             # conv block output channels
N_CLASSES     = 10                # classifier outputs

CPAD = 128                        # lane-dense padded channel / class width
M    = B * H * W                  # flattened activation rows (512)
K1   = 9 * C_IN                   # conv1 im2col depth (36)
K2   = 9 * C1                     # conv2 im2col depth (72)


def snn_kernel(p1_ref, w1_ref, w2_ref, wc_ref, b1_ref, b2_ref, bc_ref,
               yt_ref, spad):
    # ---- conv block 1 current: one bf16 MXU dot -------------------------------
    # time_step_replica presents the same input every step, so this is
    # time-invariant and computed once (outside the time loop).
    cur1 = jnp.dot(p1_ref[...], w1_ref[...],
                   preferred_element_type=jnp.float32) + b1_ref[...]     # [M,128]

    # Persistent spatially padded spk1 buffer: zero the halo ONCE; only the
    # interior is overwritten per step (no per-step re-zero).
    spad[...] = jnp.zeros(spad.shape, spad.dtype)

    mem1 = jnp.zeros((M, CPAD), jnp.float32)
    mem2 = jnp.zeros((M, CPAD), jnp.float32)
    spk1 = jnp.zeros((M, CPAD), jnp.float32)   # spike at t-1 == LIF reset term
    spk2 = jnp.zeros((M, CPAD), jnp.float32)

    # Serial time axis: unrolled in-kernel, membranes carried as values.
    for t in range(N_STEPS):
        # ---- LIF 1 (snnTorch Leaky, reset_mechanism='subtract') ----
        #   reset_t = H(mem_{t-1} - thr) = spk_{t-1}   (mem_0 = 0 => spk_{-1} = 0)
        mem1 = LIF_BETA * mem1 + cur1 - spk1 * LIF_THRESH
        spk1 = (mem1 > LIF_THRESH).astype(jnp.float32)
        # TODO(synk): ATan surrogate gradient only matters for backward; the
        # forward pass uses the exact Heaviside spike.

        # Scatter the real C1 channels of spk1 into the interior of the padded
        # scratch (halo stays zero from the one-time init above).
        spad[:, 1:H + 1, 1:W + 1, :] = spk1.reshape(B, H, W, CPAD)[:, :, :, :C1]

        # ---- conv block 2: fused im2col -> single MXU dot (K = 9*C1 = 72) ----
        cols = [spad[:, dh:dh + H, dw:dw + W, :].reshape(M, C1)
                for dh in range(3) for dw in range(3)]
        patches2 = jnp.concatenate(cols, axis=-1).astype(jnp.bfloat16)   # [M, 72]
        cur2 = jnp.dot(patches2, w2_ref[...],
                       preferred_element_type=jnp.float32) + b2_ref[...]  # [M,128]

        # ---- LIF 2 ----
        mem2 = LIF_BETA * mem2 + cur2 - spk2 * LIF_THRESH
        spk2 = (mem2 > LIF_THRESH).astype(jnp.float32)

        # ---- avg_pool(x).squeeze() + classifier ----
        pooled = jnp.mean(spk2.reshape(B, H * W, CPAD), axis=1)          # [B,128]
        logits = jnp.dot(pooled, wc_ref[...],
                         preferred_element_type=jnp.float32) + bc_ref[...]
        yt_ref[t, :, :] = logits         # lane-dense (128-wide) per-step store


def _im2col_patches(x_nhwc):
    """Conv1 im2col patches (layout plumbing only, no MACs): [M, K1] -> pad K to 128."""
    xp = jnp.pad(x_nhwc, ((0, 0), (1, 1), (1, 1), (0, 0)))
    cols = [xp[:, dh:dh + H, dw:dw + W, :] for dh in range(3) for dw in range(3)]
    p = jnp.concatenate(cols, axis=-1).reshape(M, K1)        # row = b*H*W + h*W + w
    p = jnp.pad(p, ((0, 0), (0, CPAD - K1)))                 # K padded to 128 (zeros)
    return p.astype(jnp.bfloat16)


@jax.jit
def module_snn_forward(x_nchw, params):
    """Returns yt of shape [n_steps, B, n_classes] (== torch.stack(yt_list, 0))."""
    w1, b1, w2, b2, wc, bc = params
    # TODO(synk): time_step_replica is abstract in ModuleSNN; assumed to repeat x.
    x = jnp.transpose(x_nchw, (0, 2, 3, 1)).astype(jnp.float32)   # NCHW -> NHWC
    p1 = _im2col_patches(x)                                       # [M, 128] bf16

    grid_spec = pltpu.PrefetchScalarGridSpec(
        num_scalar_prefetch=0,
        grid=(1,),                                                # single invocation
        in_specs=[
            pl.BlockSpec((M, CPAD), lambda i: (0, 0)),            # conv1 patches
            pl.BlockSpec((CPAD, CPAD), lambda i: (0, 0)),         # w1 [128,128] bf16
            pl.BlockSpec((K2, CPAD), lambda i: (0, 0)),           # w2 [72,128]  bf16
            pl.BlockSpec((CPAD, CPAD), lambda i: (0, 0)),         # wc [128,128] f32
            pl.BlockSpec((1, CPAD), lambda i: (0, 0)),            # b1
            pl.BlockSpec((1, CPAD), lambda i: (0, 0)),            # b2
            pl.BlockSpec((1, CPAD), lambda i: (0, 0)),            # bc
        ],
        out_specs=pl.BlockSpec((N_STEPS, B, CPAD), lambda i: (0, 0, 0)),
        scratch_shapes=[
            pltpu.VMEM((B, H + 2, W + 2, C1), jnp.float32),       # padded spk1 buffer
        ],
    )
    yt_pad = pl.pallas_call(
        snn_kernel,
        out_shape=jax.ShapeDtypeStruct((N_STEPS, B, CPAD), jnp.float32),
        grid_spec=grid_spec,
        compiler_params=pltpu.CompilerParams(dimension_semantics=("arbitrary",)),
    )(p1, w1, w2, wc, b1, b2, bc)
    return yt_pad[:, :, :N_CLASSES]                               # slice real classes


def init_params(key):
    """Deterministic synthetic parameters, created in PyTorch layouts then
       converted to the lane-dense kernel layouts."""
    ks = jax.random.split(key, 6)
    w1_t = jax.random.normal(ks[0], (C1, C_IN, 3, 3), jnp.float32) * 0.30
    b1_t = jax.random.normal(ks[1], (C1,), jnp.float32) * 0.10
    w2_t = jax.random.normal(ks[2], (C2, C1, 3, 3), jnp.float32) * 0.30
    b2_t = jax.random.normal(ks[3], (C2,), jnp.float32) * 0.10
    wc_t = jax.random.normal(ks[4], (N_CLASSES, C2), jnp.float32) * 0.30
    bc_t = jax.random.normal(ks[5], (N_CLASSES,), jnp.float32) * 0.10

    # conv1: [Cout,Cin,kh,kw] -> [kh*kw*Cin, Cout], K and N zero-padded to 128, bf16
    w1_k = jnp.transpose(w1_t, (2, 3, 1, 0)).reshape(K1, C1)
    w1 = jnp.zeros((CPAD, CPAD), jnp.float32).at[:K1, :C1].set(w1_k)
    w1 = w1.astype(jnp.bfloat16)
    # conv2: [kh*kw*Cin, Cout] with N zero-padded to 128 (K = 72 kept exact), bf16
    w2_k = jnp.transpose(w2_t, (2, 3, 1, 0)).reshape(K2, C2)
    w2 = jnp.zeros((K2, CPAD), jnp.float32).at[:, :C2].set(w2_k)
    w2 = w2.astype(jnp.bfloat16)
    # classifier: [Cin, Cout] zero-padded to [128, 128], kept f32 (tiny dot)
    wc = jnp.zeros((CPAD, CPAD), jnp.float32).at[:C2, :N_CLASSES].set(wc_t.T)
    # biases zero-padded to [1, 128] f32
    b1 = jnp.zeros((1, CPAD), jnp.float32).at[0, :C1].set(b1_t)
    b2 = jnp.zeros((1, CPAD), jnp.float32).at[0, :C2].set(b2_t)
    bc = jnp.zeros((1, CPAD), jnp.float32).at[0, :N_CLASSES].set(bc_t)
    return (w1, b1, w2, b2, wc, bc)


if __name__ == "__main__":
    key = jax.random.PRNGKey(0)
    kx, kp = jax.random.split(key)
    x = jax.random.normal(kx, (B, C_IN, H, W), jnp.float32)    # PyTorch NCHW input
    params = init_params(kp)

    yt = module_snn_forward(x, params)
    yt = jax.block_until_ready(yt)
    assert yt.shape == (N_STEPS, B, N_CLASSES)
    print("KERNEL_OK")
</pallas_src>

<mosaic_0001>
module attributes {stable_mosaic.version = 11 : i64} {
  func.func @snn_kernel(%arg0: i32, %arg1: memref<512x128xbf16, #tpu.memory_space<vmem>>, %arg2: memref<128x128xbf16, #tpu.memory_space<vmem>>, %arg3: memref<72x128xbf16, #tpu.memory_space<vmem>>, %arg4: memref<128x128xf32, #tpu.memory_space<vmem>>, %arg5: memref<1x128xf32, #tpu.memory_space<vmem>>, %arg6: memref<1x128xf32, #tpu.memory_space<vmem>>, %arg7: memref<1x128xf32, #tpu.memory_space<vmem>>, %arg8: memref<2x2x128xf32, #tpu.memory_space<vmem>>, %arg9: memref<2x18x18x8xf32, #tpu.memory_space<vmem>>) attributes {dimension_semantics = [#tpu.dimension_semantics<arbitrary>], iteration_bounds = array<i64: 1>, scalar_prefetch = 0 : i64, scratch_operands = 1 : i64, tpu.core_type = #tpu.core_type<tc>, window_params = [{pipeline_mode = #tpu.pipeline_mode<synchronous>, transform_indices = @transform_0, window_bounds = array<i64: 512, 128>}, {pipeline_mode = #tpu.pipeline_mode<synchronous>, transform_indices = @transform_1, window_bounds = array<i64: 128, 128>}, {pipeline_mode = #tpu.pipeline_mode<synchronous>, transform_indices = @transform_2, window_bounds = array<i64: 72, 128>}, {pipeline_mode = #tpu.pipeline_mode<synchronous>, transform_indices = @transform_3, window_bounds = array<i64: 128, 128>}, {pipeline_mode = #tpu.pipeline_mode<synchronous>, transform_indices = @transform_4, window_bounds = array<i64: 1, 128>}, {pipeline_mode = #tpu.pipeline_mode<synchronous>, transform_indices = @transform_5, window_bounds = array<i64: 1, 128>}, {pipeline_mode = #tpu.pipeline_mode<synchronous>, transform_indices = @transform_6, window_bounds = array<i64: 1, 128>}, {pipeline_mode = #tpu.pipeline_mode<synchronous>, transform_indices = @transform_7, window_bounds = array<i64: 2, 2, 128>}]} {
    %c0 = arith.constant 0 : index
    %c0_0 = arith.constant 0 : index
    %0 = vector.load %arg1[%c0, %c0_0] : memref<512x128xbf16, #tpu.memory_space<vmem>>, vector<512x128xbf16>
    %c0_1 = arith.constant 0 : index
    %c0_2 = arith.constant 0 : index
    %1 = vector.load %arg2[%c0_1, %c0_2] : memref<128x128xbf16, #tpu.memory_space<vmem>>, vector<128x128xbf16>
    %cst = arith.constant dense<0.000000e+00> : vector<512x128xf32>
    %2 = tpu.matmul %0, %1, %cst {dimension_numbers = #tpu.dot_dimension_numbers<[1], [0], [0], [1], [0, 0, 1, 1], [], []>} : vector<512x128xbf16>, vector<128x128xbf16>, vector<512x128xf32> -> vector<512x128xf32>
    %c0_3 = arith.constant 0 : index
    %c0_4 = arith.constant 0 : index
    %3 = vector.load %arg5[%c0_3, %c0_4] : memref<1x128xf32, #tpu.memory_space<vmem>>, vector<1x128xf32>
    %4 = vector.broadcast %3 : vector<1x128xf32> to vector<512x128xf32>
    %5 = arith.addf %2, %4 : vector<512x128xf32>
    %cst_5 = arith.constant 0.000000e+00 : f32
    %6 = vector.broadcast %cst_5 : f32 to vector<2x18x18x8xf32>
    %c0_6 = arith.constant 0 : index
    %c0_7 = arith.constant 0 : index
    %c0_8 = arith.constant 0 : index
    %c0_9 = arith.constant 0 : index
    %7 = vector.load %arg9[%c0_6, %c0_7, %c0_8, %c0_9] : memref<2x18x18x8xf32, #tpu.memory_space<vmem>>, vector<2x18x18x8xf32>
    tpu.vector_store %arg9[%c0_6, %c0_7, %c0_8, %c0_9], %6 {strides = array<i32>} : memref<2x18x18x8xf32, #tpu.memory_space<vmem>>, vector<2x18x18x8xf32>,
    %cst_10 = arith.constant 0.000000e+00 : f32
    %8 = vector.broadcast %cst_10 : f32 to vector<512x128xf32>
    %cst_11 = arith.constant 0.000000e+00 : f32
    %9 = vector.broadcast %cst_11 : f32 to vector<512x128xf32>
    %cst_12 = arith.constant 0.000000e+00 : f32
    %10 = vector.broadcast %cst_12 : f32 to vector<512x128xf32>
    %cst_13 = arith.constant 0.000000e+00 : f32
    %11 = vector.broadcast %cst_13 : f32 to vector<512x128xf32>
    %cst_14 = arith.constant 2.000000e-01 : f32
    %12 = vector.broadcast %cst_14 : f32 to vector<512x128xf32>
    %13 = arith.mulf %12, %8 : vector<512x128xf32>
    %14 = arith.addf %13, %5 : vector<512x128xf32>
    %cst_15 = arith.constant 1.000000e+00 : f32
    %15 = vector.broadcast %cst_15 : f32 to vector<512x128xf32>
    %16 = arith.mulf %10, %15 : vector<512x128xf32>
    %17 = arith.subf %14, %16 : vector<512x128xf32>
    %cst_16 = arith.constant 1.000000e+00 : f32
    %18 = vector.broadcast %cst_16 : f32 to vector<512x128xf32>
    %19 = arith.cmpf ogt, %17, %18 : vector<512x128xf32>
    %20 = arith.extui %19 : vector<512x128xi1> to vector<512x128xi32>
    %21 = arith.sitofp %20 : vector<512x128xi32> to vector<512x128xf32>
    %22 = vector.shape_cast %21 : vector<512x128xf32> to vector<2x16x16x128xf32>
    %23 = vector.extract_strided_slice %22 {offsets = [0, 0, 0, 0], sizes = [2, 16, 16, 8], strides = [1, 1, 1, 1]} : vector<2x16x16x128xf32> to vector<2x16x16x8xf32>
    %c0_17 = arith.constant 0 : index
    %c1 = arith.constant 1 : index
    %c1_18 = arith.constant 1 : index
    %c0_19 = arith.constant 0 : index
    %24 = vector.load %arg9[%c0_17, %c1, %c1_18, %c0_19] : memref<2x18x18x8xf32, #tpu.memory_space<vmem>>, vector<2x16x16x8xf32>
    tpu.vector_store %arg9[%c0_17, %c1, %c1_18, %c0_19], %23 {strides = array<i32>} : memref<2x18x18x8xf32, #tpu.memory_space<vmem>>, vector<2x16x16x8xf32>,
    %c0_20 = arith.constant 0 : index
    %c0_21 = arith.constant 0 : index
    %c0_22 = arith.constant 0 : index
    %c0_23 = arith.constant 0 : index
    %25 = vector.load %arg9[%c0_20, %c0_21, %c0_22, %c0_23] : memref<2x18x18x8xf32, #tpu.memory_space<vmem>>, vector<2x16x16x8xf32>
    %26 = vector.shape_cast %25 : vector<2x16x16x8xf32> to vector<512x8xf32>
    %c0_24 = arith.constant 0 : index
    %c0_25 = arith.constant 0 : index
    %c1_26 = arith.constant 1 : index
    %c0_27 = arith.constant 0 : index
    %27 = vector.load %arg9[%c0_24, %c0_25, %c1_26, %c0_27] : memref<2x18x18x8xf32, #tpu.memory_space<vmem>>, vector<2x16x16x8xf32>
    %28 = vector.shape_cast %27 : vector<2x16x16x8xf32> to vector<512x8xf32>
    %c0_28 = arith.constant 0 : index
    %c0_29 = arith.constant 0 : index
    %c2 = arith.constant 2 : index
    %c0_30 = arith.constant 0 : index
    %29 = vector.load %arg9[%c0_28, %c0_29, %c2, %c0_30] : memref<2x18x18x8xf32, #tpu.memory_space<vmem>>, vector<2x16x16x8xf32>
    %30 = vector.shape_cast %29 : vector<2x16x16x8xf32> to vector<512x8xf32>
    %c0_31 = arith.constant 0 : index
    %c1_32 = arith.constant 1 : index
    %c0_33 = arith.constant 0 : index
    %c0_34 = arith.constant 0 : index
    %31 = vector.load %arg9[%c0_31, %c1_32, %c0_33, %c0_34] : memref<2x18x18x8xf32, #tpu.memory_space<vmem>>, vector<2x16x16x8xf32>
    %32 = vector.shape_cast %31 : vector<2x16x16x8xf32> to vector<512x8xf32>
    %c0_35 = arith.constant 0 : index
    %c1_36 = arith.constant 1 : index
    %c1_37 = arith.constant 1 : index
    %c0_38 = arith.constant 0 : index
    %33 = vector.load %arg9[%c0_35, %c1_36, %c1_37, %c0_38] : memref<2x18x18x8xf32, #tpu.memory_space<vmem>>, vector<2x16x16x8xf32>
    %34 = vector.shape_cast %33 : vector<2x16x16x8xf32> to vector<512x8xf32>
    %c0_39 = arith.constant 0 : index
    %c1_40 = arith.constant 1 : index
    %c2_41 = arith.constant 2 : index
    %c0_42 = arith.constant 0 : index
    %35 = vector.load %arg9[%c0_39, %c1_40, %c2_41, %c0_42] : memref<2x18x18x8xf32, #tpu.memory_space<vmem>>, vector<2x16x16x8xf32>
    %36 = vector.shape_cast %35 : vector<2x16x16x8xf32> to vector<512x8xf32>
    %c0_43 = arith.constant 0 : index
    %c2_44 = arith.constant 2 : index
    %c0_45 = arith.constant 0 : index
    %c0_46 = arith.constant 0 : index
    %37 = vector.load %arg9[%c0_43, %c2_44, %c0_45, %c0_46] : memref<2x18x18x8xf32, #tpu.memory_space<vmem>>, vector<2x16x16x8xf32>
    %38 = vector.shape_cast %37 : vector<2x16x16x8xf32> to vector<512x8xf32>
    %c0_47 = arith.constant 0 : index
    %c2_48 = arith.constant 2 : index
    %c1_49 = arith.constant 1 : index
    %c0_50 = arith.constant 0 : index
    %39 = vector.load %arg9[%c0_47, %c2_48, %c1_49, %c0_50] : memref<2x18x18x8xf32, #tpu.memory_space<vmem>>, vector<2x16x16x8xf32>
    %40 = vector.shape_cast %39 : vector<2x16x16x8xf32> to vector<512x8xf32>
    %c0_51 = arith.constant 0 : index
    %c2_52 = arith.constant 2 : index
    %c2_53 = arith.constant 2 : index
    %c0_54 = arith.constant 0 : index
    %41 = vector.load %arg9[%c0_51, %c2_52, %c2_53, %c0_54] : memref<2x18x18x8xf32, #tpu.memory_space<vmem>>, vector<2x16x16x8xf32>
    %42 = vector.shape_cast %41 : vector<2x16x16x8xf32> to vector<512x8xf32>
    %43 = tpu.concatenate %26, %28, %30, %32, %34, %36, %38, %40, %42 in 1 : vector<512x8xf32>, vector<512x8xf32>, vector<512x8xf32>, vector<512x8xf32>, vector<512x8xf32>, vector<512x8xf32>, vector<512x8xf32>, vector<512x8xf32>, vector<512x8xf32> -> vector<512x72xf32>
    %44 = arith.truncf %43 : vector<512x72xf32> to vector<512x72xbf16>
    %c0_55 = arith.constant 0 : index
    %c0_56 = arith.constant 0 : index
    %45 = vector.load %arg3[%c0_55, %c0_56] : memref<72x128xbf16, #tpu.memory_space<vmem>>, vector<72x128xbf16>
    %cst_57 = arith.constant dense<0.000000e+00> : vector<512x128xf32>
    %46 = tpu.matmul %44, %45, %cst_57 {dimension_numbers = #tpu.dot_dimension_numbers<[1], [0], [0], [1], [0, 0, 1, 1], [], []>} : vector<512x72xbf16>, vector<72x128xbf16>, vector<512x128xf32> -> vector<512x128xf32>
    %c0_58 = arith.constant 0 : index
    %c0_59 = arith.constant 0 : index
    %47 = vector.load %arg6[%c0_58, %c0_59] : memref<1x128xf32, #tpu.memory_space<vmem>>, vector<1x128xf32>
    %48 = vector.broadcast %47 : vector<1x128xf32> to vector<512x128xf32>
    %49 = arith.addf %46, %48 : vector<512x128xf32>
    %cst_60 = arith.constant 2.000000e-01 : f32
    %50 = vector.broadcast %cst_60 : f32 to vector<512x128xf32>
    %51 = arith.mulf %50, %9 : vector<512x128xf32>
    %52 = arith.addf %51, %49 : vector<512x128xf32>
    %cst_61 = arith.constant 1.000000e+00 : f32
    %53 = vector.broadcast %cst_61 : f32 to vector<512x128xf32>
    %54 = arith.mulf %11, %53 : vector<512x128xf32>
    %55 = arith.subf %52, %54 : vector<512x128xf32>
    %cst_62 = arith.constant 1.000000e+00 : f32
    %56 = vector.broadcast %cst_62 : f32 to vector<512x128xf32>
    %57 = arith.cmpf ogt, %55, %56 : vector<512x128xf32>
    %58 = arith.extui %57 : vector<512x128xi1> to vector<512x128xi32>
    %59 = arith.sitofp %58 : vector<512x128xi32> to vector<512x128xf32>
    %60 = vector.shape_cast %59 : vector<512x128xf32> to vector<2x256x128xf32>
    %cst_63 = arith.constant dense<0.000000e+00> : vector<2x128xf32>
    %61 = vector.multi_reduction <add>, %60, %cst_63 [1] : vector<2x256x128xf32> to vector<2x128xf32>
    %cst_64 = arith.constant 2.560000e+02 : f32
    %62 = vector.broadcast %cst_64 : f32 to vector<2x128xf32>
    %63 = arith.divf %61, %62 : vector<2x128xf32>
    %c0_65 = arith.constant 0 : index
    %c0_66 = arith.constant 0 : index
    %64 = vector.load %arg4[%c0_65, %c0_66] : memref<128x128xf32, #tpu.memory_space<vmem>>, vector<128x128xf32>
    %cst_67 = arith.constant dense<0.000000e+00> : vector<2x128xf32>
    %65 = tpu.matmul %63, %64, %cst_67 {dimension_numbers = #tpu.dot_dimension_numbers<[1], [0], [0], [1], [0, 0, 1, 1], [], []>} : vector<2x128xf32>, vector<128x128xf32>, vector<2x128xf32> -> vector<2x128xf32>
    %c0_68 = arith.constant 0 : index
    %c0_69 = arith.constant 0 : index
    %66 = vector.load %arg7[%c0_68, %c0_69] : memref<1x128xf32, #tpu.memory_space<vmem>>, vector<1x128xf32>
    %67 = vector.broadcast %66 : vector<1x128xf32> to vector<2x128xf32>
    %68 = arith.addf %65, %67 : vector<2x128xf32>
    %c0_70 = arith.constant 0 : index
    %c0_71 = arith.constant 0 : index
    %c0_72 = arith.constant 0 : index
    %69 = vector.load %arg8[%c0_70, %c0_71, %c0_72] : memref<2x2x128xf32, #tpu.memory_space<vmem>>, vector<1x2x128xf32>
    %70 = vector.shape_cast %69 : vector<1x2x128xf32> to vector<2x128xf32>
    %71 = vector.shape_cast %68 : vector<2x128xf32> to vector<1x2x128xf32>
    tpu.vector_store %arg8[%c0_70, %c0_71, %c0_72], %71 {strides = array<i32>} : memref<2x2x128xf32, #tpu.memory_space<vmem>>, vector<1x2x128xf32>,
    %cst_73 = arith.constant 2.000000e-01 : f32
    %72 = vector.broadcast %cst_73 : f32 to vector<512x128xf32>
    %73 = arith.mulf %72, %17 : vector<512x128xf32>
    %74 = arith.addf %73, %5 : vector<512x128xf32>
    %cst_74 = arith.constant 1.000000e+00 : f32
    %75 = vector.broadcast %cst_74 : f32 to vector<512x128xf32>
    %76 = arith.mulf %21, %75 : vector<512x128xf32>
    %77 = arith.subf %74, %76 : vector<512x128xf32>
    %cst_75 = arith.constant 1.000000e+00 : f32
    %78 = vector.broadcast %cst_75 : f32 to vector<512x128xf32>
    %79 = arith.cmpf ogt, %77, %78 : vector<512x128xf32>
    %80 = arith.extui %79 : vector<512x128xi1> to vector<512x128xi32>
    %81 = arith.sitofp %80 : vector<512x128xi32> to vector<512x128xf32>
    %82 = vector.shape_cast %81 : vector<512x128xf32> to vector<2x16x16x128xf32>
    %83 = vector.extract_strided_slice %82 {offsets = [0, 0, 0, 0], sizes = [2, 16, 16, 8], strides = [1, 1, 1, 1]} : vector<2x16x16x128xf32> to vector<2x16x16x8xf32>
    %c0_76 = arith.constant 0 : index
    %c1_77 = arith.constant 1 : index
    %c1_78 = arith.constant 1 : index
    %c0_79 = arith.constant 0 : index
    %84 = vector.load %arg9[%c0_76, %c1_77, %c1_78, %c0_79] : memref<2x18x18x8xf32, #tpu.memory_space<vmem>>, vector<2x16x16x8xf32>
    tpu.vector_store %arg9[%c0_76, %c1_77, %c1_78, %c0_79], %83 {strides = array<i32>} : memref<2x18x18x8xf32, #tpu.memory_space<vmem>>, vector<2x16x16x8xf32>,
    %c0_80 = arith.constant 0 : index
    %c0_81 = arith.constant 0 : index
    %c0_82 = arith.constant 0 : index
    %c0_83 = arith.constant 0 : index
    %85 = vector.load %arg9[%c0_80, %c0_81, %c0_82, %c0_83] : memref<2x18x18x8xf32, #tpu.memory_space<vmem>>, vector<2x16x16x8xf32>
    %86 = vector.shape_cast %85 : vector<2x16x16x8xf32> to vector<512x8xf32>
    %c0_84 = arith.constant 0 : index
    %c0_85 = arith.constant 0 : index
    %c1_86 = arith.constant 1 : index
    %c0_87 = arith.constant 0 : index
    %87 = vector.load %arg9[%c0_84, %c0_85, %c1_86, %c0_87] : memref<2x18x18x8xf32, #tpu.memory_space<vmem>>, vector<2x16x16x8xf32>
    %88 = vector.shape_cast %87 : vector<2x16x16x8xf32> to vector<512x8xf32>
    %c0_88 = arith.constant 0 : index
    %c0_89 = arith.constant 0 : index
    %c2_90 = arith.constant 2 : index
    %c0_91 = arith.constant 0 : index
    %89 = vector.load %arg9[%c0_88, %c0_89, %c2_90, %c0_91] : memref<2x18x18x8xf32, #tpu.memory_space<vmem>>, vector<2x16x16x8xf32>
    %90 = vector.shape_cast %89 : vector<2x16x16x8xf32> to vector<512x8xf32>
    %c0_92 = arith.constant 0 : index
    %c1_93 = arith.constant 1 : index
    %c0_94 = arith.constant 0 : index
    %c0_95 = arith.constant 0 : index
    %91 = vector.load %arg9[%c0_92, %c1_93, %c0_94, %c0_95] : memref<2x18x18x8xf32, #tpu.memory_space<vmem>>, vector<2x16x16x8xf32>
    %92 = vector.shape_cast %91 : vector<2x16x16x8xf32> to vector<512x8xf32>
    %c0_96 = arith.constant 0 : index
    %c1_97 = arith.constant 1 : index
    %c1_98 = arith.constant 1 : index
    %c0_99 = arith.constant 0 : index
    %93 = vector.load %arg9[%c0_96, %c1_97, %c1_98, %c0_99] : memref<2x18x18x8xf32, #tpu.memory_space<vmem>>, vector<2x16x16x8xf32>
    %94 = vector.shape_cast %93 : vector<2x16x16x8xf32> to vector<512x8xf32>
    %c0_100 = arith.constant 0 : index
    %c1_101 = arith.constant 1 : index
    %c2_102 = arith.constant 2 : index
    %c0_103 = arith.constant 0 : index
    %95 = vector.load %arg9[%c0_100, %c1_101, %c2_102, %c0_103] : memref<2x18x18x8xf32, #tpu.memory_space<vmem>>, vector<2x16x16x8xf32>
    %96 = vector.shape_cast %95 : vector<2x16x16x8xf32> to vector<512x8xf32>
    %c0_104 = arith.constant 0 : index
    %c2_105 = arith.constant 2 : index
    %c0_106 = arith.constant 0 : index
    %c0_107 = arith.constant 0 : index
    %97 = vector.load %arg9[%c0_104, %c2_105, %c0_106, %c0_107] : memref<2x18x18x8xf32, #tpu.memory_space<vmem>>, vector<2x16x16x8xf32>
    %98 = vector.shape_cast %97 : vector<2x16x16x8xf32> to vector<512x8xf32>
    %c0_108 = arith.constant 0 : index
    %c2_109 = arith.constant 2 : index
    %c1_110 = arith.constant 1 : index
    %c0_111 = arith.constant 0 : index
    %99 = vector.load %arg9[%c0_108, %c2_109, %c1_110, %c0_111] : memref<2x18x18x8xf32, #tpu.memory_space<vmem>>, vector<2x16x16x8xf32>
    %100 = vector.shape_cast %99 : vector<2x16x16x8xf32> to vector<512x8xf32>
    %c0_112 = arith.constant 0 : index
    %c2_113 = arith.constant 2 : index
    %c2_114 = arith.constant 2 : index
    %c0_115 = arith.constant 0 : index
    %101 = vector.load %arg9[%c0_112, %c2_113, %c2_114, %c0_115] : memref<2x18x18x8xf32, #tpu.memory_space<vmem>>, vector<2x16x16x8xf32>
    %102 = vector.shape_cast %101 : vector<2x16x16x8xf32> to vector<512x8xf32>
    %103 = tpu.concatenate %86, %88, %90, %92, %94, %96, %98, %100, %102 in 1 : vector<512x8xf32>, vector<512x8xf32>, vector<512x8xf32>, vector<512x8xf32>, vector<512x8xf32>, vector<512x8xf32>, vector<512x8xf32>, vector<512x8xf32>, vector<512x8xf32> -> vector<512x72xf32>
    %104 = arith.truncf %103 : vector<512x72xf32> to vector<512x72xbf16>
    %c0_116 = arith.constant 0 : index
    %c0_117 = arith.constant 0 : index
    %105 = vector.load %arg3[%c0_116, %c0_117] : memref<72x128xbf16, #tpu.memory_space<vmem>>, vector<72x128xbf16>
    %cst_118 = arith.constant dense<0.000000e+00> : vector<512x128xf32>
    %106 = tpu.matmul %104, %105, %cst_118 {dimension_numbers = #tpu.dot_dimension_numbers<[1], [0], [0], [1], [0, 0, 1, 1], [], []>} : vector<512x72xbf16>, vector<72x128xbf16>, vector<512x128xf32> -> vector<512x128xf32>
    %c0_119 = arith.constant 0 : index
    %c0_120 = arith.constant 0 : index
    %107 = vector.load %arg6[%c0_119, %c0_120] : memref<1x128xf32, #tpu.memory_space<vmem>>, vector<1x128xf32>
    %108 = vector.broadcast %107 : vector<1x128xf32> to vector<512x128xf32>
    %109 = arith.addf %106, %108 : vector<512x128xf32>
    %cst_121 = arith.constant 2.000000e-01 : f32
    %110 = vector.broadcast %cst_121 : f32 to vector<512x128xf32>
    %111 = arith.mulf %110, %55 : vector<512x128xf32>
    %112 = arith.addf %111, %109 : vector<512x128xf32>
    %cst_122 = arith.constant 1.000000e+00 : f32
    %113 = vector.broadcast %cst_122 : f32 to vector<512x128xf32>
    %114 = arith.mulf %59, %113 : vector<512x128xf32>
    %115 = arith.subf %112, %114 : vector<512x128xf32>
    %cst_123 = arith.constant 1.000000e+00 : f32
    %116 = vector.broadcast %cst_123 : f32 to vector<512x128xf32>
    %117 = arith.cmpf ogt, %115, %116 : vector<512x128xf32>
    %118 = arith.extui %117 : vector<512x128xi1> to vector<512x128xi32>
    %119 = arith.sitofp %118 : vector<512x128xi32> to vector<512x128xf32>
    %120 = vector.shape_cast %119 : vector<512x128xf32> to vector<2x256x128xf32>
    %cst_124 = arith.constant dense<0.000000e+00> : vector<2x128xf32>
    %121 = vector.multi_reduction <add>, %120, %cst_124 [1] : vector<2x256x128xf32> to vector<2x128xf32>
    %cst_125 = arith.constant 2.560000e+02 : f32
    %122 = vector.broadcast %cst_125 : f32 to vector<2x128xf32>
    %123 = arith.divf %121, %122 : vector<2x128xf32>
    %c0_126 = arith.constant 0 : index
    %c0_127 = arith.constant 0 : index
    %124 = vector.load %arg4[%c0_126, %c0_127] : memref<128x128xf32, #tpu.memory_space<vmem>>, vector<128x128xf32>
    %cst_128 = arith.constant dense<0.000000e+00> : vector<2x128xf32>
    %125 = tpu.matmul %123, %124, %cst_128 {dimension_numbers = #tpu.dot_dimension_numbers<[1], [0], [0], [1], [0, 0, 1, 1], [], []>} : vector<2x128xf32>, vector<128x128xf32>, vector<2x128xf32> -> vector<2x128xf32>
    %c0_129 = arith.constant 0 : index
    %c0_130 = arith.constant 0 : index
    %126 = vector.load %arg7[%c0_129, %c0_130] : memref<1x128xf32, #tpu.memory_space<vmem>>, vector<1x128xf32>
    %127 = vector.broadcast %126 : vector<1x128xf32> to vector<2x128xf32>
    %128 = arith.addf %125, %127 : vector<2x128xf32>
    %c1_131 = arith.constant 1 : index
    %c0_132 = arith.constant 0 : index
    %c0_133 = arith.constant 0 : index
    %129 = vector.load %arg8[%c1_131, %c0_132, %c0_133] : memref<2x2x128xf32, #tpu.memory_space<vmem>>, vector<1x2x128xf32>
    %130 = vector.shape_cast %129 : vector<1x2x128xf32> to vector<2x128xf32>
    %131 = vector.shape_cast %128 : vector<2x128xf32> to vector<1x2x128xf32>
    tpu.vector_store %arg8[%c1_131, %c0_132, %c0_133], %131 {strides = array<i32>} : memref<2x2x128xf32, #tpu.memory_space<vmem>>, vector<1x2x128xf32>,
    return
  }
  func.func @transform_0(%arg0: i32) -> (i32, i32) {
    %c0_i32 = arith.constant 0 : i32
    %c0_i32_0 = arith.constant 0 : i32
    %c0_i32_1 = arith.constant 0 : i32
    return %c0_i32, %c0_i32_0 : i32, i32
  }
  func.func @transform_1(%arg0: i32) -> (i32, i32) {
    %c0_i32 = arith.constant 0 : i32
    %c0_i32_0 = arith.constant 0 : i32
    %c0_i32_1 = arith.constant 0 : i32
    return %c0_i32, %c0_i32_0 : i32, i32
  }
  func.func @transform_2(%arg0: i32) -> (i32, i32) {
    %c0_i32 = arith.constant 0 : i32
    %c0_i32_0 = arith.constant 0 : i32
    %c0_i32_1 = arith.constant 0 : i32
    return %c0_i32, %c0_i32_0 : i32, i32
  }
  func.func @transform_3(%arg0: i32) -> (i32, i32) {
    %c0_i32 = arith.constant 0 : i32
    %c0_i32_0 = arith.constant 0 : i32
    %c0_i32_1 = arith.constant 0 : i32
    return %c0_i32, %c0_i32_0 : i32, i32
  }
  func.func @transform_4(%arg0: i32) -> (i32, i32) {
    %c0_i32 = arith.constant 0 : i32
    %c0_i32_0 = arith.constant 0 : i32
    %c0_i32_1 = arith.constant 0 : i32
    return %c0_i32, %c0_i32_0 : i32, i32
  }
  func.func @transform_5(%arg0: i32) -> (i32, i32) {
    %c0_i32 = arith.constant 0 : i32
    %c0_i32_0 = arith.constant 0 : i32
    %c0_i32_1 = arith.constant 0 : i32
    return %c0_i32, %c0_i32_0 : i32, i32
  }
  func.func @transform_6(%arg0: i32) -> (i32, i32) {
    %c0_i32 = arith.constant 0 : i32
    %c0_i32_0 = arith.constant 0 : i32
    %c0_i32_1 = arith.constant 0 : i32
    return %c0_i32, %c0_i32_0 : i32, i32
  }
  func.func @transform_7(%arg0: i32) -> (i32, i32, i32) {
    %c0_i32 = arith.constant 0 : i32
    %c0_i32_0 = arith.constant 0 : i32
    %c0_i32_1 = arith.constant 0 : i32
    %c0_i32_2 = arith.constant 0 : i32
    return %c0_i32, %c0_i32_0, %c0_i32_1 : i32, i32, i32
  }
}

</mosaic_0001>

<llo_original>
// kernel: module_snn_forward.1
$region0: #{module_snn_forward.1}
  #allocation0 [shape = 'u32[]', space=smem, size = 0x4, offset = 0x4, fixed_abs, tag = 'smem constant byte address 0x4 - core index']
  #allocation1 [shape = 'u32[144,128]{1,0:T(1,128)}', space=vmem, size = 0x12000, scoped, tag = 'internal scratch']
  #allocation2 [shape = 'f32[2,18,18,8]{3,2,1,0:T(8,128)}', space=vmem, size = 0x6c000, scoped, tag = 'scratch operand']
  %s0 = inlined_call_operand.vmem [shape: bf16[512,128], index: 0, kind: input, shape index: {}]
  %s1 = inlined_call_operand.vmem [shape: bf16[128,128], index: 1, kind: input, shape index: {}]
  %s2 = inlined_call_operand.vmem [shape: bf16[72,128], index: 2, kind: input, shape index: {}]
  %s3 = inlined_call_operand.vmem [shape: f32[128,128], index: 3, kind: input, shape index: {}]
  %s4 = inlined_call_operand.vmem [shape: f32[1,128], index: 4, kind: input, shape index: {}]
  %s5 = inlined_call_operand.vmem [shape: f32[1,128], index: 5, kind: input, shape index: {}]
  %s6 = inlined_call_operand.vmem [shape: f32[1,128], index: 6, kind: input, shape index: {}]
  %s7 = inlined_call_operand.hbm [shape: f32[2,2,128], index: 7, kind: output, shape index: {}]
  %s8 = sld [smem:[#allocation0]]
  $region38: #{module_snn_forward.1} parent=0
    _
  %s10 = ssub.s32 1, %s8
  %s11 = scalar_select 0, %s10, %s8
  $region1: #{module_snn_forward.1} parent=0
    #allocation3 [shape = 'u8[2048]{0}', space=vmem, size = 0x800, scoped, tag = 'output window, operand 0, single buffered']
    #allocation4 [shape = 's32[1]{0}', space=sflag, size = 0x4, scoped, tag = 'scoped memory for module_snn_forward.1']
    %12 = vsyncpa [#allocation4], 0
    // Predicated region
    $region2: #{module_snn_forward.1} parent=1 // pred_check
      _
    $region3: #{module_snn_forward.1} parent=1 // pred_check_branch
      %14 = sbr.rel (0) target = $region5
    $region4: #{module_snn_forward.1} parent=1 // pred_region
      _
    $region5: #{module_snn_forward.1} parent=1 // pred_fallthru
      _
    // Predicated region
    $region6: #{module_snn_forward.1} parent=1 // pred_check
      _
    $region7: #{module_snn_forward.1} parent=1 // pred_check_branch
      %16 = sbr.rel (0) target = $region9
    $region8: #{module_snn_forward.1} parent=1 // pred_region
      _
    $region9: #{module_snn_forward.1} parent=1 // pred_fallthru
      _
    // Predicated region
    $region10: #{module_snn_forward.1} parent=1 // pred_check
      _
    $region11: #{module_snn_forward.1} parent=1 // pred_check_branch
      %18 = sbr.rel (0) target = $region13
    $region12: #{module_snn_forward.1} parent=1 // pred_region
      _
    $region13: #{module_snn_forward.1} parent=1 // pred_fallthru
      _
    // Predicated region
    $region14: #{module_snn_forward.1} parent=1 // pred_check
      _
    $region15: #{module_snn_forward.1} parent=1 // pred_check_branch
      %20 = sbr.rel (0) target = $region17
    $region16: #{module_snn_forward.1} parent=1 // pred_region
      _
    $region17: #{module_snn_forward.1} parent=1 // pred_fallthru
      _
    // Predicated region
    $region18: #{module_snn_forward.1} parent=1 // pred_check
      _
    $region19: #{module_snn_forward.1} parent=1 // pred_check_branch
      %22 = sbr.rel (0) target = $region21
    $region20: #{module_snn_forward.1} parent=1 // pred_region
      _
    $region21: #{module_snn_forward.1} parent=1 // pred_fallthru
      _
    // Predicated region
    $region22: #{module_snn_forward.1} parent=1 // pred_check
      _
    $region23: #{module_snn_forward.1} parent=1 // pred_check_branch
      %24 = sbr.rel (0) target = $region25
    $region24: #{module_snn_forward.1} parent=1 // pred_region
      _
    $region25: #{module_snn_forward.1} parent=1 // pred_fallthru
      _
    // Predicated region
    $region26: #{module_snn_forward.1} parent=1 // pred_check
      _
    $region27: #{module_snn_forward.1} parent=1 // pred_check_branch
      %26 = sbr.rel (0) target = $region29
    $region28: #{module_snn_forward.1} parent=1 // pred_region
      _
    $region29: #{module_snn_forward.1} parent=1 // pred_fallthru
      _
    %v28 = vld [vmem:[%s0] sm:$0xf]
    %v29 = vld [vmem:[%s0 + $0x4] sm:$0xf]
    %v30 = vld [vmem:[%s0 + $0x8] sm:$0xf]
    %v31 = vld [vmem:[%s0 + $0xc] sm:$0xf]
    %v32 = vld [vmem:[%s0 + $0x10] sm:$0xf]
    %v33 = vld [vmem:[%s0 + $0x14] sm:$0xf]
    %v34 = vld [vmem:[%s0 + $0x18] sm:$0xf]
    %v35 = vld [vmem:[%s0 + $0x1c] sm:$0xf]
    %v36 = vld [vmem:[%s0 + $0x20] sm:$0xf]
    %v37 = vld [vmem:[%s0 + $0x24] sm:$0xf]
    %v38 = vld [vmem:[%s0 + $0x28] sm:$0xf]
    %v39 = vld [vmem:[%s0 + $0x2c] sm:$0xf]
    %v40 = vld [vmem:[%s0 + $0x30] sm:$0xf]
    %v41 = vld [vmem:[%s0 + $0x34] sm:$0xf]
    %v42 = vld [vmem:[%s0 + $0x38] sm:$0xf]
    %v43 = vld [vmem:[%s0 + $0x3c] sm:$0xf]
    %v44 = vld [vmem:[%s0 + $0x40] sm:$0xf]
    %v45 = vld [vmem:[%s0 + $0x44] sm:$0xf]
    %v46 = vld [vmem:[%s0 + $0x48] sm:$0xf]
    %v47 = vld [vmem:[%s0 + $0x4c] sm:$0xf]
    %v48 = vld [vmem:[%s0 + $0x50] sm:$0xf]
    %v49 = vld [vmem:[%s0 + $0x54] sm:$0xf]
    %v50 = vld [vmem:[%s0 + $0x58] sm:$0xf]
    %v51 = vld [vmem:[%s0 + $0x5c] sm:$0xf]
    %v52 = vld [vmem:[%s0 + $0x60] sm:$0xf]
    %v53 = vld [vmem:[%s0 + $0x64] sm:$0xf]
    %v54 = vld [vmem:[%s0 + $0x68] sm:$0xf]
    %v55 = vld [vmem:[%s0 + $0x6c] sm:$0xf]
    %v56 = vld [vmem:[%s0 + $0x70] sm:$0xf]
    %v57 = vld [vmem:[%s0 + $0x74] sm:$0xf]
    %v58 = vld [vmem:[%s0 + $0x78] sm:$0xf]
    %v59 = vld [vmem:[%s0 + $0x7c] sm:$0xf]
    %v60 = vld [vmem:[%s0 + $0x80] sm:$0xf]
    %v61 = vld [vmem:[%s0 + $0x84] sm:$0xf]
    %v62 = vld [vmem:[%s0 + $0x88] sm:$0xf]
    %v63 = vld [vmem:[%s0 + $0x8c] sm:$0xf]
    %v64 = vld [vmem:[%s0 + $0x90] sm:$0xf]
    %v65 = vld [vmem:[%s0 + $0x94] sm:$0xf]
    %v66 = vld [vmem:[%s0 + $0x98] sm:$0xf]
    %v67 = vld [vmem:[%s0 + $0x9c] sm:$0xf]
    %v68 = vld [vmem:[%s0 + $0xa0] sm:$0xf]
    %v69 = vld [vmem:[%s0 + $0xa4] sm:$0xf]
    %v70 = vld [vmem:[%s0 + $0xa8] sm:$0xf]
    %v71 = vld [vmem:[%s0 + $0xac] sm:$0xf]
    %v72 = vld [vmem:[%s0 + $0xb0] sm:$0xf]
    %v73 = vld [vmem:[%s0 + $0xb4] sm:$0xf]
    %v74 = vld [vmem:[%s0 + $0xb8] sm:$0xf]
    %v75 = vld [vmem:[%s0 + $0xbc] sm:$0xf]
    %v76 = vld [vmem:[%s0 + $0xc0] sm:$0xf]
    %v77 = vld [vmem:[%s0 + $0xc4] sm:$0xf]
    %v78 = vld [vmem:[%s0 + $0xc8] sm:$0xf]
    %v79 = vld [vmem:[%s0 + $0xcc] sm:$0xf]
    %v80 = vld [vmem:[%s0 + $0xd0] sm:$0xf]
    %v81 = vld [vmem:[%s0 + $0xd4] sm:$0xf]
    %v82 = vld [vmem:[%s0 + $0xd8] sm:$0xf]
    %v83 = vld [vmem:[%s0 + $0xdc] sm:$0xf]
    %v84 = vld [vmem:[%s0 + $0xe0] sm:$0xf]
    %v85 = vld [vmem:[%s0 + $0xe4] sm:$0xf]
    %v86 = vld [vmem:[%s0 + $0xe8] sm:$0xf]
    %v87 = vld [vmem:[%s0 + $0xec] sm:$0xf]
    %v88 = vld [vmem:[%s0 + $0xf0] sm:$0xf]
    %v89 = vld [vmem:[%s0 + $0xf4] sm:$0xf]
    %v90 = vld [vmem:[%s0 + $0xf8] sm:$0xf]
    %v91 = vld [vmem:[%s0 + $0xfc] sm:$0xf]
    %v92 = vld [vmem:[%s1] sm:$0xf]
    %v93 = vld [vmem:[%s1 + $0x4] sm:$0xf]
    %v94 = vld [vmem:[%s1 + $0x8] sm:$0xf]
    %v95 = vld [vmem:[%s1 + $0xc] sm:$0xf]
    %v96 = vld [vmem:[%s1 + $0x10] sm:$0xf]
    %v97 = vld [vmem:[%s1 + $0x14] sm:$0xf]
    %v98 = vld [vmem:[%s1 + $0x18] sm:$0xf]
    %v99 = vld [vmem:[%s1 + $0x1c] sm:$0xf]
    %v100 = vld [vmem:[%s1 + $0x20] sm:$0xf]
    %v101 = vld [vmem:[%s1 + $0x24] sm:$0xf]
    %v102 = vld [vmem:[%s1 + $0x28] sm:$0xf]
    %v103 = vld [vmem:[%s1 + $0x2c] sm:$0xf]
    %v104 = vld [vmem:[%s1 + $0x30] sm:$0xf]
    %v105 = vld [vmem:[%s1 + $0x34] sm:$0xf]
    %v106 = vld [vmem:[%s1 + $0x38] sm:$0xf]
    %v107 = vld [vmem:[%s1 + $0x3c] sm:$0xf]
    %v108 = vld [vmem:[%s4] sm:$0x1]
    %v110 = vlaneseq
    %v111 = vshrl.u32 %v110, 7
    %v112 = vsub.s32 0, %v111
    %v113 = vrot.slane %v108, %v112
    %v179 = vunpack.c.l.b16 %v28
    %v180 = vunpack.c.l.b16 %v29
    %v181 = vunpack.c.l.b16 %v30
    %v182 = vunpack.c.l.b16 %v31
    %v183 = vunpack.c.l.b16 %v32
    %v184 = vunpack.c.l.b16 %v33
    %v185 = vunpack.c.l.b16 %v34
    %v186 = vunpack.c.l.b16 %v35
    %v187 = vunpack.c.l.b16 %v36
    %v188 = vunpack.c.l.b16 %v37
    %v189 = vunpack.c.l.b16 %v38
    %v190 = vunpack.c.l.b16 %v39
    %v191 = vunpack.c.l.b16 %v40
    %v192 = vunpack.c.l.b16 %v41
    %v193 = vunpack.c.l.b16 %v42
    %v194 = vunpack.c.l.b16 %v43
    %v195 = vunpack.c.l.b16 %v44
    %v196 = vunpack.c.l.b16 %v45
    %v197 = vunpack.c.l.b16 %v46
    %v198 = vunpack.c.l.b16 %v47
    %v199 = vunpack.c.l.b16 %v48
    %v200 = vunpack.c.l.b16 %v49
    %v201 = vunpack.c.l.b16 %v50
    %v202 = vunpack.c.l.b16 %v51
    %v203 = vunpack.c.l.b16 %v52
    %v204 = vunpack.c.l.b16 %v53
    %v205 = vunpack.c.l.b16 %v54
    %v206 = vunpack.c.l.b16 %v55
    %v207 = vunpack.c.l.b16 %v56
    %v208 = vunpack.c.l.b16 %v57
    %v209 = vunpack.c.l.b16 %v58
    %v210 = vunpack.c.l.b16 %v59
    %v211 = vunpack.c.l.b16 %v60
    %v212 = vunpack.c.l.b16 %v61
    %v213 = vunpack.c.l.b16 %v62
    %v214 = vunpack.c.l.b16 %v63
    %v215 = vunpack.c.l.b16 %v64
    %v216 = vunpack.c.l.b16 %v65
    %v217 = vunpack.c.l.b16 %v66
    %v218 = vunpack.c.l.b16 %v67
    %v219 = vunpack.c.l.b16 %v68
    %v220 = vunpack.c.l.b16 %v69
    %v221 = vunpack.c.l.b16 %v70
    %v222 = vunpack.c.l.b16 %v71
    %v223 = vunpack.c.l.b16 %v72
    %v224 = vunpack.c.l.b16 %v73
    %v225 = vunpack.c.l.b16 %v74
    %v226 = vunpack.c.l.b16 %v75
    %v227 = vunpack.c.l.b16 %v76
    %v228 = vunpack.c.l.b16 %v77
    %v229 = vunpack.c.l.b16 %v78
    %v230 = vunpack.c.l.b16 %v79
    %v231 = vunpack.c.l.b16 %v80
    %v232 = vunpack.c.l.b16 %v81
    %v233 = vunpack.c.l.b16 %v82
    %v234 = vunpack.c.l.b16 %v83
    %v235 = vunpack.c.l.b16 %v84
    %v236 = vunpack.c.l.b16 %v85
    %v237 = vunpack.c.l.b16 %v86
    %v238 = vunpack.c.l.b16 %v87
    %v239 = vunpack.c.l.b16 %v88
    %v240 = vunpack.c.l.b16 %v89
    %v241 = vunpack.c.l.b16 %v90
    %v242 = vunpack.c.l.b16 %v91
    %v243 = vpack.c.b16 %v180, %v179
    %v244 = vpack.c.b16 %v182, %v181
    %v245 = vpack.c.b16 %v184, %v183
    %v246 = vpack.c.b16 %v186, %v185
    %v247 = vpack.c.b16 %v188, %v187
    %v248 = vpack.c.b16 %v190, %v189
    %v249 = vpack.c.b16 %v192, %v191
    %v250 = vpack.c.b16 %v194, %v193
    %v251 = vpack.c.b16 %v196, %v195
    %v252 = vpack.c.b16 %v198, %v197
    %v253 = vpack.c.b16 %v200, %v199
    %v254 = vpack.c.b16 %v202, %v201
    %v255 = vpack.c.b16 %v204, %v203
    %v256 = vpack.c.b16 %v206, %v205
    %v257 = vpack.c.b16 %v208, %v207
    %v258 = vpack.c.b16 %v210, %v209
    %v259 = vpack.c.b16 %v212, %v211
    %v260 = vpack.c.b16 %v214, %v213
    %v261 = vpack.c.b16 %v216, %v215
    %v262 = vpack.c.b16 %v218, %v217
    %v263 = vpack.c.b16 %v220, %v219
    %v264 = vpack.c.b16 %v222, %v221
    %v265 = vpack.c.b16 %v224, %v223
    %v266 = vpack.c.b16 %v226, %v225
    %v267 = vpack.c.b16 %v228, %v227
    %v268 = vpack.c.b16 %v230, %v229
    %v269 = vpack.c.b16 %v232, %v231
    %v270 = vpack.c.b16 %v234, %v233
    %v271 = vpack.c.b16 %v236, %v235
    %v272 = vpack.c.b16 %v238, %v237
    %v273 = vpack.c.b16 %v240, %v239
    %v274 = vpack.c.b16 %v242, %v241
    %v323 = vunpack.c.l.b16 %v92
    %v324 = vunpack.c.l.b16 %v93
    %v325 = vunpack.c.l.b16 %v94
    %v326 = vunpack.c.l.b16 %v95
    %v327 = vunpack.c.l.b16 %v96
    %v328 = vunpack.c.l.b16 %v97
    %v329 = vunpack.c.l.b16 %v98
    %v330 = vunpack.c.l.b16 %v99
    %v331 = vunpack.c.l.b16 %v100
    %v332 = vunpack.c.l.b16 %v101
    %v333 = vunpack.c.l.b16 %v102
    %v334 = vunpack.c.l.b16 %v103
    %v335 = vunpack.c.l.b16 %v104
    %v336 = vunpack.c.l.b16 %v105
    %v337 = vunpack.c.l.b16 %v106
    %v338 = vunpack.c.l.b16 %v107
    %v339 = vpack.c.b16 %v324, %v323
    %v340 = vpack.c.b16 %v326, %v325
    %v341 = vpack.c.b16 %v328, %v327
    %v342 = vpack.c.b16 %v330, %v329
    %v343 = vpack.c.b16 %v332, %v331
    %v344 = vpack.c.b16 %v334, %v333
    %v345 = vpack.c.b16 %v336, %v335
    %v346 = vpack.c.b16 %v338, %v337
    %355 = vmatprep.subr.bf16.mxu0 0
    %356 = vmatpush1.bf16.msra.mxu0 %v339
    %357 = vmatprep.subr.bf16.mxu0 0
    %358 = vmatpush1.bf16.msra.mxu0 %v340
    %359 = vmatprep.subr.bf16.mxu0 0
    %360 = vmatpush1.bf16.msra.mxu0 %v341
    %361 = vmatprep.subr.bf16.mxu0 0
    %362 = vmatpush1.bf16.msra.mxu0 %v342
    %363 = vmatprep.subr.bf16.mxu0 0
    %364 = vmatpush1.bf16.msra.mxu0 %v343
    %365 = vmatprep.subr.bf16.mxu0 0
    %366 = vmatpush1.bf16.msra.mxu0 %v344
    %367 = vmatprep.subr.bf16.mxu0 0
    %368 = vmatpush1.bf16.msra.mxu0 %v345
    %369 = vmatprep.subr.bf16.mxu0 0
    %370 = vmatpush1.bf16.msra.mxu0 %v346
    %371 = vmatprep.subr.bf16.mxu0 0
    %372 = vmatpush1.bf16.msra.mxu0 0
    %373 = vmatprep.subr.bf16.mxu0 0
    %374 = vmatpush1.bf16.msra.mxu0 0
    %375 = vmatprep.subr.bf16.mxu0 0
    %376 = vmatpush1.bf16.msra.mxu0 0
    %377 = vmatprep.subr.bf16.mxu0 0
    %378 = vmatpush1.bf16.msra.mxu0 0
    %379 = vmatprep.subr.bf16.mxu0 0
    %380 = vmatpush1.bf16.msra.mxu0 0
    %381 = vmatprep.subr.bf16.mxu0 0
    %382 = vmatpush1.bf16.msra.mxu0 0
    %383 = vmatprep.subr.bf16.mxu0 0
    %384 = vmatpush1.bf16.msra.mxu0 0
    %385 = vmatprep.subr.bf16.mxu0 0
    %386 = vmatpush1.bf16.msra.mxu0 0
    %387 = vmatprep.mubr.bf16.mxu0 0
    %388 = vmatmul.mubr.bf16.gmra.mrb[0].mxu0 %v243
    %v389 = vpop.f32.mrb[0].mxu0
    %v390 = vadd.f32 %v113, %v389
    %v391 = vpop.f32.mrb[0].mxu0
    %v392 = vpop.f32.mrb[0].mxu0
    %v393 = vadd.f32 %v113, %v392
    %v394 = vpop.f32.mrb[0].mxu0
    %395 = vmatprep.mubr.bf16.mxu0 0
    %396 = vmatmul.mubr.bf16.gmra.mrb[0].mxu0 %v244
    %v397 = vpop.f32.mrb[0].mxu0
    %v398 = vadd.f32 %v113, %v397
    %v399 = vpop.f32.mrb[0].mxu0
    %v400 = vpop.f32.mrb[0].mxu0
    %v401 = vadd.f32 %v113, %v400
    %v402 = vpop.f32.mrb[0].mxu0
    %403 = vmatprep.mubr.bf16.mxu0 0
    %404 = vmatmul.mubr.bf16.gmra.mrb[0].mxu0 %v245
    %v405 = vpop.f32.mrb[0].mxu0
    %v406 = vadd.f32 %v113, %v405
    %v407 = vpop.f32.mrb[0].mxu0
    %v408 = vpop.f32.mrb[0].mxu0
    %v409 = vadd.f32 %v113, %v408
    %v410 = vpop.f32.mrb[0].mxu0
    %411 = vmatprep.mubr.bf16.mxu0 0
    %412 = vmatmul.mubr.bf16.gmra.mrb[0].mxu0 %v246
    %v413 = vpop.f32.mrb[0].mxu0
    %v414 = vadd.f32 %v113, %v413
    %v415 = vpop.f32.mrb[0].mxu0
    %v416 = vpop.f32.mrb[0].mxu0
    %v417 = vadd.f32 %v113, %v416
    %v418 = vpop.f32.mrb[0].mxu0
    %419 = vmatprep.mubr.bf16.mxu0 0
    %420 = vmatmul.mubr.bf16.gmra.mrb[0].mxu0 %v247
    %v421 = vpop.f32.mrb[0].mxu0
    %v422 = vadd.f32 %v113, %v421
    %v423 = vpop.f32.mrb[0].mxu0
    %v424 = vpop.f32.mrb[0].mxu0
    %v425 = vadd.f32 %v113, %v424
    %v426 = vpop.f32.mrb[0].mxu0
    %427 = vmatprep.mubr.bf16.mxu0 0
    %428 = vmatmul.mubr.bf16.gmra.mrb[0].mxu0 %v248
    %v429 = vpop.f32.mrb[0].mxu0
    %v430 = vadd.f32 %v113, %v429
    %v431 = vpop.f32.mrb[0].mxu0
    %v432 = vpop.f32.mrb[0].mxu0
    %v433 = vadd.f32 %v113, %v432
    %v434 = vpop.f32.mrb[0].mxu0
    %435 = vmatprep.mubr.bf16.mxu0 0
    %436 = vmatmul.mubr.bf16.gmra.mrb[0].mxu0 %v249
    %v437 = vpop.f32.mrb[0].mxu0
    %v438 = vadd.f32 %v113, %v437
    %v439 = vpop.f32.mrb[0].mxu0
    %v440 = vpop.f32.mrb[0].mxu0
    %v441 = vadd.f32 %v113, %v440
    %v442 = vpop.f32.mrb[0].mxu0
    %443 = vmatprep.mubr.bf16.mxu0 0
    %444 = vmatmul.mubr.bf16.gmra.mrb[0].mxu0 %v250
    %v445 = vpop.f32.mrb[0].mxu0
    %v446 = vadd.f32 %v113, %v445
    %v447 = vpop.f32.mrb[0].mxu0
    %v448 = vpop.f32.mrb[0].mxu0
    %v449 = vadd.f32 %v113, %v448
    %v450 = vpop.f32.mrb[0].mxu0
    %451 = vmatprep.mubr.bf16.mxu0 0
    %452 = vmatmul.mubr.bf16.gmra.mrb[0].mxu0 %v251
    %v453 = vpop.f32.mrb[0].mxu0
    %v454 = vadd.f32 %v113, %v453
    %v455 = vpop.f32.mrb[0].mxu0
    %v456 = vpop.f32.mrb[0].mxu0
    %v457 = vadd.f32 %v113, %v456
    %v458 = vpop.f32.mrb[0].mxu0
    %459 = vmatprep.mubr.bf16.mxu0 0
    %460 = vmatmul.mubr.bf16.gmra.mrb[0].mxu0 %v252
    %v461 = vpop.f32.mrb[0].mxu0
    %v462 = vadd.f32 %v113, %v461
    %v463 = vpop.f32.mrb[0].mxu0
    %v464 = vpop.f32.mrb[0].mxu0
    %v465 = vadd.f32 %v113, %v464
    %v466 = vpop.f32.mrb[0].mxu0
    %467 = vmatprep.mubr.bf16.mxu0 0
    %468 = vmatmul.mubr.bf16.gmra.mrb[0].mxu0 %v253
    %v469 = vpop.f32.mrb[0].mxu0
    %v470 = vadd.f32 %v113, %v469
    %v471 = vpop.f32.mrb[0].mxu0
    %v472 = vpop.f32.mrb[0].mxu0
    %v473 = vadd.f32 %v113, %v472
    %v474 = vpop.f32.mrb[0].mxu0
    %475 = vmatprep.mubr.bf16.mxu0 0
    %476 = vmatmul.mubr.bf16.gmra.mrb[0].mxu0 %v254
    %v477 = vpop.f32.mrb[0].mxu0
    %v478 = vadd.f32 %v113, %v477
    %v479 = vpop.f32.mrb[0].mxu0
    %v480 = vpop.f32.mrb[0].mxu0
    %v481 = vadd.f32 %v113, %v480
    %v482 = vpop.f32.mrb[0].mxu0
    %483 = vmatprep.mubr.bf16.mxu0 0
    %484 = vmatmul.mubr.bf16.gmra.mrb[0].mxu0 %v255
    %v485 = vpop.f32.mrb[0].mxu0
    %v486 = vadd.f32 %v113, %v485
    %v487 = vpop.f32.mrb[0].mxu0
    %v488 = vpop.f32.mrb[0].mxu0
    %v489 = vadd.f32 %v113, %v488
    %v490 = vpop.f32.mrb[0].mxu0
    %491 = vmatprep.mubr.bf16.mxu0 0
    %492 = vmatmul.mubr.bf16.gmra.mrb[0].mxu0 %v256
    %v493 = vpop.f32.mrb[0].mxu0
    %v494 = vadd.f32 %v113, %v493
    %v495 = vpop.f32.mrb[0].mxu0
    %v496 = vpop.f32.mrb[0].mxu0
    %v497 = vadd.f32 %v113, %v496
    %v498 = vpop.f32.mrb[0].mxu0
    %499 = vmatprep.mubr.bf16.mxu0 0
    %500 = vmatmul.mubr.bf16.gmra.mrb[0].mxu0 %v257
    %v501 = vpop.f32.mrb[0].mxu0
    %v502 = vadd.f32 %v113, %v501
    %v503 = vpop.f32.mrb[0].mxu0
    %v504 = vpop.f32.mrb[0].mxu0
    %v505 = vadd.f32 %v113, %v504
    %v506 = vpop.f32.mrb[0].mxu0
    %507 = vmatprep.mubr.bf16.mxu0 0
    %508 = vmatmul.mubr.bf16.gmra.mrb[0].mxu0 %v258
    %v509 = vpop.f32.mrb[0].mxu0
    %v510 = vadd.f32 %v113, %v509
    %v511 = vpop.f32.mrb[0].mxu0
    %v512 = vpop.f32.mrb[0].mxu0
    %v513 = vadd.f32 %v113, %v512
    %v514 = vpop.f32.mrb[0].mxu0
    %515 = vmatprep.mubr.bf16.mxu0 0
    %516 = vmatmul.mubr.bf16.gmra.mrb[0].mxu0 %v259
    %v517 = vpop.f32.mrb[0].mxu0
    %v518 = vadd.f32 %v113, %v517
    %v519 = vpop.f32.mrb[0].mxu0
    %v520 = vpop.f32.mrb[0].mxu0
    %v521 = vadd.f32 %v113, %v520
    %v522 = vpop.f32.mrb[0].mxu0
    %523 = vmatprep.mubr.bf16.mxu0 0
    %524 = vmatmul.mubr.bf16.gmra.mrb[0].mxu0 %v260
    %v525 = vpop.f32.mrb[0].mxu0
    %v526 = vadd.f32 %v113, %v525
    %v527 = vpop.f32.mrb[0].mxu0
    %v528 = vpop.f32.mrb[0].mxu0
    %v529 = vadd.f32 %v113, %v528
    %v530 = vpop.f32.mrb[0].mxu0
    %531 = vmatprep.mubr.bf16.mxu0 0
    %532 = vmatmul.mubr.bf16.gmra.mrb[0].mxu0 %v261
    %v533 = vpop.f32.mrb[0].mxu0
    %v534 = vadd.f32 %v113, %v533
    %v535 = vpop.f32.mrb[0].mxu0
    %v536 = vpop.f32.mrb[0].mxu0
    %v537 = vadd.f32 %v113, %v536
    %v538 = vpop.f32.mrb[0].mxu0
    %539 = vmatprep.mubr.bf16.mxu0 0
    %540 = vmatmul.mubr.bf16.gmra.mrb[0].mxu0 %v262
    %v541 = vpop.f32.mrb[0].mxu0
    %v542 = vadd.f32 %v113, %v541
    %v543 = vpop.f32.mrb[0].mxu0
    %v544 = vpop.f32.mrb[0].mxu0
    %v545 = vadd.f32 %v113, %v544
    %v546 = vpop.f32.mrb[0].mxu0
    %547 = vmatprep.mubr.bf16.mxu0 0
    %548 = vmatmul.mubr.bf16.gmra.mrb[0].mxu0 %v263
    %v549 = vpop.f32.mrb[0].mxu0
    %v550 = vadd.f32 %v113, %v549
    %v551 = vpop.f32.mrb[0].mxu0
    %v552 = vpop.f32.mrb[0].mxu0
    %v553 = vadd.f32 %v113, %v552
    %v554 = vpop.f32.mrb[0].mxu0
    %555 = vmatprep.mubr.bf16.mxu0 0
    %556 = vmatmul.mubr.bf16.gmra.mrb[0].mxu0 %v264
    %v557 = vpop.f32.mrb[0].mxu0
    %v558 = vadd.f32 %v113, %v557
    %v559 = vpop.f32.mrb[0].mxu0
    %v560 = vpop.f32.mrb[0].mxu0
    %v561 = vadd.f32 %v113, %v560
    %v562 = vpop.f32.mrb[0].mxu0
    %563 = vmatprep.mubr.bf16.mxu0 0
    %564 = vmatmul.mubr.bf16.gmra.mrb[0].mxu0 %v265
    %v565 = vpop.f32.mrb[0].mxu0
    %v566 = vadd.f32 %v113, %v565
    %v567 = vpop.f32.mrb[0].mxu0
    %v568 = vpop.f32.mrb[0].mxu0
    %v569 = vadd.f32 %v113, %v568
    %v570 = vpop.f32.mrb[0].mxu0
    %571 = vmatprep.mubr.bf16.mxu0 0
    %572 = vmatmul.mubr.bf16.gmra.mrb[0].mxu0 %v266
    %v573 = vpop.f32.mrb[0].mxu0
    %v574 = vadd.f32 %v113, %v573
    %v575 = vpop.f32.mrb[0].mxu0
    %v576 = vpop.f32.mrb[0].mxu0
    %v577 = vadd.f32 %v113, %v576
    %v578 = vpop.f32.mrb[0].mxu0
    %579 = vmatprep.mubr.bf16.mxu0 0
    %580 = vmatmul.mubr.bf16.gmra.mrb[0].mxu0 %v267
    %v581 = vpop.f32.mrb[0].mxu0
    %v582 = vadd.f32 %v113, %v581
    %v583 = vpop.f32.mrb[0].mxu0
    %v584 = vpop.f32.mrb[0].mxu0
    %v585 = vadd.f32 %v113, %v584
    %v586 = vpop.f32.mrb[0].mxu0
    %587 = vmatprep.mubr.bf16.mxu0 0
    %588 = vmatmul.mubr.bf16.gmra.mrb[0].mxu0 %v268
    %v589 = vpop.f32.mrb[0].mxu0
    %v590 = vadd.f32 %v113, %v589
    %v591 = vpop.f32.mrb[0].mxu0
    %v592 = vpop.f32.mrb[0].mxu0
    %v593 = vadd.f32 %v113, %v592
    %v594 = vpop.f32.mrb[0].mxu0
    %595 = vmatprep.mubr.bf16.mxu0 0
    %596 = vmatmul.mubr.bf16.gmra.mrb[0].mxu0 %v269
    %v597 = vpop.f32.mrb[0].mxu0
    %v598 = vadd.f32 %v113, %v597
    %v599 = vpop.f32.mrb[0].mxu0
    %v600 = vpop.f32.mrb[0].mxu0
    %v601 = vadd.f32 %v113, %v600
    %v602 = vpop.f32.mrb[0].mxu0
    %603 = vmatprep.mubr.bf16.mxu0 0
    %604 = vmatmul.mubr.bf16.gmra.mrb[0].mxu0 %v270
    %v605 = vpop.f32.mrb[0].mxu0
    %v606 = vadd.f32 %v113, %v605
    %v607 = vpop.f32.mrb[0].mxu0
    %v608 = vpop.f32.mrb[0].mxu0
    %v609 = vadd.f32 %v113, %v608
    %v610 = vpop.f32.mrb[0].mxu0
    %611 = vmatprep.mubr.bf16.mxu0 0
    %612 = vmatmul.mubr.bf16.gmra.mrb[0].mxu0 %v271
    %v613 = vpop.f32.mrb[0].mxu0
    %v614 = vadd.f32 %v113, %v613
    %v615 = vpop.f32.mrb[0].mxu0
    %v616 = vpop.f32.mrb[0].mxu0
    %v617 = vadd.f32 %v113, %v616
    %v618 = vpop.f32.mrb[0].mxu0
    %619 = vmatprep.mubr.bf16.mxu0 0
    %620 = vmatmul.mubr.bf16.gmra.mrb[0].mxu0 %v272
    %v621 = vpop.f32.mrb[0].mxu0
    %v622 = vadd.f32 %v113, %v621
    %v623 = vpop.f32.mrb[0].mxu0
    %v624 = vpop.f32.mrb[0].mxu0
    %v625 = vadd.f32 %v113, %v624
    %v626 = vpop.f32.mrb[0].mxu0
    %627 = vmatprep.mubr.bf16.mxu0 0
    %628 = vmatmul.mubr.bf16.gmra.mrb[0].mxu0 %v273
    %v629 = vpop.f32.mrb[0].mxu0
    %v630 = vadd.f32 %v113, %v629
    %v631 = vpop.f32.mrb[0].mxu0
    %v632 = vpop.f32.mrb[0].mxu0
    %v633 = vadd.f32 %v113, %v632
    %v634 = vpop.f32.mrb[0].mxu0
    %635 = vmatprep.mubr.bf16.mxu0 0
    %636 = vmatmul.mubr.bf16.gmra.mrb[0].mxu0 %v274
    %v637 = vpop.f32.mrb[0].mxu0
    %v638 = vadd.f32 %v113, %v637
    %v639 = vpop.f32.mrb[0].mxu0
    %v640 = vpop.f32.mrb[0].mxu0
    %v641 = vadd.f32 %v113, %v640
    %v642 = vpop.f32.mrb[0].mxu0
    %643 = vdwg.mxu0
    %vm644 = vcmask 64512
    %645 = vst.msk [vmem:[#allocation2] sm:$0xff] %vm644, 0.0
    %646 = vst.msk [vmem:[#allocation2 + $0x8] sm:$0xff] %vm644, 0.0
    %vm647 = vcmask 58368
    %648 = vst.msk [vmem:[#allocation2 + $0x10] sm:$0x3] %vm647, 0.0
    %649 = vst.msk [vmem:[#allocation2 + $0x18] sm:$0xff] %vm644, 0.0
    %650 = vst.msk [vmem:[#allocation2 + $0x20] sm:$0xff] %vm644, 0.0
    %651 = vst.msk [vmem:[#allocation2 + $0x28] sm:$0x3] %vm647, 0.0
    %652 = vst.msk [vmem:[#allocation2 + $0x30] sm:$0xff] %vm644, 0.0
    %653 = vst.msk [vmem:[#allocation2 + $0x38] sm:$0xff] %vm644, 0.0
    %654 = vst.msk [vmem:[#allocation2 + $0x40] sm:$0x3] %vm647, 0.0
    %655 = vst.msk [vmem:[#allocation2 + $0x48] sm:$0xff] %vm644, 0.0
    %656 = vst.msk [vmem:[#allocation2 + $0x50] sm:$0xff] %vm644, 0.0
    %657 = vst.msk [vmem:[#allocation2 + $0x58] sm:$0x3] %vm647, 0.0
    %658 = vst.msk [vmem:[#allocation2 + $0x60] sm:$0xff] %vm644, 0.0
    %659 = vst.msk [vmem:[#allocation2 + $0x68] sm:$0xff] %vm644, 0.0
    %660 = vst.msk [vmem:[#allocation2 + $0x70] sm:$0x3] %vm647, 0.0
    %661 = vst.msk [vmem:[#allocation2 + $0x78] sm:$0xff] %vm644, 0.0
    %662 = vst.msk [vmem:[#allocation2 + $0x80] sm:$0xff] %vm644, 0.0
    %663 = vst.msk [vmem:[#allocation2 + $0x88] sm:$0x3] %vm647, 0.0
    %664 = vst.msk [vmem:[#allocation2 + $0x90] sm:$0xff] %vm644, 0.0
    %665 = vst.msk [vmem:[#allocation2 + $0x98] sm:$0xff] %vm644, 0.0
    %666 = vst.msk [vmem:[#allocation2 + $0xa0] sm:$0x3] %vm647, 0.0
    %667 = vst.msk [vmem:[#allocation2 + $0xa8] sm:$0xff] %vm644, 0.0
    %668 = vst.msk [vmem:[#allocation2 + $0xb0] sm:$0xff] %vm644, 0.0
    %669 = vst.msk [vmem:[#allocation2 + $0xb8] sm:$0x3] %vm647, 0.0
    %670 = vst.msk [vmem:[#allocation2 + $0xc0] sm:$0xff] %vm644, 0.0
    %671 = vst.msk [vmem:[#allocation2 + $0xc8] sm:$0xff] %vm644, 0.0
    %672 = vst.msk [vmem:[#allocation2 + $0xd0] sm:$0x3] %vm647, 0.0
    %673 = vst.msk [vmem:[#allocation2 + $0xd8] sm:$0xff] %vm644, 0.0
    %674 = vst.msk [vmem:[#allocation2 + $0xe0] sm:$0xff] %vm644, 0.0
    %675 = vst.msk [vmem:[#allocation2 + $0xe8] sm:$0x3] %vm647, 0.0
    %676 = vst.msk [vmem:[#allocation2 + $0xf0] sm:$0xff] %vm644, 0.0
    %677 = vst.msk [vmem:[#allocation2 + $0xf8] sm:$0xff] %vm644, 0.0
    %678 = vst.msk [vmem:[#allocation2 + $0x100] sm:$0x3] %vm647, 0.0
    %679 = vst.msk [vmem:[#allocation2 + $0x108] sm:$0xff] %vm644, 0.0
    %680 = vst.msk [vmem:[#allocation2 + $0x110] sm:$0xff] %vm644, 0.0
    %681 = vst.msk [vmem:[#allocation2 + $0x118] sm:$0x3] %vm647, 0.0
    %682 = vst.msk [vmem:[#allocation2 + $0x120] sm:$0xff] %vm644, 0.0
    %683 = vst.msk [vmem:[#allocation2 + $0x128] sm:$0xff] %vm644, 0.0
    %684 = vst.msk [vmem:[#allocation2 + $0x130] sm:$0x3] %vm647, 0.0
    %685 = vst.msk [vmem:[#allocation2 + $0x138] sm:$0xff] %vm644, 0.0
    %686 = vst.msk [vmem:[#allocation2 + $0x140] sm:$0xff] %vm644, 0.0
    %687 = vst.msk [vmem:[#allocation2 + $0x148] sm:$0x3] %vm647, 0.0
    %688 = vst.msk [vmem:[#allocation2 + $0x150] sm:$0xff] %vm644, 0.0
    %689 = vst.msk [vmem:[#allocation2 + $0x158] sm:$0xff] %vm644, 0.0
    %690 = vst.msk [vmem:[#allocation2 + $0x160] sm:$0x3] %vm647, 0.0
    %691 = vst.msk [vmem:[#allocation2 + $0x168] sm:$0xff] %vm644, 0.0
    %692 = vst.msk [vmem:[#allocation2 + $0x170] sm:$0xff] %vm644, 0.0
    %693 = vst.msk [vmem:[#allocation2 + $0x178] sm:$0x3] %vm647, 0.0
    %694 = vst.msk [vmem:[#allocation2 + $0x180] sm:$0xff] %vm644, 0.0
    %695 = vst.msk [vmem:[#allocation2 + $0x188] sm:$0xff] %vm644, 0.0
    %696 = vst.msk [vmem:[#allocation2 + $0x190] sm:$0x3] %vm647, 0.0
    %697 = vst.msk [vmem:[#allocation2 + $0x198] sm:$0xff] %vm644, 0.0
    %698 = vst.msk [vmem:[#allocation2 + $0x1a0] sm:$0xff] %vm644, 0.0
    %699 = vst.msk [vmem:[#allocation2 + $0x1a8] sm:$0x3] %vm647, 0.0
    %700 = vst.msk [vmem:[#allocation2 + $0x1b0] sm:$0xff] %vm644, 0.0
    %701 = vst.msk [vmem:[#allocation2 + $0x1b8] sm:$0xff] %vm644, 0.0
    %702 = vst.msk [vmem:[#allocation2 + $0x1c0] sm:$0x3] %vm647, 0.0
    %703 = vst.msk [vmem:[#allocation2 + $0x1c8] sm:$0xff] %vm644, 0.0
    %704 = vst.msk [vmem:[#allocation2 + $0x1d0] sm:$0xff] %vm644, 0.0
    %705 = vst.msk [vmem:[#allocation2 + $0x1d8] sm:$0x3] %vm647, 0.0
    %706 = vst.msk [vmem:[#allocation2 + $0x1e0] sm:$0xff] %vm644, 0.0
    %707 = vst.msk [vmem:[#allocation2 + $0x1e8] sm:$0xff] %vm644, 0.0
    %708 = vst.msk [vmem:[#allocation2 + $0x1f0] sm:$0x3] %vm647, 0.0
    %709 = vst.msk [vmem:[#allocation2 + $0x1f8] sm:$0xff] %vm644, 0.0
    %710 = vst.msk [vmem:[#allocation2 + $0x200] sm:$0xff] %vm644, 0.0
    %711 = vst.msk [vmem:[#allocation2 + $0x208] sm:$0x3] %vm647, 0.0
    %712 = vst.msk [vmem:[#allocation2 + $0x210] sm:$0xff] %vm644, 0.0
    %713 = vst.msk [vmem:[#allocation2 + $0x218] sm:$0xff] %vm644, 0.0
    %714 = vst.msk [vmem:[#allocation2 + $0x220] sm:$0x3] %vm647, 0.0
    %715 = vst.msk [vmem:[#allocation2 + $0x228] sm:$0xff] %vm644, 0.0
    %716 = vst.msk [vmem:[#allocation2 + $0x230] sm:$0xff] %vm644, 0.0
    %717 = vst.msk [vmem:[#allocation2 + $0x238] sm:$0x3] %vm647, 0.0
    %718 = vst.msk [vmem:[#allocation2 + $0x240] sm:$0xff] %vm644, 0.0
    %719 = vst.msk [vmem:[#allocation2 + $0x248] sm:$0xff] %vm644, 0.0
    %720 = vst.msk [vmem:[#allocation2 + $0x250] sm:$0x3] %vm647, 0.0
    %721 = vst.msk [vmem:[#allocation2 + $0x258] sm:$0xff] %vm644, 0.0
    %722 = vst.msk [vmem:[#allocation2 + $0x260] sm:$0xff] %vm644, 0.0
    %723 = vst.msk [vmem:[#allocation2 + $0x268] sm:$0x3] %vm647, 0.0
    %724 = vst.msk [vmem:[#allocation2 + $0x270] sm:$0xff] %vm644, 0.0
    %725 = vst.msk [vmem:[#allocation2 + $0x278] sm:$0xff] %vm644, 0.0
    %726 = vst.msk [vmem:[#allocation2 + $0x280] sm:$0x3] %vm647, 0.0
    %727 = vst.msk [vmem:[#allocation2 + $0x288] sm:$0xff] %vm644, 0.0
    %728 = vst.msk [vmem:[#allocation2 + $0x290] sm:$0xff] %vm644, 0.0
    %729 = vst.msk [vmem:[#allocation2 + $0x298] sm:$0x3] %vm647, 0.0
    %730 = vst.msk [vmem:[#allocation2 + $0x2a0] sm:$0xff] %vm644, 0.0
    %731 = vst.msk [vmem:[#allocation2 + $0x2a8] sm:$0xff] %vm644, 0.0
    %732 = vst.msk [vmem:[#allocation2 + $0x2b0] sm:$0x3] %vm647, 0.0
    %733 = vst.msk [vmem:[#allocation2 + $0x2b8] sm:$0xff] %vm644, 0.0
    %734 = vst.msk [vmem:[#allocation2 + $0x2c0] sm:$0xff] %vm644, 0.0
    %735 = vst.msk [vmem:[#allocation2 + $0x2c8] sm:$0x3] %vm647, 0.0
    %736 = vst.msk [vmem:[#allocation2 + $0x2d0] sm:$0xff] %vm644, 0.0
    %737 = vst.msk [vmem:[#allocation2 + $0x2d8] sm:$0xff] %vm644, 0.0
    %738 = vst.msk [vmem:[#allocation2 + $0x2e0] sm:$0x3] %vm647, 0.0
    %739 = vst.msk [vmem:[#allocation2 + $0x2e8] sm:$0xff] %vm644, 0.0
    %740 = vst.msk [vmem:[#allocation2 + $0x2f0] sm:$0xff] %vm644, 0.0
    %741 = vst.msk [vmem:[#allocation2 + $0x2f8] sm:$0x3] %vm647, 0.0
    %742 = vst.msk [vmem:[#allocation2 + $0x300] sm:$0xff] %vm644, 0.0
    %743 = vst.msk [vmem:[#allocation2 + $0x308] sm:$0xff] %vm644, 0.0
    %744 = vst.msk [vmem:[#allocation2 + $0x310] sm:$0x3] %vm647, 0.0
    %745 = vst.msk [vmem:[#allocation2 + $0x318] sm:$0xff] %vm644, 0.0
    %746 = vst.msk [vmem:[#allocation2 + $0x320] sm:$0xff] %vm644, 0.0
    %747 = vst.msk [vmem:[#allocation2 + $0x328] sm:$0x3] %vm647, 0.0
    %748 = vst.msk [vmem:[#allocation2 + $0x330] sm:$0xff] %vm644, 0.0
    %749 = vst.msk [vmem:[#allocation2 + $0x338] sm:$0xff] %vm644, 0.0
    %750 = vst.msk [vmem:[#allocation2 + $0x340] sm:$0x3] %vm647, 0.0
    %751 = vst.msk [vmem:[#allocation2 + $0x348] sm:$0xff] %vm644, 0.0
    %752 = vst.msk [vmem:[#allocation2 + $0x350] sm:$0xff] %vm644, 0.0
    %753 = vst.msk [vmem:[#allocation2 + $0x358] sm:$0x3] %vm647, 0.0
    %v754 = vadd.f32 %v390, 0.0
    %v755 = vadd.f32 %v393, 0.0
    %v756 = vadd.f32 %v398, 0.0
    %v757 = vadd.f32 %v401, 0.0
    %v758 = vadd.f32 %v406, 0.0
    %v759 = vadd.f32 %v409, 0.0
    %v760 = vadd.f32 %v414, 0.0
    %v761 = vadd.f32 %v417, 0.0
    %v762 = vadd.f32 %v422, 0.0
    %v763 = vadd.f32 %v425, 0.0
    %v764 = vadd.f32 %v430, 0.0
    %v765 = vadd.f32 %v433, 0.0
    %v766 = vadd.f32 %v438, 0.0
    %v767 = vadd.f32 %v441, 0.0
    %v768 = vadd.f32 %v446, 0.0
    %v769 = vadd.f32 %v449, 0.0
    %v770 = vadd.f32 %v454, 0.0
    %v771 = vadd.f32 %v457, 0.0
    %v772 = vadd.f32 %v462, 0.0
    %v773 = vadd.f32 %v465, 0.0
    %v774 = vadd.f32 %v470, 0.0
    %v775 = vadd.f32 %v473, 0.0
    %v776 = vadd.f32 %v478, 0.0
    %v777 = vadd.f32 %v481, 0.0
    %v778 = vadd.f32 %v486, 0.0
    %v779 = vadd.f32 %v489, 0.0
    %v780 = vadd.f32 %v494, 0.0
    %v781 = vadd.f32 %v497, 0.0
    %v782 = vadd.f32 %v502, 0.0
    %v783 = vadd.f32 %v505, 0.0
    %v784 = vadd.f32 %v510, 0.0
    %v785 = vadd.f32 %v513, 0.0
    %v786 = vadd.f32 %v518, 0.0
    %v787 = vadd.f32 %v521, 0.0
    %v788 = vadd.f32 %v526, 0.0
    %v789 = vadd.f32 %v529, 0.0
    %v790 = vadd.f32 %v534, 0.0
    %v791 = vadd.f32 %v537, 0.0
    %v792 = vadd.f32 %v542, 0.0
    %v793 = vadd.f32 %v545, 0.0
    %v794 = vadd.f32 %v550, 0.0
    %v795 = vadd.f32 %v553, 0.0
    %v796 = vadd.f32 %v558, 0.0
    %v797 = vadd.f32 %v561, 0.0
    %v798 = vadd.f32 %v566, 0.0
    %v799 = vadd.f32 %v569, 0.0
    %v800 = vadd.f32 %v574, 0.0
    %v801 = vadd.f32 %v577, 0.0
    %v802 = vadd.f32 %v582, 0.0
    %v803 = vadd.f32 %v585, 0.0
    %v804 = vadd.f32 %v590, 0.0
    %v805 = vadd.f32 %v593, 0.0
    %v806 = vadd.f32 %v598, 0.0
    %v807 = vadd.f32 %v601, 0.0
    %v808 = vadd.f32 %v606, 0.0
    %v809 = vadd.f32 %v609, 0.0
    %v810 = vadd.f32 %v614, 0.0
    %v811 = vadd.f32 %v617, 0.0
    %v812 = vadd.f32 %v622, 0.0
    %v813 = vadd.f32 %v625, 0.0
    %v814 = vadd.f32 %v630, 0.0
    %v815 = vadd.f32 %v633, 0.0
    %v816 = vadd.f32 %v638, 0.0
    %v817 = vadd.f32 %v641, 0.0
    %vm818 = vcmp.gt.f32.partialorder %v754, 1.0
    %vm819 = vcmp.gt.f32.partialorder %v755, 1.0
    %vm820 = vcmp.gt.f32.partialorder %v756, 1.0
    %vm821 = vcmp.gt.f32.partialorder %v757, 1.0
    %vm822 = vcmp.gt.f32.partialorder %v758, 1.0
    %vm823 = vcmp.gt.f32.partialorder %v759, 1.0
    %vm824 = vcmp.gt.f32.partialorder %v760, 1.0
    %vm825 = vcmp.gt.f32.partialorder %v761, 1.0
    %vm826 = vcmp.gt.f32.partialorder %v762, 1.0
    %vm827 = vcmp.gt.f32.partialorder %v763, 1.0
    %vm828 = vcmp.gt.f32.partialorder %v764, 1.0
    %vm829 = vcmp.gt.f32.partialorder %v765, 1.0
    %vm830 = vcmp.gt.f32.partialorder %v766, 1.0
    %vm831 = vcmp.gt.f32.partialorder %v767, 1.0
    %vm832 = vcmp.gt.f32.partialorder %v768, 1.0
    %vm833 = vcmp.gt.f32.partialorder %v769, 1.0
    %vm834 = vcmp.gt.f32.partialorder %v770, 1.0
    %vm835 = vcmp.gt.f32.partialorder %v771, 1.0
    %vm836 = vcmp.gt.f32.partialorder %v772, 1.0
    %vm837 = vcmp.gt.f32.partialorder %v773, 1.0
    %vm838 = vcmp.gt.f32.partialorder %v774, 1.0
    %vm839 = vcmp.gt.f32.partialorder %v775, 1.0
    %vm840 = vcmp.gt.f32.partialorder %v776, 1.0
    %vm841 = vcmp.gt.f32.partialorder %v777, 1.0
    %vm842 = vcmp.gt.f32.partialorder %v778, 1.0
    %vm843 = vcmp.gt.f32.partialorder %v779, 1.0
    %vm844 = vcmp.gt.f32.partialorder %v780, 1.0
    %vm845 = vcmp.gt.f32.partialorder %v781, 1.0
    %vm846 = vcmp.gt.f32.partialorder %v782, 1.0
    %vm847 = vcmp.gt.f32.partialorder %v783, 1.0
    %vm848 = vcmp.gt.f32.partialorder %v784, 1.0
    %vm849 = vcmp.gt.f32.partialorder %v785, 1.0
    %vm850 = vcmp.gt.f32.partialorder %v786, 1.0
    %vm851 = vcmp.gt.f32.partialorder %v787, 1.0
    %vm852 = vcmp.gt.f32.partialorder %v788, 1.0
    %vm853 = vcmp.gt.f32.partialorder %v789, 1.0
    %vm854 = vcmp.gt.f32.partialorder %v790, 1.0
    %vm855 = vcmp.gt.f32.partialorder %v791, 1.0
    %vm856 = vcmp.gt.f32.partialorder %v792, 1.0
    %vm857 = vcmp.gt.f32.partialorder %v793, 1.0
    %vm858 = vcmp.gt.f32.partialorder %v794, 1.0
    %vm859 = vcmp.gt.f32.partialorder %v795, 1.0
    %vm860 = vcmp.gt.f32.partialorder %v796, 1.0
    %vm861 = vcmp.gt.f32.partialorder %v797, 1.0
    %vm862 = vcmp.gt.f32.partialorder %v798, 1.0
    %vm863 = vcmp.gt.f32.partialorder %v799, 1.0
    %vm864 = vcmp.gt.f32.partialorder %v800, 1.0
    %vm865 = vcmp.gt.f32.partialorder %v801, 1.0
    %vm866 = vcmp.gt.f32.partialorder %v802, 1.0
    %vm867 = vcmp.gt.f32.partialorder %v803, 1.0
    %vm868 = vcmp.gt.f32.partialorder %v804, 1.0
    %vm869 = vcmp.gt.f32.partialorder %v805, 1.0
    %vm870 = vcmp.gt.f32.partialorder %v806, 1.0
    %vm871 = vcmp.gt.f32.partialorder %v807, 1.0
    %vm872 = vcmp.gt.f32.partialorder %v808, 1.0
    %vm873 = vcmp.gt.f32.partialorder %v809, 1.0
    %vm874 = vcmp.gt.f32.partialorder %v810, 1.0
    %vm875 = vcmp.gt.f32.partialorder %v811, 1.0
    %vm876 = vcmp.gt.f32.partialorder %v812, 1.0
    %vm877 = vcmp.gt.f32.partialorder %v813, 1.0
    %vm878 = vcmp.gt.f32.partialorder %v814, 1.0
    %vm879 = vcmp.gt.f32.partialorder %v815, 1.0
    %vm880 = vcmp.gt.f32.partialorder %v816, 1.0
    %vm881 = vcmp.gt.f32.partialorder %v817, 1.0
    %v882 = vsel %vm818, 1, 0
    %v883 = vsel %vm819, 1, 0
    %v884 = vsel %vm820, 1, 0
    %v885 = vsel %vm821, 1, 0
    %v886 = vsel %vm822, 1, 0
    %v887 = vsel %vm823, 1, 0
    %v888 = vsel %vm824, 1, 0
    %v889 = vsel %vm825, 1, 0
    %v890 = vsel %vm826, 1, 0
    %v891 = vsel %vm827, 1, 0
    %v892 = vsel %vm828, 1, 0
    %v893 = vsel %vm829, 1, 0
    %v894 = vsel %vm830, 1, 0
    %v895 = vsel %vm831, 1, 0
    %v896 = vsel %vm832, 1, 0
    %v897 = vsel %vm833, 1, 0
    %v898 = vsel %vm834, 1, 0
    %v899 = vsel %vm835, 1, 0
    %v900 = vsel %vm836, 1, 0
    %v901 = vsel %vm837, 1, 0
    %v902 = vsel %vm838, 1, 0
    %v903 = vsel %vm839, 1, 0
    %v904 = vsel %vm840, 1, 0
    %v905 = vsel %vm841, 1, 0
    %v906 = vsel %vm842, 1, 0
    %v907 = vsel %vm843, 1, 0
    %v908 = vsel %vm844, 1, 0
    %v909 = vsel %vm845, 1, 0
    %v910 = vsel %vm846, 1, 0
    %v911 = vsel %vm847, 1, 0
    %v912 = vsel %vm848, 1, 0
    %v913 = vsel %vm849, 1, 0
    %v914 = vsel %vm850, 1, 0
    %v915 = vsel %vm851, 1, 0
    %v916 = vsel %vm852, 1, 0
    %v917 = vsel %vm853, 1, 0
    %v918 = vsel %vm854, 1, 0
    %v919 = vsel %vm855, 1, 0
    %v920 = vsel %vm856, 1, 0
    %v921 = vsel %vm857, 1, 0
    %v922 = vsel %vm858, 1, 0
    %v923 = vsel %vm859, 1, 0
    %v924 = vsel %vm860, 1, 0
    %v925 = vsel %vm861, 1, 0
    %v926 = vsel %vm862, 1, 0
    %v927 = vsel %vm863, 1, 0
    %v928 = vsel %vm864, 1, 0
    %v929 = vsel %vm865, 1, 0
    %v930 = vsel %vm866, 1, 0
    %v931 = vsel %vm867, 1, 0
    %v932 = vsel %vm868, 1, 0
    %v933 = vsel %vm869, 1, 0
    %v934 = vsel %vm870, 1, 0
    %v935 = vsel %vm871, 1, 0
    %v936 = vsel %vm872, 1, 0
    %v937 = vsel %vm873, 1, 0
    %v938 = vsel %vm874, 1, 0
    %v939 = vsel %vm875, 1, 0
    %v940 = vsel %vm876, 1, 0
    %v941 = vsel %vm877, 1, 0
    %v942 = vsel %vm878, 1, 0
    %v943 = vsel %vm879, 1, 0
    %v944 = vsel %vm880, 1, 0
    %v945 = vsel %vm881, 1, 0
    %v946 = vcvt.s32.f32 %v882
    %v947 = vcvt.s32.f32 %v883
    %v948 = vcvt.s32.f32 %v884
    %v949 = vcvt.s32.f32 %v885
    %v950 = vcvt.s32.f32 %v886
    %v951 = vcvt.s32.f32 %v887
    %v952 = vcvt.s32.f32 %v888
    %v953 = vcvt.s32.f32 %v889
    %v954 = vcvt.s32.f32 %v890
    %v955 = vcvt.s32.f32 %v891
    %v956 = vcvt.s32.f32 %v892
    %v957 = vcvt.s32.f32 %v893
    %v958 = vcvt.s32.f32 %v894
    %v959 = vcvt.s32.f32 %v895
    %v960 = vcvt.s32.f32 %v896
    %v961 = vcvt.s32.f32 %v897
    %v962 = vcvt.s32.f32 %v898
    %v963 = vcvt.s32.f32 %v899
    %v964 = vcvt.s32.f32 %v900
    %v965 = vcvt.s32.f32 %v901
    %v966 = vcvt.s32.f32 %v902
    %v967 = vcvt.s32.f32 %v903
    %v968 = vcvt.s32.f32 %v904
    %v969 = vcvt.s32.f32 %v905
    %v970 = vcvt.s32.f32 %v906
    %v971 = vcvt.s32.f32 %v907
    %v972 = vcvt.s32.f32 %v908
    %v973 = vcvt.s32.f32 %v909
    %v974 = vcvt.s32.f32 %v910
    %v975 = vcvt.s32.f32 %v911
    %v976 = vcvt.s32.f32 %v912
    %v977 = vcvt.s32.f32 %v913
    %v978 = vcvt.s32.f32 %v914
    %v979 = vcvt.s32.f32 %v915
    %v980 = vcvt.s32.f32 %v916
    %v981 = vcvt.s32.f32 %v917
    %v982 = vcvt.s32.f32 %v918
    %v983 = vcvt.s32.f32 %v919
    %v984 = vcvt.s32.f32 %v920
    %v985 = vcvt.s32.f32 %v921
    %v986 = vcvt.s32.f32 %v922
    %v987 = vcvt.s32.f32 %v923
    %v988 = vcvt.s32.f32 %v924
    %v989 = vcvt.s32.f32 %v925
    %v990 = vcvt.s32.f32 %v926
    %v991 = vcvt.s32.f32 %v927
    %v992 = vcvt.s32.f32 %v928
    %v993 = vcvt.s32.f32 %v929
    %v994 = vcvt.s32.f32 %v930
    %v995 = vcvt.s32.f32 %v931
    %v996 = vcvt.s32.f32 %v932
    %v997 = vcvt.s32.f32 %v933
    %v998 = vcvt.s32.f32 %v934
    %v999 = vcvt.s32.f32 %v935
    %v1000 = vcvt.s32.f32 %v936
    %v1001 = vcvt.s32.f32 %v937
    %v1002 = vcvt.s32.f32 %v938
    %v1003 = vcvt.s32.f32 %v939
    %v1004 = vcvt.s32.f32 %v940
    %v1005 = vcvt.s32.f32 %v941
    %v1006 = vcvt.s32.f32 %v942
    %v1007 = vcvt.s32.f32 %v943
    %v1008 = vcvt.s32.f32 %v944
    %v1009 = vcvt.s32.f32 %v945
    %s1010 = scalar_lea.vmem [#allocation2], 24
    %1011 = vst.msk [vmem:[%s1010 + $0x1] sm:$0xff] %vm644, %v946
    %1012 = vst.msk [vmem:[%s1010 + $0x9] sm:$0xff] %vm644, %v947
    %1013 = vst.msk [vmem:[%s1010 + $0x19] sm:$0xff] %vm644, %v948
    %1014 = vst.msk [vmem:[%s1010 + $0x21] sm:$0xff] %vm644, %v949
    %1015 = vst.msk [vmem:[%s1010 + $0x31] sm:$0xff] %vm644, %v950
    %1016 = vst.msk [vmem:[%s1010 + $0x39] sm:$0xff] %vm644, %v951
    %1017 = vst.msk [vmem:[%s1010 + $0x49] sm:$0xff] %vm644, %v952
    %1018 = vst.msk [vmem:[%s1010 + $0x51] sm:$0xff] %vm644, %v953
    %1019 = vst.msk [vmem:[%s1010 + $0x61] sm:$0xff] %vm644, %v954
    %1020 = vst.msk [vmem:[%s1010 + $0x69] sm:$0xff] %vm644, %v955
    %1021 = vst.msk [vmem:[%s1010 + $0x79] sm:$0xff] %vm644, %v956
    %1022 = vst.msk [vmem:[%s1010 + $0x81] sm:$0xff] %vm644, %v957
    %1023 = vst.msk [vmem:[%s1010 + $0x91] sm:$0xff] %vm644, %v958
    %1024 = vst.msk [vmem:[%s1010 + $0x99] sm:$0xff] %vm644, %v959
    %1025 = vst.msk [vmem:[%s1010 + $0xa9] sm:$0xff] %vm644, %v960
    %1026 = vst.msk [vmem:[%s1010 + $0xb1] sm:$0xff] %vm644, %v961
    %1027 = vst.msk [vmem:[%s1010 + $0xc1] sm:$0xff] %vm644, %v962
    %1028 = vst.msk [vmem:[%s1010 + $0xc9] sm:$0xff] %vm644, %v963
    %1029 = vst.msk [vmem:[%s1010 + $0xd9] sm:$0xff] %vm644, %v964
    %1030 = vst.msk [vmem:[%s1010 + $0xe1] sm:$0xff] %vm644, %v965
    %1031 = vst.msk [vmem:[%s1010 + $0xf1] sm:$0xff] %vm644, %v966
    %1032 = vst.msk [vmem:[%s1010 + $0xf9] sm:$0xff] %vm644, %v967
    %1033 = vst.msk [vmem:[%s1010 + $0x109] sm:$0xff] %vm644, %v968
    %1034 = vst.msk [vmem:[%s1010 + $0x111] sm:$0xff] %vm644, %v969
    %1035 = vst.msk [vmem:[%s1010 + $0x121] sm:$0xff] %vm644, %v970
    %1036 = vst.msk [vmem:[%s1010 + $0x129] sm:$0xff] %vm644, %v971
    %1037 = vst.msk [vmem:[%s1010 + $0x139] sm:$0xff] %vm644, %v972
    %1038 = vst.msk [vmem:[%s1010 + $0x141] sm:$0xff] %vm644, %v973
    %1039 = vst.msk [vmem:[%s1010 + $0x151] sm:$0xff] %vm644, %v974
    %1040 = vst.msk [vmem:[%s1010 + $0x159] sm:$0xff] %vm644, %v975
    %1041 = vst.msk [vmem:[%s1010 + $0x169] sm:$0xff] %vm644, %v976
    %1042 = vst.msk [vmem:[%s1010 + $0x171] sm:$0xff] %vm644, %v977
    %1043 = vst.msk [vmem:[%s1010 + $0x1b1] sm:$0xff] %vm644, %v978
    %1044 = vst.msk [vmem:[%s1010 + $0x1b9] sm:$0xff] %vm644, %v979
    %1045 = vst.msk [vmem:[%s1010 + $0x1c9] sm:$0xff] %vm644, %v980
    %1046 = vst.msk [vmem:[%s1010 + $0x1d1] sm:$0xff] %vm644, %v981
    %1047 = vst.msk [vmem:[%s1010 + $0x1e1] sm:$0xff] %vm644, %v982
    %1048 = vst.msk [vmem:[%s1010 + $0x1e9] sm:$0xff] %vm644, %v983
    %1049 = vst.msk [vmem:[%s1010 + $0x1f9] sm:$0xff] %vm644, %v984
    %1050 = vst.msk [vmem:[%s1010 + $0x201] sm:$0xff] %vm644, %v985
    %1051 = vst.msk [vmem:[%s1010 + $0x211] sm:$0xff] %vm644, %v986
    %1052 = vst.msk [vmem:[%s1010 + $0x219] sm:$0xff] %vm644, %v987
    %1053 = vst.msk [vmem:[%s1010 + $0x229] sm:$0xff] %vm644, %v988
    %1054 = vst.msk [vmem:[%s1010 + $0x231] sm:$0xff] %vm644, %v989
    %1055 = vst.msk [vmem:[%s1010 + $0x241] sm:$0xff] %vm644, %v990
    %1056 = vst.msk [vmem:[%s1010 + $0x249] sm:$0xff] %vm644, %v991
    %1057 = vst.msk [vmem:[%s1010 + $0x259] sm:$0xff] %vm644, %v992
    %1058 = vst.msk [vmem:[%s1010 + $0x261] sm:$0xff] %vm644, %v993
    %1059 = vst.msk [vmem:[%s1010 + $0x271] sm:$0xff] %vm644, %v994
    %1060 = vst.msk [vmem:[%s1010 + $0x279] sm:$0xff] %vm644, %v995
    %1061 = vst.msk [vmem:[%s1010 + $0x289] sm:$0xff] %vm644, %v996
    %1062 = vst.msk [vmem:[%s1010 + $0x291] sm:$0xff] %vm644, %v997
    %1063 = vst.msk [vmem:[%s1010 + $0x2a1] sm:$0xff] %vm644, %v998
    %1064 = vst.msk [vmem:[%s1010 + $0x2a9] sm:$0xff] %vm644, %v999
    %1065 = vst.msk [vmem:[%s1010 + $0x2b9] sm:$0xff] %vm644, %v1000
    %1066 = vst.msk [vmem:[%s1010 + $0x2c1] sm:$0xff] %vm644, %v1001
    %1067 = vst.msk [vmem:[%s1010 + $0x2d1] sm:$0xff] %vm644, %v1002
    %1068 = vst.msk [vmem:[%s1010 + $0x2d9] sm:$0xff] %vm644, %v1003
    %1069 = vst.msk [vmem:[%s1010 + $0x2e9] sm:$0xff] %vm644, %v1004
    %1070 = vst.msk [vmem:[%s1010 + $0x2f1] sm:$0xff] %vm644, %v1005
    %1071 = vst.msk [vmem:[%s1010 + $0x301] sm:$0xff] %vm644, %v1006
    %1072 = vst.msk [vmem:[%s1010 + $0x309] sm:$0xff] %vm644, %v1007
    %1073 = vst.msk [vmem:[%s1010 + $0x319] sm:$0xff] %vm644, %v1008
    %1074 = vst.msk [vmem:[%s1010 + $0x321] sm:$0xff] %vm644, %v1009
    %v1075 = vld [vmem:[#allocation2] sm:$0xff]
    %v1076 = vld [vmem:[#allocation2 + $0x8] sm:$0xff]
    %v1077 = vld [vmem:[#allocation2 + $0x18] sm:$0xff]
    %v1078 = vld [vmem:[#allocation2 + $0x20] sm:$0xff]
    %v1079 = vld [vmem:[#allocation2 + $0x30] sm:$0xff]
    %v1080 = vld [vmem:[#allocation2 + $0x38] sm:$0xff]
    %v1081 = vld [vmem:[#allocation2 + $0x48] sm:$0xff]
    %v1082 = vld [vmem:[#allocation2 + $0x50] sm:$0xff]
    %v1083 = vld [vmem:[#allocation2 + $0x60] sm:$0xff]
    %v1084 = vld [vmem:[#allocation2 + $0x68] sm:$0xff]
    %v1085 = vld [vmem:[#allocation2 + $0x78] sm:$0xff]
    %v1086 = vld [vmem:[#allocation2 + $0x80] sm:$0xff]
    %v1087 = vld [vmem:[#allocation2 + $0x90] sm:$0xff]
    %v1088 = vld [vmem:[#allocation2 + $0x98] sm:$0xff]
    %v1089 = vld [vmem:[#allocation2 + $0xa8] sm:$0xff]
    %v1090 = vld [vmem:[#allocation2 + $0xb0] sm:$0xff]
    %v1091 = vld [vmem:[#allocation2 + $0xc0] sm:$0xff]
    %v1092 = vld [vmem:[#allocation2 + $0xc8] sm:$0xff]
    %v1093 = vld [vmem:[#allocation2 + $0xd8] sm:$0xff]
    %v1094 = vld [vmem:[#allocation2 + $0xe0] sm:$0xff]
    %v1095 = vld [vmem:[#allocation2 + $0xf0] sm:$0xff]
    %v1096 = vld [vmem:[#allocation2 + $0xf8] sm:$0xff]
    %v1097 = vld [vmem:[#allocation2 + $0x108] sm:$0xff]
    %v1098 = vld [vmem:[#allocation2 + $0x110] sm:$0xff]
    %v1099 = vld [vmem:[#allocation2 + $0x120] sm:$0xff]
    %v1100 = vld [vmem:[#allocation2 + $0x128] sm:$0xff]
    %v1101 = vld [vmem:[#allocation2 + $0x138] sm:$0xff]
    %v1102 = vld [vmem:[#allocation2 + $0x140] sm:$0xff]
    %v1103 = vld [vmem:[#allocation2 + $0x150] sm:$0xff]
    %v1104 = vld [vmem:[#allocation2 + $0x158] sm:$0xff]
    %v1105 = vld [vmem:[#allocation2 + $0x168] sm:$0xff]
    %v1106 = vld [vmem:[#allocation2 + $0x170] sm:$0xff]
    %v1107 = vld [vmem:[#allocation2 + $0x1b0] sm:$0xff]
    %v1108 = vld [vmem:[#allocation2 + $0x1b8] sm:$0xff]
    %v1109 = vld [vmem:[#allocation2 + $0x1c8] sm:$0xff]
    %v1110 = vld [vmem:[#allocation2 + $0x1d0] sm:$0xff]
    %v1111 = vld [vmem:[#allocation2 + $0x1e0] sm:$0xff]
    %v1112 = vld [vmem:[#allocation2 + $0x1e8] sm:$0xff]
    %v1113 = vld [vmem:[#allocation2 + $0x1f8] sm:$0xff]
    %v1114 = vld [vmem:[#allocation2 + $0x200] sm:$0xff]
    %v1115 = vld [vmem:[#allocation2 + $0x210] sm:$0xff]
    %v1116 = vld [vmem:[#allocation2 + $0x218] sm:$0xff]
    %v1117 = vld [vmem:[#allocation2 + $0x228] sm:$0xff]
    %v1118 = vld [vmem:[#allocation2 + $0x230] sm:$0xff]
    %v1119 = vld [vmem:[#allocation2 + $0x240] sm:$0xff]
    %v1120 = vld [vmem:[#allocation2 + $0x248] sm:$0xff]
    %v1121 = vld [vmem:[#allocation2 + $0x258] sm:$0xff]
    %v1122 = vld [vmem:[#allocation2 + $0x260] sm:$0xff]
    %v1123 = vld [vmem:[#allocation2 + $0x270] sm:$0xff]
    %v1124 = vld [vmem:[#allocation2 + $0x278] sm:$0xff]
    %v1125 = vld [vmem:[#allocation2 + $0x288] sm:$0xff]
    %v1126 = vld [vmem:[#allocation2 + $0x290] sm:$0xff]
    %v1127 = vld [vmem:[#allocation2 + $0x2a0] sm:$0xff]
    %v1128 = vld [vmem:[#allocation2 + $0x2a8] sm:$0xff]
    %v1129 = vld [vmem:[#allocation2 + $0x2b8] sm:$0xff]
    %v1130 = vld [vmem:[#allocation2 + $0x2c0] sm:$0xff]
    %v1131 = vld [vmem:[#allocation2 + $0x2d0] sm:$0xff]
    %v1132 = vld [vmem:[#allocation2 + $0x2d8] sm:$0xff]
    %v1133 = vld [vmem:[#allocation2 + $0x2e8] sm:$0xff]
    %v1134 = vld [vmem:[#allocation2 + $0x2f0] sm:$0xff]
    %v1135 = vld [vmem:[#allocation2 + $0x300] sm:$0xff]
    %v1136 = vld [vmem:[#allocation2 + $0x308] sm:$0xff]
    %v1137 = vld [vmem:[#allocation2 + $0x318] sm:$0xff]
    %v1138 = vld [vmem:[#allocation2 + $0x320] sm:$0xff]
    %v1139 = vld [vmem:[#allocation2 + $0x1] sm:$0xff]
    %v1140 = vld [vmem:[#allocation2 + $0x9] sm:$0xff]
    %v1141 = vld [vmem:[#allocation2 + $0x19] sm:$0xff]
    %v1142 = vld [vmem:[#allocation2 + $0x21] sm:$0xff]
    %v1143 = vld [vmem:[#allocation2 + $0x31] sm:$0xff]
    %v1144 = vld [vmem:[#allocation2 + $0x39] sm:$0xff]
    %v1145 = vld [vmem:[#allocation2 + $0x49] sm:$0xff]
    %v1146 = vld [vmem:[#allocation2 + $0x51] sm:$0xff]
    %v1147 = vld [vmem:[#allocation2 + $0x61] sm:$0xff]
    %v1148 = vld [vmem:[#allocation2 + $0x69] sm:$0xff]
    %v1149 = vld [vmem:[#allocation2 + $0x79] sm:$0xff]
    %v1150 = vld [vmem:[#allocation2 + $0x81] sm:$0xff]
    %v1151 = vld [vmem:[#allocation2 + $0x91] sm:$0xff]
    %v1152 = vld [vmem:[#allocation2 + $0x99] sm:$0xff]
    %v1153 = vld [vmem:[#allocation2 + $0xa9] sm:$0xff]
    %v1154 = vld [vmem:[#allocation2 + $0xb1] sm:$0xff]
    %v1155 = vld [vmem:[#allocation2 + $0xc1] sm:$0xff]
    %v1156 = vld [vmem:[#allocation2 + $0xc9] sm:$0xff]
    %v1157 = vld [vmem:[#allocation2 + $0xd9] sm:$0xff]
    %v1158 = vld [vmem:[#allocation2 + $0xe1] sm:$0xff]
    %v1159 = vld [vmem:[#allocation2 + $0xf1] sm:$0xff]
    %v1160 = vld [vmem:[#allocation2 + $0xf9] sm:$0xff]
    %v1161 = vld [vmem:[#allocation2 + $0x109] sm:$0xff]
    %v1162 = vld [vmem:[#allocation2 + $0x111] sm:$0xff]
    %v1163 = vld [vmem:[#allocation2 + $0x121] sm:$0xff]
    %v1164 = vld [vmem:[#allocation2 + $0x129] sm:$0xff]
    %v1165 = vld [vmem:[#allocation2 + $0x139] sm:$0xff]
    %v1166 = vld [vmem:[#allocation2 + $0x141] sm:$0xff]
    %v1167 = vld [vmem:[#allocation2 + $0x151] sm:$0xff]
    %v1168 = vld [vmem:[#allocation2 + $0x159] sm:$0xff]
    %v1169 = vld [vmem:[#allocation2 + $0x169] sm:$0xff]
    %v1170 = vld [vmem:[#allocation2 + $0x171] sm:$0xff]
    %v1171 = vld [vmem:[#allocation2 + $0x1b1] sm:$0xff]
    %v1172 = vld [vmem:[#allocation2 + $0x1b9] sm:$0xff]
    %v1173 = vld [vmem:[#allocation2 + $0x1c9] sm:$0xff]
    %v1174 = vld [vmem:[#allocation2 + $0x1d1] sm:$0xff]
    %v1175 = vld [vmem:[#allocation2 + $0x1e1] sm:$0xff]
    %v1176 = vld [vmem:[#allocation2 + $0x1e9] sm:$0xff]
    %v1177 = vld [vmem:[#allocation2 + $0x1f9] sm:$0xff]
    %v1178 = vld [vmem:[#allocation2 + $0x201] sm:$0xff]
    %v1179 = vld [vmem:[#allocation2 + $0x211] sm:$0xff]
    %v1180 = vld [vmem:[#allocation2 + $0x219] sm:$0xff]
    %v1181 = vld [vmem:[#allocation2 + $0x229] sm:$0xff]
    %v1182 = vld [vmem:[#allocation2 + $0x231] sm:$0xff]
    %v1183 = vld [vmem:[#allocation2 + $0x241] sm:$0xff]
    %v1184 = vld [vmem:[#allocation2 + $0x249] sm:$0xff]
    %v1185 = vld [vmem:[#allocation2 + $0x259] sm:$0xff]
    %v1186 = vld [vmem:[#allocation2 + $0x261] sm:$0xff]
    %v1187 = vld [vmem:[#allocation2 + $0x271] sm:$0xff]
    %v1188 = vld [vmem:[#allocation2 + $0x279] sm:$0xff]
    %v1189 = vld [vmem:[#allocation2 + $0x289] sm:$0xff]
    %v1190 = vld [vmem:[#allocation2 + $0x291] sm:$0xff]
    %v1191 = vld [vmem:[#allocation2 + $0x2a1] sm:$0xff]
    %v1192 = vld [vmem:[#allocation2 + $0x2a9] sm:$0xff]
    %v1193 = vld [vmem:[#allocation2 + $0x2b9] sm:$0xff]
    %v1194 = vld [vmem:[#allocation2 + $0x2c1] sm:$0xff]
    %v1195 = vld [vmem:[#allocation2 + $0x2d1] sm:$0xff]
    %v1196 = vld [vmem:[#allocation2 + $0x2d9] sm:$0xff]
    %v1197 = vld [vmem:[#allocation2 + $0x2e9] sm:$0xff]
    %v1198 = vld [vmem:[#allocation2 + $0x2f1] sm:$0xff]
    %v1199 = vld [vmem:[#allocation2 + $0x301] sm:$0xff]
    %v1200 = vld [vmem:[#allocation2 + $0x309] sm:$0xff]
    %v1201 = vld [vmem:[#allocation2 + $0x319] sm:$0xff]
    %v1202 = vld [vmem:[#allocation2 + $0x321] sm:$0xff]
    %v1203 = vld [vmem:[#allocation2 + $0x2] sm:$0xff]
    %v1204 = vld [vmem:[#allocation2 + $0xa] sm:$0xff]
    %v1205 = vld [vmem:[#allocation2 + $0x1a] sm:$0xff]
    %v1206 = vld [vmem:[#allocation2 + $0x22] sm:$0xff]
    %v1207 = vld [vmem:[#allocation2 + $0x32] sm:$0xff]
    %v1208 = vld [vmem:[#allocation2 + $0x3a] sm:$0xff]
    %v1209 = vld [vmem:[#allocation2 + $0x4a] sm:$0xff]
    %v1210 = vld [vmem:[#allocation2 + $0x52] sm:$0xff]
    %v1211 = vld [vmem:[#allocation2 + $0x62] sm:$0xff]
    %v1212 = vld [vmem:[#allocation2 + $0x6a] sm:$0xff]
    %v1213 = vld [vmem:[#allocation2 + $0x7a] sm:$0xff]
    %v1214 = vld [vmem:[#allocation2 + $0x82] sm:$0xff]
    %v1215 = vld [vmem:[#allocation2 + $0x92] sm:$0xff]
    %v1216 = vld [vmem:[#allocation2 + $0x9a] sm:$0xff]
    %v1217 = vld [vmem:[#allocation2 + $0xaa] sm:$0xff]
    %v1218 = vld [vmem:[#allocation2 + $0xb2] sm:$0xff]
    %v1219 = vld [vmem:[#allocation2 + $0xc2] sm:$0xff]
    %v1220 = vld [vmem:[#allocation2 + $0xca] sm:$0xff]
    %v1221 = vld [vmem:[#allocation2 + $0xda] sm:$0xff]
    %v1222 = vld [vmem:[#allocation2 + $0xe2] sm:$0xff]
    %v1223 = vld [vmem:[#allocation2 + $0xf2] sm:$0xff]
    %v1224 = vld [vmem:[#allocation2 + $0xfa] sm:$0xff]
    %v1225 = vld [vmem:[#allocation2 + $0x10a] sm:$0xff]
    %v1226 = vld [vmem:[#allocation2 + $0x112] sm:$0xff]
    %v1227 = vld [vmem:[#allocation2 + $0x122] sm:$0xff]
    %v1228 = vld [vmem:[#allocation2 + $0x12a] sm:$0xff]
    %v1229 = vld [vmem:[#allocation2 + $0x13a] sm:$0xff]
    %v1230 = vld [vmem:[#allocation2 + $0x142] sm:$0xff]
    %v1231 = vld [vmem:[#allocation2 + $0x152] sm:$0xff]
    %v1232 = vld [vmem:[#allocation2 + $0x15a] sm:$0xff]
    %v1233 = vld [vmem:[#allocation2 + $0x16a] sm:$0xff]
    %v1234 = vld [vmem:[#allocation2 + $0x172] sm:$0xff]
    %v1235 = vld [vmem:[#allocation2 + $0x1b2] sm:$0xff]
    %v1236 = vld [vmem:[#allocation2 + $0x1ba] sm:$0xff]
    %v1237 = vld [vmem:[#allocation2 + $0x1ca] sm:$0xff]
    %v1238 = vld [vmem:[#allocation2 + $0x1d2] sm:$0xff]
    %v1239 = vld [vmem:[#allocation2 + $0x1e2] sm:$0xff]
    %v1240 = vld [vmem:[#allocation2 + $0x1ea] sm:$0xff]
    %v1241 = vld [vmem:[#allocation2 + $0x1fa] sm:$0xff]
    %v1242 = vld [vmem:[#allocation2 + $0x202] sm:$0xff]
    %v1243 = vld [vmem:[#allocation2 + $0x212] sm:$0xff]
    %v1244 = vld [vmem:[#allocation2 + $0x21a] sm:$0xff]
    %v1245 = vld [vmem:[#allocation2 + $0x22a] sm:$0xff]
    %v1246 = vld [vmem:[#allocation2 + $0x232] sm:$0xff]
    %v1247 = vld [vmem:[#allocation2 + $0x242] sm:$0xff]
    %v1248 = vld [vmem:[#allocation2 + $0x24a] sm:$0xff]
    %v1249 = vld [vmem:[#allocation2 + $0x25a] sm:$0xff]
    %v1250 = vld [vmem:[#allocation2 + $0x262] sm:$0xff]
    %v1251 = vld [vmem:[#allocation2 + $0x272] sm:$0xff]
    %v1252 = vld [vmem:[#allocation2 + $0x27a] sm:$0xff]
    %v1253 = vld [vmem:[#allocation2 + $0x28a] sm:$0xff]
    %v1254 = vld [vmem:[#allocation2 + $0x292] sm:$0xff]
    %v1255 = vld [vmem:[#allocation2 + $0x2a2] sm:$0xff]
    %v1256 = vld [vmem:[#allocation2 + $0x2aa] sm:$0xff]
    %v1257 = vld [vmem:[#allocation2 + $0x2ba] sm:$0xff]
    %v1258 = vld [vmem:[#allocation2 + $0x2c2] sm:$0xff]
    %v1259 = vld [vmem:[#allocation2 + $0x2d2] sm:$0xff]
    %v1260 = vld [vmem:[#allocation2 + $0x2da] sm:$0xff]
    %v1261 = vld [vmem:[#allocation2 + $0x2ea] sm:$0xff]
    %v1262 = vld [vmem:[#allocation2 + $0x2f2] sm:$0xff]
    %v1263 = vld [vmem:[#allocation2 + $0x302] sm:$0xff]
    %v1264 = vld [vmem:[#allocation2 + $0x30a] sm:$0xff]
    %v1265 = vld [vmem:[#allocation2 + $0x31a] sm:$0xff]
    %v1266 = vld [vmem:[#allocation2 + $0x322] sm:$0xff]
    %v1267 = vld [vmem:[%s1010] sm:$0xff]
    %v1268 = vld [vmem:[%s1010 + $0x8] sm:$0xff]
    %v1269 = vld [vmem:[%s1010 + $0x18] sm:$0xff]
    %v1270 = vld [vmem:[%s1010 + $0x20] sm:$0xff]
    %v1271 = vld [vmem:[%s1010 + $0x30] sm:$0xff]
    %v1272 = vld [vmem:[%s1010 + $0x38] sm:$0xff]
    %v1273 = vld [vmem:[%s1010 + $0x48] sm:$0xff]
    %v1274 = vld [vmem:[%s1010 + $0x50] sm:$0xff]
    %v1275 = vld [vmem:[%s1010 + $0x60] sm:$0xff]
    %v1276 = vld [vmem:[%s1010 + $0x68] sm:$0xff]
    %v1277 = vld [vmem:[%s1010 + $0x78] sm:$0xff]
    %v1278 = vld [vmem:[%s1010 + $0x80] sm:$0xff]
    %v1279 = vld [vmem:[%s1010 + $0x90] sm:$0xff]
    %v1280 = vld [vmem:[%s1010 + $0x98] sm:$0xff]
    %v1281 = vld [vmem:[%s1010 + $0xa8] sm:$0xff]
    %v1282 = vld [vmem:[%s1010 + $0xb0] sm:$0xff]
    %v1283 = vld [vmem:[%s1010 + $0xc0] sm:$0xff]
    %v1284 = vld [vmem:[%s1010 + $0xc8] sm:$0xff]
    %v1285 = vld [vmem:[%s1010 + $0xd8] sm:$0xff]
    %v1286 = vld [vmem:[%s1010 + $0xe0] sm:$0xff]
    %v1287 = vld [vmem:[%s1010 + $0xf0] sm:$0xff]
    %v1288 = vld [vmem:[%s1010 + $0xf8] sm:$0xff]
    %v1289 = vld [vmem:[%s1010 + $0x108] sm:$0xff]
    %v1290 = vld [vmem:[%s1010 + $0x110] sm:$0xff]
    %v1291 = vld [vmem:[%s1010 + $0x120] sm:$0xff]
    %v1292 = vld [vmem:[%s1010 + $0x128] sm:$0xff]
    %v1293 = vld [vmem:[%s1010 + $0x138] sm:$0xff]
    %v1294 = vld [vmem:[%s1010 + $0x140] sm:$0xff]
    %v1295 = vld [vmem:[%s1010 + $0x150] sm:$0xff]
    %v1296 = vld [vmem:[%s1010 + $0x158] sm:$0xff]
    %v1297 = vld [vmem:[%s1010 + $0x168] sm:$0xff]
    %v1298 = vld [vmem:[%s1010 + $0x170] sm:$0xff]
    %v1299 = vld [vmem:[%s1010 + $0x1b0] sm:$0xff]
    %v1300 = vld [vmem:[%s1010 + $0x1b8] sm:$0xff]
    %v1301 = vld [vmem:[%s1010 + $0x1c8] sm:$0xff]
    %v1302 = vld [vmem:[%s1010 + $0x1d0] sm:$0xff]
    %v1303 = vld [vmem:[%s1010 + $0x1e0] sm:$0xff]
    %v1304 = vld [vmem:[%s1010 + $0x1e8] sm:$0xff]
    %v1305 = vld [vmem:[%s1010 + $0x1f8] sm:$0xff]
    %v1306 = vld [vmem:[%s1010 + $0x200] sm:$0xff]
    %v1307 = vld [vmem:[%s1010 + $0x210] sm:$0xff]
    %v1308 = vld [vmem:[%s1010 + $0x218] sm:$0xff]
    %v1309 = vld [vmem:[%s1010 + $0x228] sm:$0xff]
    %v1310 = vld [vmem:[%s1010 + $0x230] sm:$0xff]
    %v1311 = vld [vmem:[%s1010 + $0x240] sm:$0xff]
    %v1312 = vld [vmem:[%s1010 + $0x248] sm:$0xff]
    %v1313 = vld [vmem:[%s1010 + $0x258] sm:$0xff]
    %v1314 = vld [vmem:[%s1010 + $0x260] sm:$0xff]
    %v1315 = vld [vmem:[%s1010 + $0x270] sm:$0xff]
    %v1316 = vld [vmem:[%s1010 + $0x278] sm:$0xff]
    %v1317 = vld [vmem:[%s1010 + $0x288] sm:$0xff]
    %v1318 = vld [vmem:[%s1010 + $0x290] sm:$0xff]
    %v1319 = vld [vmem:[%s1010 + $0x2a0] sm:$0xff]
    %v1320 = vld [vmem:[%s1010 + $0x2a8] sm:$0xff]
    %v1321 = vld [vmem:[%s1010 + $0x2b8] sm:$0xff]
    %v1322 = vld [vmem:[%s1010 + $0x2c0] sm:$0xff]
    %v1323 = vld [vmem:[%s1010 + $0x2d0] sm:$0xff]
    %v1324 = vld [vmem:[%s1010 + $0x2d8] sm:$0xff]
    %v1325 = vld [vmem:[%s1010 + $0x2e8] sm:$0xff]
    %v1326 = vld [vmem:[%s1010 + $0x2f0] sm:$0xff]
    %v1327 = vld [vmem:[%s1010 + $0x300] sm:$0xff]
    %v1328 = vld [vmem:[%s1010 + $0x308] sm:$0xff]
    %v1329 = vld [vmem:[%s1010 + $0x318] sm:$0xff]
    %v1330 = vld [vmem:[%s1010 + $0x320] sm:$0xff]
    %v1331 = vld [vmem:[%s1010 + $0x1] sm:$0xff]
    %v1332 = vld [vmem:[%s1010 + $0x9] sm:$0xff]
    %v1333 = vld [vmem:[%s1010 + $0x19] sm:$0xff]
    %v1334 = vld [vmem:[%s1010 + $0x21] sm:$0xff]
    %v1335 = vld [vmem:[%s1010 + $0x31] sm:$0xff]
    %v1336 = vld [vmem:[%s1010 + $0x39] sm:$0xff]
    %v1337 = vld [vmem:[%s1010 + $0x49] sm:$0xff]
    %v1338 = vld [vmem:[%s1010 + $0x51] sm:$0xff]
    %v1339 = vld [vmem:[%s1010 + $0x61] sm:$0xff]
    %v1340 = vld [vmem:[%s1010 + $0x69] sm:$0xff]
    %v1341 = vld [vmem:[%s1010 + $0x79] sm:$0xff]
    %v1342 = vld [vmem:[%s1010 + $0x81] sm:$0xff]
    %v1343 = vld [vmem:[%s1010 + $0x91] sm:$0xff]
    %v1344 = vld [vmem:[%s1010 + $0x99] sm:$0xff]
    %v1345 = vld [vmem:[%s1010 + $0xa9] sm:$0xff]
    %v1346 = vld [vmem:[%s1010 + $0xb1] sm:$0xff]
    %v1347 = vld [vmem:[%s1010 + $0xc1] sm:$0xff]
    %v1348 = vld [vmem:[%s1010 + $0xc9] sm:$0xff]
    %v1349 = vld [vmem:[%s1010 + $0xd9] sm:$0xff]
    %v1350 = vld [vmem:[%s1010 + $0xe1] sm:$0xff]
    %v1351 = vld [vmem:[%s1010 + $0xf1] sm:$0xff]
    %v1352 = vld [vmem:[%s1010 + $0xf9] sm:$0xff]
    %v1353 = vld [vmem:[%s1010 + $0x109] sm:$0xff]
    %v1354 = vld [vmem:[%s1010 + $0x111] sm:$0xff]
    %v1355 = vld [vmem:[%s1010 + $0x121] sm:$0xff]
    %v1356 = vld [vmem:[%s1010 + $0x129] sm:$0xff]
    %v1357 = vld [vmem:[%s1010 + $0x139] sm:$0xff]
    %v1358 = vld [vmem:[%s1010 + $0x141] sm:$0xff]
    %v1359 = vld [vmem:[%s1010 + $0x151] sm:$0xff]
    %v1360 = vld [vmem:[%s1010 + $0x159] sm:$0xff]
    %v1361 = vld [vmem:[%s1010 + $0x169] sm:$0xff]
    %v1362 = vld [vmem:[%s1010 + $0x171] sm:$0xff]
    %v1363 = vld [vmem:[%s1010 + $0x1b1] sm:$0xff]
    %v1364 = vld [vmem:[%s1010 + $0x1b9] sm:$0xff]
    %v1365 = vld [vmem:[%s1010 + $0x1c9] sm:$0xff]
    %v1366 = vld [vmem:[%s1010 + $0x1d1] sm:$0xff]
    %v1367 = vld [vmem:[%s1010 + $0x1e1] sm:$0xff]
    %v1368 = vld [vmem:[%s1010 + $0x1e9] sm:$0xff]
    %v1369 = vld [vmem:[%s1010 + $0x1f9] sm:$0xff]
    %v1370 = vld [vmem:[%s1010 + $0x201] sm:$0xff]
    %v1371 = vld [vmem:[%s1010 + $0x211] sm:$0xff]
    %v1372 = vld [vmem:[%s1010 + $0x219] sm:$0xff]
    %v1373 = vld [vmem:[%s1010 + $0x229] sm:$0xff]
    %v1374 = vld [vmem:[%s1010 + $0x231] sm:$0xff]
    %v1375 = vld [vmem:[%s1010 + $0x241] sm:$0xff]
    %v1376 = vld [vmem:[%s1010 + $0x249] sm:$0xff]
    %v1377 = vld [vmem:[%s1010 + $0x259] sm:$0xff]
    %v1378 = vld [vmem:[%s1010 + $0x261] sm:$0xff]
    %v1379 = vld [vmem:[%s1010 + $0x271] sm:$0xff]
    %v1380 = vld [vmem:[%s1010 + $0x279] sm:$0xff]
    %v1381 = vld [vmem:[%s1010 + $0x289] sm:$0xff]
    %v1382 = vld [vmem:[%s1010 + $0x291] sm:$0xff]
    %v1383 = vld [vmem:[%s1010 + $0x2a1] sm:$0xff]
    %v1384 = vld [vmem:[%s1010 + $0x2a9] sm:$0xff]
    %v1385 = vld [vmem:[%s1010 + $0x2b9] sm:$0xff]
    %v1386 = vld [vmem:[%s1010 + $0x2c1] sm:$0xff]
    %v1387 = vld [vmem:[%s1010 + $0x2d1] sm:$0xff]
    %v1388 = vld [vmem:[%s1010 + $0x2d9] sm:$0xff]
    %v1389 = vld [vmem:[%s1010 + $0x2e9] sm:$0xff]
    %v1390 = vld [vmem:[%s1010 + $0x2f1] sm:$0xff]
    %v1391 = vld [vmem:[%s1010 + $0x301] sm:$0xff]
    %v1392 = vld [vmem:[%s1010 + $0x309] sm:$0xff]
    %v1393 = vld [vmem:[%s1010 + $0x319] sm:$0xff]
    %v1394 = vld [vmem:[%s1010 + $0x321] sm:$0xff]
    %v1395 = vld [vmem:[%s1010 + $0x2] sm:$0xff]
    %v1396 = vld [vmem:[%s1010 + $0xa] sm:$0xff]
    %v1397 = vld [vmem:[%s1010 + $0x1a] sm:$0xff]
    %v1398 = vld [vmem:[%s1010 + $0x22] sm:$0xff]
    %v1399 = vld [vmem:[%s1010 + $0x32] sm:$0xff]
    %v1400 = vld [vmem:[%s1010 + $0x3a] sm:$0xff]
    %v1401 = vld [vmem:[%s1010 + $0x4a] sm:$0xff]
    %v1402 = vld [vmem:[%s1010 + $0x52] sm:$0xff]
    %v1403 = vld [vmem:[%s1010 + $0x62] sm:$0xff]
    %v1404 = vld [vmem:[%s1010 + $0x6a] sm:$0xff]
    %v1405 = vld [vmem:[%s1010 + $0x7a] sm:$0xff]
    %v1406 = vld [vmem:[%s1010 + $0x82] sm:$0xff]
    %v1407 = vld [vmem:[%s1010 + $0x92] sm:$0xff]
    %v1408 = vld [vmem:[%s1010 + $0x9a] sm:$0xff]
    %v1409 = vld [vmem:[%s1010 + $0xaa] sm:$0xff]
    %v1410 = vld [vmem:[%s1010 + $0xb2] sm:$0xff]
    %v1411 = vld [vmem:[%s1010 + $0xc2] sm:$0xff]
    %v1412 = vld [vmem:[%s1010 + $0xca] sm:$0xff]
    %v1413 = vld [vmem:[%s1010 + $0xda] sm:$0xff]
    %v1414 = vld [vmem:[%s1010 + $0xe2] sm:$0xff]
    %v1415 = vld [vmem:[%s1010 + $0xf2] sm:$0xff]
    %v1416 = vld [vmem:[%s1010 + $0xfa] sm:$0xff]
    %v1417 = vld [vmem:[%s1010 + $0x10a] sm:$0xff]
    %v1418 = vld [vmem:[%s1010 + $0x112] sm:$0xff]
    %v1419 = vld [vmem:[%s1010 + $0x122] sm:$0xff]
    %v1420 = vld [vmem:[%s1010 + $0x12a] sm:$0xff]
    %v1421 = vld [vmem:[%s1010 + $0x13a] sm:$0xff]
    %v1422 = vld [vmem:[%s1010 + $0x142] sm:$0xff]
    %v1423 = vld [vmem:[%s1010 + $0x152] sm:$0xff]
    %v1424 = vld [vmem:[%s1010 + $0x15a] sm:$0xff]
    %v1425 = vld [vmem:[%s1010 + $0x16a] sm:$0xff]
    %v1426 = vld [vmem:[%s1010 + $0x172] sm:$0xff]
    %v1427 = vld [vmem:[%s1010 + $0x1b2] sm:$0xff]
    %v1428 = vld [vmem:[%s1010 + $0x1ba] sm:$0xff]
    %v1429 = vld [vmem:[%s1010 + $0x1ca] sm:$0xff]
    %v1430 = vld [vmem:[%s1010 + $0x1d2] sm:$0xff]
    %v1431 = vld [vmem:[%s1010 + $0x1e2] sm:$0xff]
    %v1432 = vld [vmem:[%s1010 + $0x1ea] sm:$0xff]
    %v1433 = vld [vmem:[%s1010 + $0x1fa] sm:$0xff]
    %v1434 = vld [vmem:[%s1010 + $0x202] sm:$0xff]
    %v1435 = vld [vmem:[%s1010 + $0x212] sm:$0xff]
    %v1436 = vld [vmem:[%s1010 + $0x21a] sm:$0xff]
    %v1437 = vld [vmem:[%s1010 + $0x22a] sm:$0xff]
    %v1438 = vld [vmem:[%s1010 + $0x232] sm:$0xff]
    %v1439 = vld [vmem:[%s1010 + $0x242] sm:$0xff]
    %v1440 = vld [vmem:[%s1010 + $0x24a] sm:$0xff]
    %v1441 = vld [vmem:[%s1010 + $0x25a] sm:$0xff]
    %v1442 = vld [vmem:[%s1010 + $0x262] sm:$0xff]
    %v1443 = vld [vmem:[%s1010 + $0x272] sm:$0xff]
    %v1444 = vld [vmem:[%s1010 + $0x27a] sm:$0xff]
    %v1445 = vld [vmem:[%s1010 + $0x28a] sm:$0xff]
    %v1446 = vld [vmem:[%s1010 + $0x292] sm:$0xff]
    %v1447 = vld [vmem:[%s1010 + $0x2a2] sm:$0xff]
    %v1448 = vld [vmem:[%s1010 + $0x2aa] sm:$0xff]
    %v1449 = vld [vmem:[%s1010 + $0x2ba] sm:$0xff]
    %v1450 = vld [vmem:[%s1010 + $0x2c2] sm:$0xff]
    %v1451 = vld [vmem:[%s1010 + $0x2d2] sm:$0xff]
    %v1452 = vld [vmem:[%s1010 + $0x2da] sm:$0xff]
    %v1453 = vld [vmem:[%s1010 + $0x2ea] sm:$0xff]
    %v1454 = vld [vmem:[%s1010 + $0x2f2] sm:$0xff]
    %v1455 = vld [vmem:[%s1010 + $0x302] sm:$0xff]
    %v1456 = vld [vmem:[%s1010 + $0x30a] sm:$0xff]
    %v1457 = vld [vmem:[%s1010 + $0x31a] sm:$0xff]
    %v1458 = vld [vmem:[%s1010 + $0x322] sm:$0xff]
    %s1459 = scalar_lea.vmem [#allocation2], 48
    %v1460 = vld [vmem:[%s1459] sm:$0xff]
    %v1461 = vld [vmem:[%s1459 + $0x8] sm:$0xff]
    %v1462 = vld [vmem:[%s1459 + $0x18] sm:$0xff]
    %v1463 = vld [vmem:[%s1459 + $0x20] sm:$0xff]
    %v1464 = vld [vmem:[%s1459 + $0x30] sm:$0xff]
    %v1465 = vld [vmem:[%s1459 + $0x38] sm:$0xff]
    %v1466 = vld [vmem:[%s1459 + $0x48] sm:$0xff]
    %v1467 = vld [vmem:[%s1459 + $0x50] sm:$0xff]
    %v1468 = vld [vmem:[%s1459 + $0x60] sm:$0xff]
    %v1469 = vld [vmem:[%s1459 + $0x68] sm:$0xff]
    %v1470 = vld [vmem:[%s1459 + $0x78] sm:$0xff]
    %v1471 = vld [vmem:[%s1459 + $0x80] sm:$0xff]
    %v1472 = vld [vmem:[%s1459 + $0x90] sm:$0xff]
    %v1473 = vld [vmem:[%s1459 + $0x98] sm:$0xff]
    %v1474 = vld [vmem:[%s1459 + $0xa8] sm:$0xff]
    %v1475 = vld [vmem:[%s1459 + $0xb0] sm:$0xff]
    %v1476 = vld [vmem:[%s1459 + $0xc0] sm:$0xff]
    %v1477 = vld [vmem:[%s1459 + $0xc8] sm:$0xff]
    %v1478 = vld [vmem:[%s1459 + $0xd8] sm:$0xff]
    %v1479 = vld [vmem:[%s1459 + $0xe0] sm:$0xff]
    %v1480 = vld [vmem:[%s1459 + $0xf0] sm:$0xff]
    %v1481 = vld [vmem:[%s1459 + $0xf8] sm:$0xff]
    %v1482 = vld [vmem:[%s1459 + $0x108] sm:$0xff]
    %v1483 = vld [vmem:[%s1459 + $0x110] sm:$0xff]
    %v1484 = vld [vmem:[%s1459 + $0x120] sm:$0xff]
    %v1485 = vld [vmem:[%s1459 + $0x128] sm:$0xff]
    %v1486 = vld [vmem:[%s1459 + $0x138] sm:$0xff]
    %v1487 = vld [vmem:[%s1459 + $0x140] sm:$0xff]
    %v1488 = vld [vmem:[%s1459 + $0x150] sm:$0xff]
    %v1489 = vld [vmem:[%s1459 + $0x158] sm:$0xff]
    %v1490 = vld [vmem:[%s1459 + $0x168] sm:$0xff]
    %v1491 = vld [vmem:[%s1459 + $0x170] sm:$0xff]
    %v1492 = vld [vmem:[%s1459 + $0x1b0] sm:$0xff]
    %v1493 = vld [vmem:[%s1459 + $0x1b8] sm:$0xff]
    %v1494 = vld [vmem:[%s1459 + $0x1c8] sm:$0xff]
    %v1495 = vld [vmem:[%s1459 + $0x1d0] sm:$0xff]
    %v1496 = vld [vmem:[%s1459 + $0x1e0] sm:$0xff]
    %v1497 = vld [vmem:[%s1459 + $0x1e8] sm:$0xff]
    %v1498 = vld [vmem:[%s1459 + $0x1f8] sm:$0xff]
    %v1499 = vld [vmem:[%s1459 + $0x200] sm:$0xff]
    %v1500 = vld [vmem:[%s1459 + $0x210] sm:$0xff]
    %v1501 = vld [vmem:[%s1459 + $0x218] sm:$0xff]
    %v1502 = vld [vmem:[%s1459 + $0x228] sm:$0xff]
    %v1503 = vld [vmem:[%s1459 + $0x230] sm:$0xff]
    %v1504 = vld [vmem:[%s1459 + $0x240] sm:$0xff]
    %v1505 = vld [vmem:[%s1459 + $0x248] sm:$0xff]
    %v1506 = vld [vmem:[%s1459 + $0x258] sm:$0xff]
    %v1507 = vld [vmem:[%s1459 + $0x260] sm:$0xff]
    %v1508 = vld [vmem:[%s1459 + $0x270] sm:$0xff]
    %v1509 = vld [vmem:[%s1459 + $0x278] sm:$0xff]
    %v1510 = vld [vmem:[%s1459 + $0x288] sm:$0xff]
    %v1511 = vld [vmem:[%s1459 + $0x290] sm:$0xff]
    %v1512 = vld [vmem:[%s1459 + $0x2a0] sm:$0xff]
    %v1513 = vld [vmem:[%s1459 + $0x2a8] sm:$0xff]
    %v1514 = vld [vmem:[%s1459 + $0x2b8] sm:$0xff]
    %v1515 = vld [vmem:[%s1459 + $0x2c0] sm:$0xff]
    %v1516 = vld [vmem:[%s1459 + $0x2d0] sm:$0xff]
    %v1517 = vld [vmem:[%s1459 + $0x2d8] sm:$0xff]
    %v1518 = vld [vmem:[%s1459 + $0x2e8] sm:$0xff]
    %v1519 = vld [vmem:[%s1459 + $0x2f0] sm:$0xff]
    %v1520 = vld [vmem:[%s1459 + $0x300] sm:$0xff]
    %v1521 = vld [vmem:[%s1459 + $0x308] sm:$0xff]
    %v1522 = vld [vmem:[%s1459 + $0x318] sm:$0xff]
    %v1523 = vld [vmem:[%s1459 + $0x320] sm:$0xff]
    %v1524 = vld [vmem:[%s1459 + $0x1] sm:$0xff]
    %v1525 = vld [vmem:[%s1459 + $0x9] sm:$0xff]
    %v1526 = vld [vmem:[%s1459 + $0x19] sm:$0xff]
    %v1527 = vld [vmem:[%s1459 + $0x21] sm:$0xff]
    %v1528 = vld [vmem:[%s1459 + $0x31] sm:$0xff]
    %v1529 = vld [vmem:[%s1459 + $0x39] sm:$0xff]
    %v1530 = vld [vmem:[%s1459 + $0x49] sm:$0xff]
    %v1531 = vld [vmem:[%s1459 + $0x51] sm:$0xff]
    %v1532 = vld [vmem:[%s1459 + $0x61] sm:$0xff]
    %v1533 = vld [vmem:[%s1459 + $0x69] sm:$0xff]
    %v1534 = vld [vmem:[%s1459 + $0x79] sm:$0xff]
    %v1535 = vld [vmem:[%s1459 + $0x81] sm:$0xff]
    %v1536 = vld [vmem:[%s1459 + $0x91] sm:$0xff]
    %v1537 = vld [vmem:[%s1459 + $0x99] sm:$0xff]
    %v1538 = vld [vmem:[%s1459 + $0xa9] sm:$0xff]
    %v1539 = vld [vmem:[%s1459 + $0xb1] sm:$0xff]
    %v1540 = vld [vmem:[%s1459 + $0xc1] sm:$0xff]
    %v1541 = vld [vmem:[%s1459 + $0xc9] sm:$0xff]
    %v1542 = vld [vmem:[%s1459 + $0xd9] sm:$0xff]
    %v1543 = vld [vmem:[%s1459 + $0xe1] sm:$0xff]
    %v1544 = vld [vmem:[%s1459 + $0xf1] sm:$0xff]
    %v1545 = vld [vmem:[%s1459 + $0xf9] sm:$0xff]
    %v1546 = vld [vmem:[%s1459 + $0x109] sm:$0xff]
    %v1547 = vld [vmem:[%s1459 + $0x111] sm:$0xff]
    %v1548 = vld [vmem:[%s1459 + $0x121] sm:$0xff]
    %v1549 = vld [vmem:[%s1459 + $0x129] sm:$0xff]
    %v1550 = vld [vmem:[%s1459 + $0x139] sm:$0xff]
    %v1551 = vld [vmem:[%s1459 + $0x141] sm:$0xff]
    %v1552 = vld [vmem:[%s1459 + $0x151] sm:$0xff]
    %v1553 = vld [vmem:[%s1459 + $0x159] sm:$0xff]
    %v1554 = vld [vmem:[%s1459 + $0x169] sm:$0xff]
    %v1555 = vld [vmem:[%s1459 + $0x171] sm:$0xff]
    %v1556 = vld [vmem:[%s1459 + $0x1b1] sm:$0xff]
    %v1557 = vld [vmem:[%s1459 + $0x1b9] sm:$0xff]
    %v1558 = vld [vmem:[%s1459 + $0x1c9] sm:$0xff]
    %v1559 = vld [vmem:[%s1459 + $0x1d1] sm:$0xff]
    %v1560 = vld [vmem:[%s1459 + $0x1e1] sm:$0xff]
    %v1561 = vld [vmem:[%s1459 + $0x1e9] sm:$0xff]
    %v1562 = vld [vmem:[%s1459 + $0x1f9] sm:$0xff]
    %v1563 = vld [vmem:[%s1459 + $0x201] sm:$0xff]
    %v1564 = vld [vmem:[%s1459 + $0x211] sm:$0xff]
    %v1565 = vld [vmem:[%s1459 + $0x219] sm:$0xff]
    %v1566 = vld [vmem:[%s1459 + $0x229] sm:$0xff]
    %v1567 = vld [vmem:[%s1459 + $0x231] sm:$0xff]
    %v1568 = vld [vmem:[%s1459 + $0x241] sm:$0xff]
    %v1569 = vld [vmem:[%s1459 + $0x249] sm:$0xff]
    %v1570 = vld [vmem:[%s1459 + $0x259] sm:$0xff]
    %v1571 = vld [vmem:[%s1459 + $0x261] sm:$0xff]
    %v1572 = vld [vmem:[%s1459 + $0x271] sm:$0xff]
    %v1573 = vld [vmem:[%s1459 + $0x279] sm:$0xff]
    %v1574 = vld [vmem:[%s1459 + $0x289] sm:$0xff]
    %v1575 = vld [vmem:[%s1459 + $0x291] sm:$0xff]
    %v1576 = vld [vmem:[%s1459 + $0x2a1] sm:$0xff]
    %v1577 = vld [vmem:[%s1459 + $0x2a9] sm:$0xff]
    %v1578 = vld [vmem:[%s1459 + $0x2b9] sm:$0xff]
    %v1579 = vld [vmem:[%s1459 + $0x2c1] sm:$0xff]
    %v1580 = vld [vmem:[%s1459 + $0x2d1] sm:$0xff]
    %v1581 = vld [vmem:[%s1459 + $0x2d9] sm:$0xff]
    %v1582 = vld [vmem:[%s1459 + $0x2e9] sm:$0xff]
    %v1583 = vld [vmem:[%s1459 + $0x2f1] sm:$0xff]
    %v1584 = vld [vmem:[%s1459 + $0x301] sm:$0xff]
    %v1585 = vld [vmem:[%s1459 + $0x309] sm:$0xff]
    %v1586 = vld [vmem:[%s1459 + $0x319] sm:$0xff]
    %v1587 = vld [vmem:[%s1459 + $0x321] sm:$0xff]
    %v1588 = vld [vmem:[%s1459 + $0x2] sm:$0xff]
    %v1589 = vld [vmem:[%s1459 + $0xa] sm:$0xff]
    %v1590 = vld [vmem:[%s1459 + $0x1a] sm:$0xff]
    %v1591 = vld [vmem:[%s1459 + $0x22] sm:$0xff]
    %v1592 = vld [vmem:[%s1459 + $0x32] sm:$0xff]
    %v1593 = vld [vmem:[%s1459 + $0x3a] sm:$0xff]
    %v1594 = vld [vmem:[%s1459 + $0x4a] sm:$0xff]
    %v1595 = vld [vmem:[%s1459 + $0x52] sm:$0xff]
    %v1596 = vld [vmem:[%s1459 + $0x62] sm:$0xff]
    %v1597 = vld [vmem:[%s1459 + $0x6a] sm:$0xff]
    %v1598 = vld [vmem:[%s1459 + $0x7a] sm:$0xff]
    %v1599 = vld [vmem:[%s1459 + $0x82] sm:$0xff]
    %v1600 = vld [vmem:[%s1459 + $0x92] sm:$0xff]
    %v1601 = vld [vmem:[%s1459 + $0x9a] sm:$0xff]
    %v1602 = vld [vmem:[%s1459 + $0xaa] sm:$0xff]
    %v1603 = vld [vmem:[%s1459 + $0xb2] sm:$0xff]
    %v1604 = vld [vmem:[%s1459 + $0xc2] sm:$0xff]
    %v1605 = vld [vmem:[%s1459 + $0xca] sm:$0xff]
    %v1606 = vld [vmem:[%s1459 + $0xda] sm:$0xff]
    %v1607 = vld [vmem:[%s1459 + $0xe2] sm:$0xff]
    %v1608 = vld [vmem:[%s1459 + $0xf2] sm:$0xff]
    %v1609 = vld [vmem:[%s1459 + $0xfa] sm:$0xff]
    %v1610 = vld [vmem:[%s1459 + $0x10a] sm:$0xff]
    %v1611 = vld [vmem:[%s1459 + $0x112] sm:$0xff]
    %v1612 = vld [vmem:[%s1459 + $0x122] sm:$0xff]
    %v1613 = vld [vmem:[%s1459 + $0x12a] sm:$0xff]
    %v1614 = vld [vmem:[%s1459 + $0x13a] sm:$0xff]
    %v1615 = vld [vmem:[%s1459 + $0x142] sm:$0xff]
    %v1616 = vld [vmem:[%s1459 + $0x152] sm:$0xff]
    %v1617 = vld [vmem:[%s1459 + $0x15a] sm:$0xff]
    %v1618 = vld [vmem:[%s1459 + $0x16a] sm:$0xff]
    %v1619 = vld [vmem:[%s1459 + $0x172] sm:$0xff]
    %v1620 = vld [vmem:[%s1459 + $0x1b2] sm:$0xff]
    %v1621 = vld [vmem:[%s1459 + $0x1ba] sm:$0xff]
    %v1622 = vld [vmem:[%s1459 + $0x1ca] sm:$0xff]
    %v1623 = vld [vmem:[%s1459 + $0x1d2] sm:$0xff]
    %v1624 = vld [vmem:[%s1459 + $0x1e2] sm:$0xff]
    %v1625 = vld [vmem:[%s1459 + $0x1ea] sm:$0xff]
    %v1626 = vld [vmem:[%s1459 + $0x1fa] sm:$0xff]
    %v1627 = vld [vmem:[%s1459 + $0x202] sm:$0xff]
    %v1628 = vld [vmem:[%s1459 + $0x212] sm:$0xff]
    %v1629 = vld [vmem:[%s1459 + $0x21a] sm:$0xff]
    %v1630 = vld [vmem:[%s1459 + $0x22a] sm:$0xff]
    %v1631 = vld [vmem:[%s1459 + $0x232] sm:$0xff]
    %v1632 = vld [vmem:[%s1459 + $0x242] sm:$0xff]
    %v1633 = vld [vmem:[%s1459 + $0x24a] sm:$0xff]
    %v1634 = vld [vmem:[%s1459 + $0x25a] sm:$0xff]
    %v1635 = vld [vmem:[%s1459 + $0x262] sm:$0xff]
    %v1636 = vld [vmem:[%s1459 + $0x272] sm:$0xff]
    %v1637 = vld [vmem:[%s1459 + $0x27a] sm:$0xff]
    %v1638 = vld [vmem:[%s1459 + $0x28a] sm:$0xff]
    %v1639 = vld [vmem:[%s1459 + $0x292] sm:$0xff]
    %v1640 = vld [vmem:[%s1459 + $0x2a2] sm:$0xff]
    %v1641 = vld [vmem:[%s1459 + $0x2aa] sm:$0xff]
    %v1642 = vld [vmem:[%s1459 + $0x2ba] sm:$0xff]
    %v1643 = vld [vmem:[%s1459 + $0x2c2] sm:$0xff]
    %v1644 = vld [vmem:[%s1459 + $0x2d2] sm:$0xff]
    %v1645 = vld [vmem:[%s1459 + $0x2da] sm:$0xff]
    %v1646 = vld [vmem:[%s1459 + $0x2ea] sm:$0xff]
    %v1647 = vld [vmem:[%s1459 + $0x2f2] sm:$0xff]
    %v1648 = vld [vmem:[%s1459 + $0x302] sm:$0xff]
    %v1649 = vld [vmem:[%s1459 + $0x30a] sm:$0xff]
    %v1650 = vld [vmem:[%s1459 + $0x31a] sm:$0xff]
    %v1651 = vld [vmem:[%s1459 + $0x322] sm:$0xff]
    %1716 = vrot.lane.b32.xlu0 %v1139, 8
    %v1717 = vpop.permute.xlu0 %1716
    %1718 = vrot.lane.b32.xlu0 %v1140, 8
    %v1719 = vpop.permute.xlu0 %1718
    %1720 = vrot.lane.b32.xlu0 %v1141, 8
    %v1721 = vpop.permute.xlu0 %1720
    %1722 = vrot.lane.b32.xlu0 %v1142, 8
    %v1723 = vpop.permute.xlu0 %1722
    %1724 = vrot.lane.b32.xlu0 %v1143, 8
    %v1725 = vpop.permute.xlu0 %1724
    %1726 = vrot.lane.b32.xlu0 %v1144, 8
    %v1727 = vpop.permute.xlu0 %1726
    %1728 = vrot.lane.b32.xlu0 %v1145, 8
    %v1729 = vpop.permute.xlu0 %1728
    %1730 = vrot.lane.b32.xlu0 %v1146, 8
    %v1731 = vpop.permute.xlu0 %1730
    %1732 = vrot.lane.b32.xlu0 %v1147, 8
    %v1733 = vpop.permute.xlu0 %1732
    %1734 = vrot.lane.b32.xlu0 %v1148, 8
    %v1735 = vpop.permute.xlu0 %1734
    %1736 = vrot.lane.b32.xlu0 %v1149, 8
    %v1737 = vpop.permute.xlu0 %1736
    %1738 = vrot.lane.b32.xlu0 %v1150, 8
    %v1739 = vpop.permute.xlu0 %1738
    %1740 = vrot.lane.b32.xlu0 %v1151, 8
    %v1741 = vpop.permute.xlu0 %1740
    %1742 = vrot.lane.b32.xlu0 %v1152, 8
    %v1743 = vpop.permute.xlu0 %1742
    %1744 = vrot.lane.b32.xlu0 %v1153, 8
    %v1745 = vpop.permute.xlu0 %1744
    %1746 = vrot.lane.b32.xlu0 %v1154, 8
    %v1747 = vpop.permute.xlu0 %1746
    %1748 = vrot.lane.b32.xlu0 %v1155, 8
    %v1749 = vpop.permute.xlu0 %1748
    %1750 = vrot.lane.b32.xlu0 %v1156, 8
    %v1751 = vpop.permute.xlu0 %1750
    %1752 = vrot.lane.b32.xlu0 %v1157, 8
    %v1753 = vpop.permute.xlu0 %1752
    %1754 = vrot.lane.b32.xlu0 %v1158, 8
    %v1755 = vpop.permute.xlu0 %1754
    %1756 = vrot.lane.b32.xlu0 %v1159, 8
    %v1757 = vpop.permute.xlu0 %1756
    %1758 = vrot.lane.b32.xlu0 %v1160, 8
    %v1759 = vpop.permute.xlu0 %1758
    %1760 = vrot.lane.b32.xlu0 %v1161, 8
    %v1761 = vpop.permute.xlu0 %1760
    %1762 = vrot.lane.b32.xlu0 %v1162, 8
    %v1763 = vpop.permute.xlu0 %1762
    %1764 = vrot.lane.b32.xlu0 %v1163, 8
    %v1765 = vpop.permute.xlu0 %1764
    %1766 = vrot.lane.b32.xlu0 %v1164, 8
    %v1767 = vpop.permute.xlu0 %1766
    %1768 = vrot.lane.b32.xlu0 %v1165, 8
    %v1769 = vpop.permute.xlu0 %1768
    %1770 = vrot.lane.b32.xlu0 %v1166, 8
    %v1771 = vpop.permute.xlu0 %1770
    %1772 = vrot.lane.b32.xlu0 %v1167, 8
    %v1773 = vpop.permute.xlu0 %1772
    %1774 = vrot.lane.b32.xlu0 %v1168, 8
    %v1775 = vpop.permute.xlu0 %1774
    %1776 = vrot.lane.b32.xlu0 %v1169, 8
    %v1777 = vpop.permute.xlu0 %1776
    %1778 = vrot.lane.b32.xlu0 %v1170, 8
    %v1779 = vpop.permute.xlu0 %1778
    %1780 = vrot.lane.b32.xlu0 %v1171, 8
    %v1781 = vpop.permute.xlu0 %1780
    %1782 = vrot.lane.b32.xlu0 %v1172, 8
    %v1783 = vpop.permute.xlu0 %1782
    %1784 = vrot.lane.b32.xlu0 %v1173, 8
    %v1785 = vpop.permute.xlu0 %1784
    %1786 = vrot.lane.b32.xlu0 %v1174, 8
    %v1787 = vpop.permute.xlu0 %1786
    %1788 = vrot.lane.b32.xlu0 %v1175, 8
    %v1789 = vpop.permute.xlu0 %1788
    %1790 = vrot.lane.b32.xlu0 %v1176, 8
    %v1791 = vpop.permute.xlu0 %1790
    %1792 = vrot.lane.b32.xlu0 %v1177, 8
    %v1793 = vpop.permute.xlu0 %1792
    %1794 = vrot.lane.b32.xlu0 %v1178, 8
    %v1795 = vpop.permute.xlu0 %1794
    %1796 = vrot.lane.b32.xlu0 %v1179, 8
    %v1797 = vpop.permute.xlu0 %1796
    %1798 = vrot.lane.b32.xlu0 %v1180, 8
    %v1799 = vpop.permute.xlu0 %1798
    %1800 = vrot.lane.b32.xlu0 %v1181, 8
    %v1801 = vpop.permute.xlu0 %1800
    %1802 = vrot.lane.b32.xlu0 %v1182, 8
    %v1803 = vpop.permute.xlu0 %1802
    %1804 = vrot.lane.b32.xlu0 %v1183, 8
    %v1805 = vpop.permute.xlu0 %1804
    %1806 = vrot.lane.b32.xlu0 %v1184, 8
    %v1807 = vpop.permute.xlu0 %1806
    %1808 = vrot.lane.b32.xlu0 %v1185, 8
    %v1809 = vpop.permute.xlu0 %1808
    %1810 = vrot.lane.b32.xlu0 %v1186, 8
    %v1811 = vpop.permute.xlu0 %1810
    %1812 = vrot.lane.b32.xlu0 %v1187, 8
    %v1813 = vpop.permute.xlu0 %1812
    %1814 = vrot.lane.b32.xlu0 %v1188, 8
    %v1815 = vpop.permute.xlu0 %1814
    %1816 = vrot.lane.b32.xlu0 %v1189, 8
    %v1817 = vpop.permute.xlu0 %1816
    %1818 = vrot.lane.b32.xlu0 %v1190, 8
    %v1819 = vpop.permute.xlu0 %1818
    %1820 = vrot.lane.b32.xlu0 %v1191, 8
    %v1821 = vpop.permute.xlu0 %1820
    %1822 = vrot.lane.b32.xlu0 %v1192, 8
    %v1823 = vpop.permute.xlu0 %1822
    %1824 = vrot.lane.b32.xlu0 %v1193, 8
    %v1825 = vpop.permute.xlu0 %1824
    %1826 = vrot.lane.b32.xlu0 %v1194, 8
    %v1827 = vpop.permute.xlu0 %1826
    %1828 = vrot.lane.b32.xlu0 %v1195, 8
    %v1829 = vpop.permute.xlu0 %1828
    %1830 = vrot.lane.b32.xlu0 %v1196, 8
    %v1831 = vpop.permute.xlu0 %1830
    %1832 = vrot.lane.b32.xlu0 %v1197, 8
    %v1833 = vpop.permute.xlu0 %1832
    %1834 = vrot.lane.b32.xlu0 %v1198, 8
    %v1835 = vpop.permute.xlu0 %1834
    %1836 = vrot.lane.b32.xlu0 %v1199, 8
    %v1837 = vpop.permute.xlu0 %1836
    %1838 = vrot.lane.b32.xlu0 %v1200, 8
    %v1839 = vpop.permute.xlu0 %1838
    %1840 = vrot.lane.b32.xlu0 %v1201, 8
    %v1841 = vpop.permute.xlu0 %1840
    %1842 = vrot.lane.b32.xlu0 %v1202, 8
    %v1843 = vpop.permute.xlu0 %1842
    %1972 = vrot.lane.b32.xlu0 %v1203, 16
    %v1973 = vpop.permute.xlu0 %1972
    %1974 = vrot.lane.b32.xlu0 %v1204, 16
    %v1975 = vpop.permute.xlu0 %1974
    %1976 = vrot.lane.b32.xlu0 %v1205, 16
    %v1977 = vpop.permute.xlu0 %1976
    %1978 = vrot.lane.b32.xlu0 %v1206, 16
    %v1979 = vpop.permute.xlu0 %1978
    %1980 = vrot.lane.b32.xlu0 %v1207, 16
    %v1981 = vpop.permute.xlu0 %1980
    %1982 = vrot.lane.b32.xlu0 %v1208, 16
    %v1983 = vpop.permute.xlu0 %1982
    %1984 = vrot.lane.b32.xlu0 %v1209, 16
    %v1985 = vpop.permute.xlu0 %1984
    %1986 = vrot.lane.b32.xlu0 %v1210, 16
    %v1987 = vpop.permute.xlu0 %1986
    %1988 = vrot.lane.b32.xlu0 %v1211, 16
    %v1989 = vpop.permute.xlu0 %1988
    %1990 = vrot.lane.b32.xlu0 %v1212, 16
    %v1991 = vpop.permute.xlu0 %1990
    %1992 = vrot.lane.b32.xlu0 %v1213, 16
    %v1993 = vpop.permute.xlu0 %1992
    %1994 = vrot.lane.b32.xlu0 %v1214, 16
    %v1995 = vpop.permute.xlu0 %1994
    %1996 = vrot.lane.b32.xlu0 %v1215, 16
    %v1997 = vpop.permute.xlu0 %1996
    %1998 = vrot.lane.b32.xlu0 %v1216, 16
    %v1999 = vpop.permute.xlu0 %1998
    %2000 = vrot.lane.b32.xlu0 %v1217, 16
    %v2001 = vpop.permute.xlu0 %2000
    %2002 = vrot.lane.b32.xlu0 %v1218, 16
    %v2003 = vpop.permute.xlu0 %2002
    %2004 = vrot.lane.b32.xlu0 %v1219, 16
    %v2005 = vpop.permute.xlu0 %2004
    %2006 = vrot.lane.b32.xlu0 %v1220, 16
    %v2007 = vpop.permute.xlu0 %2006
    %2008 = vrot.lane.b32.xlu0 %v1221, 16
    %v2009 = vpop.permute.xlu0 %2008
    %2010 = vrot.lane.b32.xlu0 %v1222, 16
    %v2011 = vpop.permute.xlu0 %2010
    %2012 = vrot.lane.b32.xlu0 %v1223, 16
    %v2013 = vpop.permute.xlu0 %2012
    %2014 = vrot.lane.b32.xlu0 %v1224, 16
    %v2015 = vpop.permute.xlu0 %2014
    %2016 = vrot.lane.b32.xlu0 %v1225, 16
    %v2017 = vpop.permute.xlu0 %2016
    %2018 = vrot.lane.b32.xlu0 %v1226, 16
    %v2019 = vpop.permute.xlu0 %2018
    %2020 = vrot.lane.b32.xlu0 %v1227, 16
    %v2021 = vpop.permute.xlu0 %2020
    %2022 = vrot.lane.b32.xlu0 %v1228, 16
    %v2023 = vpop.permute.xlu0 %2022
    %2024 = vrot.lane.b32.xlu0 %v1229, 16
    %v2025 = vpop.permute.xlu0 %2024
    %2026 = vrot.lane.b32.xlu0 %v1230, 16
    %v2027 = vpop.permute.xlu0 %2026
    %2028 = vrot.lane.b32.xlu0 %v1231, 16
    %v2029 = vpop.permute.xlu0 %2028
    %2030 = vrot.lane.b32.xlu0 %v1232, 16
    %v2031 = vpop.permute.xlu0 %2030
    %2032 = vrot.lane.b32.xlu0 %v1233, 16
    %v2033 = vpop.permute.xlu0 %2032
    %2034 = vrot.lane.b32.xlu0 %v1234, 16
    %v2035 = vpop.permute.xlu0 %2034
    %2036 = vrot.lane.b32.xlu0 %v1235, 16
    %v2037 = vpop.permute.xlu0 %2036
    %2038 = vrot.lane.b32.xlu0 %v1236, 16
    %v2039 = vpop.permute.xlu0 %2038
    %2040 = vrot.lane.b32.xlu0 %v1237, 16
    %v2041 = vpop.permute.xlu0 %2040
    %2042 = vrot.lane.b32.xlu0 %v1238, 16
    %v2043 = vpop.permute.xlu0 %2042
    %2044 = vrot.lane.b32.xlu0 %v1239, 16
    %v2045 = vpop.permute.xlu0 %2044
    %2046 = vrot.lane.b32.xlu0 %v1240, 16
    %v2047 = vpop.permute.xlu0 %2046
    %2048 = vrot.lane.b32.xlu0 %v1241, 16
    %v2049 = vpop.permute.xlu0 %2048
    %2050 = vrot.lane.b32.xlu0 %v1242, 16
    %v2051 = vpop.permute.xlu0 %2050
    %2052 = vrot.lane.b32.xlu0 %v1243, 16
    %v2053 = vpop.permute.xlu0 %2052
    %2054 = vrot.lane.b32.xlu0 %v1244, 16
    %v2055 = vpop.permute.xlu0 %2054
    %2056 = vrot.lane.b32.xlu0 %v1245, 16
    %v2057 = vpop.permute.xlu0 %2056
    %2058 = vrot.lane.b32.xlu0 %v1246, 16
    %v2059 = vpop.permute.xlu0 %2058
    %2060 = vrot.lane.b32.xlu0 %v1247, 16
    %v2061 = vpop.permute.xlu0 %2060
    %2062 = vrot.lane.b32.xlu0 %v1248, 16
    %v2063 = vpop.permute.xlu0 %2062
    %2064 = vrot.lane.b32.xlu0 %v1249, 16
    %v2065 = vpop.permute.xlu0 %2064
    %2066 = vrot.lane.b32.xlu0 %v1250, 16
    %v2067 = vpop.permute.xlu0 %2066
    %2068 = vrot.lane.b32.xlu0 %v1251, 16
    %v2069 = vpop.permute.xlu0 %2068
    %2070 = vrot.lane.b32.xlu0 %v1252, 16
    %v2071 = vpop.permute.xlu0 %2070
    %2072 = vrot.lane.b32.xlu0 %v1253, 16
    %v2073 = vpop.permute.xlu0 %2072
    %2074 = vrot.lane.b32.xlu0 %v1254, 16
    %v2075 = vpop.permute.xlu0 %2074
    %2076 = vrot.lane.b32.xlu0 %v1255, 16
    %v2077 = vpop.permute.xlu0 %2076
    %2078 = vrot.lane.b32.xlu0 %v1256, 16
    %v2079 = vpop.permute.xlu0 %2078
    %2080 = vrot.lane.b32.xlu0 %v1257, 16
    %v2081 = vpop.permute.xlu0 %2080
    %2082 = vrot.lane.b32.xlu0 %v1258, 16
    %v2083 = vpop.permute.xlu0 %2082
    %2084 = vrot.lane.b32.xlu0 %v1259, 16
    %v2085 = vpop.permute.xlu0 %2084
    %2086 = vrot.lane.b32.xlu0 %v1260, 16
    %v2087 = vpop.permute.xlu0 %2086
    %2088 = vrot.lane.b32.xlu0 %v1261, 16
    %v2089 = vpop.permute.xlu0 %2088
    %2090 = vrot.lane.b32.xlu0 %v1262, 16
    %v2091 = vpop.permute.xlu0 %2090
    %2092 = vrot.lane.b32.xlu0 %v1263, 16
    %v2093 = vpop.permute.xlu0 %2092
    %2094 = vrot.lane.b32.xlu0 %v1264, 16
    %v2095 = vpop.permute.xlu0 %2094
    %2096 = vrot.lane.b32.xlu0 %v1265, 16
    %v2097 = vpop.permute.xlu0 %2096
    %2098 = vrot.lane.b32.xlu0 %v1266, 16
    %v2099 = vpop.permute.xlu0 %2098
    %2228 = vrot.lane.b32.xlu0 %v1267, 24
    %v2229 = vpop.permute.xlu0 %2228
    %2230 = vrot.lane.b32.xlu0 %v1268, 24
    %v2231 = vpop.permute.xlu0 %2230
    %2232 = vrot.lane.b32.xlu0 %v1269, 24
    %v2233 = vpop.permute.xlu0 %2232
    %2234 = vrot.lane.b32.xlu0 %v1270, 24
    %v2235 = vpop.permute.xlu0 %2234
    %2236 = vrot.lane.b32.xlu0 %v1271, 24
    %v2237 = vpop.permute.xlu0 %2236
    %2238 = vrot.lane.b32.xlu0 %v1272, 24
    %v2239 = vpop.permute.xlu0 %2238
    %2240 = vrot.lane.b32.xlu0 %v1273, 24
    %v2241 = vpop.permute.xlu0 %2240
    %2242 = vrot.lane.b32.xlu0 %v1274, 24
    %v2243 = vpop.permute.xlu0 %2242
    %2244 = vrot.lane.b32.xlu0 %v1275, 24
    %v2245 = vpop.permute.xlu0 %2244
    %2246 = vrot.lane.b32.xlu0 %v1276, 24
    %v2247 = vpop.permute.xlu0 %2246
    %2248 = vrot.lane.b32.xlu0 %v1277, 24
    %v2249 = vpop.permute.xlu0 %2248
    %2250 = vrot.lane.b32.xlu0 %v1278, 24
    %v2251 = vpop.permute.xlu0 %2250
    %2252 = vrot.lane.b32.xlu0 %v1279, 24
    %v2253 = vpop.permute.xlu0 %2252
    %2254 = vrot.lane.b32.xlu0 %v1280, 24
    %v2255 = vpop.permute.xlu0 %2254
    %2256 = vrot.lane.b32.xlu0 %v1281, 24
    %v2257 = vpop.permute.xlu0 %2256
    %2258 = vrot.lane.b32.xlu0 %v1282, 24
    %v2259 = vpop.permute.xlu0 %2258
    %2260 = vrot.lane.b32.xlu0 %v1283, 24
    %v2261 = vpop.permute.xlu0 %2260
    %2262 = vrot.lane.b32.xlu0 %v1284, 24
    %v2263 = vpop.permute.xlu0 %2262
    %2264 = vrot.lane.b32.xlu0 %v1285, 24
    %v2265 = vpop.permute.xlu0 %2264
    %2266 = vrot.lane.b32.xlu0 %v1286, 24
    %v2267 = vpop.permute.xlu0 %2266
    %2268 = vrot.lane.b32.xlu0 %v1287, 24
    %v2269 = vpop.permute.xlu0 %2268
    %2270 = vrot.lane.b32.xlu0 %v1288, 24
    %v2271 = vpop.permute.xlu0 %2270
    %2272 = vrot.lane.b32.xlu0 %v1289, 24
    %v2273 = vpop.permute.xlu0 %2272
    %2274 = vrot.lane.b32.xlu0 %v1290, 24
    %v2275 = vpop.permute.xlu0 %2274
    %2276 = vrot.lane.b32.xlu0 %v1291, 24
    %v2277 = vpop.permute.xlu0 %2276
    %2278 = vrot.lane.b32.xlu0 %v1292, 24
    %v2279 = vpop.permute.xlu0 %2278
    %2280 = vrot.lane.b32.xlu0 %v1293, 24
    %v2281 = vpop.permute.xlu0 %2280
    %2282 = vrot.lane.b32.xlu0 %v1294, 24
    %v2283 = vpop.permute.xlu0 %2282
    %2284 = vrot.lane.b32.xlu0 %v1295, 24
    %v2285 = vpop.permute.xlu0 %2284
    %2286 = vrot.lane.b32.xlu0 %v1296, 24
    %v2287 = vpop.permute.xlu0 %2286
    %2288 = vrot.lane.b32.xlu0 %v1297, 24
    %v2289 = vpop.permute.xlu0 %2288
    %2290 = vrot.lane.b32.xlu0 %v1298, 24
    %v2291 = vpop.permute.xlu0 %2290
    %2292 = vrot.lane.b32.xlu0 %v1299, 24
    %v2293 = vpop.permute.xlu0 %2292
    %2294 = vrot.lane.b32.xlu0 %v1300, 24
    %v2295 = vpop.permute.xlu0 %2294
    %2296 = vrot.lane.b32.xlu0 %v1301, 24
    %v2297 = vpop.permute.xlu0 %2296
    %2298 = vrot.lane.b32.xlu0 %v1302, 24
    %v2299 = vpop.permute.xlu0 %2298
    %2300 = vrot.lane.b32.xlu0 %v1303, 24
    %v2301 = vpop.permute.xlu0 %2300
    %2302 = vrot.lane.b32.xlu0 %v1304, 24
    %v2303 = vpop.permute.xlu0 %2302
    %2304 = vrot.lane.b32.xlu0 %v1305, 24
    %v2305 = vpop.permute.xlu0 %2304
    %2306 = vrot.lane.b32.xlu0 %v1306, 24
    %v2307 = vpop.permute.xlu0 %2306
    %2308 = vrot.lane.b32.xlu0 %v1307, 24
    %v2309 = vpop.permute.xlu0 %2308
    %2310 = vrot.lane.b32.xlu0 %v1308, 24
    %v2311 = vpop.permute.xlu0 %2310
    %2312 = vrot.lane.b32.xlu0 %v1309, 24
    %v2313 = vpop.permute.xlu0 %2312
    %2314 = vrot.lane.b32.xlu0 %v1310, 24
    %v2315 = vpop.permute.xlu0 %2314
    %2316 = vrot.lane.b32.xlu0 %v1311, 24
    %v2317 = vpop.permute.xlu0 %2316
    %2318 = vrot.lane.b32.xlu0 %v1312, 24
    %v2319 = vpop.permute.xlu0 %2318
    %2320 = vrot.lane.b32.xlu0 %v1313, 24
    %v2321 = vpop.permute.xlu0 %2320
    %2322 = vrot.lane.b32.xlu0 %v1314, 24
    %v2323 = vpop.permute.xlu0 %2322
    %2324 = vrot.lane.b32.xlu0 %v1315, 24
    %v2325 = vpop.permute.xlu0 %2324
    %2326 = vrot.lane.b32.xlu0 %v1316, 24
    %v2327 = vpop.permute.xlu0 %2326
    %2328 = vrot.lane.b32.xlu0 %v1317, 24
    %v2329 = vpop.permute.xlu0 %2328
    %2330 = vrot.lane.b32.xlu0 %v1318, 24
    %v2331 = vpop.permute.xlu0 %2330
    %2332 = vrot.lane.b32.xlu0 %v1319, 24
    %v2333 = vpop.permute.xlu0 %2332
    %2334 = vrot.lane.b32.xlu0 %v1320, 24
    %v2335 = vpop.permute.xlu0 %2334
    %2336 = vrot.lane.b32.xlu0 %v1321, 24
    %v2337 = vpop.permute.xlu0 %2336
    %2338 = vrot.lane.b32.xlu0 %v1322, 24
    %v2339 = vpop.permute.xlu0 %2338
    %2340 = vrot.lane.b32.xlu0 %v1323, 24
    %v2341 = vpop.permute.xlu0 %2340
    %2342 = vrot.lane.b32.xlu0 %v1324, 24
    %v2343 = vpop.permute.xlu0 %2342
    %2344 = vrot.lane.b32.xlu0 %v1325, 24
    %v2345 = vpop.permute.xlu0 %2344
    %2346 = vrot.lane.b32.xlu0 %v1326, 24
    %v2347 = vpop.permute.xlu0 %2346
    %2348 = vrot.lane.b32.xlu0 %v1327, 24
    %v2349 = vpop.permute.xlu0 %2348
    %2350 = vrot.lane.b32.xlu0 %v1328, 24
    %v2351 = vpop.permute.xlu0 %2350
    %2352 = vrot.lane.b32.xlu0 %v1329, 24
    %v2353 = vpop.permute.xlu0 %2352
    %2354 = vrot.lane.b32.xlu0 %v1330, 24
    %v2355 = vpop.permute.xlu0 %2354
    %2484 = vrot.lane.b32.xlu0 %v1331, 32
    %v2485 = vpop.permute.xlu0 %2484
    %2486 = vrot.lane.b32.xlu0 %v1332, 32
    %v2487 = vpop.permute.xlu0 %2486
    %2488 = vrot.lane.b32.xlu0 %v1333, 32
    %v2489 = vpop.permute.xlu0 %2488
    %2490 = vrot.lane.b32.xlu0 %v1334, 32
    %v2491 = vpop.permute.xlu0 %2490
    %2492 = vrot.lane.b32.xlu0 %v1335, 32
    %v2493 = vpop.permute.xlu0 %2492
    %2494 = vrot.lane.b32.xlu0 %v1336, 32
    %v2495 = vpop.permute.xlu0 %2494
    %2496 = vrot.lane.b32.xlu0 %v1337, 32
    %v2497 = vpop.permute.xlu0 %2496
    %2498 = vrot.lane.b32.xlu0 %v1338, 32
    %v2499 = vpop.permute.xlu0 %2498
    %2500 = vrot.lane.b32.xlu0 %v1339, 32
    %v2501 = vpop.permute.xlu0 %2500
    %2502 = vrot.lane.b32.xlu0 %v1340, 32
    %v2503 = vpop.permute.xlu0 %2502
    %2504 = vrot.lane.b32.xlu0 %v1341, 32
    %v2505 = vpop.permute.xlu0 %2504
    %2506 = vrot.lane.b32.xlu0 %v1342, 32
    %v2507 = vpop.permute.xlu0 %2506
    %2508 = vrot.lane.b32.xlu0 %v1343, 32
    %v2509 = vpop.permute.xlu0 %2508
    %2510 = vrot.lane.b32.xlu0 %v1344, 32
    %v2511 = vpop.permute.xlu0 %2510
    %2512 = vrot.lane.b32.xlu0 %v1345, 32
    %v2513 = vpop.permute.xlu0 %2512
    %2514 = vrot.lane.b32.xlu0 %v1346, 32
    %v2515 = vpop.permute.xlu0 %2514
    %2516 = vrot.lane.b32.xlu0 %v1347, 32
    %v2517 = vpop.permute.xlu0 %2516
    %2518 = vrot.lane.b32.xlu0 %v1348, 32
    %v2519 = vpop.permute.xlu0 %2518
    %2520 = vrot.lane.b32.xlu0 %v1349, 32
    %v2521 = vpop.permute.xlu0 %2520
    %2522 = vrot.lane.b32.xlu0 %v1350, 32
    %v2523 = vpop.permute.xlu0 %2522
    %2524 = vrot.lane.b32.xlu0 %v1351, 32
    %v2525 = vpop.permute.xlu0 %2524
    %2526 = vrot.lane.b32.xlu0 %v1352, 32
    %v2527 = vpop.permute.xlu0 %2526
    %2528 = vrot.lane.b32.xlu0 %v1353, 32
    %v2529 = vpop.permute.xlu0 %2528
    %2530 = vrot.lane.b32.xlu0 %v1354, 32
    %v2531 = vpop.permute.xlu0 %2530
    %2532 = vrot.lane.b32.xlu0 %v1355, 32
    %v2533 = vpop.permute.xlu0 %2532
    %2534 = vrot.lane.b32.xlu0 %v1356, 32
    %v2535 = vpop.permute.xlu0 %2534
    %2536 = vrot.lane.b32.xlu0 %v1357, 32
    %v2537 = vpop.permute.xlu0 %2536
    %2538 = vrot.lane.b32.xlu0 %v1358, 32
    %v2539 = vpop.permute.xlu0 %2538
    %2540 = vrot.lane.b32.xlu0 %v1359, 32
    %v2541 = vpop.permute.xlu0 %2540
    %2542 = vrot.lane.b32.xlu0 %v1360, 32
    %v2543 = vpop.permute.xlu0 %2542
    %2544 = vrot.lane.b32.xlu0 %v1361, 32
    %v2545 = vpop.permute.xlu0 %2544
    %2546 = vrot.lane.b32.xlu0 %v1362, 32
    %v2547 = vpop.permute.xlu0 %2546
    %2548 = vrot.lane.b32.xlu0 %v1363, 32
    %v2549 = vpop.permute.xlu0 %2548
    %2550 = vrot.lane.b32.xlu0 %v1364, 32
    %v2551 = vpop.permute.xlu0 %2550
    %2552 = vrot.lane.b32.xlu0 %v1365, 32
    %v2553 = vpop.permute.xlu0 %2552
    %2554 = vrot.lane.b32.xlu0 %v1366, 32
    %v2555 = vpop.permute.xlu0 %2554
    %2556 = vrot.lane.b32.xlu0 %v1367, 32
    %v2557 = vpop.permute.xlu0 %2556
    %2558 = vrot.lane.b32.xlu0 %v1368, 32
    %v2559 = vpop.permute.xlu0 %2558
    %2560 = vrot.lane.b32.xlu0 %v1369, 32
    %v2561 = vpop.permute.xlu0 %2560
    %2562 = vrot.lane.b32.xlu0 %v1370, 32
    %v2563 = vpop.permute.xlu0 %2562
    %2564 = vrot.lane.b32.xlu0 %v1371, 32
    %v2565 = vpop.permute.xlu0 %2564
    %2566 = vrot.lane.b32.xlu0 %v1372, 32
    %v2567 = vpop.permute.xlu0 %2566
    %2568 = vrot.lane.b32.xlu0 %v1373, 32
    %v2569 = vpop.permute.xlu0 %2568
    %2570 = vrot.lane.b32.xlu0 %v1374, 32
    %v2571 = vpop.permute.xlu0 %2570
    %2572 = vrot.lane.b32.xlu0 %v1375, 32
    %v2573 = vpop.permute.xlu0 %2572
    %2574 = vrot.lane.b32.xlu0 %v1376, 32
    %v2575 = vpop.permute.xlu0 %2574
    %2576 = vrot.lane.b32.xlu0 %v1377, 32
    %v2577 = vpop.permute.xlu0 %2576
    %2578 = vrot.lane.b32.xlu0 %v1378, 32
    %v2579 = vpop.permute.xlu0 %2578
    %2580 = vrot.lane.b32.xlu0 %v1379, 32
    %v2581 = vpop.permute.xlu0 %2580
    %2582 = vrot.lane.b32.xlu0 %v1380, 32
    %v2583 = vpop.permute.xlu0 %2582
    %2584 = vrot.lane.b32.xlu0 %v1381, 32
    %v2585 = vpop.permute.xlu0 %2584
    %2586 = vrot.lane.b32.xlu0 %v1382, 32
    %v2587 = vpop.permute.xlu0 %2586
    %2588 = vrot.lane.b32.xlu0 %v1383, 32
    %v2589 = vpop.permute.xlu0 %2588
    %2590 = vrot.lane.b32.xlu0 %v1384, 32
    %v2591 = vpop.permute.xlu0 %2590
    %2592 = vrot.lane.b32.xlu0 %v1385, 32
    %v2593 = vpop.permute.xlu0 %2592
    %2594 = vrot.lane.b32.xlu0 %v1386, 32
    %v2595 = vpop.permute.xlu0 %2594
    %2596 = vrot.lane.b32.xlu0 %v1387, 32
    %v2597 = vpop.permute.xlu0 %2596
    %2598 = vrot.lane.b32.xlu0 %v1388, 32
    %v2599 = vpop.permute.xlu0 %2598
    %2600 = vrot.lane.b32.xlu0 %v1389, 32
    %v2601 = vpop.permute.xlu0 %2600
    %2602 = vrot.lane.b32.xlu0 %v1390, 32
    %v2603 = vpop.permute.xlu0 %2602
    %2604 = vrot.lane.b32.xlu0 %v1391, 32
    %v2605 = vpop.permute.xlu0 %2604
    %2606 = vrot.lane.b32.xlu0 %v1392, 32
    %v2607 = vpop.permute.xlu0 %2606
    %2608 = vrot.lane.b32.xlu0 %v1393, 32
    %v2609 = vpop.permute.xlu0 %2608
    %2610 = vrot.lane.b32.xlu0 %v1394, 32
    %v2611 = vpop.permute.xlu0 %2610
    %2740 = vrot.lane.b32.xlu0 %v1395, 40
    %v2741 = vpop.permute.xlu0 %2740
    %2742 = vrot.lane.b32.xlu0 %v1396, 40
    %v2743 = vpop.permute.xlu0 %2742
    %2744 = vrot.lane.b32.xlu0 %v1397, 40
    %v2745 = vpop.permute.xlu0 %2744
    %2746 = vrot.lane.b32.xlu0 %v1398, 40
    %v2747 = vpop.permute.xlu0 %2746
    %2748 = vrot.lane.b32.xlu0 %v1399, 40
    %v2749 = vpop.permute.xlu0 %2748
    %2750 = vrot.lane.b32.xlu0 %v1400, 40
    %v2751 = vpop.permute.xlu0 %2750
    %2752 = vrot.lane.b32.xlu0 %v1401, 40
    %v2753 = vpop.permute.xlu0 %2752
    %2754 = vrot.lane.b32.xlu0 %v1402, 40
    %v2755 = vpop.permute.xlu0 %2754
    %2756 = vrot.lane.b32.xlu0 %v1403, 40
    %v2757 = vpop.permute.xlu0 %2756
    %2758 = vrot.lane.b32.xlu0 %v1404, 40
    %v2759 = vpop.permute.xlu0 %2758
    %2760 = vrot.lane.b32.xlu0 %v1405, 40
    %v2761 = vpop.permute.xlu0 %2760
    %2762 = vrot.lane.b32.xlu0 %v1406, 40
    %v2763 = vpop.permute.xlu0 %2762
    %2764 = vrot.lane.b32.xlu0 %v1407, 40
    %v2765 = vpop.permute.xlu0 %2764
    %2766 = vrot.lane.b32.xlu0 %v1408, 40
    %v2767 = vpop.permute.xlu0 %2766
    %2768 = vrot.lane.b32.xlu0 %v1409, 40
    %v2769 = vpop.permute.xlu0 %2768
    %2770 = vrot.lane.b32.xlu0 %v1410, 40
    %v2771 = vpop.permute.xlu0 %2770
    %2772 = vrot.lane.b32.xlu0 %v1411, 40
    %v2773 = vpop.permute.xlu0 %2772
    %2774 = vrot.lane.b32.xlu0 %v1412, 40
    %v2775 = vpop.permute.xlu0 %2774
    %2776 = vrot.lane.b32.xlu0 %v1413, 40
    %v2777 = vpop.permute.xlu0 %2776
    %2778 = vrot.lane.b32.xlu0 %v1414, 40
    %v2779 = vpop.permute.xlu0 %2778
    %2780 = vrot.lane.b32.xlu0 %v1415, 40
    %v2781 = vpop.permute.xlu0 %2780
    %2782 = vrot.lane.b32.xlu0 %v1416, 40
    %v2783 = vpop.permute.xlu0 %2782
    %2784 = vrot.lane.b32.xlu0 %v1417, 40
    %v2785 = vpop.permute.xlu0 %2784
    %2786 = vrot.lane.b32.xlu0 %v1418, 40
    %v2787 = vpop.permute.xlu0 %2786
    %2788 = vrot.lane.b32.xlu0 %v1419, 40
    %v2789 = vpop.permute.xlu0 %2788
    %2790 = vrot.lane.b32.xlu0 %v1420, 40
    %v2791 = vpop.permute.xlu0 %2790
    %2792 = vrot.lane.b32.xlu0 %v1421, 40
    %v2793 = vpop.permute.xlu0 %2792
    %2794 = vrot.lane.b32.xlu0 %v1422, 40
    %v2795 = vpop.permute.xlu0 %2794
    %2796 = vrot.lane.b32.xlu0 %v1423, 40
    %v2797 = vpop.permute.xlu0 %2796
    %2798 = vrot.lane.b32.xlu0 %v1424, 40
    %v2799 = vpop.permute.xlu0 %2798
    %2800 = vrot.lane.b32.xlu0 %v1425, 40
    %v2801 = vpop.permute.xlu0 %2800
    %2802 = vrot.lane.b32.xlu0 %v1426, 40
    %v2803 = vpop.permute.xlu0 %2802
    %2804 = vrot.lane.b32.xlu0 %v1427, 40
    %v2805 = vpop.permute.xlu0 %2804
    %2806 = vrot.lane.b32.xlu0 %v1428, 40
    %v2807 = vpop.permute.xlu0 %2806
    %2808 = vrot.lane.b32.xlu0 %v1429, 40
    %v2809 = vpop.permute.xlu0 %2808
    %2810 = vrot.lane.b32.xlu0 %v1430, 40
    %v2811 = vpop.permute.xlu0 %2810
    %2812 = vrot.lane.b32.xlu0 %v1431, 40
    %v2813 = vpop.permute.xlu0 %2812
    %2814 = vrot.lane.b32.xlu0 %v1432, 40
    %v2815 = vpop.permute.xlu0 %2814
    %2816 = vrot.lane.b32.xlu0 %v1433, 40
    %v2817 = vpop.permute.xlu0 %2816
    %2818 = vrot.lane.b32.xlu0 %v1434, 40
    %v2819 = vpop.permute.xlu0 %2818
    %2820 = vrot.lane.b32.xlu0 %v1435, 40
    %v2821 = vpop.permute.xlu0 %2820
    %2822 = vrot.lane.b32.xlu0 %v1436, 40
    %v2823 = vpop.permute.xlu0 %2822
    %2824 = vrot.lane.b32.xlu0 %v1437, 40
    %v2825 = vpop.permute.xlu0 %2824
    %2826 = vrot.lane.b32.xlu0 %v1438, 40
    %v2827 = vpop.permute.xlu0 %2826
    %2828 = vrot.lane.b32.xlu0 %v1439, 40
    %v2829 = vpop.permute.xlu0 %2828
    %2830 = vrot.lane.b32.xlu0 %v1440, 40
    %v2831 = vpop.permute.xlu0 %2830
    %2832 = vrot.lane.b32.xlu0 %v1441, 40
    %v2833 = vpop.permute.xlu0 %2832
    %2834 = vrot.lane.b32.xlu0 %v1442, 40
    %v2835 = vpop.permute.xlu0 %2834
    %2836 = vrot.lane.b32.xlu0 %v1443, 40
    %v2837 = vpop.permute.xlu0 %2836
    %2838 = vrot.lane.b32.xlu0 %v1444, 40
    %v2839 = vpop.permute.xlu0 %2838
    %2840 = vrot.lane.b32.xlu0 %v1445, 40
    %v2841 = vpop.permute.xlu0 %2840
    %2842 = vrot.lane.b32.xlu0 %v1446, 40
    %v2843 = vpop.permute.xlu0 %2842
    %2844 = vrot.lane.b32.xlu0 %v1447, 40
    %v2845 = vpop.permute.xlu0 %2844
    %2846 = vrot.lane.b32.xlu0 %v1448, 40
    %v2847 = vpop.permute.xlu0 %2846
    %2848 = vrot.lane.b32.xlu0 %v1449, 40
    %v2849 = vpop.permute.xlu0 %2848
    %2850 = vrot.lane.b32.xlu0 %v1450, 40
    %v2851 = vpop.permute.xlu0 %2850
    %2852 = vrot.lane.b32.xlu0 %v1451, 40
    %v2853 = vpop.permute.xlu0 %2852
    %2854 = vrot.lane.b32.xlu0 %v1452, 40
    %v2855 = vpop.permute.xlu0 %2854
    %2856 = vrot.lane.b32.xlu0 %v1453, 40
    %v2857 = vpop.permute.xlu0 %2856
    %2858 = vrot.lane.b32.xlu0 %v1454, 40
    %v2859 = vpop.permute.xlu0 %2858
    %2860 = vrot.lane.b32.xlu0 %v1455, 40
    %v2861 = vpop.permute.xlu0 %2860
    %2862 = vrot.lane.b32.xlu0 %v1456, 40
    %v2863 = vpop.permute.xlu0 %2862
    %2864 = vrot.lane.b32.xlu0 %v1457, 40
    %v2865 = vpop.permute.xlu0 %2864
    %2866 = vrot.lane.b32.xlu0 %v1458, 40
    %v2867 = vpop.permute.xlu0 %2866
    %2996 = vrot.lane.b32.xlu0 %v1460, 48
    %v2997 = vpop.permute.xlu0 %2996
    %2998 = vrot.lane.b32.xlu0 %v1461, 48
    %v2999 = vpop.permute.xlu0 %2998
    %3000 = vrot.lane.b32.xlu0 %v1462, 48
    %v3001 = vpop.permute.xlu0 %3000
    %3002 = vrot.lane.b32.xlu0 %v1463, 48
    %v3003 = vpop.permute.xlu0 %3002
    %3004 = vrot.lane.b32.xlu0 %v1464, 48
    %v3005 = vpop.permute.xlu0 %3004
    %3006 = vrot.lane.b32.xlu0 %v1465, 48
    %v3007 = vpop.permute.xlu0 %3006
    %3008 = vrot.lane.b32.xlu0 %v1466, 48
    %v3009 = vpop.permute.xlu0 %3008
    %3010 = vrot.lane.b32.xlu0 %v1467, 48
    %v3011 = vpop.permute.xlu0 %3010
    %3012 = vrot.lane.b32.xlu0 %v1468, 48
    %v3013 = vpop.permute.xlu0 %3012
    %3014 = vrot.lane.b32.xlu0 %v1469, 48
    %v3015 = vpop.permute.xlu0 %3014
    %3016 = vrot.lane.b32.xlu0 %v1470, 48
    %v3017 = vpop.permute.xlu0 %3016
    %3018 = vrot.lane.b32.xlu0 %v1471, 48
    %v3019 = vpop.permute.xlu0 %3018
    %3020 = vrot.lane.b32.xlu0 %v1472, 48
    %v3021 = vpop.permute.xlu0 %3020
    %3022 = vrot.lane.b32.xlu0 %v1473, 48
    %v3023 = vpop.permute.xlu0 %3022
    %3024 = vrot.lane.b32.xlu0 %v1474, 48
    %v3025 = vpop.permute.xlu0 %3024
    %3026 = vrot.lane.b32.xlu0 %v1475, 48
    %v3027 = vpop.permute.xlu0 %3026
    %3028 = vrot.lane.b32.xlu0 %v1476, 48
    %v3029 = vpop.permute.xlu0 %3028
    %3030 = vrot.lane.b32.xlu0 %v1477, 48
    %v3031 = vpop.permute.xlu0 %3030
    %3032 = vrot.lane.b32.xlu0 %v1478, 48
    %v3033 = vpop.permute.xlu0 %3032
    %3034 = vrot.lane.b32.xlu0 %v1479, 48
    %v3035 = vpop.permute.xlu0 %3034
    %3036 = vrot.lane.b32.xlu0 %v1480, 48
    %v3037 = vpop.permute.xlu0 %3036
    %3038 = vrot.lane.b32.xlu0 %v1481, 48
    %v3039 = vpop.permute.xlu0 %3038
    %3040 = vrot.lane.b32.xlu0 %v1482, 48
    %v3041 = vpop.permute.xlu0 %3040
    %3042 = vrot.lane.b32.xlu0 %v1483, 48
    %v3043 = vpop.permute.xlu0 %3042
    %3044 = vrot.lane.b32.xlu0 %v1484, 48
    %v3045 = vpop.permute.xlu0 %3044
    %3046 = vrot.lane.b32.xlu0 %v1485, 48
    %v3047 = vpop.permute.xlu0 %3046
    %3048 = vrot.lane.b32.xlu0 %v1486, 48
    %v3049 = vpop.permute.xlu0 %3048
    %3050 = vrot.lane.b32.xlu0 %v1487, 48
    %v3051 = vpop.permute.xlu0 %3050
    %3052 = vrot.lane.b32.xlu0 %v1488, 48
    %v3053 = vpop.permute.xlu0 %3052
    %3054 = vrot.lane.b32.xlu0 %v1489, 48
    %v3055 = vpop.permute.xlu0 %3054
    %3056 = vrot.lane.b32.xlu0 %v1490, 48
    %v3057 = vpop.permute.xlu0 %3056
    %3058 = vrot.lane.b32.xlu0 %v1491, 48
    %v3059 = vpop.permute.xlu0 %3058
    %3060 = vrot.lane.b32.xlu0 %v1492, 48
    %v3061 = vpop.permute.xlu0 %3060
    %3062 = vrot.lane.b32.xlu0 %v1493, 48
    %v3063 = vpop.permute.xlu0 %3062
    %3064 = vrot.lane.b32.xlu0 %v1494, 48
    %v3065 = vpop.permute.xlu0 %3064
    %3066 = vrot.lane.b32.xlu0 %v1495, 48
    %v3067 = vpop.permute.xlu0 %3066
    %3068 = vrot.lane.b32.xlu0 %v1496, 48
    %v3069 = vpop.permute.xlu0 %3068
    %3070 = vrot.lane.b32.xlu0 %v1497, 48
    %v3071 = vpop.permute.xlu0 %3070
    %3072 = vrot.lane.b32.xlu0 %v1498, 48
    %v3073 = vpop.permute.xlu0 %3072
    %3074 = vrot.lane.b32.xlu0 %v1499, 48
    %v3075 = vpop.permute.xlu0 %3074
    %3076 = vrot.lane.b32.xlu0 %v1500, 48
    %v3077 = vpop.permute.xlu0 %3076
    %3078 = vrot.lane.b32.xlu0 %v1501, 48
    %v3079 = vpop.permute.xlu0 %3078
    %3080 = vrot.lane.b32.xlu0 %v1502, 48
    %v3081 = vpop.permute.xlu0 %3080
    %3082 = vrot.lane.b32.xlu0 %v1503, 48
    %v3083 = vpop.permute.xlu0 %3082
    %3084 = vrot.lane.b32.xlu0 %v1504, 48
    %v3085 = vpop.permute.xlu0 %3084
    %3086 = vrot.lane.b32.xlu0 %v1505, 48
    %v3087 = vpop.permute.xlu0 %3086
    %3088 = vrot.lane.b32.xlu0 %v1506, 48
    %v3089 = vpop.permute.xlu0 %3088
    %3090 = vrot.lane.b32.xlu0 %v1507, 48
    %v3091 = vpop.permute.xlu0 %3090
    %3092 = vrot.lane.b32.xlu0 %v1508, 48
    %v3093 = vpop.permute.xlu0 %3092
    %3094 = vrot.lane.b32.xlu0 %v1509, 48
    %v3095 = vpop.permute.xlu0 %3094
    %3096 = vrot.lane.b32.xlu0 %v1510, 48
    %v3097 = vpop.permute.xlu0 %3096
    %3098 = vrot.lane.b32.xlu0 %v1511, 48
    %v3099 = vpop.permute.xlu0 %3098
    %3100 = vrot.lane.b32.xlu0 %v1512, 48
    %v3101 = vpop.permute.xlu0 %3100
    %3102 = vrot.lane.b32.xlu0 %v1513, 48
    %v3103 = vpop.permute.xlu0 %3102
    %3104 = vrot.lane.b32.xlu0 %v1514, 48
    %v3105 = vpop.permute.xlu0 %3104
    %3106 = vrot.lane.b32.xlu0 %v1515, 48
    %v3107 = vpop.permute.xlu0 %3106
    %3108 = vrot.lane.b32.xlu0 %v1516, 48
    %v3109 = vpop.permute.xlu0 %3108
    %3110 = vrot.lane.b32.xlu0 %v1517, 48
    %v3111 = vpop.permute.xlu0 %3110
    %3112 = vrot.lane.b32.xlu0 %v1518, 48
    %v3113 = vpop.permute.xlu0 %3112
    %3114 = vrot.lane.b32.xlu0 %v1519, 48
    %v3115 = vpop.permute.xlu0 %3114
    %3116 = vrot.lane.b32.xlu0 %v1520, 48
    %v3117 = vpop.permute.xlu0 %3116
    %3118 = vrot.lane.b32.xlu0 %v1521, 48
    %v3119 = vpop.permute.xlu0 %3118
    %3120 = vrot.lane.b32.xlu0 %v1522, 48
    %v3121 = vpop.permute.xlu0 %3120
    %3122 = vrot.lane.b32.xlu0 %v1523, 48
    %v3123 = vpop.permute.xlu0 %3122
    %3252 = vrot.lane.b32.xlu0 %v1524, 56
    %v3253 = vpop.permute.xlu0 %3252
    %3254 = vrot.lane.b32.xlu0 %v1525, 56
    %v3255 = vpop.permute.xlu0 %3254
    %3256 = vrot.lane.b32.xlu0 %v1526, 56
    %v3257 = vpop.permute.xlu0 %3256
    %3258 = vrot.lane.b32.xlu0 %v1527, 56
    %v3259 = vpop.permute.xlu0 %3258
    %3260 = vrot.lane.b32.xlu0 %v1528, 56
    %v3261 = vpop.permute.xlu0 %3260
    %3262 = vrot.lane.b32.xlu0 %v1529, 56
    %v3263 = vpop.permute.xlu0 %3262
    %3264 = vrot.lane.b32.xlu0 %v1530, 56
    %v3265 = vpop.permute.xlu0 %3264
    %3266 = vrot.lane.b32.xlu0 %v1531, 56
    %v3267 = vpop.permute.xlu0 %3266
    %3268 = vrot.lane.b32.xlu0 %v1532, 56
    %v3269 = vpop.permute.xlu0 %3268
    %3270 = vrot.lane.b32.xlu0 %v1533, 56
    %v3271 = vpop.permute.xlu0 %3270
    %3272 = vrot.lane.b32.xlu0 %v1534, 56
    %v3273 = vpop.permute.xlu0 %3272
    %3274 = vrot.lane.b32.xlu0 %v1535, 56
    %v3275 = vpop.permute.xlu0 %3274
    %3276 = vrot.lane.b32.xlu0 %v1536, 56
    %v3277 = vpop.permute.xlu0 %3276
    %3278 = vrot.lane.b32.xlu0 %v1537, 56
    %v3279 = vpop.permute.xlu0 %3278
    %3280 = vrot.lane.b32.xlu0 %v1538, 56
    %v3281 = vpop.permute.xlu0 %3280
    %3282 = vrot.lane.b32.xlu0 %v1539, 56
    %v3283 = vpop.permute.xlu0 %3282
    %3284 = vrot.lane.b32.xlu0 %v1540, 56
    %v3285 = vpop.permute.xlu0 %3284
    %3286 = vrot.lane.b32.xlu0 %v1541, 56
    %v3287 = vpop.permute.xlu0 %3286
    %3288 = vrot.lane.b32.xlu0 %v1542, 56
    %v3289 = vpop.permute.xlu0 %3288
    %3290 = vrot.lane.b32.xlu0 %v1543, 56
    %v3291 = vpop.permute.xlu0 %3290
    %3292 = vrot.lane.b32.xlu0 %v1544, 56
    %v3293 = vpop.permute.xlu0 %3292
    %3294 = vrot.lane.b32.xlu0 %v1545, 56
    %v3295 = vpop.permute.xlu0 %3294
    %3296 = vrot.lane.b32.xlu0 %v1546, 56
    %v3297 = vpop.permute.xlu0 %3296
    %3298 = vrot.lane.b32.xlu0 %v1547, 56
    %v3299 = vpop.permute.xlu0 %3298
    %3300 = vrot.lane.b32.xlu0 %v1548, 56
    %v3301 = vpop.permute.xlu0 %3300
    %3302 = vrot.lane.b32.xlu0 %v1549, 56
    %v3303 = vpop.permute.xlu0 %3302
    %3304 = vrot.lane.b32.xlu0 %v1550, 56
    %v3305 = vpop.permute.xlu0 %3304
    %3306 = vrot.lane.b32.xlu0 %v1551, 56
    %v3307 = vpop.permute.xlu0 %3306
    %3308 = vrot.lane.b32.xlu0 %v1552, 56
    %v3309 = vpop.permute.xlu0 %3308
    %3310 = vrot.lane.b32.xlu0 %v1553, 56
    %v3311 = vpop.permute.xlu0 %3310
    %3312 = vrot.lane.b32.xlu0 %v1554, 56
    %v3313 = vpop.permute.xlu0 %3312
    %3314 = vrot.lane.b32.xlu0 %v1555, 56
    %v3315 = vpop.permute.xlu0 %3314
    %3316 = vrot.lane.b32.xlu0 %v1556, 56
    %v3317 = vpop.permute.xlu0 %3316
    %3318 = vrot.lane.b32.xlu0 %v1557, 56
    %v3319 = vpop.permute.xlu0 %3318
    %3320 = vrot.lane.b32.xlu0 %v1558, 56
    %v3321 = vpop.permute.xlu0 %3320
    %3322 = vrot.lane.b32.xlu0 %v1559, 56
    %v3323 = vpop.permute.xlu0 %3322
    %3324 = vrot.lane.b32.xlu0 %v1560, 56
    %v3325 = vpop.permute.xlu0 %3324
    %3326 = vrot.lane.b32.xlu0 %v1561, 56
    %v3327 = vpop.permute.xlu0 %3326
    %3328 = vrot.lane.b32.xlu0 %v1562, 56
    %v3329 = vpop.permute.xlu0 %3328
    %3330 = vrot.lane.b32.xlu0 %v1563, 56
    %v3331 = vpop.permute.xlu0 %3330
    %3332 = vrot.lane.b32.xlu0 %v1564, 56
    %v3333 = vpop.permute.xlu0 %3332
    %3334 = vrot.lane.b32.xlu0 %v1565, 56
    %v3335 = vpop.permute.xlu0 %3334
    %3336 = vrot.lane.b32.xlu0 %v1566, 56
    %v3337 = vpop.permute.xlu0 %3336
    %3338 = vrot.lane.b32.xlu0 %v1567, 56
    %v3339 = vpop.permute.xlu0 %3338
    %3340 = vrot.lane.b32.xlu0 %v1568, 56
    %v3341 = vpop.permute.xlu0 %3340
    %3342 = vrot.lane.b32.xlu0 %v1569, 56
    %v3343 = vpop.permute.xlu0 %3342
    %3344 = vrot.lane.b32.xlu0 %v1570, 56
    %v3345 = vpop.permute.xlu0 %3344
    %3346 = vrot.lane.b32.xlu0 %v1571, 56
    %v3347 = vpop.permute.xlu0 %3346
    %3348 = vrot.lane.b32.xlu0 %v1572, 56
    %v3349 = vpop.permute.xlu0 %3348
    %3350 = vrot.lane.b32.xlu0 %v1573, 56
    %v3351 = vpop.permute.xlu0 %3350
    %3352 = vrot.lane.b32.xlu0 %v1574, 56
    %v3353 = vpop.permute.xlu0 %3352
    %3354 = vrot.lane.b32.xlu0 %v1575, 56
    %v3355 = vpop.permute.xlu0 %3354
    %3356 = vrot.lane.b32.xlu0 %v1576, 56
    %v3357 = vpop.permute.xlu0 %3356
    %3358 = vrot.lane.b32.xlu0 %v1577, 56
    %v3359 = vpop.permute.xlu0 %3358
    %3360 = vrot.lane.b32.xlu0 %v1578, 56
    %v3361 = vpop.permute.xlu0 %3360
    %3362 = vrot.lane.b32.xlu0 %v1579, 56
    %v3363 = vpop.permute.xlu0 %3362
    %3364 = vrot.lane.b32.xlu0 %v1580, 56
    %v3365 = vpop.permute.xlu0 %3364
    %3366 = vrot.lane.b32.xlu0 %v1581, 56
    %v3367 = vpop.permute.xlu0 %3366
    %3368 = vrot.lane.b32.xlu0 %v1582, 56
    %v3369 = vpop.permute.xlu0 %3368
    %3370 = vrot.lane.b32.xlu0 %v1583, 56
    %v3371 = vpop.permute.xlu0 %3370
    %3372 = vrot.lane.b32.xlu0 %v1584, 56
    %v3373 = vpop.permute.xlu0 %3372
    %3374 = vrot.lane.b32.xlu0 %v1585, 56
    %v3375 = vpop.permute.xlu0 %3374
    %3376 = vrot.lane.b32.xlu0 %v1586, 56
    %v3377 = vpop.permute.xlu0 %3376
    %3378 = vrot.lane.b32.xlu0 %v1587, 56
    %v3379 = vpop.permute.xlu0 %3378
    %3508 = vrot.lane.b32.xlu0 %v1588, 64
    %v3509 = vpop.permute.xlu0 %3508
    %3510 = vrot.lane.b32.xlu0 %v1589, 64
    %v3511 = vpop.permute.xlu0 %3510
    %3512 = vrot.lane.b32.xlu0 %v1590, 64
    %v3513 = vpop.permute.xlu0 %3512
    %3514 = vrot.lane.b32.xlu0 %v1591, 64
    %v3515 = vpop.permute.xlu0 %3514
    %3516 = vrot.lane.b32.xlu0 %v1592, 64
    %v3517 = vpop.permute.xlu0 %3516
    %3518 = vrot.lane.b32.xlu0 %v1593, 64
    %v3519 = vpop.permute.xlu0 %3518
    %3520 = vrot.lane.b32.xlu0 %v1594, 64
    %v3521 = vpop.permute.xlu0 %3520
    %3522 = vrot.lane.b32.xlu0 %v1595, 64
    %v3523 = vpop.permute.xlu0 %3522
    %3524 = vrot.lane.b32.xlu0 %v1596, 64
    %v3525 = vpop.permute.xlu0 %3524
    %3526 = vrot.lane.b32.xlu0 %v1597, 64
    %v3527 = vpop.permute.xlu0 %3526
    %3528 = vrot.lane.b32.xlu0 %v1598, 64
    %v3529 = vpop.permute.xlu0 %3528
    %3530 = vrot.lane.b32.xlu0 %v1599, 64
    %v3531 = vpop.permute.xlu0 %3530
    %3532 = vrot.lane.b32.xlu0 %v1600, 64
    %v3533 = vpop.permute.xlu0 %3532
    %3534 = vrot.lane.b32.xlu0 %v1601, 64
    %v3535 = vpop.permute.xlu0 %3534
    %3536 = vrot.lane.b32.xlu0 %v1602, 64
    %v3537 = vpop.permute.xlu0 %3536
    %3538 = vrot.lane.b32.xlu0 %v1603, 64
    %v3539 = vpop.permute.xlu0 %3538
    %3540 = vrot.lane.b32.xlu0 %v1604, 64
    %v3541 = vpop.permute.xlu0 %3540
    %3542 = vrot.lane.b32.xlu0 %v1605, 64
    %v3543 = vpop.permute.xlu0 %3542
    %3544 = vrot.lane.b32.xlu0 %v1606, 64
    %v3545 = vpop.permute.xlu0 %3544
    %3546 = vrot.lane.b32.xlu0 %v1607, 64
    %v3547 = vpop.permute.xlu0 %3546
    %3548 = vrot.lane.b32.xlu0 %v1608, 64
    %v3549 = vpop.permute.xlu0 %3548
    %3550 = vrot.lane.b32.xlu0 %v1609, 64
    %v3551 = vpop.permute.xlu0 %3550
    %3552 = vrot.lane.b32.xlu0 %v1610, 64
    %v3553 = vpop.permute.xlu0 %3552
    %3554 = vrot.lane.b32.xlu0 %v1611, 64
    %v3555 = vpop.permute.xlu0 %3554
    %3556 = vrot.lane.b32.xlu0 %v1612, 64
    %v3557 = vpop.permute.xlu0 %3556
    %3558 = vrot.lane.b32.xlu0 %v1613, 64
    %v3559 = vpop.permute.xlu0 %3558
    %3560 = vrot.lane.b32.xlu0 %v1614, 64
    %v3561 = vpop.permute.xlu0 %3560
    %3562 = vrot.lane.b32.xlu0 %v1615, 64
    %v3563 = vpop.permute.xlu0 %3562
    %3564 = vrot.lane.b32.xlu0 %v1616, 64
    %v3565 = vpop.permute.xlu0 %3564
    %3566 = vrot.lane.b32.xlu0 %v1617, 64
    %v3567 = vpop.permute.xlu0 %3566
    %3568 = vrot.lane.b32.xlu0 %v1618, 64
    %v3569 = vpop.permute.xlu0 %3568
    %3570 = vrot.lane.b32.xlu0 %v1619, 64
    %v3571 = vpop.permute.xlu0 %3570
    %3572 = vrot.lane.b32.xlu0 %v1620, 64
    %v3573 = vpop.permute.xlu0 %3572
    %3574 = vrot.lane.b32.xlu0 %v1621, 64
    %v3575 = vpop.permute.xlu0 %3574
    %3576 = vrot.lane.b32.xlu0 %v1622, 64
    %v3577 = vpop.permute.xlu0 %3576
    %3578 = vrot.lane.b32.xlu0 %v1623, 64
    %v3579 = vpop.permute.xlu0 %3578
    %3580 = vrot.lane.b32.xlu0 %v1624, 64
    %v3581 = vpop.permute.xlu0 %3580
    %3582 = vrot.lane.b32.xlu0 %v1625, 64
    %v3583 = vpop.permute.xlu0 %3582
    %3584 = vrot.lane.b32.xlu0 %v1626, 64
    %v3585 = vpop.permute.xlu0 %3584
    %3586 = vrot.lane.b32.xlu0 %v1627, 64
    %v3587 = vpop.permute.xlu0 %3586
    %3588 = vrot.lane.b32.xlu0 %v1628, 64
    %v3589 = vpop.permute.xlu0 %3588
    %3590 = vrot.lane.b32.xlu0 %v1629, 64
    %v3591 = vpop.permute.xlu0 %3590
    %3592 = vrot.lane.b32.xlu0 %v1630, 64
    %v3593 = vpop.permute.xlu0 %3592
    %3594 = vrot.lane.b32.xlu0 %v1631, 64
    %v3595 = vpop.permute.xlu0 %3594
    %3596 = vrot.lane.b32.xlu0 %v1632, 64
    %v3597 = vpop.permute.xlu0 %3596
    %3598 = vrot.lane.b32.xlu0 %v1633, 64
    %v3599 = vpop.permute.xlu0 %3598
    %3600 = vrot.lane.b32.xlu0 %v1634, 64
    %v3601 = vpop.permute.xlu0 %3600
    %3602 = vrot.lane.b32.xlu0 %v1635, 64
    %v3603 = vpop.permute.xlu0 %3602
    %3604 = vrot.lane.b32.xlu0 %v1636, 64
    %v3605 = vpop.permute.xlu0 %3604
    %3606 = vrot.lane.b32.xlu0 %v1637, 64
    %v3607 = vpop.permute.xlu0 %3606
    %3608 = vrot.lane.b32.xlu0 %v1638, 64
    %v3609 = vpop.permute.xlu0 %3608
    %3610 = vrot.lane.b32.xlu0 %v1639, 64
    %v3611 = vpop.permute.xlu0 %3610
    %3612 = vrot.lane.b32.xlu0 %v1640, 64
    %v3613 = vpop.permute.xlu0 %3612
    %3614 = vrot.lane.b32.xlu0 %v1641, 64
    %v3615 = vpop.permute.xlu0 %3614
    %3616 = vrot.lane.b32.xlu0 %v1642, 64
    %v3617 = vpop.permute.xlu0 %3616
    %3618 = vrot.lane.b32.xlu0 %v1643, 64
    %v3619 = vpop.permute.xlu0 %3618
    %3620 = vrot.lane.b32.xlu0 %v1644, 64
    %v3621 = vpop.permute.xlu0 %3620
    %3622 = vrot.lane.b32.xlu0 %v1645, 64
    %v3623 = vpop.permute.xlu0 %3622
    %3624 = vrot.lane.b32.xlu0 %v1646, 64
    %v3625 = vpop.permute.xlu0 %3624
    %3626 = vrot.lane.b32.xlu0 %v1647, 64
    %v3627 = vpop.permute.xlu0 %3626
    %3628 = vrot.lane.b32.xlu0 %v1648, 64
    %v3629 = vpop.permute.xlu0 %3628
    %3630 = vrot.lane.b32.xlu0 %v1649, 64
    %v3631 = vpop.permute.xlu0 %3630
    %3632 = vrot.lane.b32.xlu0 %v1650, 64
    %v3633 = vpop.permute.xlu0 %3632
    %3634 = vrot.lane.b32.xlu0 %v1651, 64
    %v3635 = vpop.permute.xlu0 %3634
    %v3700 = vsel %vm644, %v1075, %v1717
    %v3701 = vsel %vm644, %v1076, %v1719
    %v3702 = vsel %vm644, %v1077, %v1721
    %v3703 = vsel %vm644, %v1078, %v1723
    %v3704 = vsel %vm644, %v1079, %v1725
    %v3705 = vsel %vm644, %v1080, %v1727
    %v3706 = vsel %vm644, %v1081, %v1729
    %v3707 = vsel %vm644, %v1082, %v1731
    %v3708 = vsel %vm644, %v1083, %v1733
    %v3709 = vsel %vm644, %v1084, %v1735
    %v3710 = vsel %vm644, %v1085, %v1737
    %v3711 = vsel %vm644, %v1086, %v1739
    %v3712 = vsel %vm644, %v1087, %v1741
    %v3713 = vsel %vm644, %v1088, %v1743
    %v3714 = vsel %vm644, %v1089, %v1745
    %v3715 = vsel %vm644, %v1090, %v1747
    %v3716 = vsel %vm644, %v1091, %v1749
    %v3717 = vsel %vm644, %v1092, %v1751
    %v3718 = vsel %vm644, %v1093, %v1753
    %v3719 = vsel %vm644, %v1094, %v1755
    %v3720 = vsel %vm644, %v1095, %v1757
    %v3721 = vsel %vm644, %v1096, %v1759
    %v3722 = vsel %vm644, %v1097, %v1761
    %v3723 = vsel %vm644, %v1098, %v1763
    %v3724 = vsel %vm644, %v1099, %v1765
    %v3725 = vsel %vm644, %v1100, %v1767
    %v3726 = vsel %vm644, %v1101, %v1769
    %v3727 = vsel %vm644, %v1102, %v1771
    %v3728 = vsel %vm644, %v1103, %v1773
    %v3729 = vsel %vm644, %v1104, %v1775
    %v3730 = vsel %vm644, %v1105, %v1777
    %v3731 = vsel %vm644, %v1106, %v1779
    %v3732 = vsel %vm644, %v1107, %v1781
    %v3733 = vsel %vm644, %v1108, %v1783
    %v3734 = vsel %vm644, %v1109, %v1785
    %v3735 = vsel %vm644, %v1110, %v1787
    %v3736 = vsel %vm644, %v1111, %v1789
    %v3737 = vsel %vm644, %v1112, %v1791
    %v3738 = vsel %vm644, %v1113, %v1793
    %v3739 = vsel %vm644, %v1114, %v1795
    %v3740 = vsel %vm644, %v1115, %v1797
    %v3741 = vsel %vm644, %v1116, %v1799
    %v3742 = vsel %vm644, %v1117, %v1801
    %v3743 = vsel %vm644, %v1118, %v1803
    %v3744 = vsel %vm644, %v1119, %v1805
    %v3745 = vsel %vm644, %v1120, %v1807
    %v3746 = vsel %vm644, %v1121, %v1809
    %v3747 = vsel %vm644, %v1122, %v1811
    %v3748 = vsel %vm644, %v1123, %v1813
    %v3749 = vsel %vm644, %v1124, %v1815
    %v3750 = vsel %vm644, %v1125, %v1817
    %v3751 = vsel %vm644, %v1126, %v1819
    %v3752 = vsel %vm644, %v1127, %v1821
    %v3753 = vsel %vm644, %v1128, %v1823
    %v3754 = vsel %vm644, %v1129, %v1825
    %v3755 = vsel %vm644, %v1130, %v1827
    %v3756 = vsel %vm644, %v1131, %v1829
    %v3757 = vsel %vm644, %v1132, %v1831
    %v3758 = vsel %vm644, %v1133, %v1833
    %v3759 = vsel %vm644, %v1134, %v1835
    %v3760 = vsel %vm644, %v1135, %v1837
    %v3761 = vsel %vm644, %v1136, %v1839
    %v3762 = vsel %vm644, %v1137, %v1841
    %v3763 = vsel %vm644, %v1138, %v1843
    %vm3764 = vcmask 130048
    %v3765 = vsel %vm3764, %v3700, %v1973
    %v3766 = vsel %vm3764, %v3701, %v1975
    %v3767 = vsel %vm3764, %v3702, %v1977
    %v3768 = vsel %vm3764, %v3703, %v1979
    %v3769 = vsel %vm3764, %v3704, %v1981
    %v3770 = vsel %vm3764, %v3705, %v1983
    %v3771 = vsel %vm3764, %v3706, %v1985
    %v3772 = vsel %vm3764, %v3707, %v1987
    %v3773 = vsel %vm3764, %v3708, %v1989
    %v3774 = vsel %vm3764, %v3709, %v1991
    %v3775 = vsel %vm3764, %v3710, %v1993
    %v3776 = vsel %vm3764, %v3711, %v1995
    %v3777 = vsel %vm3764, %v3712, %v1997
    %v3778 = vsel %vm3764, %v3713, %v1999
    %v3779 = vsel %vm3764, %v3714, %v2001
    %v3780 = vsel %vm3764, %v3715, %v2003
    %v3781 = vsel %vm3764, %v3716, %v2005
    %v3782 = vsel %vm3764, %v3717, %v2007
    %v3783 = vsel %vm3764, %v3718, %v2009
    %v3784 = vsel %vm3764, %v3719, %v2011
    %v3785 = vsel %vm3764, %v3720, %v2013
    %v3786 = vsel %vm3764, %v3721, %v2015
    %v3787 = vsel %vm3764, %v3722, %v2017
    %v3788 = vsel %vm3764, %v3723, %v2019
    %v3789 = vsel %vm3764, %v3724, %v2021
    %v3790 = vsel %vm3764, %v3725, %v2023
    %v3791 = vsel %vm3764, %v3726, %v2025
    %v3792 = vsel %vm3764, %v3727, %v2027
    %v3793 = vsel %vm3764, %v3728, %v2029
    %v3794 = vsel %vm3764, %v3729, %v2031
    %v3795 = vsel %vm3764, %v3730, %v2033
    %v3796 = vsel %vm3764, %v3731, %v2035
    %v3797 = vsel %vm3764, %v3732, %v2037
    %v3798 = vsel %vm3764, %v3733, %v2039
    %v3799 = vsel %vm3764, %v3734, %v2041
    %v3800 = vsel %vm3764, %v3735, %v2043
    %v3801 = vsel %vm3764, %v3736, %v2045
    %v3802 = vsel %vm3764, %v3737, %v2047
    %v3803 = vsel %vm3764, %v3738, %v2049
    %v3804 = vsel %vm3764, %v3739, %v2051
    %v3805 = vsel %vm3764, %v3740, %v2053
    %v3806 = vsel %vm3764, %v3741, %v2055
    %v3807 = vsel %vm3764, %v3742, %v2057
    %v3808 = vsel %vm3764, %v3743, %v2059
    %v3809 = vsel %vm3764, %v3744, %v2061
    %v3810 = vsel %vm3764, %v3745, %v2063
    %v3811 = vsel %vm3764, %v3746, %v2065
    %v3812 = vsel %vm3764, %v3747, %v2067
    %v3813 = vsel %vm3764, %v3748, %v2069
    %v3814 = vsel %vm3764, %v3749, %v2071
    %v3815 = vsel %vm3764, %v3750, %v2073
    %v3816 = vsel %vm3764, %v3751, %v2075
    %v3817 = vsel %vm3764, %v3752, %v2077
    %v3818 = vsel %vm3764, %v3753, %v2079
    %v3819 = vsel %vm3764, %v3754, %v2081
    %v3820 = vsel %vm3764, %v3755, %v2083
    %v3821 = vsel %vm3764, %v3756, %v2085
    %v3822 = vsel %vm3764, %v3757, %v2087
    %v3823 = vsel %vm3764, %v3758, %v2089
    %v3824 = vsel %vm3764, %v3759, %v2091
    %v3825 = vsel %vm3764, %v3760, %v2093
    %v3826 = vsel %vm3764, %v3761, %v2095
    %v3827 = vsel %vm3764, %v3762, %v2097
    %v3828 = vsel %vm3764, %v3763, %v2099
    %vm3829 = vcmask 195584
    %v3830 = vsel %vm3829, %v3765, %v2229
    %v3831 = vsel %vm3829, %v3766, %v2231
    %v3832 = vsel %vm3829, %v3767, %v2233
    %v3833 = vsel %vm3829, %v3768, %v2235
    %v3834 = vsel %vm3829, %v3769, %v2237
    %v3835 = vsel %vm3829, %v3770, %v2239
    %v3836 = vsel %vm3829, %v3771, %v2241
    %v3837 = vsel %vm3829, %v3772, %v2243
    %v3838 = vsel %vm3829, %v3773, %v2245
    %v3839 = vsel %vm3829, %v3774, %v2247
    %v3840 = vsel %vm3829, %v3775, %v2249
    %v3841 = vsel %vm3829, %v3776, %v2251
    %v3842 = vsel %vm3829, %v3777, %v2253
    %v3843 = vsel %vm3829, %v3778, %v2255
    %v3844 = vsel %vm3829, %v3779, %v2257
    %v3845 = vsel %vm3829, %v3780, %v2259
    %v3846 = vsel %vm3829, %v3781, %v2261
    %v3847 = vsel %vm3829, %v3782, %v2263
    %v3848 = vsel %vm3829, %v3783, %v2265
    %v3849 = vsel %vm3829, %v3784, %v2267
    %v3850 = vsel %vm3829, %v3785, %v2269
    %v3851 = vsel %vm3829, %v3786, %v2271
    %v3852 = vsel %vm3829, %v3787, %v2273
    %v3853 = vsel %vm3829, %v3788, %v2275
    %v3854 = vsel %vm3829, %v3789, %v2277
    %v3855 = vsel %vm3829, %v3790, %v2279
    %v3856 = vsel %vm3829, %v3791, %v2281
    %v3857 = vsel %vm3829, %v3792, %v2283
    %v3858 = vsel %vm3829, %v3793, %v2285
    %v3859 = vsel %vm3829, %v3794, %v2287
    %v3860 = vsel %vm3829, %v3795, %v2289
    %v3861 = vsel %vm3829, %v3796, %v2291
    %v3862 = vsel %vm3829, %v3797, %v2293
    %v3863 = vsel %vm3829, %v3798, %v2295
    %v3864 = vsel %vm3829, %v3799, %v2297
    %v3865 = vsel %vm3829, %v3800, %v2299
    %v3866 = vsel %vm3829, %v3801, %v2301
    %v3867 = vsel %vm3829, %v3802, %v2303
    %v3868 = vsel %vm3829, %v3803, %v2305
    %v3869 = vsel %vm3829, %v3804, %v2307
    %v3870 = vsel %vm3829, %v3805, %v2309
    %v3871 = vsel %vm3829, %v3806, %v2311
    %v3872 = vsel %vm3829, %v3807, %v2313
    %v3873 = vsel %vm3829, %v3808, %v2315
    %v3874 = vsel %vm3829, %v3809, %v2317
    %v3875 = vsel %vm3829, %v3810, %v2319
    %v3876 = vsel %vm3829, %v3811, %v2321
    %v3877 = vsel %vm3829, %v3812, %v2323
    %v3878 = vsel %vm3829, %v3813, %v2325
    %v3879 = vsel %vm3829, %v3814, %v2327
    %v3880 = vsel %vm3829, %v3815, %v2329
    %v3881 = vsel %vm3829, %v3816, %v2331
    %v3882 = vsel %vm3829, %v3817, %v2333
    %v3883 = vsel %vm3829, %v3818, %v2335
    %v3884 = vsel %vm3829, %v3819, %v2337
    %v3885 = vsel %vm3829, %v3820, %v2339
    %v3886 = vsel %vm3829, %v3821, %v2341
    %v3887 = vsel %vm3829, %v3822, %v2343
    %v3888 = vsel %vm3829, %v3823, %v2345
    %v3889 = vsel %vm3829, %v3824, %v2347
    %v3890 = vsel %vm3829, %v3825, %v2349
    %v3891 = vsel %vm3829, %v3826, %v2351
    %v3892 = vsel %vm3829, %v3827, %v2353
    %v3893 = vsel %vm3829, %v3828, %v2355
    %vm3894 = vcmask 261120
    %v3895 = vsel %vm3894, %v3830, %v2485
    %v3896 = vsel %vm3894, %v3831, %v2487
    %v3897 = vsel %vm3894, %v3832, %v2489
    %v3898 = vsel %vm3894, %v3833, %v2491
    %v3899 = vsel %vm3894, %v3834, %v2493
    %v3900 = vsel %vm3894, %v3835, %v2495
    %v3901 = vsel %vm3894, %v3836, %v2497
    %v3902 = vsel %vm3894, %v3837, %v2499
    %v3903 = vsel %vm3894, %v3838, %v2501
    %v3904 = vsel %vm3894, %v3839, %v2503
    %v3905 = vsel %vm3894, %v3840, %v2505
    %v3906 = vsel %vm3894, %v3841, %v2507
    %v3907 = vsel %vm3894, %v3842, %v2509
    %v3908 = vsel %vm3894, %v3843, %v2511
    %v3909 = vsel %vm3894, %v3844, %v2513
    %v3910 = vsel %vm3894, %v3845, %v2515
    %v3911 = vsel %vm3894, %v3846, %v2517
    %v3912 = vsel %vm3894, %v3847, %v2519
    %v3913 = vsel %vm3894, %v3848, %v2521
    %v3914 = vsel %vm3894, %v3849, %v2523
    %v3915 = vsel %vm3894, %v3850, %v2525
    %v3916 = vsel %vm3894, %v3851, %v2527
    %v3917 = vsel %vm3894, %v3852, %v2529
    %v3918 = vsel %vm3894, %v3853, %v2531
    %v3919 = vsel %vm3894, %v3854, %v2533
    %v3920 = vsel %vm3894, %v3855, %v2535
    %v3921 = vsel %vm3894, %v3856, %v2537
    %v3922 = vsel %vm3894, %v3857, %v2539
    %v3923 = vsel %vm3894, %v3858, %v2541
    %v3924 = vsel %vm3894, %v3859, %v2543
    %v3925 = vsel %vm3894, %v3860, %v2545
    %v3926 = vsel %vm3894, %v3861, %v2547
    %v3927 = vsel %vm3894, %v3862, %v2549
    %v3928 = vsel %vm3894, %v3863, %v2551
    %v3929 = vsel %vm3894, %v3864, %v2553
    %v3930 = vsel %vm3894, %v3865, %v2555
    %v3931 = vsel %vm3894, %v3866, %v2557
    %v3932 = vsel %vm3894, %v3867, %v2559
    %v3933 = vsel %vm3894, %v3868, %v2561
    %v3934 = vsel %vm3894, %v3869, %v2563
    %v3935 = vsel %vm3894, %v3870, %v2565
    %v3936 = vsel %vm3894, %v3871, %v2567
    %v3937 = vsel %vm3894, %v3872, %v2569
    %v3938 = vsel %vm3894, %v3873, %v2571
    %v3939 = vsel %vm3894, %v3874, %v2573
    %v3940 = vsel %vm3894, %v3875, %v2575
    %v3941 = vsel %vm3894, %v3876, %v2577
    %v3942 = vsel %vm3894, %v3877, %v2579
    %v3943 = vsel %vm3894, %v3878, %v2581
    %v3944 = vsel %vm3894, %v3879, %v2583
    %v3945 = vsel %vm3894, %v3880, %v2585
    %v3946 = vsel %vm3894, %v3881, %v2587
    %v3947 = vsel %vm3894, %v3882, %v2589
    %v3948 = vsel %vm3894, %v3883, %v2591
    %v3949 = vsel %vm3894, %v3884, %v2593
    %v3950 = vsel %vm3894, %v3885, %v2595
    %v3951 = vsel %vm3894, %v3886, %v2597
    %v3952 = vsel %vm3894, %v3887, %v2599
    %v3953 = vsel %vm3894, %v3888, %v2601
    %v3954 = vsel %vm3894, %v3889, %v2603
    %v3955 = vsel %vm3894, %v3890, %v2605
    %v3956 = vsel %vm3894, %v3891, %v2607
    %v3957 = vsel %vm3894, %v3892, %v2609
    %v3958 = vsel %vm3894, %v3893, %v2611
    %vm3959 = vcmask 326656
    %v3960 = vsel %vm3959, %v3895, %v2741
    %v3961 = vsel %vm3959, %v3896, %v2743
    %v3962 = vsel %vm3959, %v3897, %v2745
    %v3963 = vsel %vm3959, %v3898, %v2747
    %v3964 = vsel %vm3959, %v3899, %v2749
    %v3965 = vsel %vm3959, %v3900, %v2751
    %v3966 = vsel %vm3959, %v3901, %v2753
    %v3967 = vsel %vm3959, %v3902, %v2755
    %v3968 = vsel %vm3959, %v3903, %v2757
    %v3969 = vsel %vm3959, %v3904, %v2759
    %v3970 = vsel %vm3959, %v3905, %v2761
    %v3971 = vsel %vm3959, %v3906, %v2763
    %v3972 = vsel %vm3959, %v3907, %v2765
    %v3973 = vsel %vm3959, %v3908, %v2767
    %v3974 = vsel %vm3959, %v3909, %v2769
    %v3975 = vsel %vm3959, %v3910, %v2771
    %v3976 = vsel %vm3959, %v3911, %v2773
    %v3977 = vsel %vm3959, %v3912, %v2775
    %v3978 = vsel %vm3959, %v3913, %v2777
    %v3979 = vsel %vm3959, %v3914, %v2779
    %v3980 = vsel %vm3959, %v3915, %v2781
    %v3981 = vsel %vm3959, %v3916, %v2783
    %v3982 = vsel %vm3959, %v3917, %v2785
    %v3983 = vsel %vm3959, %v3918, %v2787
    %v3984 = vsel %vm3959, %v3919, %v2789
    %v3985 = vsel %vm3959, %v3920, %v2791
    %v3986 = vsel %vm3959, %v3921, %v2793
    %v3987 = vsel %vm3959, %v3922, %v2795
    %v3988 = vsel %vm3959, %v3923, %v2797
    %v3989 = vsel %vm3959, %v3924, %v2799
    %v3990 = vsel %vm3959, %v3925, %v2801
    %v3991 = vsel %vm3959, %v3926, %v2803
    %v3992 = vsel %vm3959, %v3927, %v2805
    %v3993 = vsel %vm3959, %v3928, %v2807
    %v3994 = vsel %vm3959, %v3929, %v2809
    %v3995 = vsel %vm3959, %v3930, %v2811
    %v3996 = vsel %vm3959, %v3931, %v2813
    %v3997 = vsel %vm3959, %v3932, %v2815
    %v3998 = vsel %vm3959, %v3933, %v2817
    %v3999 = vsel %vm3959, %v3934, %v2819
    %v4000 = vsel %vm3959, %v3935, %v2821
    %v4001 = vsel %vm3959, %v3936, %v2823
    %v4002 = vsel %vm3959, %v3937, %v2825
    %v4003 = vsel %vm3959, %v3938, %v2827
    %v4004 = vsel %vm3959, %v3939, %v2829
    %v4005 = vsel %vm3959, %v3940, %v2831
    %v4006 = vsel %vm3959, %v3941, %v2833
    %v4007 = vsel %vm3959, %v3942, %v2835
    %v4008 = vsel %vm3959, %v3943, %v2837
    %v4009 = vsel %vm3959, %v3944, %v2839
    %v4010 = vsel %vm3959, %v3945, %v2841
    %v4011 = vsel %vm3959, %v3946, %v2843
    %v4012 = vsel %vm3959, %v3947, %v2845
    %v4013 = vsel %vm3959, %v3948, %v2847
    %v4014 = vsel %vm3959, %v3949, %v2849
    %v4015 = vsel %vm3959, %v3950, %v2851
    %v4016 = vsel %vm3959, %v3951, %v2853
    %v4017 = vsel %vm3959, %v3952, %v2855
    %v4018 = vsel %vm3959, %v3953, %v2857
    %v4019 = vsel %vm3959, %v3954, %v2859
    %v4020 = vsel %vm3959, %v3955, %v2861
    %v4021 = vsel %vm3959, %v3956, %v2863
    %v4022 = vsel %vm3959, %v3957, %v2865
    %v4023 = vsel %vm3959, %v3958, %v2867
    %vm4024 = vcmask 392192
    %v4025 = vsel %vm4024, %v3960, %v2997
    %v4026 = vsel %vm4024, %v3961, %v2999
    %v4027 = vsel %vm4024, %v3962, %v3001
    %v4028 = vsel %vm4024, %v3963, %v3003
    %v4029 = vsel %vm4024, %v3964, %v3005
    %v4030 = vsel %vm4024, %v3965, %v3007
    %v4031 = vsel %vm4024, %v3966, %v3009
    %v4032 = vsel %vm4024, %v3967, %v3011
    %v4033 = vsel %vm4024, %v3968, %v3013
    %v4034 = vsel %vm4024, %v3969, %v3015
    %v4035 = vsel %vm4024, %v3970, %v3017
    %v4036 = vsel %vm4024, %v3971, %v3019
    %v4037 = vsel %vm4024, %v3972, %v3021
    %v4038 = vsel %vm4024, %v3973, %v3023
    %v4039 = vsel %vm4024, %v3974, %v3025
    %v4040 = vsel %vm4024, %v3975, %v3027
    %v4041 = vsel %vm4024, %v3976, %v3029
    %v4042 = vsel %vm4024, %v3977, %v3031
    %v4043 = vsel %vm4024, %v3978, %v3033
    %v4044 = vsel %vm4024, %v3979, %v3035
    %v4045 = vsel %vm4024, %v3980, %v3037
    %v4046 = vsel %vm4024, %v3981, %v3039
    %v4047 = vsel %vm4024, %v3982, %v3041
    %v4048 = vsel %vm4024, %v3983, %v3043
    %v4049 = vsel %vm4024, %v3984, %v3045
    %v4050 = vsel %vm4024, %v3985, %v3047
    %v4051 = vsel %vm4024, %v3986, %v3049
    %v4052 = vsel %vm4024, %v3987, %v3051
    %v4053 = vsel %vm4024, %v3988, %v3053
    %v4054 = vsel %vm4024, %v3989, %v3055
    %v4055 = vsel %vm4024, %v3990, %v3057
    %v4056 = vsel %vm4024, %v3991, %v3059
    %v4057 = vsel %vm4024, %v3992, %v3061
    %v4058 = vsel %vm4024, %v3993, %v3063
    %v4059 = vsel %vm4024, %v3994, %v3065
    %v4060 = vsel %vm4024, %v3995, %v3067
    %v4061 = vsel %vm4024, %v3996, %v3069
    %v4062 = vsel %vm4024, %v3997, %v3071
    %v4063 = vsel %vm4024, %v3998, %v3073
    %v4064 = vsel %vm4024, %v3999, %v3075
    %v4065 = vsel %vm4024, %v4000, %v3077
    %v4066 = vsel %vm4024, %v4001, %v3079
    %v4067 = vsel %vm4024, %v4002, %v3081
    %v4068 = vsel %vm4024, %v4003, %v3083
    %v4069 = vsel %vm4024, %v4004, %v3085
    %v4070 = vsel %vm4024, %v4005, %v3087
    %v4071 = vsel %vm4024, %v4006, %v3089
    %v4072 = vsel %vm4024, %v4007, %v3091
    %v4073 = vsel %vm4024, %v4008, %v3093
    %v4074 = vsel %vm4024, %v4009, %v3095
    %v4075 = vsel %vm4024, %v4010, %v3097
    %v4076 = vsel %vm4024, %v4011, %v3099
    %v4077 = vsel %vm4024, %v4012, %v3101
    %v4078 = vsel %vm4024, %v4013, %v3103
    %v4079 = vsel %vm4024, %v4014, %v3105
    %v4080 = vsel %vm4024, %v4015, %v3107
    %v4081 = vsel %vm4024, %v4016, %v3109
    %v4082 = vsel %vm4024, %v4017, %v3111
    %v4083 = vsel %vm4024, %v4018, %v3113
    %v4084 = vsel %vm4024, %v4019, %v3115
    %v4085 = vsel %vm4024, %v4020, %v3117
    %v4086 = vsel %vm4024, %v4021, %v3119
    %v4087 = vsel %vm4024, %v4022, %v3121
    %v4088 = vsel %vm4024, %v4023, %v3123
    %vm4089 = vcmask 457728
    %v4090 = vsel %vm4089, %v4025, %v3253
    %v4091 = vsel %vm4089, %v4026, %v3255
    %v4092 = vsel %vm4089, %v4027, %v3257
    %v4093 = vsel %vm4089, %v4028, %v3259
    %v4094 = vsel %vm4089, %v4029, %v3261
    %v4095 = vsel %vm4089, %v4030, %v3263
    %v4096 = vsel %vm4089, %v4031, %v3265
    %v4097 = vsel %vm4089, %v4032, %v3267
    %v4098 = vsel %vm4089, %v4033, %v3269
    %v4099 = vsel %vm4089, %v4034, %v3271
    %v4100 = vsel %vm4089, %v4035, %v3273
    %v4101 = vsel %vm4089, %v4036, %v3275
    %v4102 = vsel %vm4089, %v4037, %v3277
    %v4103 = vsel %vm4089, %v4038, %v3279
    %v4104 = vsel %vm4089, %v4039, %v3281
    %v4105 = vsel %vm4089, %v4040, %v3283
    %v4106 = vsel %vm4089, %v4041, %v3285
    %v4107 = vsel %vm4089, %v4042, %v3287
    %v4108 = vsel %vm4089, %v4043, %v3289
    %v4109 = vsel %vm4089, %v4044, %v3291
    %v4110 = vsel %vm4089, %v4045, %v3293
    %v4111 = vsel %vm4089, %v4046, %v3295
    %v4112 = vsel %vm4089, %v4047, %v3297
    %v4113 = vsel %vm4089, %v4048, %v3299
    %v4114 = vsel %vm4089, %v4049, %v3301
    %v4115 = vsel %vm4089, %v4050, %v3303
    %v4116 = vsel %vm4089, %v4051, %v3305
    %v4117 = vsel %vm4089, %v4052, %v3307
    %v4118 = vsel %vm4089, %v4053, %v3309
    %v4119 = vsel %vm4089, %v4054, %v3311
    %v4120 = vsel %vm4089, %v4055, %v3313
    %v4121 = vsel %vm4089, %v4056, %v3315
    %v4122 = vsel %vm4089, %v4057, %v3317
    %v4123 = vsel %vm4089, %v4058, %v3319
    %v4124 = vsel %vm4089, %v4059, %v3321
    %v4125 = vsel %vm4089, %v4060, %v3323
    %v4126 = vsel %vm4089, %v4061, %v3325
    %v4127 = vsel %vm4089, %v4062, %v3327
    %v4128 = vsel %vm4089, %v4063, %v3329
    %v4129 = vsel %vm4089, %v4064, %v3331
    %v4130 = vsel %vm4089, %v4065, %v3333
    %v4131 = vsel %vm4089, %v4066, %v3335
    %v4132 = vsel %vm4089, %v4067, %v3337
    %v4133 = vsel %vm4089, %v4068, %v3339
    %v4134 = vsel %vm4089, %v4069, %v3341
    %v4135 = vsel %vm4089, %v4070, %v3343
    %v4136 = vsel %vm4089, %v4071, %v3345
    %v4137 = vsel %vm4089, %v4072, %v3347
    %v4138 = vsel %vm4089, %v4073, %v3349
    %v4139 = vsel %vm4089, %v4074, %v3351
    %v4140 = vsel %vm4089, %v4075, %v3353
    %v4141 = vsel %vm4089, %v4076, %v3355
    %v4142 = vsel %vm4089, %v4077, %v3357
    %v4143 = vsel %vm4089, %v4078, %v3359
    %v4144 = vsel %vm4089, %v4079, %v3361
    %v4145 = vsel %vm4089, %v4080, %v3363
    %v4146 = vsel %vm4089, %v4081, %v3365
    %v4147 = vsel %vm4089, %v4082, %v3367
    %v4148 = vsel %vm4089, %v4083, %v3369
    %v4149 = vsel %vm4089, %v4084, %v3371
    %v4150 = vsel %vm4089, %v4085, %v3373
    %v4151 = vsel %vm4089, %v4086, %v3375
    %v4152 = vsel %vm4089, %v4087, %v3377
    %v4153 = vsel %vm4089, %v4088, %v3379
    %vm4154 = vcmask 523264
    %v4155 = vsel %vm4154, %v4090, %v3509
    %v4156 = vsel %vm4154, %v4091, %v3511
    %v4157 = vsel %vm4154, %v4092, %v3513
    %v4158 = vsel %vm4154, %v4093, %v3515
    %v4159 = vsel %vm4154, %v4094, %v3517
    %v4160 = vsel %vm4154, %v4095, %v3519
    %v4161 = vsel %vm4154, %v4096, %v3521
    %v4162 = vsel %vm4154, %v4097, %v3523
    %v4163 = vsel %vm4154, %v4098, %v3525
    %v4164 = vsel %vm4154, %v4099, %v3527
    %v4165 = vsel %vm4154, %v4100, %v3529
    %v4166 = vsel %vm4154, %v4101, %v3531
    %v4167 = vsel %vm4154, %v4102, %v3533
    %v4168 = vsel %vm4154, %v4103, %v3535
    %v4169 = vsel %vm4154, %v4104, %v3537
    %v4170 = vsel %vm4154, %v4105, %v3539
    %v4171 = vsel %vm4154, %v4106, %v3541
    %v4172 = vsel %vm4154, %v4107, %v3543
    %v4173 = vsel %vm4154, %v4108, %v3545
    %v4174 = vsel %vm4154, %v4109, %v3547
    %v4175 = vsel %vm4154, %v4110, %v3549
    %v4176 = vsel %vm4154, %v4111, %v3551
    %v4177 = vsel %vm4154, %v4112, %v3553
    %v4178 = vsel %vm4154, %v4113, %v3555
    %v4179 = vsel %vm4154, %v4114, %v3557
    %v4180 = vsel %vm4154, %v4115, %v3559
    %v4181 = vsel %vm4154, %v4116, %v3561
    %v4182 = vsel %vm4154, %v4117, %v3563
    %v4183 = vsel %vm4154, %v4118, %v3565
    %v4184 = vsel %vm4154, %v4119, %v3567
    %v4185 = vsel %vm4154, %v4120, %v3569
    %v4186 = vsel %vm4154, %v4121, %v3571
    %v4187 = vsel %vm4154, %v4122, %v3573
    %v4188 = vsel %vm4154, %v4123, %v3575
    %v4189 = vsel %vm4154, %v4124, %v3577
    %v4190 = vsel %vm4154, %v4125, %v3579
    %v4191 = vsel %vm4154, %v4126, %v3581
    %v4192 = vsel %vm4154, %v4127, %v3583
    %v4193 = vsel %vm4154, %v4128, %v3585
    %v4194 = vsel %vm4154, %v4129, %v3587
    %v4195 = vsel %vm4154, %v4130, %v3589
    %v4196 = vsel %vm4154, %v4131, %v3591
    %v4197 = vsel %vm4154, %v4132, %v3593
    %v4198 = vsel %vm4154, %v4133, %v3595
    %v4199 = vsel %vm4154, %v4134, %v3597
    %v4200 = vsel %vm4154, %v4135, %v3599
    %v4201 = vsel %vm4154, %v4136, %v3601
    %v4202 = vsel %vm4154, %v4137, %v3603
    %v4203 = vsel %vm4154, %v4138, %v3605
    %v4204 = vsel %vm4154, %v4139, %v3607
    %v4205 = vsel %vm4154, %v4140, %v3609
    %v4206 = vsel %vm4154, %v4141, %v3611
    %v4207 = vsel %vm4154, %v4142, %v3613
    %v4208 = vsel %vm4154, %v4143, %v3615
    %v4209 = vsel %vm4154, %v4144, %v3617
    %v4210 = vsel %vm4154, %v4145, %v3619
    %v4211 = vsel %vm4154, %v4146, %v3621
    %v4212 = vsel %vm4154, %v4147, %v3623
    %v4213 = vsel %vm4154, %v4148, %v3625
    %v4214 = vsel %vm4154, %v4149, %v3627
    %v4215 = vsel %vm4154, %v4150, %v3629
    %v4216 = vsel %vm4154, %v4151, %v3631
    %v4217 = vsel %vm4154, %v4152, %v3633
    %v4218 = vsel %vm4154, %v4153, %v3635
    %v4219 = vpack.c.bf16 %v4156, %v4155
    %v4220 = vpack.c.bf16 %v4158, %v4157
    %v4221 = vpack.c.bf16 %v4160, %v4159
    %v4222 = vpack.c.bf16 %v4162, %v4161
    %v4223 = vpack.c.bf16 %v4164, %v4163
    %v4224 = vpack.c.bf16 %v4166, %v4165
    %v4225 = vpack.c.bf16 %v4168, %v4167
    %v4226 = vpack.c.bf16 %v4170, %v4169
    %v4227 = vpack.c.bf16 %v4172, %v4171
    %v4228 = vpack.c.bf16 %v4174, %v4173
    %v4229 = vpack.c.bf16 %v4176, %v4175
    %v4230 = vpack.c.bf16 %v4178, %v4177
    %v4231 = vpack.c.bf16 %v4180, %v4179
    %v4232 = vpack.c.bf16 %v4182, %v4181
    %v4233 = vpack.c.bf16 %v4184, %v4183
    %v4234 = vpack.c.bf16 %v4186, %v4185
    %v4235 = vpack.c.bf16 %v4188, %v4187
    %v4236 = vpack.c.bf16 %v4190, %v4189
    %v4237 = vpack.c.bf16 %v4192, %v4191
    %v4238 = vpack.c.bf16 %v4194, %v4193
    %v4239 = vpack.c.bf16 %v4196, %v4195
    %v4240 = vpack.c.bf16 %v4198, %v4197
    %v4241 = vpack.c.bf16 %v4200, %v4199
    %v4242 = vpack.c.bf16 %v4202, %v4201
    %v4243 = vpack.c.bf16 %v4204, %v4203
    %v4244 = vpack.c.bf16 %v4206, %v4205
    %v4245 = vpack.c.bf16 %v4208, %v4207
    %v4246 = vpack.c.bf16 %v4210, %v4209
    %v4247 = vpack.c.bf16 %v4212, %v4211
    %v4248 = vpack.c.bf16 %v4214, %v4213
    %v4249 = vpack.c.bf16 %v4216, %v4215
    %v4250 = vpack.c.bf16 %v4218, %v4217
    %v4251 = vld [vmem:[%s2] sm:$0xf]
    %v4252 = vld [vmem:[%s2 + $0x4] sm:$0xf]
    %v4253 = vld [vmem:[%s2 + $0x8] sm:$0xf]
    %v4254 = vld [vmem:[%s2 + $0xc] sm:$0xf]
    %v4255 = vld [vmem:[%s2 + $0x10] sm:$0xf]
    %v4256 = vld [vmem:[%s2 + $0x14] sm:$0xf]
    %v4257 = vld [vmem:[%s2 + $0x18] sm:$0xf]
    %v4258 = vld [vmem:[%s2 + $0x1c] sm:$0xf]
    %v4259 = vld [vmem:[%s2 + $0x20] sm:$0xf]
    %v4260 = vld [vmem:[%s5] sm:$0x1]
    %v4262 = vlaneseq
    %v4263 = vshrl.u32 %v4262, 7
    %v4264 = vsub.s32 0, %v4263
    %v4265 = vrot.slane %v4260, %v4264
    %v4276 = vunpack.c.l.b16 %v4251
    %v4277 = vunpack.c.l.b16 %v4252
    %v4278 = vunpack.c.l.b16 %v4253
    %v4279 = vunpack.c.l.b16 %v4254
    %v4280 = vunpack.c.l.b16 %v4255
    %v4281 = vunpack.c.l.b16 %v4256
    %v4282 = vunpack.c.l.b16 %v4257
    %v4283 = vunpack.c.l.b16 %v4258
    %v4284 = vunpack.c.l.b16 %v4259
    %v4285 = vpack.c.b16 %v4277, %v4276
    %v4286 = vpack.c.b16 %v4279, %v4278
    %v4287 = vpack.c.b16 %v4281, %v4280
    %v4288 = vpack.c.b16 %v4283, %v4282
    %v4289 = vpack.c.b16 %v4284, %v4284
    %vm4294 = vcmask 588800
    %v4296 = vsel %vm4294, %v4219, 0
    %v4299 = vsel %vm4294, %v4220, 0
    %v4302 = vsel %vm4294, %v4221, 0
    %v4305 = vsel %vm4294, %v4222, 0
    %v4308 = vsel %vm4294, %v4223, 0
    %v4311 = vsel %vm4294, %v4224, 0
    %v4314 = vsel %vm4294, %v4225, 0
    %v4317 = vsel %vm4294, %v4226, 0
    %v4320 = vsel %vm4294, %v4227, 0
    %v4323 = vsel %vm4294, %v4228, 0
    %v4326 = vsel %vm4294, %v4229, 0
    %v4329 = vsel %vm4294, %v4230, 0
    %v4332 = vsel %vm4294, %v4231, 0
    %v4335 = vsel %vm4294, %v4232, 0
    %v4338 = vsel %vm4294, %v4233, 0
    %v4341 = vsel %vm4294, %v4234, 0
    %v4344 = vsel %vm4294, %v4235, 0
    %v4347 = vsel %vm4294, %v4236, 0
    %v4350 = vsel %vm4294, %v4237, 0
    %v4353 = vsel %vm4294, %v4238, 0
    %v4356 = vsel %vm4294, %v4239, 0
    %v4359 = vsel %vm4294, %v4240, 0
    %v4362 = vsel %vm4294, %v4241, 0
    %v4365 = vsel %vm4294, %v4242, 0
    %v4368 = vsel %vm4294, %v4243, 0
    %v4371 = vsel %vm4294, %v4244, 0
    %v4374 = vsel %vm4294, %v4245, 0
    %v4377 = vsel %vm4294, %v4246, 0
    %v4380 = vsel %vm4294, %v4247, 0
    %v4383 = vsel %vm4294, %v4248, 0
    %v4386 = vsel %vm4294, %v4249, 0
    %v4389 = vsel %vm4294, %v4250, 0
    %vm4391 = vcmask 1043456
    %v4393 = vsel %vm4391, %v4289, 0
    %4395 = vmatprep.subr.bf16.mxu0 0
    %4396 = vmatpush1.bf16.msra.mxu0 %v4285
    %4397 = vmatprep.subr.bf16.mxu0 0
    %4398 = vmatpush1.bf16.msra.mxu0 %v4286
    %4399 = vmatprep.subr.bf16.mxu0 0
    %4400 = vmatpush1.bf16.msra.mxu0 %v4287
    %4401 = vmatprep.subr.bf16.mxu0 0
    %4402 = vmatpush1.bf16.msra.mxu0 %v4288
    %4403 = vmatprep.subr.bf16.mxu0 0
    %4404 = vmatpush1.bf16.msra.mxu0 %v4393
    %4405 = vmatprep.subr.bf16.mxu0 0
    %4406 = vmatpush1.bf16.msra.mxu0 0
    %4407 = vmatprep.subr.bf16.mxu0 0
    %4408 = vmatpush1.bf16.msra.mxu0 0
    %4409 = vmatprep.subr.bf16.mxu0 0
    %4410 = vmatpush1.bf16.msra.mxu0 0
    %4411 = vmatprep.subr.bf16.mxu0 0
    %4412 = vmatpush1.bf16.msra.mxu0 0
    %4413 = vmatprep.subr.bf16.mxu0 0
    %4414 = vmatpush1.bf16.msra.mxu0 0
    %4415 = vmatprep.subr.bf16.mxu0 0
    %4416 = vmatpush1.bf16.msra.mxu0 0
    %4417 = vmatprep.subr.bf16.mxu0 0
    %4418 = vmatpush1.bf16.msra.mxu0 0
    %4419 = vmatprep.subr.bf16.mxu0 0
    %4420 = vmatpush1.bf16.msra.mxu0 0
    %4421 = vmatprep.subr.bf16.mxu0 0
    %4422 = vmatpush1.bf16.msra.mxu0 0
    %4423 = vmatprep.subr.bf16.mxu0 0
    %4424 = vmatpush1.bf16.msra.mxu0 0
    %4425 = vmatprep.subr.bf16.mxu0 0
    %4426 = vmatpush1.bf16.msra.mxu0 0
    %4427 = vmatprep.mubr.bf16.mxu0 0
    %4428 = vmatmul.mubr.bf16.gmra.mrb[0].mxu0 %v4296
    %v4429 = vpop.f32.mrb[0].mxu0
    %v4430 = vadd.f32 %v4265, %v4429
    %v4431 = vpop.f32.mrb[0].mxu0
    %v4432 = vpop.f32.mrb[0].mxu0
    %v4433 = vadd.f32 %v4265, %v4432
    %v4434 = vpop.f32.mrb[0].mxu0
    %4435 = vmatprep.mubr.bf16.mxu0 0
    %4436 = vmatmul.mubr.bf16.gmra.mrb[0].mxu0 %v4299
    %v4437 = vpop.f32.mrb[0].mxu0
    %v4438 = vadd.f32 %v4265, %v4437
    %v4439 = vpop.f32.mrb[0].mxu0
    %v4440 = vpop.f32.mrb[0].mxu0
    %v4441 = vadd.f32 %v4265, %v4440
    %v4442 = vpop.f32.mrb[0].mxu0
    %4443 = vmatprep.mubr.bf16.mxu0 0
    %4444 = vmatmul.mubr.bf16.gmra.mrb[0].mxu0 %v4302
    %v4445 = vpop.f32.mrb[0].mxu0
    %v4446 = vadd.f32 %v4265, %v4445
    %v4447 = vpop.f32.mrb[0].mxu0
    %v4448 = vpop.f32.mrb[0].mxu0
    %v4449 = vadd.f32 %v4265, %v4448
    %v4450 = vpop.f32.mrb[0].mxu0
    %4451 = vmatprep.mubr.bf16.mxu0 0
    %4452 = vmatmul.mubr.bf16.gmra.mrb[0].mxu0 %v4305
    %v4453 = vpop.f32.mrb[0].mxu0
    %v4454 = vadd.f32 %v4265, %v4453
    %v4455 = vpop.f32.mrb[0].mxu0
    %v4456 = vpop.f32.mrb[0].mxu0
    %v4457 = vadd.f32 %v4265, %v4456
    %v4458 = vpop.f32.mrb[0].mxu0
    %4459 = vmatprep.mubr.bf16.mxu0 0
    %4460 = vmatmul.mubr.bf16.gmra.mrb[0].mxu0 %v4308
    %v4461 = vpop.f32.mrb[0].mxu0
    %v4462 = vadd.f32 %v4265, %v4461
    %v4463 = vpop.f32.mrb[0].mxu0
    %v4464 = vpop.f32.mrb[0].mxu0
    %v4465 = vadd.f32 %v4265, %v4464
    %v4466 = vpop.f32.mrb[0].mxu0
    %4467 = vmatprep.mubr.bf16.mxu0 0
    %4468 = vmatmul.mubr.bf16.gmra.mrb[0].mxu0 %v4311
    %v4469 = vpop.f32.mrb[0].mxu0
    %v4470 = vadd.f32 %v4265, %v4469
    %v4471 = vpop.f32.mrb[0].mxu0
    %v4472 = vpop.f32.mrb[0].mxu0
    %v4473 = vadd.f32 %v4265, %v4472
    %v4474 = vpop.f32.mrb[0].mxu0
    %4475 = vmatprep.mubr.bf16.mxu0 0
    %4476 = vmatmul.mubr.bf16.gmra.mrb[0].mxu0 %v4314
    %v4477 = vpop.f32.mrb[0].mxu0
    %v4478 = vadd.f32 %v4265, %v4477
    %v4479 = vpop.f32.mrb[0].mxu0
    %v4480 = vpop.f32.mrb[0].mxu0
    %v4481 = vadd.f32 %v4265, %v4480
    %v4482 = vpop.f32.mrb[0].mxu0
    %4483 = vmatprep.mubr.bf16.mxu0 0
    %4484 = vmatmul.mubr.bf16.gmra.mrb[0].mxu0 %v4317
    %v4485 = vpop.f32.mrb[0].mxu0
    %v4486 = vadd.f32 %v4265, %v4485
    %v4487 = vpop.f32.mrb[0].mxu0
    %v4488 = vpop.f32.mrb[0].mxu0
    %v4489 = vadd.f32 %v4265, %v4488
    %v4490 = vpop.f32.mrb[0].mxu0
    %4491 = vmatprep.mubr.bf16.mxu0 0
    %4492 = vmatmul.mubr.bf16.gmra.mrb[0].mxu0 %v4320
    %v4493 = vpop.f32.mrb[0].mxu0
    %v4494 = vadd.f32 %v4265, %v4493
    %v4495 = vpop.f32.mrb[0].mxu0
    %v4496 = vpop.f32.mrb[0].mxu0
    %v4497 = vadd.f32 %v4265, %v4496
    %v4498 = vpop.f32.mrb[0].mxu0
    %4499 = vmatprep.mubr.bf16.mxu0 0
    %4500 = vmatmul.mubr.bf16.gmra.mrb[0].mxu0 %v4323
    %v4501 = vpop.f32.mrb[0].mxu0
    %v4502 = vadd.f32 %v4265, %v4501
    %v4503 = vpop.f32.mrb[0].mxu0
    %v4504 = vpop.f32.mrb[0].mxu0
    %v4505 = vadd.f32 %v4265, %v4504
    %v4506 = vpop.f32.mrb[0].mxu0
    %4507 = vmatprep.mubr.bf16.mxu0 0
    %4508 = vmatmul.mubr.bf16.gmra.mrb[0].mxu0 %v4326
    %v4509 = vpop.f32.mrb[0].mxu0
    %v4510 = vadd.f32 %v4265, %v4509
    %v4511 = vpop.f32.mrb[0].mxu0
    %v4512 = vpop.f32.mrb[0].mxu0
    %v4513 = vadd.f32 %v4265, %v4512
    %v4514 = vpop.f32.mrb[0].mxu0
    %4515 = vmatprep.mubr.bf16.mxu0 0
    %4516 = vmatmul.mubr.bf16.gmra.mrb[0].mxu0 %v4329
    %v4517 = vpop.f32.mrb[0].mxu0
    %v4518 = vadd.f32 %v4265, %v4517
    %v4519 = vpop.f32.mrb[0].mxu0
    %v4520 = vpop.f32.mrb[0].mxu0
    %v4521 = vadd.f32 %v4265, %v4520
    %v4522 = vpop.f32.mrb[0].mxu0
    %4523 = vmatprep.mubr.bf16.mxu0 0
    %4524 = vmatmul.mubr.bf16.gmra.mrb[0].mxu0 %v4332
    %v4525 = vpop.f32.mrb[0].mxu0
    %v4526 = vadd.f32 %v4265, %v4525
    %v4527 = vpop.f32.mrb[0].mxu0
    %v4528 = vpop.f32.mrb[0].mxu0
    %v4529 = vadd.f32 %v4265, %v4528
    %v4530 = vpop.f32.mrb[0].mxu0
    %4531 = vmatprep.mubr.bf16.mxu0 0
    %4532 = vmatmul.mubr.bf16.gmra.mrb[0].mxu0 %v4335
    %v4533 = vpop.f32.mrb[0].mxu0
    %v4534 = vadd.f32 %v4265, %v4533
    %v4535 = vpop.f32.mrb[0].mxu0
    %v4536 = vpop.f32.mrb[0].mxu0
    %v4537 = vadd.f32 %v4265, %v4536
    %v4538 = vpop.f32.mrb[0].mxu0
    %4539 = vmatprep.mubr.bf16.mxu0 0
    %4540 = vmatmul.mubr.bf16.gmra.mrb[0].mxu0 %v4338
    %v4541 = vpop.f32.mrb[0].mxu0
    %v4542 = vadd.f32 %v4265, %v4541
    %v4543 = vpop.f32.mrb[0].mxu0
    %v4544 = vpop.f32.mrb[0].mxu0
    %v4545 = vadd.f32 %v4265, %v4544
    %v4546 = vpop.f32.mrb[0].mxu0
    %4547 = vmatprep.mubr.bf16.mxu0 0
    %4548 = vmatmul.mubr.bf16.gmra.mrb[0].mxu0 %v4341
    %v4549 = vpop.f32.mrb[0].mxu0
    %v4550 = vadd.f32 %v4265, %v4549
    %v4551 = vpop.f32.mrb[0].mxu0
    %v4552 = vpop.f32.mrb[0].mxu0
    %v4553 = vadd.f32 %v4265, %v4552
    %v4554 = vpop.f32.mrb[0].mxu0
    %4555 = vmatprep.mubr.bf16.mxu0 0
    %4556 = vmatmul.mubr.bf16.gmra.mrb[0].mxu0 %v4344
    %v4557 = vpop.f32.mrb[0].mxu0
    %v4558 = vadd.f32 %v4265, %v4557
    %v4559 = vpop.f32.mrb[0].mxu0
    %v4560 = vpop.f32.mrb[0].mxu0
    %v4561 = vadd.f32 %v4265, %v4560
    %v4562 = vpop.f32.mrb[0].mxu0
    %4563 = vmatprep.mubr.bf16.mxu0 0
    %4564 = vmatmul.mubr.bf16.gmra.mrb[0].mxu0 %v4347
    %v4565 = vpop.f32.mrb[0].mxu0
    %v4566 = vadd.f32 %v4265, %v4565
    %v4567 = vpop.f32.mrb[0].mxu0
    %v4568 = vpop.f32.mrb[0].mxu0
    %v4569 = vadd.f32 %v4265, %v4568
    %v4570 = vpop.f32.mrb[0].mxu0
    %4571 = vmatprep.mubr.bf16.mxu0 0
    %4572 = vmatmul.mubr.bf16.gmra.mrb[0].mxu0 %v4350
    %v4573 = vpop.f32.mrb[0].mxu0
    %v4574 = vadd.f32 %v4265, %v4573
    %v4575 = vpop.f32.mrb[0].mxu0
    %v4576 = vpop.f32.mrb[0].mxu0
    %v4577 = vadd.f32 %v4265, %v4576
    %v4578 = vpop.f32.mrb[0].mxu0
    %4579 = vmatprep.mubr.bf16.mxu0 0
    %4580 = vmatmul.mubr.bf16.gmra.mrb[0].mxu0 %v4353
    %v4581 = vpop.f32.mrb[0].mxu0
    %v4582 = vadd.f32 %v4265, %v4581
    %v4583 = vpop.f32.mrb[0].mxu0
    %v4584 = vpop.f32.mrb[0].mxu0
    %v4585 = vadd.f32 %v4265, %v4584
    %v4586 = vpop.f32.mrb[0].mxu0
    %4587 = vmatprep.mubr.bf16.mxu0 0
    %4588 = vmatmul.mubr.bf16.gmra.mrb[0].mxu0 %v4356
    %v4589 = vpop.f32.mrb[0].mxu0
    %v4590 = vadd.f32 %v4265, %v4589
    %v4591 = vpop.f32.mrb[0].mxu0
    %v4592 = vpop.f32.mrb[0].mxu0
    %v4593 = vadd.f32 %v4265, %v4592
    %v4594 = vpop.f32.mrb[0].mxu0
    %4595 = vmatprep.mubr.bf16.mxu0 0
    %4596 = vmatmul.mubr.bf16.gmra.mrb[0].mxu0 %v4359
    %v4597 = vpop.f32.mrb[0].mxu0
    %v4598 = vadd.f32 %v4265, %v4597
    %v4599 = vpop.f32.mrb[0].mxu0
    %v4600 = vpop.f32.mrb[0].mxu0
    %v4601 = vadd.f32 %v4265, %v4600
    %v4602 = vpop.f32.mrb[0].mxu0
    %4603 = vmatprep.mubr.bf16.mxu0 0
    %4604 = vmatmul.mubr.bf16.gmra.mrb[0].mxu0 %v4362
    %v4605 = vpop.f32.mrb[0].mxu0
    %v4606 = vadd.f32 %v4265, %v4605
    %v4607 = vpop.f32.mrb[0].mxu0
    %v4608 = vpop.f32.mrb[0].mxu0
    %v4609 = vadd.f32 %v4265, %v4608
    %v4610 = vpop.f32.mrb[0].mxu0
    %4611 = vmatprep.mubr.bf16.mxu0 0
    %4612 = vmatmul.mubr.bf16.gmra.mrb[0].mxu0 %v4365
    %v4613 = vpop.f32.mrb[0].mxu0
    %v4614 = vadd.f32 %v4265, %v4613
    %v4615 = vpop.f32.mrb[0].mxu0
    %v4616 = vpop.f32.mrb[0].mxu0
    %v4617 = vadd.f32 %v4265, %v4616
    %v4618 = vpop.f32.mrb[0].mxu0
    %4619 = vmatprep.mubr.bf16.mxu0 0
    %4620 = vmatmul.mubr.bf16.gmra.mrb[0].mxu0 %v4368
    %v4621 = vpop.f32.mrb[0].mxu0
    %v4622 = vadd.f32 %v4265, %v4621
    %v4623 = vpop.f32.mrb[0].mxu0
    %v4624 = vpop.f32.mrb[0].mxu0
    %v4625 = vadd.f32 %v4265, %v4624
    %v4626 = vpop.f32.mrb[0].mxu0
    %4627 = vmatprep.mubr.bf16.mxu0 0
    %4628 = vmatmul.mubr.bf16.gmra.mrb[0].mxu0 %v4371
    %v4629 = vpop.f32.mrb[0].mxu0
    %v4630 = vadd.f32 %v4265, %v4629
    %v4631 = vpop.f32.mrb[0].mxu0
    %v4632 = vpop.f32.mrb[0].mxu0
    %v4633 = vadd.f32 %v4265, %v4632
    %v4634 = vpop.f32.mrb[0].mxu0
    %4635 = vmatprep.mubr.bf16.mxu0 0
    %4636 = vmatmul.mubr.bf16.gmra.mrb[0].mxu0 %v4374
    %v4637 = vpop.f32.mrb[0].mxu0
    %v4638 = vadd.f32 %v4265, %v4637
    %v4639 = vpop.f32.mrb[0].mxu0
    %v4640 = vpop.f32.mrb[0].mxu0
    %v4641 = vadd.f32 %v4265, %v4640
    %v4642 = vpop.f32.mrb[0].mxu0
    %4643 = vmatprep.mubr.bf16.mxu0 0
    %4644 = vmatmul.mubr.bf16.gmra.mrb[0].mxu0 %v4377
    %v4645 = vpop.f32.mrb[0].mxu0
    %v4646 = vadd.f32 %v4265, %v4645
    %v4647 = vpop.f32.mrb[0].mxu0
    %v4648 = vpop.f32.mrb[0].mxu0
    %v4649 = vadd.f32 %v4265, %v4648
    %v4650 = vpop.f32.mrb[0].mxu0
    %4651 = vmatprep.mubr.bf16.mxu0 0
    %4652 = vmatmul.mubr.bf16.gmra.mrb[0].mxu0 %v4380
    %v4653 = vpop.f32.mrb[0].mxu0
    %v4654 = vadd.f32 %v4265, %v4653
    %v4655 = vpop.f32.mrb[0].mxu0
    %v4656 = vpop.f32.mrb[0].mxu0
    %v4657 = vadd.f32 %v4265, %v4656
    %v4658 = vpop.f32.mrb[0].mxu0
    %4659 = vmatprep.mubr.bf16.mxu0 0
    %4660 = vmatmul.mubr.bf16.gmra.mrb[0].mxu0 %v4383
    %v4661 = vpop.f32.mrb[0].mxu0
    %v4662 = vadd.f32 %v4265, %v4661
    %v4663 = vpop.f32.mrb[0].mxu0
    %v4664 = vpop.f32.mrb[0].mxu0
    %v4665 = vadd.f32 %v4265, %v4664
    %v4666 = vpop.f32.mrb[0].mxu0
    %4667 = vmatprep.mubr.bf16.mxu0 0
    %4668 = vmatmul.mubr.bf16.gmra.mrb[0].mxu0 %v4386
    %v4669 = vpop.f32.mrb[0].mxu0
    %v4670 = vadd.f32 %v4265, %v4669
    %v4671 = vpop.f32.mrb[0].mxu0
    %v4672 = vpop.f32.mrb[0].mxu0
    %v4673 = vadd.f32 %v4265, %v4672
    %v4674 = vpop.f32.mrb[0].mxu0
    %4675 = vmatprep.mubr.bf16.mxu0 0
    %4676 = vmatmul.mubr.bf16.gmra.mrb[0].mxu0 %v4389
    %v4677 = vpop.f32.mrb[0].mxu0
    %v4678 = vadd.f32 %v4265, %v4677
    %v4679 = vpop.f32.mrb[0].mxu0
    %v4680 = vpop.f32.mrb[0].mxu0
    %v4681 = vadd.f32 %v4265, %v4680
    %v4682 = vpop.f32.mrb[0].mxu0
    %4683 = vdwg.mxu0
    %v4684 = vadd.f32 %v4430, 0.0
    %v4685 = vadd.f32 %v4433, 0.0
    %v4686 = vadd.f32 %v4438, 0.0
    %v4687 = vadd.f32 %v4441, 0.0
    %v4688 = vadd.f32 %v4446, 0.0
    %v4689 = vadd.f32 %v4449, 0.0
    %v4690 = vadd.f32 %v4454, 0.0
    %v4691 = vadd.f32 %v4457, 0.0
    %v4692 = vadd.f32 %v4462, 0.0
    %v4693 = vadd.f32 %v4465, 0.0
    %v4694 = vadd.f32 %v4470, 0.0
    %v4695 = vadd.f32 %v4473, 0.0
    %v4696 = vadd.f32 %v4478, 0.0
    %v4697 = vadd.f32 %v4481, 0.0
    %v4698 = vadd.f32 %v4486, 0.0
    %v4699 = vadd.f32 %v4489, 0.0
    %v4700 = vadd.f32 %v4494, 0.0
    %v4701 = vadd.f32 %v4497, 0.0
    %v4702 = vadd.f32 %v4502, 0.0
    %v4703 = vadd.f32 %v4505, 0.0
    %v4704 = vadd.f32 %v4510, 0.0
    %v4705 = vadd.f32 %v4513, 0.0
    %v4706 = vadd.f32 %v4518, 0.0
    %v4707 = vadd.f32 %v4521, 0.0
    %v4708 = vadd.f32 %v4526, 0.0
    %v4709 = vadd.f32 %v4529, 0.0
    %v4710 = vadd.f32 %v4534, 0.0
    %v4711 = vadd.f32 %v4537, 0.0
    %v4712 = vadd.f32 %v4542, 0.0
    %v4713 = vadd.f32 %v4545, 0.0
    %v4714 = vadd.f32 %v4550, 0.0
    %v4715 = vadd.f32 %v4553, 0.0
    %v4716 = vadd.f32 %v4558, 0.0
    %v4717 = vadd.f32 %v4561, 0.0
    %v4718 = vadd.f32 %v4566, 0.0
    %v4719 = vadd.f32 %v4569, 0.0
    %v4720 = vadd.f32 %v4574, 0.0
    %v4721 = vadd.f32 %v4577, 0.0
    %v4722 = vadd.f32 %v4582, 0.0
    %v4723 = vadd.f32 %v4585, 0.0
    %v4724 = vadd.f32 %v4590, 0.0
    %v4725 = vadd.f32 %v4593, 0.0
    %v4726 = vadd.f32 %v4598, 0.0
    %v4727 = vadd.f32 %v4601, 0.0
    %v4728 = vadd.f32 %v4606, 0.0
    %v4729 = vadd.f32 %v4609, 0.0
    %v4730 = vadd.f32 %v4614, 0.0
    %v4731 = vadd.f32 %v4617, 0.0
    %v4732 = vadd.f32 %v4622, 0.0
    %v4733 = vadd.f32 %v4625, 0.0
    %v4734 = vadd.f32 %v4630, 0.0
    %v4735 = vadd.f32 %v4633, 0.0
    %v4736 = vadd.f32 %v4638, 0.0
    %v4737 = vadd.f32 %v4641, 0.0
    %v4738 = vadd.f32 %v4646, 0.0
    %v4739 = vadd.f32 %v4649, 0.0
    %v4740 = vadd.f32 %v4654, 0.0
    %v4741 = vadd.f32 %v4657, 0.0
    %v4742 = vadd.f32 %v4662, 0.0
    %v4743 = vadd.f32 %v4665, 0.0
    %v4744 = vadd.f32 %v4670, 0.0
    %v4745 = vadd.f32 %v4673, 0.0
    %v4746 = vadd.f32 %v4678, 0.0
    %v4747 = vadd.f32 %v4681, 0.0
    %vm4748 = vcmp.gt.f32.partialorder %v4684, 1.0
    %vm4749 = vcmp.gt.f32.partialorder %v4685, 1.0
    %vm4750 = vcmp.gt.f32.partialorder %v4686, 1.0
    %vm4751 = vcmp.gt.f32.partialorder %v4687, 1.0
    %vm4752 = vcmp.gt.f32.partialorder %v4688, 1.0
    %vm4753 = vcmp.gt.f32.partialorder %v4689, 1.0
    %vm4754 = vcmp.gt.f32.partialorder %v4690, 1.0
    %vm4755 = vcmp.gt.f32.partialorder %v4691, 1.0
    %vm4756 = vcmp.gt.f32.partialorder %v4692, 1.0
    %vm4757 = vcmp.gt.f32.partialorder %v4693, 1.0
    %vm4758 = vcmp.gt.f32.partialorder %v4694, 1.0
    %vm4759 = vcmp.gt.f32.partialorder %v4695, 1.0
    %vm4760 = vcmp.gt.f32.partialorder %v4696, 1.0
    %vm4761 = vcmp.gt.f32.partialorder %v4697, 1.0
    %vm4762 = vcmp.gt.f32.partialorder %v4698, 1.0
    %vm4763 = vcmp.gt.f32.partialorder %v4699, 1.0
    %vm4764 = vcmp.gt.f32.partialorder %v4700, 1.0
    %vm4765 = vcmp.gt.f32.partialorder %v4701, 1.0
    %vm4766 = vcmp.gt.f32.partialorder %v4702, 1.0
    %vm4767 = vcmp.gt.f32.partialorder %v4703, 1.0
    %vm4768 = vcmp.gt.f32.partialorder %v4704, 1.0
    %vm4769 = vcmp.gt.f32.partialorder %v4705, 1.0
    %vm4770 = vcmp.gt.f32.partialorder %v4706, 1.0
    %vm4771 = vcmp.gt.f32.partialorder %v4707, 1.0
    %vm4772 = vcmp.gt.f32.partialorder %v4708, 1.0
    %vm4773 = vcmp.gt.f32.partialorder %v4709, 1.0
    %vm4774 = vcmp.gt.f32.partialorder %v4710, 1.0
    %vm4775 = vcmp.gt.f32.partialorder %v4711, 1.0
    %vm4776 = vcmp.gt.f32.partialorder %v4712, 1.0
    %vm4777 = vcmp.gt.f32.partialorder %v4713, 1.0
    %vm4778 = vcmp.gt.f32.partialorder %v4714, 1.0
    %vm4779 = vcmp.gt.f32.partialorder %v4715, 1.0
    %vm4780 = vcmp.gt.f32.partialorder %v4716, 1.0
    %vm4781 = vcmp.gt.f32.partialorder %v4717, 1.0
    %vm4782 = vcmp.gt.f32.partialorder %v4718, 1.0
    %vm4783 = vcmp.gt.f32.partialorder %v4719, 1.0
    %vm4784 = vcmp.gt.f32.partialorder %v4720, 1.0
    %vm4785 = vcmp.gt.f32.partialorder %v4721, 1.0
    %vm4786 = vcmp.gt.f32.partialorder %v4722, 1.0
    %vm4787 = vcmp.gt.f32.partialorder %v4723, 1.0
    %vm4788 = vcmp.gt.f32.partialorder %v4724, 1.0
    %vm4789 = vcmp.gt.f32.partialorder %v4725, 1.0
    %vm4790 = vcmp.gt.f32.partialorder %v4726, 1.0
    %vm4791 = vcmp.gt.f32.partialorder %v4727, 1.0
    %vm4792 = vcmp.gt.f32.partialorder %v4728, 1.0
    %vm4793 = vcmp.gt.f32.partialorder %v4729, 1.0
    %vm4794 = vcmp.gt.f32.partialorder %v4730, 1.0
    %vm4795 = vcmp.gt.f32.partialorder %v4731, 1.0
    %vm4796 = vcmp.gt.f32.partialorder %v4732, 1.0
    %vm4797 = vcmp.gt.f32.partialorder %v4733, 1.0
    %vm4798 = vcmp.gt.f32.partialorder %v4734, 1.0
    %vm4799 = vcmp.gt.f32.partialorder %v4735, 1.0
    %vm4800 = vcmp.gt.f32.partialorder %v4736, 1.0
    %vm4801 = vcmp.gt.f32.partialorder %v4737, 1.0
    %vm4802 = vcmp.gt.f32.partialorder %v4738, 1.0
    %vm4803 = vcmp.gt.f32.partialorder %v4739, 1.0
    %vm4804 = vcmp.gt.f32.partialorder %v4740, 1.0
    %vm4805 = vcmp.gt.f32.partialorder %v4741, 1.0
    %vm4806 = vcmp.gt.f32.partialorder %v4742, 1.0
    %vm4807 = vcmp.gt.f32.partialorder %v4743, 1.0
    %vm4808 = vcmp.gt.f32.partialorder %v4744, 1.0
    %vm4809 = vcmp.gt.f32.partialorder %v4745, 1.0
    %vm4810 = vcmp.gt.f32.partialorder %v4746, 1.0
    %vm4811 = vcmp.gt.f32.partialorder %v4747, 1.0
    %v4812 = vsel %vm4748, 1, 0
    %v4813 = vsel %vm4749, 1, 0
    %v4814 = vsel %vm4750, 1, 0
    %v4815 = vsel %vm4751, 1, 0
    %v4816 = vsel %vm4752, 1, 0
    %v4817 = vsel %vm4753, 1, 0
    %v4818 = vsel %vm4754, 1, 0
    %v4819 = vsel %vm4755, 1, 0
    %v4820 = vsel %vm4756, 1, 0
    %v4821 = vsel %vm4757, 1, 0
    %v4822 = vsel %vm4758, 1, 0
    %v4823 = vsel %vm4759, 1, 0
    %v4824 = vsel %vm4760, 1, 0
    %v4825 = vsel %vm4761, 1, 0
    %v4826 = vsel %vm4762, 1, 0
    %v4827 = vsel %vm4763, 1, 0
    %v4828 = vsel %vm4764, 1, 0
    %v4829 = vsel %vm4765, 1, 0
    %v4830 = vsel %vm4766, 1, 0
    %v4831 = vsel %vm4767, 1, 0
    %v4832 = vsel %vm4768, 1, 0
    %v4833 = vsel %vm4769, 1, 0
    %v4834 = vsel %vm4770, 1, 0
    %v4835 = vsel %vm4771, 1, 0
    %v4836 = vsel %vm4772, 1, 0
    %v4837 = vsel %vm4773, 1, 0
    %v4838 = vsel %vm4774, 1, 0
    %v4839 = vsel %vm4775, 1, 0
    %v4840 = vsel %vm4776, 1, 0
    %v4841 = vsel %vm4777, 1, 0
    %v4842 = vsel %vm4778, 1, 0
    %v4843 = vsel %vm4779, 1, 0
    %v4844 = vsel %vm4780, 1, 0
    %v4845 = vsel %vm4781, 1, 0
    %v4846 = vsel %vm4782, 1, 0
    %v4847 = vsel %vm4783, 1, 0
    %v4848 = vsel %vm4784, 1, 0
    %v4849 = vsel %vm4785, 1, 0
    %v4850 = vsel %vm4786, 1, 0
    %v4851 = vsel %vm4787, 1, 0
    %v4852 = vsel %vm4788, 1, 0
    %v4853 = vsel %vm4789, 1, 0
    %v4854 = vsel %vm4790, 1, 0
    %v4855 = vsel %vm4791, 1, 0
    %v4856 = vsel %vm4792, 1, 0
    %v4857 = vsel %vm4793, 1, 0
    %v4858 = vsel %vm4794, 1, 0
    %v4859 = vsel %vm4795, 1, 0
    %v4860 = vsel %vm4796, 1, 0
    %v4861 = vsel %vm4797, 1, 0
    %v4862 = vsel %vm4798, 1, 0
    %v4863 = vsel %vm4799, 1, 0
    %v4864 = vsel %vm4800, 1, 0
    %v4865 = vsel %vm4801, 1, 0
    %v4866 = vsel %vm4802, 1, 0
    %v4867 = vsel %vm4803, 1, 0
    %v4868 = vsel %vm4804, 1, 0
    %v4869 = vsel %vm4805, 1, 0
    %v4870 = vsel %vm4806, 1, 0
    %v4871 = vsel %vm4807, 1, 0
    %v4872 = vsel %vm4808, 1, 0
    %v4873 = vsel %vm4809, 1, 0
    %v4874 = vsel %vm4810, 1, 0
    %v4875 = vsel %vm4811, 1, 0
    %v4876 = vcvt.s32.f32 %v4812
    %v4877 = vcvt.s32.f32 %v4813
    %v4878 = vcvt.s32.f32 %v4814
    %v4879 = vcvt.s32.f32 %v4815
    %v4880 = vcvt.s32.f32 %v4816
    %v4881 = vcvt.s32.f32 %v4817
    %v4882 = vcvt.s32.f32 %v4818
    %v4883 = vcvt.s32.f32 %v4819
    %v4884 = vcvt.s32.f32 %v4820
    %v4885 = vcvt.s32.f32 %v4821
    %v4886 = vcvt.s32.f32 %v4822
    %v4887 = vcvt.s32.f32 %v4823
    %v4888 = vcvt.s32.f32 %v4824
    %v4889 = vcvt.s32.f32 %v4825
    %v4890 = vcvt.s32.f32 %v4826
    %v4891 = vcvt.s32.f32 %v4827
    %v4892 = vcvt.s32.f32 %v4828
    %v4893 = vcvt.s32.f32 %v4829
    %v4894 = vcvt.s32.f32 %v4830
    %v4895 = vcvt.s32.f32 %v4831
    %v4896 = vcvt.s32.f32 %v4832
    %v4897 = vcvt.s32.f32 %v4833
    %v4898 = vcvt.s32.f32 %v4834
    %v4899 = vcvt.s32.f32 %v4835
    %v4900 = vcvt.s32.f32 %v4836
    %v4901 = vcvt.s32.f32 %v4837
    %v4902 = vcvt.s32.f32 %v4838
    %v4903 = vcvt.s32.f32 %v4839
    %v4904 = vcvt.s32.f32 %v4840
    %v4905 = vcvt.s32.f32 %v4841
    %v4906 = vcvt.s32.f32 %v4842
    %v4907 = vcvt.s32.f32 %v4843
    %v4908 = vcvt.s32.f32 %v4844
    %v4909 = vcvt.s32.f32 %v4845
    %v4910 = vcvt.s32.f32 %v4846
    %v4911 = vcvt.s32.f32 %v4847
    %v4912 = vcvt.s32.f32 %v4848
    %v4913 = vcvt.s32.f32 %v4849
    %v4914 = vcvt.s32.f32 %v4850
    %v4915 = vcvt.s32.f32 %v4851
    %v4916 = vcvt.s32.f32 %v4852
    %v4917 = vcvt.s32.f32 %v4853
    %v4918 = vcvt.s32.f32 %v4854
    %v4919 = vcvt.s32.f32 %v4855
    %v4920 = vcvt.s32.f32 %v4856
    %v4921 = vcvt.s32.f32 %v4857
    %v4922 = vcvt.s32.f32 %v4858
    %v4923 = vcvt.s32.f32 %v4859
    %v4924 = vcvt.s32.f32 %v4860
    %v4925 = vcvt.s32.f32 %v4861
    %v4926 = vcvt.s32.f32 %v4862
    %v4927 = vcvt.s32.f32 %v4863
    %v4928 = vcvt.s32.f32 %v4864
    %v4929 = vcvt.s32.f32 %v4865
    %v4930 = vcvt.s32.f32 %v4866
    %v4931 = vcvt.s32.f32 %v4867
    %v4932 = vcvt.s32.f32 %v4868
    %v4933 = vcvt.s32.f32 %v4869
    %v4934 = vcvt.s32.f32 %v4870
    %v4935 = vcvt.s32.f32 %v4871
    %v4936 = vcvt.s32.f32 %v4872
    %v4937 = vcvt.s32.f32 %v4873
    %v4938 = vcvt.s32.f32 %v4874
    %v4939 = vcvt.s32.f32 %v4875
    %v4940 = vadd.f32 %v4876, %v4877
    %v4941 = vadd.f32 %v4940, %v4878
    %v4942 = vadd.f32 %v4941, %v4879
    %v4943 = vadd.f32 %v4942, %v4880
    %v4944 = vadd.f32 %v4943, %v4881
    %v4945 = vadd.f32 %v4944, %v4882
    %v4946 = vadd.f32 %v4945, %v4883
    %v4947 = vadd.f32 %v4946, %v4884
    %v4948 = vadd.f32 %v4947, %v4885
    %v4949 = vadd.f32 %v4948, %v4886
    %v4950 = vadd.f32 %v4949, %v4887
    %v4951 = vadd.f32 %v4950, %v4888
    %v4952 = vadd.f32 %v4951, %v4889
    %v4953 = vadd.f32 %v4952, %v4890
    %v4954 = vadd.f32 %v4953, %v4891
    %v4955 = vadd.f32 %v4954, %v4892
    %v4956 = vadd.f32 %v4955, %v4893
    %v4957 = vadd.f32 %v4956, %v4894
    %v4958 = vadd.f32 %v4957, %v4895
    %v4959 = vadd.f32 %v4958, %v4896
    %v4960 = vadd.f32 %v4959, %v4897
    %v4961 = vadd.f32 %v4960, %v4898
    %v4962 = vadd.f32 %v4961, %v4899
    %v4963 = vadd.f32 %v4962, %v4900
    %v4964 = vadd.f32 %v4963, %v4901
    %v4965 = vadd.f32 %v4964, %v4902
    %v4966 = vadd.f32 %v4965, %v4903
    %v4967 = vadd.f32 %v4966, %v4904
    %v4968 = vadd.f32 %v4967, %v4905
    %v4969 = vadd.f32 %v4968, %v4906
    %v4970 = vadd.f32 %v4969, %v4907
    %v4971 = vrot.slane %v4970, 4
    %v4972 = vadd.f32 %v4970, %v4971
    %v4973 = vrot.slane %v4972, 2
    %v4974 = vadd.f32 %v4972, %v4973
    %v4975 = vrot.slane %v4974, 1
    %v4976 = vadd.f32 %v4974, %v4975
    %v4977 = vadd.f32 %v4908, %v4909
    %v4978 = vadd.f32 %v4977, %v4910
    %v4979 = vadd.f32 %v4978, %v4911
    %v4980 = vadd.f32 %v4979, %v4912
    %v4981 = vadd.f32 %v4980, %v4913
    %v4982 = vadd.f32 %v4981, %v4914
    %v4983 = vadd.f32 %v4982, %v4915
    %v4984 = vadd.f32 %v4983, %v4916
    %v4985 = vadd.f32 %v4984, %v4917
    %v4986 = vadd.f32 %v4985, %v4918
    %v4987 = vadd.f32 %v4986, %v4919
    %v4988 = vadd.f32 %v4987, %v4920
    %v4989 = vadd.f32 %v4988, %v4921
    %v4990 = vadd.f32 %v4989, %v4922
    %v4991 = vadd.f32 %v4990, %v4923
    %v4992 = vadd.f32 %v4991, %v4924
    %v4993 = vadd.f32 %v4992, %v4925
    %v4994 = vadd.f32 %v4993, %v4926
    %v4995 = vadd.f32 %v4994, %v4927
    %v4996 = vadd.f32 %v4995, %v4928
    %v4997 = vadd.f32 %v4996, %v4929
    %v4998 = vadd.f32 %v4997, %v4930
    %v4999 = vadd.f32 %v4998, %v4931
    %v5000 = vadd.f32 %v4999, %v4932
    %v5001 = vadd.f32 %v5000, %v4933
    %v5002 = vadd.f32 %v5001, %v4934
    %v5003 = vadd.f32 %v5002, %v4935
    %v5004 = vadd.f32 %v5003, %v4936
    %v5005 = vadd.f32 %v5004, %v4937
    %v5006 = vadd.f32 %v5005, %v4938
    %v5007 = vadd.f32 %v5006, %v4939
    %v5008 = vrot.slane %v5007, 4
    %v5009 = vadd.f32 %v5007, %v5008
    %v5010 = vrot.slane %v5009, 2
    %v5011 = vadd.f32 %v5009, %v5010
    %v5012 = vrot.slane %v5011, 1
    %v5013 = vadd.f32 %v5011, %v5012
    %v5014 = vrcp.pop 256.0
    %v5015 = vmul.f32 %v4976, %v5014
    %v5016 = vmul.f32 %v5013, %v5014
    %v5017 = vld [vmem:[%s3] sm:$0xff]
    %v5018 = vld [vmem:[%s3 + $0x8] sm:$0xff]
    %v5019 = vld [vmem:[%s3 + $0x10] sm:$0xff]
    %v5020 = vld [vmem:[%s3 + $0x18] sm:$0xff]
    %v5021 = vld [vmem:[%s3 + $0x20] sm:$0xff]
    %v5022 = vld [vmem:[%s3 + $0x28] sm:$0xff]
    %v5023 = vld [vmem:[%s3 + $0x30] sm:$0xff]
    %v5024 = vld [vmem:[%s3 + $0x38] sm:$0xff]
    %v5025 = vld [vmem:[%s3 + $0x40] sm:$0xff]
    %v5026 = vld [vmem:[%s3 + $0x48] sm:$0xff]
    %v5027 = vld [vmem:[%s3 + $0x50] sm:$0xff]
    %v5028 = vld [vmem:[%s3 + $0x58] sm:$0xff]
    %v5029 = vld [vmem:[%s3 + $0x60] sm:$0xff]
    %v5030 = vld [vmem:[%s3 + $0x68] sm:$0xff]
    %v5031 = vld [vmem:[%s3 + $0x70] sm:$0xff]
    %v5032 = vld [vmem:[%s3 + $0x78] sm:$0xff]
    %v5033 = vld [vmem:[%s6] sm:$0x1]
    %v5035 = vlaneseq
    %v5036 = vshrl.u32 %v5035, 7
    %v5037 = vsub.s32 0, %v5036
    %v5038 = vrot.slane %v5033, %v5037
    %vm5042 = vcmask 1041409
    %v5043 = vsel %vm5042, %v5016, %v5015
    %5045 = vmatprep.subr.mxu0 0.0
    %5046 = vmatpush1.msra.mxu0 %v5017
    %5047 = vmatprep.subr.mxu0 0.0
    %5048 = vmatpush1.msra.mxu0 %v5018
    %5049 = vmatprep.subr.mxu0 0.0
    %5050 = vmatpush1.msra.mxu0 %v5019
    %5051 = vmatprep.subr.mxu0 0.0
    %5052 = vmatpush1.msra.mxu0 %v5020
    %5053 = vmatprep.subr.mxu0 0.0
    %5054 = vmatpush1.msra.mxu0 %v5021
    %5055 = vmatprep.subr.mxu0 0.0
    %5056 = vmatpush1.msra.mxu0 %v5022
    %5057 = vmatprep.subr.mxu0 0.0
    %5058 = vmatpush1.msra.mxu0 %v5023
    %5059 = vmatprep.subr.mxu0 0.0
    %5060 = vmatpush1.msra.mxu0 %v5024
    %5061 = vmatprep.subr.mxu0 0.0
    %5062 = vmatpush1.msra.mxu0 %v5025
    %5063 = vmatprep.subr.mxu0 0.0
    %5064 = vmatpush1.msra.mxu0 %v5026
    %5065 = vmatprep.subr.mxu0 0.0
    %5066 = vmatpush1.msra.mxu0 %v5027
    %5067 = vmatprep.subr.mxu0 0.0
    %5068 = vmatpush1.msra.mxu0 %v5028
    %5069 = vmatprep.subr.mxu0 0.0
    %5070 = vmatpush1.msra.mxu0 %v5029
    %5071 = vmatprep.subr.mxu0 0.0
    %5072 = vmatpush1.msra.mxu0 %v5030
    %5073 = vmatprep.subr.mxu0 0.0
    %5074 = vmatpush1.msra.mxu0 %v5031
    %5075 = vmatprep.subr.mxu0 0.0
    %5076 = vmatpush1.msra.mxu0 %v5032
    %5077 = vmatprep.subr.mxu0 0.0
    %5078 = vmatpush1.msra.mxu0 0.0
    %5079 = vmatprep.subr.mxu0 0.0
    %5080 = vmatpush1.msra.mxu0 0.0
    %5081 = vmatprep.subr.mxu0 0.0
    %5082 = vmatpush1.msra.mxu0 0.0
    %5083 = vmatprep.subr.mxu0 0.0
    %5084 = vmatpush1.msra.mxu0 0.0
    %5085 = vmatprep.subr.mxu0 0.0
    %5086 = vmatpush1.msra.mxu0 0.0
    %5087 = vmatprep.subr.mxu0 0.0
    %5088 = vmatpush1.msra.mxu0 0.0
    %5089 = vmatprep.subr.mxu0 0.0
    %5090 = vmatpush1.msra.mxu0 0.0
    %5091 = vmatprep.subr.mxu0 0.0
    %5092 = vmatpush1.msra.mxu0 0.0
    %5093 = vmatprep.subr.mxu0 0.0
    %5094 = vmatpush1.msra.mxu0 0.0
    %5095 = vmatprep.subr.mxu0 0.0
    %5096 = vmatpush1.msra.mxu0 0.0
    %5097 = vmatprep.subr.mxu0 0.0
    %5098 = vmatpush1.msra.mxu0 0.0
    %5099 = vmatprep.subr.mxu0 0.0
    %5100 = vmatpush1.msra.mxu0 0.0
    %5101 = vmatprep.subr.mxu0 0.0
    %5102 = vmatpush1.msra.mxu0 0.0
    %5103 = vmatprep.subr.mxu0 0.0
    %5104 = vmatpush1.msra.mxu0 0.0
    %5105 = vmatprep.subr.mxu0 0.0
    %5106 = vmatpush1.msra.mxu0 0.0
    %5107 = vmatprep.subr.mxu0 0.0
    %5108 = vmatpush1.msra.mxu0 0.0
    %5109 = vmatprep.mubr.f32.mxu0 0.0
    %5110 = vmatmul.mubr.f32.gmra.mrb[0].mxu0 %v5043
    %v5111 = vpop.f32.mrb[0].mxu0
    %v5112 = vadd.f32 %v5038, %v5111
    %v5113 = vpop.f32.mrb[0].mxu0
    %5114 = vdwg.mxu0
    %5115 = vst [vmem:[#allocation3] sm:$0x3] %v5112
    %v5116 = vmul.f32 %v754, 0.2
    %v5117 = vmul.f32 %v755, 0.2
    %v5118 = vmul.f32 %v756, 0.2
    %v5119 = vmul.f32 %v757, 0.2
    %v5120 = vmul.f32 %v758, 0.2
    %v5121 = vmul.f32 %v759, 0.2
    %v5122 = vmul.f32 %v760, 0.2
    %v5123 = vmul.f32 %v761, 0.2
    %v5124 = vmul.f32 %v762, 0.2
    %v5125 = vmul.f32 %v763, 0.2
    %v5126 = vmul.f32 %v764, 0.2
    %v5127 = vmul.f32 %v765, 0.2
    %v5128 = vmul.f32 %v766, 0.2
    %v5129 = vmul.f32 %v767, 0.2
    %v5130 = vmul.f32 %v768, 0.2
    %v5131 = vmul.f32 %v769, 0.2
    %v5132 = vmul.f32 %v770, 0.2
    %v5133 = vmul.f32 %v771, 0.2
    %v5134 = vmul.f32 %v772, 0.2
    %v5135 = vmul.f32 %v773, 0.2
    %v5136 = vmul.f32 %v774, 0.2
    %v5137 = vmul.f32 %v775, 0.2
    %v5138 = vmul.f32 %v776, 0.2
    %v5139 = vmul.f32 %v777, 0.2
    %v5140 = vmul.f32 %v778, 0.2
    %v5141 = vmul.f32 %v779, 0.2
    %v5142 = vmul.f32 %v780, 0.2
    %v5143 = vmul.f32 %v781, 0.2
    %v5144 = vmul.f32 %v782, 0.2
    %v5145 = vmul.f32 %v783, 0.2
    %v5146 = vmul.f32 %v784, 0.2
    %v5147 = vmul.f32 %v785, 0.2
    %v5148 = vmul.f32 %v786, 0.2
    %v5149 = vmul.f32 %v787, 0.2
    %v5150 = vmul.f32 %v788, 0.2
    %v5151 = vmul.f32 %v789, 0.2
    %v5152 = vmul.f32 %v790, 0.2
    %v5153 = vmul.f32 %v791, 0.2
    %v5154 = vmul.f32 %v792, 0.2
    %v5155 = vmul.f32 %v793, 0.2
    %v5156 = vmul.f32 %v794, 0.2
    %v5157 = vmul.f32 %v795, 0.2
    %v5158 = vmul.f32 %v796, 0.2
    %v5159 = vmul.f32 %v797, 0.2
    %v5160 = vmul.f32 %v798, 0.2
    %v5161 = vmul.f32 %v799, 0.2
    %v5162 = vmul.f32 %v800, 0.2
    %v5163 = vmul.f32 %v801, 0.2
    %v5164 = vmul.f32 %v802, 0.2
    %v5165 = vmul.f32 %v803, 0.2
    %v5166 = vmul.f32 %v804, 0.2
    %v5167 = vmul.f32 %v805, 0.2
    %v5168 = vmul.f32 %v806, 0.2
    %v5169 = vmul.f32 %v807, 0.2
    %v5170 = vmul.f32 %v808, 0.2
    %v5171 = vmul.f32 %v809, 0.2
    %v5172 = vmul.f32 %v810, 0.2
    %v5173 = vmul.f32 %v811, 0.2
    %v5174 = vmul.f32 %v812, 0.2
    %v5175 = vmul.f32 %v813, 0.2
    %v5176 = vmul.f32 %v814, 0.2
    %v5177 = vmul.f32 %v815, 0.2
    %v5178 = vmul.f32 %v816, 0.2
    %v5179 = vmul.f32 %v817, 0.2
    %v5180 = vadd.f32 %v5116, %v390
    %v5181 = vadd.f32 %v5117, %v393
    %v5182 = vadd.f32 %v5118, %v398
    %v5183 = vadd.f32 %v5119, %v401
    %v5184 = vadd.f32 %v5120, %v406
    %v5185 = vadd.f32 %v5121, %v409
    %v5186 = vadd.f32 %v5122, %v414
    %v5187 = vadd.f32 %v5123, %v417
    %v5188 = vadd.f32 %v5124, %v422
    %v5189 = vadd.f32 %v5125, %v425
    %v5190 = vadd.f32 %v5126, %v430
    %v5191 = vadd.f32 %v5127, %v433
    %v5192 = vadd.f32 %v5128, %v438
    %v5193 = vadd.f32 %v5129, %v441
    %v5194 = vadd.f32 %v5130, %v446
    %v5195 = vadd.f32 %v5131, %v449
    %v5196 = vadd.f32 %v5132, %v454
    %v5197 = vadd.f32 %v5133, %v457
    %v5198 = vadd.f32 %v5134, %v462
    %v5199 = vadd.f32 %v5135, %v465
    %v5200 = vadd.f32 %v5136, %v470
    %v5201 = vadd.f32 %v5137, %v473
    %v5202 = vadd.f32 %v5138, %v478
    %v5203 = vadd.f32 %v5139, %v481
    %v5204 = vadd.f32 %v5140, %v486
    %v5205 = vadd.f32 %v5141, %v489
    %v5206 = vadd.f32 %v5142, %v494
    %v5207 = vadd.f32 %v5143, %v497
    %v5208 = vadd.f32 %v5144, %v502
    %v5209 = vadd.f32 %v5145, %v505
    %v5210 = vadd.f32 %v5146, %v510
    %v5211 = vadd.f32 %v5147, %v513
    %v5212 = vadd.f32 %v5148, %v518
    %v5213 = vadd.f32 %v5149, %v521
    %v5214 = vadd.f32 %v5150, %v526
    %v5215 = vadd.f32 %v5151, %v529
    %v5216 = vadd.f32 %v5152, %v534
    %v5217 = vadd.f32 %v5153, %v537
    %v5218 = vadd.f32 %v5154, %v542
    %v5219 = vadd.f32 %v5155, %v545
    %v5220 = vadd.f32 %v5156, %v550
    %v5221 = vadd.f32 %v5157, %v553
    %v5222 = vadd.f32 %v5158, %v558
    %v5223 = vadd.f32 %v5159, %v561
    %v5224 = vadd.f32 %v5160, %v566
    %v5225 = vadd.f32 %v5161, %v569
    %v5226 = vadd.f32 %v5162, %v574
    %v5227 = vadd.f32 %v5163, %v577
    %v5228 = vadd.f32 %v5164, %v582
    %v5229 = vadd.f32 %v5165, %v585
    %v5230 = vadd.f32 %v5166, %v590
    %v5231 = vadd.f32 %v5167, %v593
    %v5232 = vadd.f32 %v5168, %v598
    %v5233 = vadd.f32 %v5169, %v601
    %v5234 = vadd.f32 %v5170, %v606
    %v5235 = vadd.f32 %v5171, %v609
    %v5236 = vadd.f32 %v5172, %v614
    %v5237 = vadd.f32 %v5173, %v617
    %v5238 = vadd.f32 %v5174, %v622
    %v5239 = vadd.f32 %v5175, %v625
    %v5240 = vadd.f32 %v5176, %v630
    %v5241 = vadd.f32 %v5177, %v633
    %v5242 = vadd.f32 %v5178, %v638
    %v5243 = vadd.f32 %v5179, %v641
    %v5244 = vsub.f32 %v5180, %v946
    %v5245 = vsub.f32 %v5181, %v947
    %v5246 = vsub.f32 %v5182, %v948
    %v5247 = vsub.f32 %v5183, %v949
    %v5248 = vsub.f32 %v5184, %v950
    %v5249 = vsub.f32 %v5185, %v951
    %v5250 = vsub.f32 %v5186, %v952
    %v5251 = vsub.f32 %v5187, %v953
    %v5252 = vsub.f32 %v5188, %v954
    %v5253 = vsub.f32 %v5189, %v955
    %v5254 = vsub.f32 %v5190, %v956
    %v5255 = vsub.f32 %v5191, %v957
    %v5256 = vsub.f32 %v5192, %v958
    %v5257 = vsub.f32 %v5193, %v959
    %v5258 = vsub.f32 %v5194, %v960
    %v5259 = vsub.f32 %v5195, %v961
    %v5260 = vsub.f32 %v5196, %v962
    %v5261 = vsub.f32 %v5197, %v963
    %v5262 = vsub.f32 %v5198, %v964
    %v5263 = vsub.f32 %v5199, %v965
    %v5264 = vsub.f32 %v5200, %v966
    %v5265 = vsub.f32 %v5201, %v967
    %v5266 = vsub.f32 %v5202, %v968
    %v5267 = vsub.f32 %v5203, %v969
    %v5268 = vsub.f32 %v5204, %v970
    %v5269 = vsub.f32 %v5205, %v971
    %v5270 = vsub.f32 %v5206, %v972
    %v5271 = vsub.f32 %v5207, %v973
    %v5272 = vsub.f32 %v5208, %v974
    %v5273 = vsub.f32 %v5209, %v975
    %v5274 = vsub.f32 %v5210, %v976
    %v5275 = vsub.f32 %v5211, %v977
    %v5276 = vsub.f32 %v5212, %v978
    %v5277 = vsub.f32 %v5213, %v979
    %v5278 = vsub.f32 %v5214, %v980
    %v5279 = vsub.f32 %v5215, %v981
    %v5280 = vsub.f32 %v5216, %v982
    %v5281 = vsub.f32 %v5217, %v983
    %v5282 = vsub.f32 %v5218, %v984
    %v5283 = vsub.f32 %v5219, %v985
    %v5284 = vsub.f32 %v5220, %v986
    %v5285 = vsub.f32 %v5221, %v987
    %v5286 = vsub.f32 %v5222, %v988
    %v5287 = vsub.f32 %v5223, %v989
    %v5288 = vsub.f32 %v5224, %v990
    %v5289 = vsub.f32 %v5225, %v991
    %v5290 = vsub.f32 %v5226, %v992
    %v5291 = vsub.f32 %v5227, %v993
    %v5292 = vsub.f32 %v5228, %v994
    %v5293 = vsub.f32 %v5229, %v995
    %v5294 = vsub.f32 %v5230, %v996
    %v5295 = vsub.f32 %v5231, %v997
    %v5296 = vsub.f32 %v5232, %v998
    %v5297 = vsub.f32 %v5233, %v999
    %v5298 = vsub.f32 %v5234, %v1000
    %v5299 = vsub.f32 %v5235, %v1001
    %v5300 = vsub.f32 %v5236, %v1002
    %v5301 = vsub.f32 %v5237, %v1003
    %v5302 = vsub.f32 %v5238, %v1004
    %v5303 = vsub.f32 %v5239, %v1005
    %v5304 = vsub.f32 %v5240, %v1006
    %v5305 = vsub.f32 %v5241, %v1007
    %v5306 = vsub.f32 %v5242, %v1008
    %v5307 = vsub.f32 %v5243, %v1009
    %vm5308 = vcmp.gt.f32.partialorder %v5244, 1.0
    %vm5309 = vcmp.gt.f32.partialorder %v5245, 1.0
    %vm5310 = vcmp.gt.f32.partialorder %v5246, 1.0
    %vm5311 = vcmp.gt.f32.partialorder %v5247, 1.0
    %vm5312 = vcmp.gt.f32.partialorder %v5248, 1.0
    %vm5313 = vcmp.gt.f32.partialorder %v5249, 1.0
    %vm5314 = vcmp.gt.f32.partialorder %v5250, 1.0
    %vm5315 = vcmp.gt.f32.partialorder %v5251, 1.0
    %vm5316 = vcmp.gt.f32.partialorder %v5252, 1.0
    %vm5317 = vcmp.gt.f32.partialorder %v5253, 1.0
    %vm5318 = vcmp.gt.f32.partialorder %v5254, 1.0
    %vm5319 = vcmp.gt.f32.partialorder %v5255, 1.0
    %vm5320 = vcmp.gt.f32.partialorder %v5256, 1.0
    %vm5321 = vcmp.gt.f32.partialorder %v5257, 1.0
    %vm5322 = vcmp.gt.f32.partialorder %v5258, 1.0
    %vm5323 = vcmp.gt.f32.partialorder %v5259, 1.0
    %vm5324 = vcmp.gt.f32.partialorder %v5260, 1.0
    %vm5325 = vcmp.gt.f32.partialorder %v5261, 1.0
    %vm5326 = vcmp.gt.f32.partialorder %v5262, 1.0
    %vm5327 = vcmp.gt.f32.partialorder %v5263, 1.0
    %vm5328 = vcmp.gt.f32.partialorder %v5264, 1.0
    %vm5329 = vcmp.gt.f32.partialorder %v5265, 1.0
    %vm5330 = vcmp.gt.f32.partialorder %v5266, 1.0
    %vm5331 = vcmp.gt.f32.partialorder %v5267, 1.0
    %vm5332 = vcmp.gt.f32.partialorder %v5268, 1.0
    %vm5333 = vcmp.gt.f32.partialorder %v5269, 1.0
    %vm5334 = vcmp.gt.f32.partialorder %v5270, 1.0
    %vm5335 = vcmp.gt.f32.partialorder %v5271, 1.0
    %vm5336 = vcmp.gt.f32.partialorder %v5272, 1.0
    %vm5337 = vcmp.gt.f32.partialorder %v5273, 1.0
    %vm5338 = vcmp.gt.f32.partialorder %v5274, 1.0
    %vm5339 = vcmp.gt.f32.partialorder %v5275, 1.0
    %vm5340 = vcmp.gt.f32.partialorder %v5276, 1.0
    %vm5341 = vcmp.gt.f32.partialorder %v5277, 1.0
    %vm5342 = vcmp.gt.f32.partialorder %v5278, 1.0
    %vm5343 = vcmp.gt.f32.partialorder %v5279, 1.0
    %vm5344 = vcmp.gt.f32.partialorder %v5280, 1.0
    %vm5345 = vcmp.gt.f32.partialorder %v5281, 1.0
    %vm5346 = vcmp.gt.f32.partialorder %v5282, 1.0
    %vm5347 = vcmp.gt.f32.partialorder %v5283, 1.0
    %vm5348 = vcmp.gt.f32.partialorder %v5284, 1.0
    %vm5349 = vcmp.gt.f32.partialorder %v5285, 1.0
    %vm5350 = vcmp.gt.f32.partialorder %v5286, 1.0
    %vm5351 = vcmp.gt.f32.partialorder %v5287, 1.0
    %vm5352 = vcmp.gt.f32.partialorder %v5288, 1.0
    %vm5353 = vcmp.gt.f32.partialorder %v5289, 1.0
    %vm5354 = vcmp.gt.f32.partialorder %v5290, 1.0
    %vm5355 = vcmp.gt.f32.partialorder %v5291, 1.0
    %vm5356 = vcmp.gt.f32.partialorder %v5292, 1.0
    %vm5357 = vcmp.gt.f32.partialorder %v5293, 1.0
    %vm5358 = vcmp.gt.f32.partialorder %v5294, 1.0
    %vm5359 = vcmp.gt.f32.partialorder %v5295, 1.0
    %vm5360 = vcmp.gt.f32.partialorder %v5296, 1.0
    %vm5361 = vcmp.gt.f32.partialorder %v5297, 1.0
    %vm5362 = vcmp.gt.f32.partialorder %v5298, 1.0
    %vm5363 = vcmp.gt.f32.partialorder %v5299, 1.0
    %vm5364 = vcmp.gt.f32.partialorder %v5300, 1.0
    %vm5365 = vcmp.gt.f32.partialorder %v5301, 1.0
    %vm5366 = vcmp.gt.f32.partialorder %v5302, 1.0
    %vm5367 = vcmp.gt.f32.partialorder %v5303, 1.0
    %vm5368 = vcmp.gt.f32.partialorder %v5304, 1.0
    %vm5369 = vcmp.gt.f32.partialorder %v5305, 1.0
    %vm5370 = vcmp.gt.f32.partialorder %v5306, 1.0
    %vm5371 = vcmp.gt.f32.partialorder %v5307, 1.0
    %v5372 = vsel %vm5308, 1, 0
    %v5373 = vsel %vm5309, 1, 0
    %v5374 = vsel %vm5310, 1, 0
    %v5375 = vsel %vm5311, 1, 0
    %v5376 = vsel %vm5312, 1, 0
    %v5377 = vsel %vm5313, 1, 0
    %v5378 = vsel %vm5314, 1, 0
    %v5379 = vsel %vm5315, 1, 0
    %v5380 = vsel %vm5316, 1, 0
    %v5381 = vsel %vm5317, 1, 0
    %v5382 = vsel %vm5318, 1, 0
    %v5383 = vsel %vm5319, 1, 0
    %v5384 = vsel %vm5320, 1, 0
    %v5385 = vsel %vm5321, 1, 0
    %v5386 = vsel %vm5322, 1, 0
    %v5387 = vsel %vm5323, 1, 0
    %v5388 = vsel %vm5324, 1, 0
    %v5389 = vsel %vm5325, 1, 0
    %v5390 = vsel %vm5326, 1, 0
    %v5391 = vsel %vm5327, 1, 0
    %v5392 = vsel %vm5328, 1, 0
    %v5393 = vsel %vm5329, 1, 0
    %v5394 = vsel %vm5330, 1, 0
    %v5395 = vsel %vm5331, 1, 0
    %v5396 = vsel %vm5332, 1, 0
    %v5397 = vsel %vm5333, 1, 0
    %v5398 = vsel %vm5334, 1, 0
    %v5399 = vsel %vm5335, 1, 0
    %v5400 = vsel %vm5336, 1, 0
    %v5401 = vsel %vm5337, 1, 0
    %v5402 = vsel %vm5338, 1, 0
    %v5403 = vsel %vm5339, 1, 0
    %v5404 = vsel %vm5340, 1, 0
    %v5405 = vsel %vm5341, 1, 0
    %v5406 = vsel %vm5342, 1, 0
    %v5407 = vsel %vm5343, 1, 0
    %v5408 = vsel %vm5344, 1, 0
    %v5409 = vsel %vm5345, 1, 0
    %v5410 = vsel %vm5346, 1, 0
    %v5411 = vsel %vm5347, 1, 0
    %v5412 = vsel %vm5348, 1, 0
    %v5413 = vsel %vm5349, 1, 0
    %v5414 = vsel %vm5350, 1, 0
    %v5415 = vsel %vm5351, 1, 0
    %v5416 = vsel %vm5352, 1, 0
    %v5417 = vsel %vm5353, 1, 0
    %v5418 = vsel %vm5354, 1, 0
    %v5419 = vsel %vm5355, 1, 0
    %v5420 = vsel %vm5356, 1, 0
    %v5421 = vsel %vm5357, 1, 0
    %v5422 = vsel %vm5358, 1, 0
    %v5423 = vsel %vm5359, 1, 0
    %v5424 = vsel %vm5360, 1, 0
    %v5425 = vsel %vm5361, 1, 0
    %v5426 = vsel %vm5362, 1, 0
    %v5427 = vsel %vm5363, 1, 0
    %v5428 = vsel %vm5364, 1, 0
    %v5429 = vsel %vm5365, 1, 0
    %v5430 = vsel %vm5366, 1, 0
    %v5431 = vsel %vm5367, 1, 0
    %v5432 = vsel %vm5368, 1, 0
    %v5433 = vsel %vm5369, 1, 0
    %v5434 = vsel %vm5370, 1, 0
    %v5435 = vsel %vm5371, 1, 0
    %v5436 = vcvt.s32.f32 %v5372
    %v5437 = vcvt.s32.f32 %v5373
    %v5438 = vcvt.s32.f32 %v5374
    %v5439 = vcvt.s32.f32 %v5375
    %v5440 = vcvt.s32.f32 %v5376
    %v5441 = vcvt.s32.f32 %v5377
    %v5442 = vcvt.s32.f32 %v5378
    %v5443 = vcvt.s32.f32 %v5379
    %v5444 = vcvt.s32.f32 %v5380
    %v5445 = vcvt.s32.f32 %v5381
    %v5446 = vcvt.s32.f32 %v5382
    %v5447 = vcvt.s32.f32 %v5383
    %v5448 = vcvt.s32.f32 %v5384
    %v5449 = vcvt.s32.f32 %v5385
    %v5450 = vcvt.s32.f32 %v5386
    %v5451 = vcvt.s32.f32 %v5387
    %v5452 = vcvt.s32.f32 %v5388
    %v5453 = vcvt.s32.f32 %v5389
    %v5454 = vcvt.s32.f32 %v5390
    %v5455 = vcvt.s32.f32 %v5391
    %v5456 = vcvt.s32.f32 %v5392
    %v5457 = vcvt.s32.f32 %v5393
    %v5458 = vcvt.s32.f32 %v5394
    %v5459 = vcvt.s32.f32 %v5395
    %v5460 = vcvt.s32.f32 %v5396
    %v5461 = vcvt.s32.f32 %v5397
    %v5462 = vcvt.s32.f32 %v5398
    %v5463 = vcvt.s32.f32 %v5399
    %v5464 = vcvt.s32.f32 %v5400
    %v5465 = vcvt.s32.f32 %v5401
    %v5466 = vcvt.s32.f32 %v5402
    %v5467 = vcvt.s32.f32 %v5403
    %v5468 = vcvt.s32.f32 %v5404
    %v5469 = vcvt.s32.f32 %v5405
    %v5470 = vcvt.s32.f32 %v5406
    %v5471 = vcvt.s32.f32 %v5407
    %v5472 = vcvt.s32.f32 %v5408
    %v5473 = vcvt.s32.f32 %v5409
    %v5474 = vcvt.s32.f32 %v5410
    %v5475 = vcvt.s32.f32 %v5411
    %v5476 = vcvt.s32.f32 %v5412
    %v5477 = vcvt.s32.f32 %v5413
    %v5478 = vcvt.s32.f32 %v5414
    %v5479 = vcvt.s32.f32 %v5415
    %v5480 = vcvt.s32.f32 %v5416
    %v5481 = vcvt.s32.f32 %v5417
    %v5482 = vcvt.s32.f32 %v5418
    %v5483 = vcvt.s32.f32 %v5419
    %v5484 = vcvt.s32.f32 %v5420
    %v5485 = vcvt.s32.f32 %v5421
    %v5486 = vcvt.s32.f32 %v5422
    %v5487 = vcvt.s32.f32 %v5423
    %v5488 = vcvt.s32.f32 %v5424
    %v5489 = vcvt.s32.f32 %v5425
    %v5490 = vcvt.s32.f32 %v5426
    %v5491 = vcvt.s32.f32 %v5427
    %v5492 = vcvt.s32.f32 %v5428
    %v5493 = vcvt.s32.f32 %v5429
    %v5494 = vcvt.s32.f32 %v5430
    %v5495 = vcvt.s32.f32 %v5431
    %v5496 = vcvt.s32.f32 %v5432
    %v5497 = vcvt.s32.f32 %v5433
    %v5498 = vcvt.s32.f32 %v5434
    %v5499 = vcvt.s32.f32 %v5435
    %5500 = vst.msk [vmem:[%s1010 + $0x1] sm:$0xff] %vm644, %v5436
    %5501 = vst.msk [vmem:[%s1010 + $0x9] sm:$0xff] %vm644, %v5437
    %5502 = vst.msk [vmem:[%s1010 + $0x19] sm:$0xff] %vm644, %v5438
    %5503 = vst.msk [vmem:[%s1010 + $0x21] sm:$0xff] %vm644, %v5439
    %5504 = vst.msk [vmem:[%s1010 + $0x31] sm:$0xff] %vm644, %v5440
    %5505 = vst.msk [vmem:[%s1010 + $0x39] sm:$0xff] %vm644, %v5441
    %5506 = vst.msk [vmem:[%s1010 + $0x49] sm:$0xff] %vm644, %v5442
    %5507 = vst.msk [vmem:[%s1010 + $0x51] sm:$0xff] %vm644, %v5443
    %5508 = vst.msk [vmem:[%s1010 + $0x61] sm:$0xff] %vm644, %v5444
    %5509 = vst.msk [vmem:[%s1010 + $0x69] sm:$0xff] %vm644, %v5445
    %5510 = vst.msk [vmem:[%s1010 + $0x79] sm:$0xff] %vm644, %v5446
    %5511 = vst.msk [vmem:[%s1010 + $0x81] sm:$0xff] %vm644, %v5447
    %5512 = vst.msk [vmem:[%s1010 + $0x91] sm:$0xff] %vm644, %v5448
    %5513 = vst.msk [vmem:[%s1010 + $0x99] sm:$0xff] %vm644, %v5449
    %5514 = vst.msk [vmem:[%s1010 + $0xa9] sm:$0xff] %vm644, %v5450
    %5515 = vst.msk [vmem:[%s1010 + $0xb1] sm:$0xff] %vm644, %v5451
    %5516 = vst.msk [vmem:[%s1010 + $0xc1] sm:$0xff] %vm644, %v5452
    %5517 = vst.msk [vmem:[%s1010 + $0xc9] sm:$0xff] %vm644, %v5453
    %5518 = vst.msk [vmem:[%s1010 + $0xd9] sm:$0xff] %vm644, %v5454
    %5519 = vst.msk [vmem:[%s1010 + $0xe1] sm:$0xff] %vm644, %v5455
    %5520 = vst.msk [vmem:[%s1010 + $0xf1] sm:$0xff] %vm644, %v5456
    %5521 = vst.msk [vmem:[%s1010 + $0xf9] sm:$0xff] %vm644, %v5457
    %5522 = vst.msk [vmem:[%s1010 + $0x109] sm:$0xff] %vm644, %v5458
    %5523 = vst.msk [vmem:[%s1010 + $0x111] sm:$0xff] %vm644, %v5459
    %5524 = vst.msk [vmem:[%s1010 + $0x121] sm:$0xff] %vm644, %v5460
    %5525 = vst.msk [vmem:[%s1010 + $0x129] sm:$0xff] %vm644, %v5461
    %5526 = vst.msk [vmem:[%s1010 + $0x139] sm:$0xff] %vm644, %v5462
    %5527 = vst.msk [vmem:[%s1010 + $0x141] sm:$0xff] %vm644, %v5463
    %5528 = vst.msk [vmem:[%s1010 + $0x151] sm:$0xff] %vm644, %v5464
    %5529 = vst.msk [vmem:[%s1010 + $0x159] sm:$0xff] %vm644, %v5465
    %5530 = vst.msk [vmem:[%s1010 + $0x169] sm:$0xff] %vm644, %v5466
    %5531 = vst.msk [vmem:[%s1010 + $0x171] sm:$0xff] %vm644, %v5467
    %5532 = vst.msk [vmem:[%s1010 + $0x1b1] sm:$0xff] %vm644, %v5468
    %5533 = vst.msk [vmem:[%s1010 + $0x1b9] sm:$0xff] %vm644, %v5469
    %5534 = vst.msk [vmem:[%s1010 + $0x1c9] sm:$0xff] %vm644, %v5470
    %5535 = vst.msk [vmem:[%s1010 + $0x1d1] sm:$0xff] %vm644, %v5471
    %5536 = vst.msk [vmem:[%s1010 + $0x1e1] sm:$0xff] %vm644, %v5472
    %5537 = vst.msk [vmem:[%s1010 + $0x1e9] sm:$0xff] %vm644, %v5473
    %5538 = vst.msk [vmem:[%s1010 + $0x1f9] sm:$0xff] %vm644, %v5474
    %5539 = vst.msk [vmem:[%s1010 + $0x201] sm:$0xff] %vm644, %v5475
    %5540 = vst.msk [vmem:[%s1010 + $0x211] sm:$0xff] %vm644, %v5476
    %5541 = vst.msk [vmem:[%s1010 + $0x219] sm:$0xff] %vm644, %v5477
    %5542 = vst.msk [vmem:[%s1010 + $0x229] sm:$0xff] %vm644, %v5478
    %5543 = vst.msk [vmem:[%s1010 + $0x231] sm:$0xff] %vm644, %v5479
    %5544 = vst.msk [vmem:[%s1010 + $0x241] sm:$0xff] %vm644, %v5480
    %5545 = vst.msk [vmem:[%s1010 + $0x249] sm:$0xff] %vm644, %v5481
    %5546 = vst.msk [vmem:[%s1010 + $0x259] sm:$0xff] %vm644, %v5482
    %5547 = vst.msk [vmem:[%s1010 + $0x261] sm:$0xff] %vm644, %v5483
    %5548 = vst.msk [vmem:[%s1010 + $0x271] sm:$0xff] %vm644, %v5484
    %5549 = vst.msk [vmem:[%s1010 + $0x279] sm:$0xff] %vm644, %v5485
    %5550 = vst.msk [vmem:[%s1010 + $0x289] sm:$0xff] %vm644, %v5486
    %5551 = vst.msk [vmem:[%s1010 + $0x291] sm:$0xff] %vm644, %v5487
    %5552 = vst.msk [vmem:[%s1010 + $0x2a1] sm:$0xff] %vm644, %v5488
    %5553 = vst.msk [vmem:[%s1010 + $0x2a9] sm:$0xff] %vm644, %v5489
    %5554 = vst.msk [vmem:[%s1010 + $0x2b9] sm:$0xff] %vm644, %v5490
    %5555 = vst.msk [vmem:[%s1010 + $0x2c1] sm:$0xff] %vm644, %v5491
    %5556 = vst.msk [vmem:[%s1010 + $0x2d1] sm:$0xff] %vm644, %v5492
    %5557 = vst.msk [vmem:[%s1010 + $0x2d9] sm:$0xff] %vm644, %v5493
    %5558 = vst.msk [vmem:[%s1010 + $0x2e9] sm:$0xff] %vm644, %v5494
    %5559 = vst.msk [vmem:[%s1010 + $0x2f1] sm:$0xff] %vm644, %v5495
    %5560 = vst.msk [vmem:[%s1010 + $0x301] sm:$0xff] %vm644, %v5496
    %5561 = vst.msk [vmem:[%s1010 + $0x309] sm:$0xff] %vm644, %v5497
    %5562 = vst.msk [vmem:[%s1010 + $0x319] sm:$0xff] %vm644, %v5498
    %5563 = vst.msk [vmem:[%s1010 + $0x321] sm:$0xff] %vm644, %v5499
    %v5564 = vld [vmem:[#allocation2] sm:$0xff]
    %v5565 = vld [vmem:[#allocation2 + $0x8] sm:$0xff]
    %v5566 = vld [vmem:[#allocation2 + $0x18] sm:$0xff]
    %v5567 = vld [vmem:[#allocation2 + $0x20] sm:$0xff]
    %v5568 = vld [vmem:[#allocation2 + $0x30] sm:$0xff]
    %v5569 = vld [vmem:[#allocation2 + $0x38] sm:$0xff]
    %v5570 = vld [vmem:[#allocation2 + $0x48] sm:$0xff]
    %v5571 = vld [vmem:[#allocation2 + $0x50] sm:$0xff]
    %v5572 = vld [vmem:[#allocation2 + $0x60] sm:$0xff]
    %v5573 = vld [vmem:[#allocation2 + $0x68] sm:$0xff]
    %v5574 = vld [vmem:[#allocation2 + $0x78] sm:$0xff]
    %v5575 = vld [vmem:[#allocation2 + $0x80] sm:$0xff]
    %v5576 = vld [vmem:[#allocation2 + $0x90] sm:$0xff]
    %v5577 = vld [vmem:[#allocation2 + $0x98] sm:$0xff]
    %v5578 = vld [vmem:[#allocation2 + $0xa8] sm:$0xff]
    %v5579 = vld [vmem:[#allocation2 + $0xb0] sm:$0xff]
    %v5580 = vld [vmem:[#allocation2 + $0xc0] sm:$0xff]
    %v5581 = vld [vmem:[#allocation2 + $0xc8] sm:$0xff]
    %v5582 = vld [vmem:[#allocation2 + $0xd8] sm:$0xff]
    %v5583 = vld [vmem:[#allocation2 + $0xe0] sm:$0xff]
    %v5584 = vld [vmem:[#allocation2 + $0xf0] sm:$0xff]
    %v5585 = vld [vmem:[#allocation2 + $0xf8] sm:$0xff]
    %v5586 = vld [vmem:[#allocation2 + $0x108] sm:$0xff]
    %v5587 = vld [vmem:[#allocation2 + $0x110] sm:$0xff]
    %v5588 = vld [vmem:[#allocation2 + $0x120] sm:$0xff]
    %v5589 = vld [vmem:[#allocation2 + $0x128] sm:$0xff]
    %v5590 = vld [vmem:[#allocation2 + $0x138] sm:$0xff]
    %v5591 = vld [vmem:[#allocation2 + $0x140] sm:$0xff]
    %v5592 = vld [vmem:[#allocation2 + $0x150] sm:$0xff]
    %v5593 = vld [vmem:[#allocation2 + $0x158] sm:$0xff]
    %v5594 = vld [vmem:[#allocation2 + $0x168] sm:$0xff]
    %v5595 = vld [vmem:[#allocation2 + $0x170] sm:$0xff]
    %v5596 = vld [vmem:[#allocation2 + $0x1b0] sm:$0xff]
    %v5597 = vld [vmem:[#allocation2 + $0x1b8] sm:$0xff]
    %v5598 = vld [vmem:[#allocation2 + $0x1c8] sm:$0xff]
    %v5599 = vld [vmem:[#allocation2 + $0x1d0] sm:$0xff]
    %v5600 = vld [vmem:[#allocation2 + $0x1e0] sm:$0xff]
    %v5601 = vld [vmem:[#allocation2 + $0x1e8] sm:$0xff]
    %v5602 = vld [vmem:[#allocation2 + $0x1f8] sm:$0xff]
    %v5603 = vld [vmem:[#allocation2 + $0x200] sm:$0xff]
    %v5604 = vld [vmem:[#allocation2 + $0x210] sm:$0xff]
    %v5605 = vld [vmem:[#allocation2 + $0x218] sm:$0xff]
    %v5606 = vld [vmem:[#allocation2 + $0x228] sm:$0xff]
    %v5607 = vld [vmem:[#allocation2 + $0x230] sm:$0xff]
    %v5608 = vld [vmem:[#allocation2 + $0x240] sm:$0xff]
    %v5609 = vld [vmem:[#allocation2 + $0x248] sm:$0xff]
    %v5610 = vld [vmem:[#allocation2 + $0x258] sm:$0xff]
    %v5611 = vld [vmem:[#allocation2 + $0x260] sm:$0xff]
    %v5612 = vld [vmem:[#allocation2 + $0x270] sm:$0xff]
    %v5613 = vld [vmem:[#allocation2 + $0x278] sm:$0xff]
    %v5614 = vld [vmem:[#allocation2 + $0x288] sm:$0xff]
    %v5615 = vld [vmem:[#allocation2 + $0x290] sm:$0xff]
    %v5616 = vld [vmem:[#allocation2 + $0x2a0] sm:$0xff]
    %v5617 = vld [vmem:[#allocation2 + $0x2a8] sm:$0xff]
    %v5618 = vld [vmem:[#allocation2 + $0x2b8] sm:$0xff]
    %v5619 = vld [vmem:[#allocation2 + $0x2c0] sm:$0xff]
    %v5620 = vld [vmem:[#allocation2 + $0x2d0] sm:$0xff]
    %v5621 = vld [vmem:[#allocation2 + $0x2d8] sm:$0xff]
    %v5622 = vld [vmem:[#allocation2 + $0x2e8] sm:$0xff]
    %v5623 = vld [vmem:[#allocation2 + $0x2f0] sm:$0xff]
    %v5624 = vld [vmem:[#allocation2 + $0x300] sm:$0xff]
    %v5625 = vld [vmem:[#allocation2 + $0x308] sm:$0xff]
    %v5626 = vld [vmem:[#allocation2 + $0x318] sm:$0xff]
    %v5627 = vld [vmem:[#allocation2 + $0x320] sm:$0xff]
    %v5628 = vld [vmem:[#allocation2 + $0x1] sm:$0xff]
    %v5629 = vld [vmem:[#allocation2 + $0x9] sm:$0xff]
    %v5630 = vld [vmem:[#allocation2 + $0x19] sm:$0xff]
    %v5631 = vld [vmem:[#allocation2 + $0x21] sm:$0xff]
    %v5632 = vld [vmem:[#allocation2 + $0x31] sm:$0xff]
    %v5633 = vld [vmem:[#allocation2 + $0x39] sm:$0xff]
    %v5634 = vld [vmem:[#allocation2 + $0x49] sm:$0xff]
    %v5635 = vld [vmem:[#allocation2 + $0x51] sm:$0xff]
    %v5636 = vld [vmem:[#allocation2 + $0x61] sm:$0xff]
    %v5637 = vld [vmem:[#allocation2 + $0x69] sm:$0xff]
    %v5638 = vld [vmem:[#allocation2 + $0x79] sm:$0xff]
    %v5639 = vld [vmem:[#allocation2 + $0x81] sm:$0xff]
    %v5640 = vld [vmem:[#allocation2 + $0x91] sm:$0xff]
    %v5641 = vld [vmem:[#allocation2 + $0x99] sm:$0xff]
    %v5642 = vld [vmem:[#allocation2 + $0xa9] sm:$0xff]
    %v5643 = vld [vmem:[#allocation2 + $0xb1] sm:$0xff]
    %v5644 = vld [vmem:[#allocation2 + $0xc1] sm:$0xff]
    %v5645 = vld [vmem:[#allocation2 + $0xc9] sm:$0xff]
    %v5646 = vld [vmem:[#allocation2 + $0xd9] sm:$0xff]
    %v5647 = vld [vmem:[#allocation2 + $0xe1] sm:$0xff]
    %v5648 = vld [vmem:[#allocation2 + $0xf1] sm:$0xff]
    %v5649 = vld [vmem:[#allocation2 + $0xf9] sm:$0xff]
    %v5650 = vld [vmem:[#allocation2 + $0x109] sm:$0xff]
    %v5651 = vld [vmem:[#allocation2 + $0x111] sm:$0xff]
    %v5652 = vld [vmem:[#allocation2 + $0x121] sm:$0xff]
    %v5653 = vld [vmem:[#allocation2 + $0x129] sm:$0xff]
    %v5654 = vld [vmem:[#allocation2 + $0x139] sm:$0xff]
    %v5655 = vld [vmem:[#allocation2 + $0x141] sm:$0xff]
    %v5656 = vld [vmem:[#allocation2 + $0x151] sm:$0xff]
    %v5657 = vld [vmem:[#allocation2 + $0x159] sm:$0xff]
    %v5658 = vld [vmem:[#allocation2 + $0x169] sm:$0xff]
    %v5659 = vld [vmem:[#allocation2 + $0x171] sm:$0xff]
    %v5660 = vld [vmem:[#allocation2 + $0x1b1] sm:$0xff]
    %v5661 = vld [vmem:[#allocation2 + $0x1b9] sm:$0xff]
    %v5662 = vld [vmem:[#allocation2 + $0x1c9] sm:$0xff]
    %v5663 = vld [vmem:[#allocation2 + $0x1d1] sm:$0xff]
    %v5664 = vld [vmem:[#allocation2 + $0x1e1] sm:$0xff]
    %v5665 = vld [vmem:[#allocation2 + $0x1e9] sm:$0xff]
    %v5666 = vld [vmem:[#allocation2 + $0x1f9] sm:$0xff]
    %v5667 = vld [vmem:[#allocation2 + $0x201] sm:$0xff]
    %v5668 = vld [vmem:[#allocation2 + $0x211] sm:$0xff]
    %v5669 = vld [vmem:[#allocation2 + $0x219] sm:$0xff]
    %v5670 = vld [vmem:[#allocation2 + $0x229] sm:$0xff]
    %v5671 = vld [vmem:[#allocation2 + $0x231] sm:$0xff]
    %v5672 = vld [vmem:[#allocation2 + $0x241] sm:$0xff]
    %v5673 = vld [vmem:[#allocation2 + $0x249] sm:$0xff]
    %v5674 = vld [vmem:[#allocation2 + $0x259] sm:$0xff]
    %v5675 = vld [vmem:[#allocation2 + $0x261] sm:$0xff]
    %v5676 = vld [vmem:[#allocation2 + $0x271] sm:$0xff]
    %v5677 = vld [vmem:[#allocation2 + $0x279] sm:$0xff]
    %v5678 = vld [vmem:[#allocation2 + $0x289] sm:$0xff]
    %v5679 = vld [vmem:[#allocation2 + $0x291] sm:$0xff]
    %v5680 = vld [vmem:[#allocation2 + $0x2a1] sm:$0xff]
    %v5681 = vld [vmem:[#allocation2 + $0x2a9] sm:$0xff]
    %v5682 = vld [vmem:[#allocation2 + $0x2b9] sm:$0xff]
    %v5683 = vld [vmem:[#allocation2 + $0x2c1] sm:$0xff]
    %v5684 = vld [vmem:[#allocation2 + $0x2d1] sm:$0xff]
    %v5685 = vld [vmem:[#allocation2 + $0x2d9] sm:$0xff]
    %v5686 = vld [vmem:[#allocation2 + $0x2e9] sm:$0xff]
    %v5687 = vld [vmem:[#allocation2 + $0x2f1] sm:$0xff]
    %v5688 = vld [vmem:[#allocation2 + $0x301] sm:$0xff]
    %v5689 = vld [vmem:[#allocation2 + $0x309] sm:$0xff]
    %v5690 = vld [vmem:[#allocation2 + $0x319] sm:$0xff]
    %v5691 = vld [vmem:[#allocation2 + $0x321] sm:$0xff]
    %v5692 = vld [vmem:[#allocation2 + $0x2] sm:$0xff]
    %v5693 = vld [vmem:[#allocation2 + $0xa] sm:$0xff]
    %v5694 = vld [vmem:[#allocation2 + $0x1a] sm:$0xff]
    %v5695 = vld [vmem:[#allocation2 + $0x22] sm:$0xff]
    %v5696 = vld [vmem:[#allocation2 + $0x32] sm:$0xff]
    %v5697 = vld [vmem:[#allocation2 + $0x3a] sm:$0xff]
    %v5698 = vld [vmem:[#allocation2 + $0x4a] sm:$0xff]
    %v5699 = vld [vmem:[#allocation2 + $0x52] sm:$0xff]
    %v5700 = vld [vmem:[#allocation2 + $0x62] sm:$0xff]
    %v5701 = vld [vmem:[#allocation2 + $0x6a] sm:$0xff]
    %v5702 = vld [vmem:[#allocation2 + $0x7a] sm:$0xff]
    %v5703 = vld [vmem:[#allocation2 + $0x82] sm:$0xff]
    %v5704 = vld [vmem:[#allocation2 + $0x92] sm:$0xff]
    %v5705 = vld [vmem:[#allocation2 + $0x9a] sm:$0xff]
    %v5706 = vld [vmem:[#allocation2 + $0xaa] sm:$0xff]
    %v5707 = vld [vmem:[#allocation2 + $0xb2] sm:$0xff]
    %v5708 = vld [vmem:[#allocation2 + $0xc2] sm:$0xff]
    %v5709 = vld [vmem:[#allocation2 + $0xca] sm:$0xff]
    %v5710 = vld [vmem:[#allocation2 + $0xda] sm:$0xff]
    %v5711 = vld [vmem:[#allocation2 + $0xe2] sm:$0xff]
    %v5712 = vld [vmem:[#allocation2 + $0xf2] sm:$0xff]
    %v5713 = vld [vmem:[#allocation2 + $0xfa] sm:$0xff]
    %v5714 = vld [vmem:[#allocation2 + $0x10a] sm:$0xff]
    %v5715 = vld [vmem:[#allocation2 + $0x112] sm:$0xff]
    %v5716 = vld [vmem:[#allocation2 + $0x122] sm:$0xff]
    %v5717 = vld [vmem:[#allocation2 + $0x12a] sm:$0xff]
    %v5718 = vld [vmem:[#allocation2 + $0x13a] sm:$0xff]
    %v5719 = vld [vmem:[#allocation2 + $0x142] sm:$0xff]
    %v5720 = vld [vmem:[#allocation2 + $0x152] sm:$0xff]
    %v5721 = vld [vmem:[#allocation2 + $0x15a] sm:$0xff]
    %v5722 = vld [vmem:[#allocation2 + $0x16a] sm:$0xff]
    %v5723 = vld [vmem:[#allocation2 + $0x172] sm:$0xff]
    %v5724 = vld [vmem:[#allocation2 + $0x1b2] sm:$0xff]
    %v5725 = vld [vmem:[#allocation2 + $0x1ba] sm:$0xff]
    %v5726 = vld [vmem:[#allocation2 + $0x1ca] sm:$0xff]
    %v5727 = vld [vmem:[#allocation2 + $0x1d2] sm:$0xff]
    %v5728 = vld [vmem:[#allocation2 + $0x1e2] sm:$0xff]
    %v5729 = vld [vmem:[#allocation2 + $0x1ea] sm:$0xff]
    %v5730 = vld [vmem:[#allocation2 + $0x1fa] sm:$0xff]
    %v5731 = vld [vmem:[#allocation2 + $0x202] sm:$0xff]
    %v5732 = vld [vmem:[#allocation2 + $0x212] sm:$0xff]
    %v5733 = vld [vmem:[#allocation2 + $0x21a] sm:$0xff]
    %v5734 = vld [vmem:[#allocation2 + $0x22a] sm:$0xff]
    %v5735 = vld [vmem:[#allocation2 + $0x232] sm:$0xff]
    %v5736 = vld [vmem:[#allocation2 + $0x242] sm:$0xff]
    %v5737 = vld [vmem:[#allocation2 + $0x24a] sm:$0xff]
    %v5738 = vld [vmem:[#allocation2 + $0x25a] sm:$0xff]
    %v5739 = vld [vmem:[#allocation2 + $0x262] sm:$0xff]
    %v5740 = vld [vmem:[#allocation2 + $0x272] sm:$0xff]
    %v5741 = vld [vmem:[#allocation2 + $0x27a] sm:$0xff]
    %v5742 = vld [vmem:[#allocation2 + $0x28a] sm:$0xff]
    %v5743 = vld [vmem:[#allocation2 + $0x292] sm:$0xff]
    %v5744 = vld [vmem:[#allocation2 + $0x2a2] sm:$0xff]
    %v5745 = vld [vmem:[#allocation2 + $0x2aa] sm:$0xff]
    %v5746 = vld [vmem:[#allocation2 + $0x2ba] sm:$0xff]
    %v5747 = vld [vmem:[#allocation2 + $0x2c2] sm:$0xff]
    %v5748 = vld [vmem:[#allocation2 + $0x2d2] sm:$0xff]
    %v5749 = vld [vmem:[#allocation2 + $0x2da] sm:$0xff]
    %v5750 = vld [vmem:[#allocation2 + $0x2ea] sm:$0xff]
    %v5751 = vld [vmem:[#allocation2 + $0x2f2] sm:$0xff]
    %v5752 = vld [vmem:[#allocation2 + $0x302] sm:$0xff]
    %v5753 = vld [vmem:[#allocation2 + $0x30a] sm:$0xff]
    %v5754 = vld [vmem:[#allocation2 + $0x31a] sm:$0xff]
    %v5755 = vld [vmem:[#allocation2 + $0x322] sm:$0xff]
    %v5756 = vld [vmem:[%s1010] sm:$0xff]
    %v5757 = vld [vmem:[%s1010 + $0x8] sm:$0xff]
    %v5758 = vld [vmem:[%s1010 + $0x18] sm:$0xff]
    %v5759 = vld [vmem:[%s1010 + $0x20] sm:$0xff]
    %v5760 = vld [vmem:[%s1010 + $0x30] sm:$0xff]
    %v5761 = vld [vmem:[%s1010 + $0x38] sm:$0xff]
    %v5762 = vld [vmem:[%s1010 + $0x48] sm:$0xff]
    %v5763 = vld [vmem:[%s1010 + $0x50] sm:$0xff]
    %v5764 = vld [vmem:[%s1010 + $0x60] sm:$0xff]
    %v5765 = vld [vmem:[%s1010 + $0x68] sm:$0xff]
    %v5766 = vld [vmem:[%s1010 + $0x78] sm:$0xff]
    %v5767 = vld [vmem:[%s1010 + $0x80] sm:$0xff]
    %v5768 = vld [vmem:[%s1010 + $0x90] sm:$0xff]
    %v5769 = vld [vmem:[%s1010 + $0x98] sm:$0xff]
    %v5770 = vld [vmem:[%s1010 + $0xa8] sm:$0xff]
    %v5771 = vld [vmem:[%s1010 + $0xb0] sm:$0xff]
    %v5772 = vld [vmem:[%s1010 + $0xc0] sm:$0xff]
    %v5773 = vld [vmem:[%s1010 + $0xc8] sm:$0xff]
    %v5774 = vld [vmem:[%s1010 + $0xd8] sm:$0xff]
    %v5775 = vld [vmem:[%s1010 + $0xe0] sm:$0xff]
    %v5776 = vld [vmem:[%s1010 + $0xf0] sm:$0xff]
    %v5777 = vld [vmem:[%s1010 + $0xf8] sm:$0xff]
    %v5778 = vld [vmem:[%s1010 + $0x108] sm:$0xff]
    %v5779 = vld [vmem:[%s1010 + $0x110] sm:$0xff]
    %v5780 = vld [vmem:[%s1010 + $0x120] sm:$0xff]
    %v5781 = vld [vmem:[%s1010 + $0x128] sm:$0xff]
    %v5782 = vld [vmem:[%s1010 + $0x138] sm:$0xff]
    %v5783 = vld [vmem:[%s1010 + $0x140] sm:$0xff]
    %v5784 = vld [vmem:[%s1010 + $0x150] sm:$0xff]
    %v5785 = vld [vmem:[%s1010 + $0x158] sm:$0xff]
    %v5786 = vld [vmem:[%s1010 + $0x168] sm:$0xff]
    %v5787 = vld [vmem:[%s1010 + $0x170] sm:$0xff]
    %v5788 = vld [vmem:[%s1010 + $0x1b0] sm:$0xff]
    %v5789 = vld [vmem:[%s1010 + $0x1b8] sm:$0xff]
    %v5790 = vld [vmem:[%s1010 + $0x1c8] sm:$0xff]
    %v5791 = vld [vmem:[%s1010 + $0x1d0] sm:$0xff]
    %v5792 = vld [vmem:[%s1010 + $0x1e0] sm:$0xff]
    %v5793 = vld [vmem:[%s1010 + $0x1e8] sm:$0xff]
    %v5794 = vld [vmem:[%s1010 + $0x1f8] sm:$0xff]
    %v5795 = vld [vmem:[%s1010 + $0x200] sm:$0xff]
    %v5796 = vld [vmem:[%s1010 + $0x210] sm:$0xff]
    %v5797 = vld [vmem:[%s1010 + $0x218] sm:$0xff]
    %v5798 = vld [vmem:[%s1010 + $0x228] sm:$0xff]
    %v5799 = vld [vmem:[%s1010 + $0x230] sm:$0xff]
    %v5800 = vld [vmem:[%s1010 + $0x240] sm:$0xff]
    %v5801 = vld [vmem:[%s1010 + $0x248] sm:$0xff]
    %v5802 = vld [vmem:[%s1010 + $0x258] sm:$0xff]
    %v5803 = vld [vmem:[%s1010 + $0x260] sm:$0xff]
    %v5804 = vld [vmem:[%s1010 + $0x270] sm:$0xff]
    %v5805 = vld [vmem:[%s1010 + $0x278] sm:$0xff]
    %v5806 = vld [vmem:[%s1010 + $0x288] sm:$0xff]
    %v5807 = vld [vmem:[%s1010 + $0x290] sm:$0xff]
    %v5808 = vld [vmem:[%s1010 + $0x2a0] sm:$0xff]
    %v5809 = vld [vmem:[%s1010 + $0x2a8] sm:$0xff]
    %v5810 = vld [vmem:[%s1010 + $0x2b8] sm:$0xff]
    %v5811 = vld [vmem:[%s1010 + $0x2c0] sm:$0xff]
    %v5812 = vld [vmem:[%s1010 + $0x2d0] sm:$0xff]
    %v5813 = vld [vmem:[%s1010 + $0x2d8] sm:$0xff]
    %v5814 = vld [vmem:[%s1010 + $0x2e8] sm:$0xff]
    %v5815 = vld [vmem:[%s1010 + $0x2f0] sm:$0xff]
    %v5816 = vld [vmem:[%s1010 + $0x300] sm:$0xff]
    %v5817 = vld [vmem:[%s1010 + $0x308] sm:$0xff]
    %v5818 = vld [vmem:[%s1010 + $0x318] sm:$0xff]
    %v5819 = vld [vmem:[%s1010 + $0x320] sm:$0xff]
    %v5820 = vld [vmem:[%s1010 + $0x1] sm:$0xff]
    %v5821 = vld [vmem:[%s1010 + $0x9] sm:$0xff]
    %v5822 = vld [vmem:[%s1010 + $0x19] sm:$0xff]
    %v5823 = vld [vmem:[%s1010 + $0x21] sm:$0xff]
    %v5824 = vld [vmem:[%s1010 + $0x31] sm:$0xff]
    %v5825 = vld [vmem:[%s1010 + $0x39] sm:$0xff]
    %v5826 = vld [vmem:[%s1010 + $0x49] sm:$0xff]
    %v5827 = vld [vmem:[%s1010 + $0x51] sm:$0xff]
    %v5828 = vld [vmem:[%s1010 + $0x61] sm:$0xff]
    %v5829 = vld [vmem:[%s1010 + $0x69] sm:$0xff]
    %v5830 = vld [vmem:[%s1010 + $0x79] sm:$0xff]
    %v5831 = vld [vmem:[%s1010 + $0x81] sm:$0xff]
    %v5832 = vld [vmem:[%s1010 + $0x91] sm:$0xff]
    %v5833 = vld [vmem:[%s1010 + $0x99] sm:$0xff]
    %v5834 = vld [vmem:[%s1010 + $0xa9] sm:$0xff]
    %v5835 = vld [vmem:[%s1010 + $0xb1] sm:$0xff]
    %v5836 = vld [vmem:[%s1010 + $0xc1] sm:$0xff]
    %v5837 = vld [vmem:[%s1010 + $0xc9] sm:$0xff]
    %v5838 = vld [vmem:[%s1010 + $0xd9] sm:$0xff]
    %v5839 = vld [vmem:[%s1010 + $0xe1] sm:$0xff]
    %v5840 = vld [vmem:[%s1010 + $0xf1] sm:$0xff]
    %v5841 = vld [vmem:[%s1010 + $0xf9] sm:$0xff]
    %v5842 = vld [vmem:[%s1010 + $0x109] sm:$0xff]
    %v5843 = vld [vmem:[%s1010 + $0x111] sm:$0xff]
    %v5844 = vld [vmem:[%s1010 + $0x121] sm:$0xff]
    %v5845 = vld [vmem:[%s1010 + $0x129] sm:$0xff]
    %v5846 = vld [vmem:[%s1010 + $0x139] sm:$0xff]
    %v5847 = vld [vmem:[%s1010 + $0x141] sm:$0xff]
    %v5848 = vld [vmem:[%s1010 + $0x151] sm:$0xff]
    %v5849 = vld [vmem:[%s1010 + $0x159] sm:$0xff]
    %v5850 = vld [vmem:[%s1010 + $0x169] sm:$0xff]
    %v5851 = vld [vmem:[%s1010 + $0x171] sm:$0xff]
    %v5852 = vld [vmem:[%s1010 + $0x1b1] sm:$0xff]
    %v5853 = vld [vmem:[%s1010 + $0x1b9] sm:$0xff]
    %v5854 = vld [vmem:[%s1010 + $0x1c9] sm:$0xff]
    %v5855 = vld [vmem:[%s1010 + $0x1d1] sm:$0xff]
    %v5856 = vld [vmem:[%s1010 + $0x1e1] sm:$0xff]
    %v5857 = vld [vmem:[%s1010 + $0x1e9] sm:$0xff]
    %v5858 = vld [vmem:[%s1010 + $0x1f9] sm:$0xff]
    %v5859 = vld [vmem:[%s1010 + $0x201] sm:$0xff]
    %v5860 = vld [vmem:[%s1010 + $0x211] sm:$0xff]
    %v5861 = vld [vmem:[%s1010 + $0x219] sm:$0xff]
    %v5862 = vld [vmem:[%s1010 + $0x229] sm:$0xff]
    %v5863 = vld [vmem:[%s1010 + $0x231] sm:$0xff]
    %v5864 = vld [vmem:[%s1010 + $0x241] sm:$0xff]
    %v5865 = vld [vmem:[%s1010 + $0x249] sm:$0xff]
    %v5866 = vld [vmem:[%s1010 + $0x259] sm:$0xff]
    %v5867 = vld [vmem:[%s1010 + $0x261] sm:$0xff]
    %v5868 = vld [vmem:[%s1010 + $0x271] sm:$0xff]
    %v5869 = vld [vmem:[%s1010 + $0x279] sm:$0xff]
    %v5870 = vld [vmem:[%s1010 + $0x289] sm:$0xff]
    %v5871 = vld [vmem:[%s1010 + $0x291] sm:$0xff]
    %v5872 = vld [vmem:[%s1010 + $0x2a1] sm:$0xff]
    %v5873 = vld [vmem:[%s1010 + $0x2a9] sm:$0xff]
    %v5874 = vld [vmem:[%s1010 + $0x2b9] sm:$0xff]
    %v5875 = vld [vmem:[%s1010 + $0x2c1] sm:$0xff]
    %v5876 = vld [vmem:[%s1010 + $0x2d1] sm:$0xff]
    %v5877 = vld [vmem:[%s1010 + $0x2d9] sm:$0xff]
    %v5878 = vld [vmem:[%s1010 + $0x2e9] sm:$0xff]
    %v5879 = vld [vmem:[%s1010 + $0x2f1] sm:$0xff]
    %v5880 = vld [vmem:[%s1010 + $0x301] sm:$0xff]
    %v5881 = vld [vmem:[%s1010 + $0x309] sm:$0xff]
    %v5882 = vld [vmem:[%s1010 + $0x319] sm:$0xff]
    %v5883 = vld [vmem:[%s1010 + $0x321] sm:$0xff]
    %v5884 = vld [vmem:[%s1010 + $0x2] sm:$0xff]
    %v5885 = vld [vmem:[%s1010 + $0xa] sm:$0xff]
    %v5886 = vld [vmem:[%s1010 + $0x1a] sm:$0xff]
    %v5887 = vld [vmem:[%s1010 + $0x22] sm:$0xff]
    %v5888 = vld [vmem:[%s1010 + $0x32] sm:$0xff]
    %v5889 = vld [vmem:[%s1010 + $0x3a] sm:$0xff]
    %v5890 = vld [vmem:[%s1010 + $0x4a] sm:$0xff]
    %v5891 = vld [vmem:[%s1010 + $0x52] sm:$0xff]
    %v5892 = vld [vmem:[%s1010 + $0x62] sm:$0xff]
    %v5893 = vld [vmem:[%s1010 + $0x6a] sm:$0xff]
    %v5894 = vld [vmem:[%s1010 + $0x7a] sm:$0xff]
    %v5895 = vld [vmem:[%s1010 + $0x82] sm:$0xff]
    %v5896 = vld [vmem:[%s1010 + $0x92] sm:$0xff]
    %v5897 = vld [vmem:[%s1010 + $0x9a] sm:$0xff]
    %v5898 = vld [vmem:[%s1010 + $0xaa] sm:$0xff]
    %v5899 = vld [vmem:[%s1010 + $0xb2] sm:$0xff]
    %v5900 = vld [vmem:[%s1010 + $0xc2] sm:$0xff]
    %v5901 = vld [vmem:[%s1010 + $0xca] sm:$0xff]
    %v5902 = vld [vmem:[%s1010 + $0xda] sm:$0xff]
    %v5903 = vld [vmem:[%s1010 + $0xe2] sm:$0xff]
    %v5904 = vld [vmem:[%s1010 + $0xf2] sm:$0xff]
    %v5905 = vld [vmem:[%s1010 + $0xfa] sm:$0xff]
    %v5906 = vld [vmem:[%s1010 + $0x10a] sm:$0xff]
    %v5907 = vld [vmem:[%s1010 + $0x112] sm:$0xff]
    %v5908 = vld [vmem:[%s1010 + $0x122] sm:$0xff]
    %v5909 = vld [vmem:[%s1010 + $0x12a] sm:$0xff]
    %v5910 = vld [vmem:[%s1010 + $0x13a] sm:$0xff]
    %v5911 = vld [vmem:[%s1010 + $0x142] sm:$0xff]
    %v5912 = vld [vmem:[%s1010 + $0x152] sm:$0xff]
    %v5913 = vld [vmem:[%s1010 + $0x15a] sm:$0xff]
    %v5914 = vld [vmem:[%s1010 + $0x16a] sm:$0xff]
    %v5915 = vld [vmem:[%s1010 + $0x172] sm:$0xff]
    %v5916 = vld [vmem:[%s1010 + $0x1b2] sm:$0xff]
    %v5917 = vld [vmem:[%s1010 + $0x1ba] sm:$0xff]
    %v5918 = vld [vmem:[%s1010 + $0x1ca] sm:$0xff]
    %v5919 = vld [vmem:[%s1010 + $0x1d2] sm:$0xff]
    %v5920 = vld [vmem:[%s1010 + $0x1e2] sm:$0xff]
    %v5921 = vld [vmem:[%s1010 + $0x1ea] sm:$0xff]
    %v5922 = vld [vmem:[%s1010 + $0x1fa] sm:$0xff]
    %v5923 = vld [vmem:[%s1010 + $0x202] sm:$0xff]
    %v5924 = vld [vmem:[%s1010 + $0x212] sm:$0xff]
    %v5925 = vld [vmem:[%s1010 + $0x21a] sm:$0xff]
    %v5926 = vld [vmem:[%s1010 + $0x22a] sm:$0xff]
    %v5927 = vld [vmem:[%s1010 + $0x232] sm:$0xff]
    %v5928 = vld [vmem:[%s1010 + $0x242] sm:$0xff]
    %v5929 = vld [vmem:[%s1010 + $0x24a] sm:$0xff]
    %v5930 = vld [vmem:[%s1010 + $0x25a] sm:$0xff]
    %v5931 = vld [vmem:[%s1010 + $0x262] sm:$0xff]
    %v5932 = vld [vmem:[%s1010 + $0x272] sm:$0xff]
    %v5933 = vld [vmem:[%s1010 + $0x27a] sm:$0xff]
    %v5934 = vld [vmem:[%s1010 + $0x28a] sm:$0xff]
    %v5935 = vld [vmem:[%s1010 + $0x292] sm:$0xff]
    %v5936 = vld [vmem:[%s1010 + $0x2a2] sm:$0xff]
    %v5937 = vld [vmem:[%s1010 + $0x2aa] sm:$0xff]
    %v5938 = vld [vmem:[%s1010 + $0x2ba] sm:$0xff]
    %v5939 = vld [vmem:[%s1010 + $0x2c2] sm:$0xff]
    %v5940 = vld [vmem:[%s1010 + $0x2d2] sm:$0xff]
    %v5941 = vld [vmem:[%s1010 + $0x2da] sm:$0xff]
    %v5942 = vld [vmem:[%s1010 + $0x2ea] sm:$0xff]
    %v5943 = vld [vmem:[%s1010 + $0x2f2] sm:$0xff]
    %v5944 = vld [vmem:[%s1010 + $0x302] sm:$0xff]
    %v5945 = vld [vmem:[%s1010 + $0x30a] sm:$0xff]
    %v5946 = vld [vmem:[%s1010 + $0x31a] sm:$0xff]
    %v5947 = vld [vmem:[%s1010 + $0x322] sm:$0xff]
    %v5948 = vld [vmem:[%s1459] sm:$0xff]
    %v5949 = vld [vmem:[%s1459 + $0x8] sm:$0xff]
    %v5950 = vld [vmem:[%s1459 + $0x18] sm:$0xff]
    %v5951 = vld [vmem:[%s1459 + $0x20] sm:$0xff]
    %v5952 = vld [vmem:[%s1459 + $0x30] sm:$0xff]
    %v5953 = vld [vmem:[%s1459 + $0x38] sm:$0xff]
    %v5954 = vld [vmem:[%s1459 + $0x48] sm:$0xff]
    %v5955 = vld [vmem:[%s1459 + $0x50] sm:$0xff]
    %v5956 = vld [vmem:[%s1459 + $0x60] sm:$0xff]
    %v5957 = vld [vmem:[%s1459 + $0x68] sm:$0xff]
    %v5958 = vld [vmem:[%s1459 + $0x78] sm:$0xff]
    %v5959 = vld [vmem:[%s1459 + $0x80] sm:$0xff]
    %v5960 = vld [vmem:[%s1459 + $0x90] sm:$0xff]
    %v5961 = vld [vmem:[%s1459 + $0x98] sm:$0xff]
    %v5962 = vld [vmem:[%s1459 + $0xa8] sm:$0xff]
    %v5963 = vld [vmem:[%s1459 + $0xb0] sm:$0xff]
    %v5964 = vld [vmem:[%s1459 + $0xc0] sm:$0xff]
    %v5965 = vld [vmem:[%s1459 + $0xc8] sm:$0xff]
    %v5966 = vld [vmem:[%s1459 + $0xd8] sm:$0xff]
    %v5967 = vld [vmem:[%s1459 + $0xe0] sm:$0xff]
    %v5968 = vld [vmem:[%s1459 + $0xf0] sm:$0xff]
    %v5969 = vld [vmem:[%s1459 + $0xf8] sm:$0xff]
    %v5970 = vld [vmem:[%s1459 + $0x108] sm:$0xff]
    %v5971 = vld [vmem:[%s1459 + $0x110] sm:$0xff]
    %v5972 = vld [vmem:[%s1459 + $0x120] sm:$0xff]
    %v5973 = vld [vmem:[%s1459 + $0x128] sm:$0xff]
    %v5974 = vld [vmem:[%s1459 + $0x138] sm:$0xff]
    %v5975 = vld [vmem:[%s1459 + $0x140] sm:$0xff]
    %v5976 = vld [vmem:[%s1459 + $0x150] sm:$0xff]
    %v5977 = vld [vmem:[%s1459 + $0x158] sm:$0xff]
    %v5978 = vld [vmem:[%s1459 + $0x168] sm:$0xff]
    %v5979 = vld [vmem:[%s1459 + $0x170] sm:$0xff]
    %v5980 = vld [vmem:[%s1459 + $0x1b0] sm:$0xff]
    %v5981 = vld [vmem:[%s1459 + $0x1b8] sm:$0xff]
    %v5982 = vld [vmem:[%s1459 + $0x1c8] sm:$0xff]
    %v5983 = vld [vmem:[%s1459 + $0x1d0] sm:$0xff]
    %v5984 = vld [vmem:[%s1459 + $0x1e0] sm:$0xff]
    %v5985 = vld [vmem:[%s1459 + $0x1e8] sm:$0xff]
    %v5986 = vld [vmem:[%s1459 + $0x1f8] sm:$0xff]
    %v5987 = vld [vmem:[%s1459 + $0x200] sm:$0xff]
    %v5988 = vld [vmem:[%s1459 + $0x210] sm:$0xff]
    %v5989 = vld [vmem:[%s1459 + $0x218] sm:$0xff]
    %v5990 = vld [vmem:[%s1459 + $0x228] sm:$0xff]
    %v5991 = vld [vmem:[%s1459 + $0x230] sm:$0xff]
    %v5992 = vld [vmem:[%s1459 + $0x240] sm:$0xff]
    %v5993 = vld [vmem:[%s1459 + $0x248] sm:$0xff]
    %v5994 = vld [vmem:[%s1459 + $0x258] sm:$0xff]
    %v5995 = vld [vmem:[%s1459 + $0x260] sm:$0xff]
    %v5996 = vld [vmem:[%s1459 + $0x270] sm:$0xff]
    %v5997 = vld [vmem:[%s1459 + $0x278] sm:$0xff]
    %v5998 = vld [vmem:[%s1459 + $0x288] sm:$0xff]
    %v5999 = vld [vmem:[%s1459 + $0x290] sm:$0xff]
    %v6000 = vld [vmem:[%s1459 + $0x2a0] sm:$0xff]
    %v6001 = vld [vmem:[%s1459 + $0x2a8] sm:$0xff]
    %v6002 = vld [vmem:[%s1459 + $0x2b8] sm:$0xff]
    %v6003 = vld [vmem:[%s1459 + $0x2c0] sm:$0xff]
    %v6004 = vld [vmem:[%s1459 + $0x2d0] sm:$0xff]
    %v6005 = vld [vmem:[%s1459 + $0x2d8] sm:$0xff]
    %v6006 = vld [vmem:[%s1459 + $0x2e8] sm:$0xff]
    %v6007 = vld [vmem:[%s1459 + $0x2f0] sm:$0xff]
    %v6008 = vld [vmem:[%s1459 + $0x300] sm:$0xff]
    %v6009 = vld [vmem:[%s1459 + $0x308] sm:$0xff]
    %v6010 = vld [vmem:[%s1459 + $0x318] sm:$0xff]
    %v6011 = vld [vmem:[%s1459 + $0x320] sm:$0xff]
    %v6012 = vld [vmem:[%s1459 + $0x1] sm:$0xff]
    %v6013 = vld [vmem:[%s1459 + $0x9] sm:$0xff]
    %v6014 = vld [vmem:[%s1459 + $0x19] sm:$0xff]
    %v6015 = vld [vmem:[%s1459 + $0x21] sm:$0xff]
    %v6016 = vld [vmem:[%s1459 + $0x31] sm:$0xff]
    %v6017 = vld [vmem:[%s1459 + $0x39] sm:$0xff]
    %v6018 = vld [vmem:[%s1459 + $0x49] sm:$0xff]
    %v6019 = vld [vmem:[%s1459 + $0x51] sm:$0xff]
    %v6020 = vld [vmem:[%s1459 + $0x61] sm:$0xff]
    %v6021 = vld [vmem:[%s1459 + $0x69] sm:$0xff]
    %v6022 = vld [vmem:[%s1459 + $0x79] sm:$0xff]
    %v6023 = vld [vmem:[%s1459 + $0x81] sm:$0xff]
    %v6024 = vld [vmem:[%s1459 + $0x91] sm:$0xff]
    %v6025 = vld [vmem:[%s1459 + $0x99] sm:$0xff]
    %v6026 = vld [vmem:[%s1459 + $0xa9] sm:$0xff]
    %v6027 = vld [vmem:[%s1459 + $0xb1] sm:$0xff]
    %v6028 = vld [vmem:[%s1459 + $0xc1] sm:$0xff]
    %v6029 = vld [vmem:[%s1459 + $0xc9] sm:$0xff]
    %v6030 = vld [vmem:[%s1459 + $0xd9] sm:$0xff]
    %v6031 = vld [vmem:[%s1459 + $0xe1] sm:$0xff]
    %v6032 = vld [vmem:[%s1459 + $0xf1] sm:$0xff]
    %v6033 = vld [vmem:[%s1459 + $0xf9] sm:$0xff]
    %v6034 = vld [vmem:[%s1459 + $0x109] sm:$0xff]
    %v6035 = vld [vmem:[%s1459 + $0x111] sm:$0xff]
    %v6036 = vld [vmem:[%s1459 + $0x121] sm:$0xff]
    %v6037 = vld [vmem:[%s1459 + $0x129] sm:$0xff]
    %v6038 = vld [vmem:[%s1459 + $0x139] sm:$0xff]
    %v6039 = vld [vmem:[%s1459 + $0x141] sm:$0xff]
    %v6040 = vld [vmem:[%s1459 + $0x151] sm:$0xff]
    %v6041 = vld [vmem:[%s1459 + $0x159] sm:$0xff]
    %v6042 = vld [vmem:[%s1459 + $0x169] sm:$0xff]
    %v6043 = vld [vmem:[%s1459 + $0x171] sm:$0xff]
    %v6044 = vld [vmem:[%s1459 + $0x1b1] sm:$0xff]
    %v6045 = vld [vmem:[%s1459 + $0x1b9] sm:$0xff]
    %v6046 = vld [vmem:[%s1459 + $0x1c9] sm:$0xff]
    %v6047 = vld [vmem:[%s1459 + $0x1d1] sm:$0xff]
    %v6048 = vld [vmem:[%s1459 + $0x1e1] sm:$0xff]
    %v6049 = vld [vmem:[%s1459 + $0x1e9] sm:$0xff]
    %v6050 = vld [vmem:[%s1459 + $0x1f9] sm:$0xff]
    %v6051 = vld [vmem:[%s1459 + $0x201] sm:$0xff]
    %v6052 = vld [vmem:[%s1459 + $0x211] sm:$0xff]
    %v6053 = vld [vmem:[%s1459 + $0x219] sm:$0xff]
    %v6054 = vld [vmem:[%s1459 + $0x229] sm:$0xff]
    %v6055 = vld [vmem:[%s1459 + $0x231] sm:$0xff]
    %v6056 = vld [vmem:[%s1459 + $0x241] sm:$0xff]
    %v6057 = vld [vmem:[%s1459 + $0x249] sm:$0xff]
    %v6058 = vld [vmem:[%s1459 + $0x259] sm:$0xff]
    %v6059 = vld [vmem:[%s1459 + $0x261] sm:$0xff]
    %v6060 = vld [vmem:[%s1459 + $0x271] sm:$0xff]
    %v6061 = vld [vmem:[%s1459 + $0x279] sm:$0xff]
    %v6062 = vld [vmem:[%s1459 + $0x289] sm:$0xff]
    %v6063 = vld [vmem:[%s1459 + $0x291] sm:$0xff]
    %v6064 = vld [vmem:[%s1459 + $0x2a1] sm:$0xff]
    %v6065 = vld [vmem:[%s1459 + $0x2a9] sm:$0xff]
    %v6066 = vld [vmem:[%s1459 + $0x2b9] sm:$0xff]
    %v6067 = vld [vmem:[%s1459 + $0x2c1] sm:$0xff]
    %v6068 = vld [vmem:[%s1459 + $0x2d1] sm:$0xff]
    %v6069 = vld [vmem:[%s1459 + $0x2d9] sm:$0xff]
    %v6070 = vld [vmem:[%s1459 + $0x2e9] sm:$0xff]
    %v6071 = vld [vmem:[%s1459 + $0x2f1] sm:$0xff]
    %v6072 = vld [vmem:[%s1459 + $0x301] sm:$0xff]
    %v6073 = vld [vmem:[%s1459 + $0x309] sm:$0xff]
    %v6074 = vld [vmem:[%s1459 + $0x319] sm:$0xff]
    %v6075 = vld [vmem:[%s1459 + $0x321] sm:$0xff]
    %v6076 = vld [vmem:[%s1459 + $0x2] sm:$0xff]
    %v6077 = vld [vmem:[%s1459 + $0xa] sm:$0xff]
    %v6078 = vld [vmem:[%s1459 + $0x1a] sm:$0xff]
    %v6079 = vld [vmem:[%s1459 + $0x22] sm:$0xff]
    %v6080 = vld [vmem:[%s1459 + $0x32] sm:$0xff]
    %v6081 = vld [vmem:[%s1459 + $0x3a] sm:$0xff]
    %v6082 = vld [vmem:[%s1459 + $0x4a] sm:$0xff]
    %v6083 = vld [vmem:[%s1459 + $0x52] sm:$0xff]
    %v6084 = vld [vmem:[%s1459 + $0x62] sm:$0xff]
    %v6085 = vld [vmem:[%s1459 + $0x6a] sm:$0xff]
    %v6086 = vld [vmem:[%s1459 + $0x7a] sm:$0xff]
    %v6087 = vld [vmem:[%s1459 + $0x82] sm:$0xff]
    %v6088 = vld [vmem:[%s1459 + $0x92] sm:$0xff]
    %v6089 = vld [vmem:[%s1459 + $0x9a] sm:$0xff]
    %v6090 = vld [vmem:[%s1459 + $0xaa] sm:$0xff]
    %v6091 = vld [vmem:[%s1459 + $0xb2] sm:$0xff]
    %v6092 = vld [vmem:[%s1459 + $0xc2] sm:$0xff]
    %v6093 = vld [vmem:[%s1459 + $0xca] sm:$0xff]
    %v6094 = vld [vmem:[%s1459 + $0xda] sm:$0xff]
    %v6095 = vld [vmem:[%s1459 + $0xe2] sm:$0xff]
    %v6096 = vld [vmem:[%s1459 + $0xf2] sm:$0xff]
    %v6097 = vld [vmem:[%s1459 + $0xfa] sm:$0xff]
    %v6098 = vld [vmem:[%s1459 + $0x10a] sm:$0xff]
    %v6099 = vld [vmem:[%s1459 + $0x112] sm:$0xff]
    %v6100 = vld [vmem:[%s1459 + $0x122] sm:$0xff]
    %v6101 = vld [vmem:[%s1459 + $0x12a] sm:$0xff]
    %v6102 = vld [vmem:[%s1459 + $0x13a] sm:$0xff]
    %v6103 = vld [vmem:[%s1459 + $0x142] sm:$0xff]
    %v6104 = vld [vmem:[%s1459 + $0x152] sm:$0xff]
    %v6105 = vld [vmem:[%s1459 + $0x15a] sm:$0xff]
    %v6106 = vld [vmem:[%s1459 + $0x16a] sm:$0xff]
    %v6107 = vld [vmem:[%s1459 + $0x172] sm:$0xff]
    %v6108 = vld [vmem:[%s1459 + $0x1b2] sm:$0xff]
    %v6109 = vld [vmem:[%s1459 + $0x1ba] sm:$0xff]
    %v6110 = vld [vmem:[%s1459 + $0x1ca] sm:$0xff]
    %v6111 = vld [vmem:[%s1459 + $0x1d2] sm:$0xff]
    %v6112 = vld [vmem:[%s1459 + $0x1e2] sm:$0xff]
    %v6113 = vld [vmem:[%s1459 + $0x1ea] sm:$0xff]
    %v6114 = vld [vmem:[%s1459 + $0x1fa] sm:$0xff]
    %v6115 = vld [vmem:[%s1459 + $0x202] sm:$0xff]
    %v6116 = vld [vmem:[%s1459 + $0x212] sm:$0xff]
    %v6117 = vld [vmem:[%s1459 + $0x21a] sm:$0xff]
    %v6118 = vld [vmem:[%s1459 + $0x22a] sm:$0xff]
    %v6119 = vld [vmem:[%s1459 + $0x232] sm:$0xff]
    %v6120 = vld [vmem:[%s1459 + $0x242] sm:$0xff]
    %v6121 = vld [vmem:[%s1459 + $0x24a] sm:$0xff]
    %v6122 = vld [vmem:[%s1459 + $0x25a] sm:$0xff]
    %v6123 = vld [vmem:[%s1459 + $0x262] sm:$0xff]
    %v6124 = vld [vmem:[%s1459 + $0x272] sm:$0xff]
    %v6125 = vld [vmem:[%s1459 + $0x27a] sm:$0xff]
    %v6126 = vld [vmem:[%s1459 + $0x28a] sm:$0xff]
    %v6127 = vld [vmem:[%s1459 + $0x292] sm:$0xff]
    %v6128 = vld [vmem:[%s1459 + $0x2a2] sm:$0xff]
    %v6129 = vld [vmem:[%s1459 + $0x2aa] sm:$0xff]
    %v6130 = vld [vmem:[%s1459 + $0x2ba] sm:$0xff]
    %v6131 = vld [vmem:[%s1459 + $0x2c2] sm:$0xff]
    %v6132 = vld [vmem:[%s1459 + $0x2d2] sm:$0xff]
    %v6133 = vld [vmem:[%s1459 + $0x2da] sm:$0xff]
    %v6134 = vld [vmem:[%s1459 + $0x2ea] sm:$0xff]
    %v6135 = vld [vmem:[%s1459 + $0x2f2] sm:$0xff]
    %v6136 = vld [vmem:[%s1459 + $0x302] sm:$0xff]
    %v6137 = vld [vmem:[%s1459 + $0x30a] sm:$0xff]
    %v6138 = vld [vmem:[%s1459 + $0x31a] sm:$0xff]
    %v6139 = vld [vmem:[%s1459 + $0x322] sm:$0xff]
    %6204 = vrot.lane.b32.xlu0 %v5628, 8
    %v6205 = vpop.permute.xlu0 %6204
    %6206 = vrot.lane.b32.xlu0 %v5629, 8
    %v6207 = vpop.permute.xlu0 %6206
    %6208 = vrot.lane.b32.xlu0 %v5630, 8
    %v6209 = vpop.permute.xlu0 %6208
    %6210 = vrot.lane.b32.xlu0 %v5631, 8
    %v6211 = vpop.permute.xlu0 %6210
    %6212 = vrot.lane.b32.xlu0 %v5632, 8
    %v6213 = vpop.permute.xlu0 %6212
    %6214 = vrot.lane.b32.xlu0 %v5633, 8
    %v6215 = vpop.permute.xlu0 %6214
    %6216 = vrot.lane.b32.xlu0 %v5634, 8
    %v6217 = vpop.permute.xlu0 %6216
    %6218 = vrot.lane.b32.xlu0 %v5635, 8
    %v6219 = vpop.permute.xlu0 %6218
    %6220 = vrot.lane.b32.xlu0 %v5636, 8
    %v6221 = vpop.permute.xlu0 %6220
    %6222 = vrot.lane.b32.xlu0 %v5637, 8
    %v6223 = vpop.permute.xlu0 %6222
    %6224 = vrot.lane.b32.xlu0 %v5638, 8
    %v6225 = vpop.permute.xlu0 %6224
    %6226 = vrot.lane.b32.xlu0 %v5639, 8
    %v6227 = vpop.permute.xlu0 %6226
    %6228 = vrot.lane.b32.xlu0 %v5640, 8
    %v6229 = vpop.permute.xlu0 %6228
    %6230 = vrot.lane.b32.xlu0 %v5641, 8
    %v6231 = vpop.permute.xlu0 %6230
    %6232 = vrot.lane.b32.xlu0 %v5642, 8
    %v6233 = vpop.permute.xlu0 %6232
    %6234 = vrot.lane.b32.xlu0 %v5643, 8
    %v6235 = vpop.permute.xlu0 %6234
    %6236 = vrot.lane.b32.xlu0 %v5644, 8
    %v6237 = vpop.permute.xlu0 %6236
    %6238 = vrot.lane.b32.xlu0 %v5645, 8
    %v6239 = vpop.permute.xlu0 %6238
    %6240 = vrot.lane.b32.xlu0 %v5646, 8
    %v6241 = vpop.permute.xlu0 %6240
    %6242 = vrot.lane.b32.xlu0 %v5647, 8
    %v6243 = vpop.permute.xlu0 %6242
    %6244 = vrot.lane.b32.xlu0 %v5648, 8
    %v6245 = vpop.permute.xlu0 %6244
    %6246 = vrot.lane.b32.xlu0 %v5649, 8
    %v6247 = vpop.permute.xlu0 %6246
    %6248 = vrot.lane.b32.xlu0 %v5650, 8
    %v6249 = vpop.permute.xlu0 %6248
    %6250 = vrot.lane.b32.xlu0 %v5651, 8
    %v6251 = vpop.permute.xlu0 %6250
    %6252 = vrot.lane.b32.xlu0 %v5652, 8
    %v6253 = vpop.permute.xlu0 %6252
    %6254 = vrot.lane.b32.xlu0 %v5653, 8
    %v6255 = vpop.permute.xlu0 %6254
    %6256 = vrot.lane.b32.xlu0 %v5654, 8
    %v6257 = vpop.permute.xlu0 %6256
    %6258 = vrot.lane.b32.xlu0 %v5655, 8
    %v6259 = vpop.permute.xlu0 %6258
    %6260 = vrot.lane.b32.xlu0 %v5656, 8
    %v6261 = vpop.permute.xlu0 %6260
    %6262 = vrot.lane.b32.xlu0 %v5657, 8
    %v6263 = vpop.permute.xlu0 %6262
    %6264 = vrot.lane.b32.xlu0 %v5658, 8
    %v6265 = vpop.permute.xlu0 %6264
    %6266 = vrot.lane.b32.xlu0 %v5659, 8
    %v6267 = vpop.permute.xlu0 %6266
    %6268 = vrot.lane.b32.xlu0 %v5660, 8
    %v6269 = vpop.permute.xlu0 %6268
    %6270 = vrot.lane.b32.xlu0 %v5661, 8
    %v6271 = vpop.permute.xlu0 %6270
    %6272 = vrot.lane.b32.xlu0 %v5662, 8
    %v6273 = vpop.permute.xlu0 %6272
    %6274 = vrot.lane.b32.xlu0 %v5663, 8
    %v6275 = vpop.permute.xlu0 %6274
    %6276 = vrot.lane.b32.xlu0 %v5664, 8
    %v6277 = vpop.permute.xlu0 %6276
    %6278 = vrot.lane.b32.xlu0 %v5665, 8
    %v6279 = vpop.permute.xlu0 %6278
    %6280 = vrot.lane.b32.xlu0 %v5666, 8
    %v6281 = vpop.permute.xlu0 %6280
    %6282 = vrot.lane.b32.xlu0 %v5667, 8
    %v6283 = vpop.permute.xlu0 %6282
    %6284 = vrot.lane.b32.xlu0 %v5668, 8
    %v6285 = vpop.permute.xlu0 %6284
    %6286 = vrot.lane.b32.xlu0 %v5669, 8
    %v6287 = vpop.permute.xlu0 %6286
    %6288 = vrot.lane.b32.xlu0 %v5670, 8
    %v6289 = vpop.permute.xlu0 %6288
    %6290 = vrot.lane.b32.xlu0 %v5671, 8
    %v6291 = vpop.permute.xlu0 %6290
    %6292 = vrot.lane.b32.xlu0 %v5672, 8
    %v6293 = vpop.permute.xlu0 %6292
    %6294 = vrot.lane.b32.xlu0 %v5673, 8
    %v6295 = vpop.permute.xlu0 %6294
    %6296 = vrot.lane.b32.xlu0 %v5674, 8
    %v6297 = vpop.permute.xlu0 %6296
    %6298 = vrot.lane.b32.xlu0 %v5675, 8
    %v6299 = vpop.permute.xlu0 %6298
    %6300 = vrot.lane.b32.xlu0 %v5676, 8
    %v6301 = vpop.permute.xlu0 %6300
    %6302 = vrot.lane.b32.xlu0 %v5677, 8
    %v6303 = vpop.permute.xlu0 %6302
    %6304 = vrot.lane.b32.xlu0 %v5678, 8
    %v6305 = vpop.permute.xlu0 %6304
    %6306 = vrot.lane.b32.xlu0 %v5679, 8
    %v6307 = vpop.permute.xlu0 %6306
    %6308 = vrot.lane.b32.xlu0 %v5680, 8
    %v6309 = vpop.permute.xlu0 %6308
    %6310 = vrot.lane.b32.xlu0 %v5681, 8
    %v6311 = vpop.permute.xlu0 %6310
    %6312 = vrot.lane.b32.xlu0 %v5682, 8
    %v6313 = vpop.permute.xlu0 %6312
    %6314 = vrot.lane.b32.xlu0 %v5683, 8
    %v6315 = vpop.permute.xlu0 %6314
    %6316 = vrot.lane.b32.xlu0 %v5684, 8
    %v6317 = vpop.permute.xlu0 %6316
    %6318 = vrot.lane.b32.xlu0 %v5685, 8
    %v6319 = vpop.permute.xlu0 %6318
    %6320 = vrot.lane.b32.xlu0 %v5686, 8
    %v6321 = vpop.permute.xlu0 %6320
    %6322 = vrot.lane.b32.xlu0 %v5687, 8
    %v6323 = vpop.permute.xlu0 %6322
    %6324 = vrot.lane.b32.xlu0 %v5688, 8
    %v6325 = vpop.permute.xlu0 %6324
    %6326 = vrot.lane.b32.xlu0 %v5689, 8
    %v6327 = vpop.permute.xlu0 %6326
    %6328 = vrot.lane.b32.xlu0 %v5690, 8
    %v6329 = vpop.permute.xlu0 %6328
    %6330 = vrot.lane.b32.xlu0 %v5691, 8
    %v6331 = vpop.permute.xlu0 %6330
    %6460 = vrot.lane.b32.xlu0 %v5692, 16
    %v6461 = vpop.permute.xlu0 %6460
    %6462 = vrot.lane.b32.xlu0 %v5693, 16
    %v6463 = vpop.permute.xlu0 %6462
    %6464 = vrot.lane.b32.xlu0 %v5694, 16
    %v6465 = vpop.permute.xlu0 %6464
    %6466 = vrot.lane.b32.xlu0 %v5695, 16
    %v6467 = vpop.permute.xlu0 %6466
    %6468 = vrot.lane.b32.xlu0 %v5696, 16
    %v6469 = vpop.permute.xlu0 %6468
    %6470 = vrot.lane.b32.xlu0 %v5697, 16
    %v6471 = vpop.permute.xlu0 %6470
    %6472 = vrot.lane.b32.xlu0 %v5698, 16
    %v6473 = vpop.permute.xlu0 %6472
    %6474 = vrot.lane.b32.xlu0 %v5699, 16
    %v6475 = vpop.permute.xlu0 %6474
    %6476 = vrot.lane.b32.xlu0 %v5700, 16
    %v6477 = vpop.permute.xlu0 %6476
    %6478 = vrot.lane.b32.xlu0 %v5701, 16
    %v6479 = vpop.permute.xlu0 %6478
    %6480 = vrot.lane.b32.xlu0 %v5702, 16
    %v6481 = vpop.permute.xlu0 %6480
    %6482 = vrot.lane.b32.xlu0 %v5703, 16
    %v6483 = vpop.permute.xlu0 %6482
    %6484 = vrot.lane.b32.xlu0 %v5704, 16
    %v6485 = vpop.permute.xlu0 %6484
    %6486 = vrot.lane.b32.xlu0 %v5705, 16
    %v6487 = vpop.permute.xlu0 %6486
    %6488 = vrot.lane.b32.xlu0 %v5706, 16
    %v6489 = vpop.permute.xlu0 %6488
    %6490 = vrot.lane.b32.xlu0 %v5707, 16
    %v6491 = vpop.permute.xlu0 %6490
    %6492 = vrot.lane.b32.xlu0 %v5708, 16
    %v6493 = vpop.permute.xlu0 %6492
    %6494 = vrot.lane.b32.xlu0 %v5709, 16
    %v6495 = vpop.permute.xlu0 %6494
    %6496 = vrot.lane.b32.xlu0 %v5710, 16
    %v6497 = vpop.permute.xlu0 %6496
    %6498 = vrot.lane.b32.xlu0 %v5711, 16
    %v6499 = vpop.permute.xlu0 %6498
    %6500 = vrot.lane.b32.xlu0 %v5712, 16
    %v6501 = vpop.permute.xlu0 %6500
    %6502 = vrot.lane.b32.xlu0 %v5713, 16
    %v6503 = vpop.permute.xlu0 %6502
    %6504 = vrot.lane.b32.xlu0 %v5714, 16
    %v6505 = vpop.permute.xlu0 %6504
    %6506 = vrot.lane.b32.xlu0 %v5715, 16
    %v6507 = vpop.permute.xlu0 %6506
    %6508 = vrot.lane.b32.xlu0 %v5716, 16
    %v6509 = vpop.permute.xlu0 %6508
    %6510 = vrot.lane.b32.xlu0 %v5717, 16
    %v6511 = vpop.permute.xlu0 %6510
    %6512 = vrot.lane.b32.xlu0 %v5718, 16
    %v6513 = vpop.permute.xlu0 %6512
    %6514 = vrot.lane.b32.xlu0 %v5719, 16
    %v6515 = vpop.permute.xlu0 %6514
    %6516 = vrot.lane.b32.xlu0 %v5720, 16
    %v6517 = vpop.permute.xlu0 %6516
    %6518 = vrot.lane.b32.xlu0 %v5721, 16
    %v6519 = vpop.permute.xlu0 %6518
    %6520 = vrot.lane.b32.xlu0 %v5722, 16
    %v6521 = vpop.permute.xlu0 %6520
    %6522 = vrot.lane.b32.xlu0 %v5723, 16
    %v6523 = vpop.permute.xlu0 %6522
    %6524 = vrot.lane.b32.xlu0 %v5724, 16
    %v6525 = vpop.permute.xlu0 %6524
    %6526 = vrot.lane.b32.xlu0 %v5725, 16
    %v6527 = vpop.permute.xlu0 %6526
    %6528 = vrot.lane.b32.xlu0 %v5726, 16
    %v6529 = vpop.permute.xlu0 %6528
    %6530 = vrot.lane.b32.xlu0 %v5727, 16
    %v6531 = vpop.permute.xlu0 %6530
    %6532 = vrot.lane.b32.xlu0 %v5728, 16
    %v6533 = vpop.permute.xlu0 %6532
    %6534 = vrot.lane.b32.xlu0 %v5729, 16
    %v6535 = vpop.permute.xlu0 %6534
    %6536 = vrot.lane.b32.xlu0 %v5730, 16
    %v6537 = vpop.permute.xlu0 %6536
    %6538 = vrot.lane.b32.xlu0 %v5731, 16
    %v6539 = vpop.permute.xlu0 %6538
    %6540 = vrot.lane.b32.xlu0 %v5732, 16
    %v6541 = vpop.permute.xlu0 %6540
    %6542 = vrot.lane.b32.xlu0 %v5733, 16
    %v6543 = vpop.permute.xlu0 %6542
    %6544 = vrot.lane.b32.xlu0 %v5734, 16
    %v6545 = vpop.permute.xlu0 %6544
    %6546 = vrot.lane.b32.xlu0 %v5735, 16
    %v6547 = vpop.permute.xlu0 %6546
    %6548 = vrot.lane.b32.xlu0 %v5736, 16
    %v6549 = vpop.permute.xlu0 %6548
    %6550 = vrot.lane.b32.xlu0 %v5737, 16
    %v6551 = vpop.permute.xlu0 %6550
    %6552 = vrot.lane.b32.xlu0 %v5738, 16
    %v6553 = vpop.permute.xlu0 %6552
    %6554 = vrot.lane.b32.xlu0 %v5739, 16
    %v6555 = vpop.permute.xlu0 %6554
    %6556 = vrot.lane.b32.xlu0 %v5740, 16
    %v6557 = vpop.permute.xlu0 %6556
    %6558 = vrot.lane.b32.xlu0 %v5741, 16
    %v6559 = vpop.permute.xlu0 %6558
    %6560 = vrot.lane.b32.xlu0 %v5742, 16
    %v6561 = vpop.permute.xlu0 %6560
    %6562 = vrot.lane.b32.xlu0 %v5743, 16
    %v6563 = vpop.permute.xlu0 %6562
    %6564 = vrot.lane.b32.xlu0 %v5744, 16
    %v6565 = vpop.permute.xlu0 %6564
    %6566 = vrot.lane.b32.xlu0 %v5745, 16
    %v6567 = vpop.permute.xlu0 %6566
    %6568 = vrot.lane.b32.xlu0 %v5746, 16
    %v6569 = vpop.permute.xlu0 %6568
    %6570 = vrot.lane.b32.xlu0 %v5747, 16
    %v6571 = vpop.permute.xlu0 %6570
    %6572 = vrot.lane.b32.xlu0 %v5748, 16
    %v6573 = vpop.permute.xlu0 %6572
    %6574 = vrot.lane.b32.xlu0 %v5749, 16
    %v6575 = vpop.permute.xlu0 %6574
    %6576 = vrot.lane.b32.xlu0 %v5750, 16
    %v6577 = vpop.permute.xlu0 %6576
    %6578 = vrot.lane.b32.xlu0 %v5751, 16
    %v6579 = vpop.permute.xlu0 %6578
    %6580 = vrot.lane.b32.xlu0 %v5752, 16
    %v6581 = vpop.permute.xlu0 %6580
    %6582 = vrot.lane.b32.xlu0 %v5753, 16
    %v6583 = vpop.permute.xlu0 %6582
    %6584 = vrot.lane.b32.xlu0 %v5754, 16
    %v6585 = vpop.permute.xlu0 %6584
    %6586 = vrot.lane.b32.xlu0 %v5755, 16
    %v6587 = vpop.permute.xlu0 %6586
    %6716 = vrot.lane.b32.xlu0 %v5756, 24
    %v6717 = vpop.permute.xlu0 %6716
    %6718 = vrot.lane.b32.xlu0 %v5757, 24
    %v6719 = vpop.permute.xlu0 %6718
    %6720 = vrot.lane.b32.xlu0 %v5758, 24
    %v6721 = vpop.permute.xlu0 %6720
    %6722 = vrot.lane.b32.xlu0 %v5759, 24
    %v6723 = vpop.permute.xlu0 %6722
    %6724 = vrot.lane.b32.xlu0 %v5760, 24
    %v6725 = vpop.permute.xlu0 %6724
    %6726 = vrot.lane.b32.xlu0 %v5761, 24
    %v6727 = vpop.permute.xlu0 %6726
    %6728 = vrot.lane.b32.xlu0 %v5762, 24
    %v6729 = vpop.permute.xlu0 %6728
    %6730 = vrot.lane.b32.xlu0 %v5763, 24
    %v6731 = vpop.permute.xlu0 %6730
    %6732 = vrot.lane.b32.xlu0 %v5764, 24
    %v6733 = vpop.permute.xlu0 %6732
    %6734 = vrot.lane.b32.xlu0 %v5765, 24
    %v6735 = vpop.permute.xlu0 %6734
    %6736 = vrot.lane.b32.xlu0 %v5766, 24
    %v6737 = vpop.permute.xlu0 %6736
    %6738 = vrot.lane.b32.xlu0 %v5767, 24
    %v6739 = vpop.permute.xlu0 %6738
    %6740 = vrot.lane.b32.xlu0 %v5768, 24
    %v6741 = vpop.permute.xlu0 %6740
    %6742 = vrot.lane.b32.xlu0 %v5769, 24
    %v6743 = vpop.permute.xlu0 %6742
    %6744 = vrot.lane.b32.xlu0 %v5770, 24
    %v6745 = vpop.permute.xlu0 %6744
    %6746 = vrot.lane.b32.xlu0 %v5771, 24
    %v6747 = vpop.permute.xlu0 %6746
    %6748 = vrot.lane.b32.xlu0 %v5772, 24
    %v6749 = vpop.permute.xlu0 %6748
    %6750 = vrot.lane.b32.xlu0 %v5773, 24
    %v6751 = vpop.permute.xlu0 %6750
    %6752 = vrot.lane.b32.xlu0 %v5774, 24
    %v6753 = vpop.permute.xlu0 %6752
    %6754 = vrot.lane.b32.xlu0 %v5775, 24
    %v6755 = vpop.permute.xlu0 %6754
    %6756 = vrot.lane.b32.xlu0 %v5776, 24
    %v6757 = vpop.permute.xlu0 %6756
    %6758 = vrot.lane.b32.xlu0 %v5777, 24
    %v6759 = vpop.permute.xlu0 %6758
    %6760 = vrot.lane.b32.xlu0 %v5778, 24
    %v6761 = vpop.permute.xlu0 %6760
    %6762 = vrot.lane.b32.xlu0 %v5779, 24
    %v6763 = vpop.permute.xlu0 %6762
    %6764 = vrot.lane.b32.xlu0 %v5780, 24
    %v6765 = vpop.permute.xlu0 %6764
    %6766 = vrot.lane.b32.xlu0 %v5781, 24
    %v6767 = vpop.permute.xlu0 %6766
    %6768 = vrot.lane.b32.xlu0 %v5782, 24
    %v6769 = vpop.permute.xlu0 %6768
    %6770 = vrot.lane.b32.xlu0 %v5783, 24
    %v6771 = vpop.permute.xlu0 %6770
    %6772 = vrot.lane.b32.xlu0 %v5784, 24
    %v6773 = vpop.permute.xlu0 %6772
    %6774 = vrot.lane.b32.xlu0 %v5785, 24
    %v6775 = vpop.permute.xlu0 %6774
    %6776 = vrot.lane.b32.xlu0 %v5786, 24
    %v6777 = vpop.permute.xlu0 %6776
    %6778 = vrot.lane.b32.xlu0 %v5787, 24
    %v6779 = vpop.permute.xlu0 %6778
    %6780 = vrot.lane.b32.xlu0 %v5788, 24
    %v6781 = vpop.permute.xlu0 %6780
    %6782 = vrot.lane.b32.xlu0 %v5789, 24
    %v6783 = vpop.permute.xlu0 %6782
    %6784 = vrot.lane.b32.xlu0 %v5790, 24
    %v6785 = vpop.permute.xlu0 %6784
    %6786 = vrot.lane.b32.xlu0 %v5791, 24
    %v6787 = vpop.permute.xlu0 %6786
    %6788 = vrot.lane.b32.xlu0 %v5792, 24
    %v6789 = vpop.permute.xlu0 %6788
    %6790 = vrot.lane.b32.xlu0 %v5793, 24
    %v6791 = vpop.permute.xlu0 %6790
    %6792 = vrot.lane.b32.xlu0 %v5794, 24
    %v6793 = vpop.permute.xlu0 %6792
    %6794 = vrot.lane.b32.xlu0 %v5795, 24
    %v6795 = vpop.permute.xlu0 %6794
    %6796 = vrot.lane.b32.xlu0 %v5796, 24
    %v6797 = vpop.permute.xlu0 %6796
    %6798 = vrot.lane.b32.xlu0 %v5797, 24
    %v6799 = vpop.permute.xlu0 %6798
    %6800 = vrot.lane.b32.xlu0 %v5798, 24
    %v6801 = vpop.permute.xlu0 %6800
    %6802 = vrot.lane.b32.xlu0 %v5799, 24
    %v6803 = vpop.permute.xlu0 %6802
    %6804 = vrot.lane.b32.xlu0 %v5800, 24
    %v6805 = vpop.permute.xlu0 %6804
    %6806 = vrot.lane.b32.xlu0 %v5801, 24
    %v6807 = vpop.permute.xlu0 %6806
    %6808 = vrot.lane.b32.xlu0 %v5802, 24
    %v6809 = vpop.permute.xlu0 %6808
    %6810 = vrot.lane.b32.xlu0 %v5803, 24
    %v6811 = vpop.permute.xlu0 %6810
    %6812 = vrot.lane.b32.xlu0 %v5804, 24
    %v6813 = vpop.permute.xlu0 %6812
    %6814 = vrot.lane.b32.xlu0 %v5805, 24
    %v6815 = vpop.permute.xlu0 %6814
    %6816 = vrot.lane.b32.xlu0 %v5806, 24
    %v6817 = vpop.permute.xlu0 %6816
    %6818 = vrot.lane.b32.xlu0 %v5807, 24
    %v6819 = vpop.permute.xlu0 %6818
    %6820 = vrot.lane.b32.xlu0 %v5808, 24
    %v6821 = vpop.permute.xlu0 %6820
    %6822 = vrot.lane.b32.xlu0 %v5809, 24
    %v6823 = vpop.permute.xlu0 %6822
    %6824 = vrot.lane.b32.xlu0 %v5810, 24
    %v6825 = vpop.permute.xlu0 %6824
    %6826 = vrot.lane.b32.xlu0 %v5811, 24
    %v6827 = vpop.permute.xlu0 %6826
    %6828 = vrot.lane.b32.xlu0 %v5812, 24
    %v6829 = vpop.permute.xlu0 %6828
    %6830 = vrot.lane.b32.xlu0 %v5813, 24
    %v6831 = vpop.permute.xlu0 %6830
    %6832 = vrot.lane.b32.xlu0 %v5814, 24
    %v6833 = vpop.permute.xlu0 %6832
    %6834 = vrot.lane.b32.xlu0 %v5815, 24
    %v6835 = vpop.permute.xlu0 %6834
    %6836 = vrot.lane.b32.xlu0 %v5816, 24
    %v6837 = vpop.permute.xlu0 %6836
    %6838 = vrot.lane.b32.xlu0 %v5817, 24
    %v6839 = vpop.permute.xlu0 %6838
    %6840 = vrot.lane.b32.xlu0 %v5818, 24
    %v6841 = vpop.permute.xlu0 %6840
    %6842 = vrot.lane.b32.xlu0 %v5819, 24
    %v6843 = vpop.permute.xlu0 %6842
    %6972 = vrot.lane.b32.xlu0 %v5820, 32
    %v6973 = vpop.permute.xlu0 %6972
    %6974 = vrot.lane.b32.xlu0 %v5821, 32
    %v6975 = vpop.permute.xlu0 %6974
    %6976 = vrot.lane.b32.xlu0 %v5822, 32
    %v6977 = vpop.permute.xlu0 %6976
    %6978 = vrot.lane.b32.xlu0 %v5823, 32
    %v6979 = vpop.permute.xlu0 %6978
    %6980 = vrot.lane.b32.xlu0 %v5824, 32
    %v6981 = vpop.permute.xlu0 %6980
    %6982 = vrot.lane.b32.xlu0 %v5825, 32
    %v6983 = vpop.permute.xlu0 %6982
    %6984 = vrot.lane.b32.xlu0 %v5826, 32
    %v6985 = vpop.permute.xlu0 %6984
    %6986 = vrot.lane.b32.xlu0 %v5827, 32
    %v6987 = vpop.permute.xlu0 %6986
    %6988 = vrot.lane.b32.xlu0 %v5828, 32
    %v6989 = vpop.permute.xlu0 %6988
    %6990 = vrot.lane.b32.xlu0 %v5829, 32
    %v6991 = vpop.permute.xlu0 %6990
    %6992 = vrot.lane.b32.xlu0 %v5830, 32
    %v6993 = vpop.permute.xlu0 %6992
    %6994 = vrot.lane.b32.xlu0 %v5831, 32
    %v6995 = vpop.permute.xlu0 %6994
    %6996 = vrot.lane.b32.xlu0 %v5832, 32
    %v6997 = vpop.permute.xlu0 %6996
    %6998 = vrot.lane.b32.xlu0 %v5833, 32
    %v6999 = vpop.permute.xlu0 %6998
    %7000 = vrot.lane.b32.xlu0 %v5834, 32
    %v7001 = vpop.permute.xlu0 %7000
    %7002 = vrot.lane.b32.xlu0 %v5835, 32
    %v7003 = vpop.permute.xlu0 %7002
    %7004 = vrot.lane.b32.xlu0 %v5836, 32
    %v7005 = vpop.permute.xlu0 %7004
    %7006 = vrot.lane.b32.xlu0 %v5837, 32
    %v7007 = vpop.permute.xlu0 %7006
    %7008 = vrot.lane.b32.xlu0 %v5838, 32
    %v7009 = vpop.permute.xlu0 %7008
    %7010 = vrot.lane.b32.xlu0 %v5839, 32
    %v7011 = vpop.permute.xlu0 %7010
    %7012 = vrot.lane.b32.xlu0 %v5840, 32
    %v7013 = vpop.permute.xlu0 %7012
    %7014 = vrot.lane.b32.xlu0 %v5841, 32
    %v7015 = vpop.permute.xlu0 %7014
    %7016 = vrot.lane.b32.xlu0 %v5842, 32
    %v7017 = vpop.permute.xlu0 %7016
    %7018 = vrot.lane.b32.xlu0 %v5843, 32
    %v7019 = vpop.permute.xlu0 %7018
    %7020 = vrot.lane.b32.xlu0 %v5844, 32
    %v7021 = vpop.permute.xlu0 %7020
    %7022 = vrot.lane.b32.xlu0 %v5845, 32
    %v7023 = vpop.permute.xlu0 %7022
    %7024 = vrot.lane.b32.xlu0 %v5846, 32
    %v7025 = vpop.permute.xlu0 %7024
    %7026 = vrot.lane.b32.xlu0 %v5847, 32
    %v7027 = vpop.permute.xlu0 %7026
    %7028 = vrot.lane.b32.xlu0 %v5848, 32
    %v7029 = vpop.permute.xlu0 %7028
    %7030 = vrot.lane.b32.xlu0 %v5849, 32
    %v7031 = vpop.permute.xlu0 %7030
    %7032 = vrot.lane.b32.xlu0 %v5850, 32
    %v7033 = vpop.permute.xlu0 %7032
    %7034 = vrot.lane.b32.xlu0 %v5851, 32
    %v7035 = vpop.permute.xlu0 %7034
    %7036 = vrot.lane.b32.xlu0 %v5852, 32
    %v7037 = vpop.permute.xlu0 %7036
    %7038 = vrot.lane.b32.xlu0 %v5853, 32
    %v7039 = vpop.permute.xlu0 %7038
    %7040 = vrot.lane.b32.xlu0 %v5854, 32
    %v7041 = vpop.permute.xlu0 %7040
    %7042 = vrot.lane.b32.xlu0 %v5855, 32
    %v7043 = vpop.permute.xlu0 %7042
    %7044 = vrot.lane.b32.xlu0 %v5856, 32
    %v7045 = vpop.permute.xlu0 %7044
    %7046 = vrot.lane.b32.xlu0 %v5857, 32
    %v7047 = vpop.permute.xlu0 %7046
    %7048 = vrot.lane.b32.xlu0 %v5858, 32
    %v7049 = vpop.permute.xlu0 %7048
    %7050 = vrot.lane.b32.xlu0 %v5859, 32
    %v7051 = vpop.permute.xlu0 %7050
    %7052 = vrot.lane.b32.xlu0 %v5860, 32
    %v7053 = vpop.permute.xlu0 %7052
    %7054 = vrot.lane.b32.xlu0 %v5861, 32
    %v7055 = vpop.permute.xlu0 %7054
    %7056 = vrot.lane.b32.xlu0 %v5862, 32
    %v7057 = vpop.permute.xlu0 %7056
    %7058 = vrot.lane.b32.xlu0 %v5863, 32
    %v7059 = vpop.permute.xlu0 %7058
    %7060 = vrot.lane.b32.xlu0 %v5864, 32
    %v7061 = vpop.permute.xlu0 %7060
    %7062 = vrot.lane.b32.xlu0 %v5865, 32
    %v7063 = vpop.permute.xlu0 %7062
    %7064 = vrot.lane.b32.xlu0 %v5866, 32
    %v7065 = vpop.permute.xlu0 %7064
    %7066 = vrot.lane.b32.xlu0 %v5867, 32
    %v7067 = vpop.permute.xlu0 %7066
    %7068 = vrot.lane.b32.xlu0 %v5868, 32
    %v7069 = vpop.permute.xlu0 %7068
    %7070 = vrot.lane.b32.xlu0 %v5869, 32
    %v7071 = vpop.permute.xlu0 %7070
    %7072 = vrot.lane.b32.xlu0 %v5870, 32
    %v7073 = vpop.permute.xlu0 %7072
    %7074 = vrot.lane.b32.xlu0 %v5871, 32
    %v7075 = vpop.permute.xlu0 %7074
    %7076 = vrot.lane.b32.xlu0 %v5872, 32
    %v7077 = vpop.permute.xlu0 %7076
    %7078 = vrot.lane.b32.xlu0 %v5873, 32
    %v7079 = vpop.permute.xlu0 %7078
    %7080 = vrot.lane.b32.xlu0 %v5874, 32
    %v7081 = vpop.permute.xlu0 %7080
    %7082 = vrot.lane.b32.xlu0 %v5875, 32
    %v7083 = vpop.permute.xlu0 %7082
    %7084 = vrot.lane.b32.xlu0 %v5876, 32
    %v7085 = vpop.permute.xlu0 %7084
    %7086 = vrot.lane.b32.xlu0 %v5877, 32
    %v7087 = vpop.permute.xlu0 %7086
    %7088 = vrot.lane.b32.xlu0 %v5878, 32
    %v7089 = vpop.permute.xlu0 %7088
    %7090 = vrot.lane.b32.xlu0 %v5879, 32
    %v7091 = vpop.permute.xlu0 %7090
    %7092 = vrot.lane.b32.xlu0 %v5880, 32
    %v7093 = vpop.permute.xlu0 %7092
    %7094 = vrot.lane.b32.xlu0 %v5881, 32
    %v7095 = vpop.permute.xlu0 %7094
    %7096 = vrot.lane.b32.xlu0 %v5882, 32
    %v7097 = vpop.permute.xlu0 %7096
    %7098 = vrot.lane.b32.xlu0 %v5883, 32
    %v7099 = vpop.permute.xlu0 %7098
    %7228 = vrot.lane.b32.xlu0 %v5884, 40
    %v7229 = vpop.permute.xlu0 %7228
    %7230 = vrot.lane.b32.xlu0 %v5885, 40
    %v7231 = vpop.permute.xlu0 %7230
    %7232 = vrot.lane.b32.xlu0 %v5886, 40
    %v7233 = vpop.permute.xlu0 %7232
    %7234 = vrot.lane.b32.xlu0 %v5887, 40
    %v7235 = vpop.permute.xlu0 %7234
    %7236 = vrot.lane.b32.xlu0 %v5888, 40
    %v7237 = vpop.permute.xlu0 %7236
    %7238 = vrot.lane.b32.xlu0 %v5889, 40
    %v7239 = vpop.permute.xlu0 %7238
    %7240 = vrot.lane.b32.xlu0 %v5890, 40
    %v7241 = vpop.permute.xlu0 %7240
    %7242 = vrot.lane.b32.xlu0 %v5891, 40
    %v7243 = vpop.permute.xlu0 %7242
    %7244 = vrot.lane.b32.xlu0 %v5892, 40
    %v7245 = vpop.permute.xlu0 %7244
    %7246 = vrot.lane.b32.xlu0 %v5893, 40
    %v7247 = vpop.permute.xlu0 %7246
    %7248 = vrot.lane.b32.xlu0 %v5894, 40
    %v7249 = vpop.permute.xlu0 %7248
    %7250 = vrot.lane.b32.xlu0 %v5895, 40
    %v7251 = vpop.permute.xlu0 %7250
    %7252 = vrot.lane.b32.xlu0 %v5896, 40
    %v7253 = vpop.permute.xlu0 %7252
    %7254 = vrot.lane.b32.xlu0 %v5897, 40
    %v7255 = vpop.permute.xlu0 %7254
    %7256 = vrot.lane.b32.xlu0 %v5898, 40
    %v7257 = vpop.permute.xlu0 %7256
    %7258 = vrot.lane.b32.xlu0 %v5899, 40
    %v7259 = vpop.permute.xlu0 %7258
    %7260 = vrot.lane.b32.xlu0 %v5900, 40
    %v7261 = vpop.permute.xlu0 %7260
    %7262 = vrot.lane.b32.xlu0 %v5901, 40
    %v7263 = vpop.permute.xlu0 %7262
    %7264 = vrot.lane.b32.xlu0 %v5902, 40
    %v7265 = vpop.permute.xlu0 %7264
    %7266 = vrot.lane.b32.xlu0 %v5903, 40
    %v7267 = vpop.permute.xlu0 %7266
    %7268 = vrot.lane.b32.xlu0 %v5904, 40
    %v7269 = vpop.permute.xlu0 %7268
    %7270 = vrot.lane.b32.xlu0 %v5905, 40
    %v7271 = vpop.permute.xlu0 %7270
    %7272 = vrot.lane.b32.xlu0 %v5906, 40
    %v7273 = vpop.permute.xlu0 %7272
    %7274 = vrot.lane.b32.xlu0 %v5907, 40
    %v7275 = vpop.permute.xlu0 %7274
    %7276 = vrot.lane.b32.xlu0 %v5908, 40
    %v7277 = vpop.permute.xlu0 %7276
    %7278 = vrot.lane.b32.xlu0 %v5909, 40
    %v7279 = vpop.permute.xlu0 %7278
    %7280 = vrot.lane.b32.xlu0 %v5910, 40
    %v7281 = vpop.permute.xlu0 %7280
    %7282 = vrot.lane.b32.xlu0 %v5911, 40
    %v7283 = vpop.permute.xlu0 %7282
    %7284 = vrot.lane.b32.xlu0 %v5912, 40
    %v7285 = vpop.permute.xlu0 %7284
    %7286 = vrot.lane.b32.xlu0 %v5913, 40
    %v7287 = vpop.permute.xlu0 %7286
    %7288 = vrot.lane.b32.xlu0 %v5914, 40
    %v7289 = vpop.permute.xlu0 %7288
    %7290 = vrot.lane.b32.xlu0 %v5915, 40
    %v7291 = vpop.permute.xlu0 %7290
    %7292 = vrot.lane.b32.xlu0 %v5916, 40
    %v7293 = vpop.permute.xlu0 %7292
    %7294 = vrot.lane.b32.xlu0 %v5917, 40
    %v7295 = vpop.permute.xlu0 %7294
    %7296 = vrot.lane.b32.xlu0 %v5918, 40
    %v7297 = vpop.permute.xlu0 %7296
    %7298 = vrot.lane.b32.xlu0 %v5919, 40
    %v7299 = vpop.permute.xlu0 %7298
    %7300 = vrot.lane.b32.xlu0 %v5920, 40
    %v7301 = vpop.permute.xlu0 %7300
    %7302 = vrot.lane.b32.xlu0 %v5921, 40
    %v7303 = vpop.permute.xlu0 %7302
    %7304 = vrot.lane.b32.xlu0 %v5922, 40
    %v7305 = vpop.permute.xlu0 %7304
    %7306 = vrot.lane.b32.xlu0 %v5923, 40
    %v7307 = vpop.permute.xlu0 %7306
    %7308 = vrot.lane.b32.xlu0 %v5924, 40
    %v7309 = vpop.permute.xlu0 %7308
    %7310 = vrot.lane.b32.xlu0 %v5925, 40
    %v7311 = vpop.permute.xlu0 %7310
    %7312 = vrot.lane.b32.xlu0 %v5926, 40
    %v7313 = vpop.permute.xlu0 %7312
    %7314 = vrot.lane.b32.xlu0 %v5927, 40
    %v7315 = vpop.permute.xlu0 %7314
    %7316 = vrot.lane.b32.xlu0 %v5928, 40
    %v7317 = vpop.permute.xlu0 %7316
    %7318 = vrot.lane.b32.xlu0 %v5929, 40
    %v7319 = vpop.permute.xlu0 %7318
    %7320 = vrot.lane.b32.xlu0 %v5930, 40
    %v7321 = vpop.permute.xlu0 %7320
    %7322 = vrot.lane.b32.xlu0 %v5931, 40
    %v7323 = vpop.permute.xlu0 %7322
    %7324 = vrot.lane.b32.xlu0 %v5932, 40
    %v7325 = vpop.permute.xlu0 %7324
    %7326 = vrot.lane.b32.xlu0 %v5933, 40
    %v7327 = vpop.permute.xlu0 %7326
    %7328 = vrot.lane.b32.xlu0 %v5934, 40
    %v7329 = vpop.permute.xlu0 %7328
    %7330 = vrot.lane.b32.xlu0 %v5935, 40
    %v7331 = vpop.permute.xlu0 %7330
    %7332 = vrot.lane.b32.xlu0 %v5936, 40
    %v7333 = vpop.permute.xlu0 %7332
    %7334 = vrot.lane.b32.xlu0 %v5937, 40
    %v7335 = vpop.permute.xlu0 %7334
    %7336 = vrot.lane.b32.xlu0 %v5938, 40
    %v7337 = vpop.permute.xlu0 %7336
    %7338 = vrot.lane.b32.xlu0 %v5939, 40
    %v7339 = vpop.permute.xlu0 %7338
    %7340 = vrot.lane.b32.xlu0 %v5940, 40
    %v7341 = vpop.permute.xlu0 %7340
    %7342 = vrot.lane.b32.xlu0 %v5941, 40
    %v7343 = vpop.permute.xlu0 %7342
    %7344 = vrot.lane.b32.xlu0 %v5942, 40
    %v7345 = vpop.permute.xlu0 %7344
    %7346 = vrot.lane.b32.xlu0 %v5943, 40
    %v7347 = vpop.permute.xlu0 %7346
    %7348 = vrot.lane.b32.xlu0 %v5944, 40
    %v7349 = vpop.permute.xlu0 %7348
    %7350 = vrot.lane.b32.xlu0 %v5945, 40
    %v7351 = vpop.permute.xlu0 %7350
    %7352 = vrot.lane.b32.xlu0 %v5946, 40
    %v7353 = vpop.permute.xlu0 %7352
    %7354 = vrot.lane.b32.xlu0 %v5947, 40
    %v7355 = vpop.permute.xlu0 %7354
    %7484 = vrot.lane.b32.xlu0 %v5948, 48
    %v7485 = vpop.permute.xlu0 %7484
    %7486 = vrot.lane.b32.xlu0 %v5949, 48
    %v7487 = vpop.permute.xlu0 %7486
    %7488 = vrot.lane.b32.xlu0 %v5950, 48
    %v7489 = vpop.permute.xlu0 %7488
    %7490 = vrot.lane.b32.xlu0 %v5951, 48
    %v7491 = vpop.permute.xlu0 %7490
    %7492 = vrot.lane.b32.xlu0 %v5952, 48
    %v7493 = vpop.permute.xlu0 %7492
    %7494 = vrot.lane.b32.xlu0 %v5953, 48
    %v7495 = vpop.permute.xlu0 %7494
    %7496 = vrot.lane.b32.xlu0 %v5954, 48
    %v7497 = vpop.permute.xlu0 %7496
    %7498 = vrot.lane.b32.xlu0 %v5955, 48
    %v7499 = vpop.permute.xlu0 %7498
    %7500 = vrot.lane.b32.xlu0 %v5956, 48
    %v7501 = vpop.permute.xlu0 %7500
    %7502 = vrot.lane.b32.xlu0 %v5957, 48
    %v7503 = vpop.permute.xlu0 %7502
    %7504 = vrot.lane.b32.xlu0 %v5958, 48
    %v7505 = vpop.permute.xlu0 %7504
    %7506 = vrot.lane.b32.xlu0 %v5959, 48
    %v7507 = vpop.permute.xlu0 %7506
    %7508 = vrot.lane.b32.xlu0 %v5960, 48
    %v7509 = vpop.permute.xlu0 %7508
    %7510 = vrot.lane.b32.xlu0 %v5961, 48
    %v7511 = vpop.permute.xlu0 %7510
    %7512 = vrot.lane.b32.xlu0 %v5962, 48
    %v7513 = vpop.permute.xlu0 %7512
    %7514 = vrot.lane.b32.xlu0 %v5963, 48
    %v7515 = vpop.permute.xlu0 %7514
    %7516 = vrot.lane.b32.xlu0 %v5964, 48
    %v7517 = vpop.permute.xlu0 %7516
    %7518 = vrot.lane.b32.xlu0 %v5965, 48
    %v7519 = vpop.permute.xlu0 %7518
    %7520 = vrot.lane.b32.xlu0 %v5966, 48
    %v7521 = vpop.permute.xlu0 %7520
    %7522 = vrot.lane.b32.xlu0 %v5967, 48
    %v7523 = vpop.permute.xlu0 %7522
    %7524 = vrot.lane.b32.xlu0 %v5968, 48
    %v7525 = vpop.permute.xlu0 %7524
    %7526 = vrot.lane.b32.xlu0 %v5969, 48
    %v7527 = vpop.permute.xlu0 %7526
    %7528 = vrot.lane.b32.xlu0 %v5970, 48
    %v7529 = vpop.permute.xlu0 %7528
    %7530 = vrot.lane.b32.xlu0 %v5971, 48
    %v7531 = vpop.permute.xlu0 %7530
    %7532 = vrot.lane.b32.xlu0 %v5972, 48
    %v7533 = vpop.permute.xlu0 %7532
    %7534 = vrot.lane.b32.xlu0 %v5973, 48
    %v7535 = vpop.permute.xlu0 %7534
    %7536 = vrot.lane.b32.xlu0 %v5974, 48
    %v7537 = vpop.permute.xlu0 %7536
    %7538 = vrot.lane.b32.xlu0 %v5975, 48
    %v7539 = vpop.permute.xlu0 %7538
    %7540 = vrot.lane.b32.xlu0 %v5976, 48
    %v7541 = vpop.permute.xlu0 %7540
    %7542 = vrot.lane.b32.xlu0 %v5977, 48
    %v7543 = vpop.permute.xlu0 %7542
    %7544 = vrot.lane.b32.xlu0 %v5978, 48
    %v7545 = vpop.permute.xlu0 %7544
    %7546 = vrot.lane.b32.xlu0 %v5979, 48
    %v7547 = vpop.permute.xlu0 %7546
    %7548 = vrot.lane.b32.xlu0 %v5980, 48
    %v7549 = vpop.permute.xlu0 %7548
    %7550 = vrot.lane.b32.xlu0 %v5981, 48
    %v7551 = vpop.permute.xlu0 %7550
    %7552 = vrot.lane.b32.xlu0 %v5982, 48
    %v7553 = vpop.permute.xlu0 %7552
    %7554 = vrot.lane.b32.xlu0 %v5983, 48
    %v7555 = vpop.permute.xlu0 %7554
    %7556 = vrot.lane.b32.xlu0 %v5984, 48
    %v7557 = vpop.permute.xlu0 %7556
    %7558 = vrot.lane.b32.xlu0 %v5985, 48
    %v7559 = vpop.permute.xlu0 %7558
    %7560 = vrot.lane.b32.xlu0 %v5986, 48
    %v7561 = vpop.permute.xlu0 %7560
    %7562 = vrot.lane.b32.xlu0 %v5987, 48
    %v7563 = vpop.permute.xlu0 %7562
    %7564 = vrot.lane.b32.xlu0 %v5988, 48
    %v7565 = vpop.permute.xlu0 %7564
    %7566 = vrot.lane.b32.xlu0 %v5989, 48
    %v7567 = vpop.permute.xlu0 %7566
    %7568 = vrot.lane.b32.xlu0 %v5990, 48
    %v7569 = vpop.permute.xlu0 %7568
    %7570 = vrot.lane.b32.xlu0 %v5991, 48
    %v7571 = vpop.permute.xlu0 %7570
    %7572 = vrot.lane.b32.xlu0 %v5992, 48
    %v7573 = vpop.permute.xlu0 %7572
    %7574 = vrot.lane.b32.xlu0 %v5993, 48
    %v7575 = vpop.permute.xlu0 %7574
    %7576 = vrot.lane.b32.xlu0 %v5994, 48
    %v7577 = vpop.permute.xlu0 %7576
    %7578 = vrot.lane.b32.xlu0 %v5995, 48
    %v7579 = vpop.permute.xlu0 %7578
    %7580 = vrot.lane.b32.xlu0 %v5996, 48
    %v7581 = vpop.permute.xlu0 %7580
    %7582 = vrot.lane.b32.xlu0 %v5997, 48
    %v7583 = vpop.permute.xlu0 %7582
    %7584 = vrot.lane.b32.xlu0 %v5998, 48
    %v7585 = vpop.permute.xlu0 %7584
    %7586 = vrot.lane.b32.xlu0 %v5999, 48
    %v7587 = vpop.permute.xlu0 %7586
    %7588 = vrot.lane.b32.xlu0 %v6000, 48
    %v7589 = vpop.permute.xlu0 %7588
    %7590 = vrot.lane.b32.xlu0 %v6001, 48
    %v7591 = vpop.permute.xlu0 %7590
    %7592 = vrot.lane.b32.xlu0 %v6002, 48
    %v7593 = vpop.permute.xlu0 %7592
    %7594 = vrot.lane.b32.xlu0 %v6003, 48
    %v7595 = vpop.permute.xlu0 %7594
    %7596 = vrot.lane.b32.xlu0 %v6004, 48
    %v7597 = vpop.permute.xlu0 %7596
    %7598 = vrot.lane.b32.xlu0 %v6005, 48
    %v7599 = vpop.permute.xlu0 %7598
    %7600 = vrot.lane.b32.xlu0 %v6006, 48
    %v7601 = vpop.permute.xlu0 %7600
    %7602 = vrot.lane.b32.xlu0 %v6007, 48
    %v7603 = vpop.permute.xlu0 %7602
    %7604 = vrot.lane.b32.xlu0 %v6008, 48
    %v7605 = vpop.permute.xlu0 %7604
    %7606 = vrot.lane.b32.xlu0 %v6009, 48
    %v7607 = vpop.permute.xlu0 %7606
    %7608 = vrot.lane.b32.xlu0 %v6010, 48
    %v7609 = vpop.permute.xlu0 %7608
    %7610 = vrot.lane.b32.xlu0 %v6011, 48
    %v7611 = vpop.permute.xlu0 %7610
    %7740 = vrot.lane.b32.xlu0 %v6012, 56
    %v7741 = vpop.permute.xlu0 %7740
    %7742 = vrot.lane.b32.xlu0 %v6013, 56
    %v7743 = vpop.permute.xlu0 %7742
    %7744 = vrot.lane.b32.xlu0 %v6014, 56
    %v7745 = vpop.permute.xlu0 %7744
    %7746 = vrot.lane.b32.xlu0 %v6015, 56
    %v7747 = vpop.permute.xlu0 %7746
    %7748 = vrot.lane.b32.xlu0 %v6016, 56
    %v7749 = vpop.permute.xlu0 %7748
    %7750 = vrot.lane.b32.xlu0 %v6017, 56
    %v7751 = vpop.permute.xlu0 %7750
    %7752 = vrot.lane.b32.xlu0 %v6018, 56
    %v7753 = vpop.permute.xlu0 %7752
    %7754 = vrot.lane.b32.xlu0 %v6019, 56
    %v7755 = vpop.permute.xlu0 %7754
    %7756 = vrot.lane.b32.xlu0 %v6020, 56
    %v7757 = vpop.permute.xlu0 %7756
    %7758 = vrot.lane.b32.xlu0 %v6021, 56
    %v7759 = vpop.permute.xlu0 %7758
    %7760 = vrot.lane.b32.xlu0 %v6022, 56
    %v7761 = vpop.permute.xlu0 %7760
    %7762 = vrot.lane.b32.xlu0 %v6023, 56
    %v7763 = vpop.permute.xlu0 %7762
    %7764 = vrot.lane.b32.xlu0 %v6024, 56
    %v7765 = vpop.permute.xlu0 %7764
    %7766 = vrot.lane.b32.xlu0 %v6025, 56
    %v7767 = vpop.permute.xlu0 %7766
    %7768 = vrot.lane.b32.xlu0 %v6026, 56
    %v7769 = vpop.permute.xlu0 %7768
    %7770 = vrot.lane.b32.xlu0 %v6027, 56
    %v7771 = vpop.permute.xlu0 %7770
    %7772 = vrot.lane.b32.xlu0 %v6028, 56
    %v7773 = vpop.permute.xlu0 %7772
    %7774 = vrot.lane.b32.xlu0 %v6029, 56
    %v7775 = vpop.permute.xlu0 %7774
    %7776 = vrot.lane.b32.xlu0 %v6030, 56
    %v7777 = vpop.permute.xlu0 %7776
    %7778 = vrot.lane.b32.xlu0 %v6031, 56
    %v7779 = vpop.permute.xlu0 %7778
    %7780 = vrot.lane.b32.xlu0 %v6032, 56
    %v7781 = vpop.permute.xlu0 %7780
    %7782 = vrot.lane.b32.xlu0 %v6033, 56
    %v7783 = vpop.permute.xlu0 %7782
    %7784 = vrot.lane.b32.xlu0 %v6034, 56
    %v7785 = vpop.permute.xlu0 %7784
    %7786 = vrot.lane.b32.xlu0 %v6035, 56
    %v7787 = vpop.permute.xlu0 %7786
    %7788 = vrot.lane.b32.xlu0 %v6036, 56
    %v7789 = vpop.permute.xlu0 %7788
    %7790 = vrot.lane.b32.xlu0 %v6037, 56
    %v7791 = vpop.permute.xlu0 %7790
    %7792 = vrot.lane.b32.xlu0 %v6038, 56
    %v7793 = vpop.permute.xlu0 %7792
    %7794 = vrot.lane.b32.xlu0 %v6039, 56
    %v7795 = vpop.permute.xlu0 %7794
    %7796 = vrot.lane.b32.xlu0 %v6040, 56
    %v7797 = vpop.permute.xlu0 %7796
    %7798 = vrot.lane.b32.xlu0 %v6041, 56
    %v7799 = vpop.permute.xlu0 %7798
    %7800 = vrot.lane.b32.xlu0 %v6042, 56
    %v7801 = vpop.permute.xlu0 %7800
    %7802 = vrot.lane.b32.xlu0 %v6043, 56
    %v7803 = vpop.permute.xlu0 %7802
    %7804 = vrot.lane.b32.xlu0 %v6044, 56
    %v7805 = vpop.permute.xlu0 %7804
    %7806 = vrot.lane.b32.xlu0 %v6045, 56
    %v7807 = vpop.permute.xlu0 %7806
    %7808 = vrot.lane.b32.xlu0 %v6046, 56
    %v7809 = vpop.permute.xlu0 %7808
    %7810 = vrot.lane.b32.xlu0 %v6047, 56
    %v7811 = vpop.permute.xlu0 %7810
    %7812 = vrot.lane.b32.xlu0 %v6048, 56
    %v7813 = vpop.permute.xlu0 %7812
    %7814 = vrot.lane.b32.xlu0 %v6049, 56
    %v7815 = vpop.permute.xlu0 %7814
    %7816 = vrot.lane.b32.xlu0 %v6050, 56
    %v7817 = vpop.permute.xlu0 %7816
    %7818 = vrot.lane.b32.xlu0 %v6051, 56
    %v7819 = vpop.permute.xlu0 %7818
    %7820 = vrot.lane.b32.xlu0 %v6052, 56
    %v7821 = vpop.permute.xlu0 %7820
    %7822 = vrot.lane.b32.xlu0 %v6053, 56
    %v7823 = vpop.permute.xlu0 %7822
    %7824 = vrot.lane.b32.xlu0 %v6054, 56
    %v7825 = vpop.permute.xlu0 %7824
    %7826 = vrot.lane.b32.xlu0 %v6055, 56
    %v7827 = vpop.permute.xlu0 %7826
    %7828 = vrot.lane.b32.xlu0 %v6056, 56
    %v7829 = vpop.permute.xlu0 %7828
    %7830 = vrot.lane.b32.xlu0 %v6057, 56
    %v7831 = vpop.permute.xlu0 %7830
    %7832 = vrot.lane.b32.xlu0 %v6058, 56
    %v7833 = vpop.permute.xlu0 %7832
    %7834 = vrot.lane.b32.xlu0 %v6059, 56
    %v7835 = vpop.permute.xlu0 %7834
    %7836 = vrot.lane.b32.xlu0 %v6060, 56
    %v7837 = vpop.permute.xlu0 %7836
    %7838 = vrot.lane.b32.xlu0 %v6061, 56
    %v7839 = vpop.permute.xlu0 %7838
    %7840 = vrot.lane.b32.xlu0 %v6062, 56
    %v7841 = vpop.permute.xlu0 %7840
    %7842 = vrot.lane.b32.xlu0 %v6063, 56
    %v7843 = vpop.permute.xlu0 %7842
    %7844 = vrot.lane.b32.xlu0 %v6064, 56
    %v7845 = vpop.permute.xlu0 %7844
    %7846 = vrot.lane.b32.xlu0 %v6065, 56
    %v7847 = vpop.permute.xlu0 %7846
    %7848 = vrot.lane.b32.xlu0 %v6066, 56
    %v7849 = vpop.permute.xlu0 %7848
    %7850 = vrot.lane.b32.xlu0 %v6067, 56
    %v7851 = vpop.permute.xlu0 %7850
    %7852 = vrot.lane.b32.xlu0 %v6068, 56
    %v7853 = vpop.permute.xlu0 %7852
    %7854 = vrot.lane.b32.xlu0 %v6069, 56
    %v7855 = vpop.permute.xlu0 %7854
    %7856 = vrot.lane.b32.xlu0 %v6070, 56
    %v7857 = vpop.permute.xlu0 %7856
    %7858 = vrot.lane.b32.xlu0 %v6071, 56
    %v7859 = vpop.permute.xlu0 %7858
    %7860 = vrot.lane.b32.xlu0 %v6072, 56
    %v7861 = vpop.permute.xlu0 %7860
    %7862 = vrot.lane.b32.xlu0 %v6073, 56
    %v7863 = vpop.permute.xlu0 %7862
    %7864 = vrot.lane.b32.xlu0 %v6074, 56
    %v7865 = vpop.permute.xlu0 %7864
    %7866 = vrot.lane.b32.xlu0 %v6075, 56
    %v7867 = vpop.permute.xlu0 %7866
    %7996 = vrot.lane.b32.xlu0 %v6076, 64
    %v7997 = vpop.permute.xlu0 %7996
    %7998 = vrot.lane.b32.xlu0 %v6077, 64
    %v7999 = vpop.permute.xlu0 %7998
    %8000 = vrot.lane.b32.xlu0 %v6078, 64
    %v8001 = vpop.permute.xlu0 %8000
    %8002 = vrot.lane.b32.xlu0 %v6079, 64
    %v8003 = vpop.permute.xlu0 %8002
    %8004 = vrot.lane.b32.xlu0 %v6080, 64
    %v8005 = vpop.permute.xlu0 %8004
    %8006 = vrot.lane.b32.xlu0 %v6081, 64
    %v8007 = vpop.permute.xlu0 %8006
    %8008 = vrot.lane.b32.xlu0 %v6082, 64
    %v8009 = vpop.permute.xlu0 %8008
    %8010 = vrot.lane.b32.xlu0 %v6083, 64
    %v8011 = vpop.permute.xlu0 %8010
    %8012 = vrot.lane.b32.xlu0 %v6084, 64
    %v8013 = vpop.permute.xlu0 %8012
    %8014 = vrot.lane.b32.xlu0 %v6085, 64
    %v8015 = vpop.permute.xlu0 %8014
    %8016 = vrot.lane.b32.xlu0 %v6086, 64
    %v8017 = vpop.permute.xlu0 %8016
    %8018 = vrot.lane.b32.xlu0 %v6087, 64
    %v8019 = vpop.permute.xlu0 %8018
    %8020 = vrot.lane.b32.xlu0 %v6088, 64
    %v8021 = vpop.permute.xlu0 %8020
    %8022 = vrot.lane.b32.xlu0 %v6089, 64
    %v8023 = vpop.permute.xlu0 %8022
    %8024 = vrot.lane.b32.xlu0 %v6090, 64
    %v8025 = vpop.permute.xlu0 %8024
    %8026 = vrot.lane.b32.xlu0 %v6091, 64
    %v8027 = vpop.permute.xlu0 %8026
    %8028 = vrot.lane.b32.xlu0 %v6092, 64
    %v8029 = vpop.permute.xlu0 %8028
    %8030 = vrot.lane.b32.xlu0 %v6093, 64
    %v8031 = vpop.permute.xlu0 %8030
    %8032 = vrot.lane.b32.xlu0 %v6094, 64
    %v8033 = vpop.permute.xlu0 %8032
    %8034 = vrot.lane.b32.xlu0 %v6095, 64
    %v8035 = vpop.permute.xlu0 %8034
    %8036 = vrot.lane.b32.xlu0 %v6096, 64
    %v8037 = vpop.permute.xlu0 %8036
    %8038 = vrot.lane.b32.xlu0 %v6097, 64
    %v8039 = vpop.permute.xlu0 %8038
    %8040 = vrot.lane.b32.xlu0 %v6098, 64
    %v8041 = vpop.permute.xlu0 %8040
    %8042 = vrot.lane.b32.xlu0 %v6099, 64
    %v8043 = vpop.permute.xlu0 %8042
    %8044 = vrot.lane.b32.xlu0 %v6100, 64
    %v8045 = vpop.permute.xlu0 %8044
    %8046 = vrot.lane.b32.xlu0 %v6101, 64
    %v8047 = vpop.permute.xlu0 %8046
    %8048 = vrot.lane.b32.xlu0 %v6102, 64
    %v8049 = vpop.permute.xlu0 %8048
    %8050 = vrot.lane.b32.xlu0 %v6103, 64
    %v8051 = vpop.permute.xlu0 %8050
    %8052 = vrot.lane.b32.xlu0 %v6104, 64
    %v8053 = vpop.permute.xlu0 %8052
    %8054 = vrot.lane.b32.xlu0 %v6105, 64
    %v8055 = vpop.permute.xlu0 %8054
    %8056 = vrot.lane.b32.xlu0 %v6106, 64
    %v8057 = vpop.permute.xlu0 %8056
    %8058 = vrot.lane.b32.xlu0 %v6107, 64
    %v8059 = vpop.permute.xlu0 %8058
    %8060 = vrot.lane.b32.xlu0 %v6108, 64
    %v8061 = vpop.permute.xlu0 %8060
    %8062 = vrot.lane.b32.xlu0 %v6109, 64
    %v8063 = vpop.permute.xlu0 %8062
    %8064 = vrot.lane.b32.xlu0 %v6110, 64
    %v8065 = vpop.permute.xlu0 %8064
    %8066 = vrot.lane.b32.xlu0 %v6111, 64
    %v8067 = vpop.permute.xlu0 %8066
    %8068 = vrot.lane.b32.xlu0 %v6112, 64
    %v8069 = vpop.permute.xlu0 %8068
    %8070 = vrot.lane.b32.xlu0 %v6113, 64
    %v8071 = vpop.permute.xlu0 %8070
    %8072 = vrot.lane.b32.xlu0 %v6114, 64
    %v8073 = vpop.permute.xlu0 %8072
    %8074 = vrot.lane.b32.xlu0 %v6115, 64
    %v8075 = vpop.permute.xlu0 %8074
    %8076 = vrot.lane.b32.xlu0 %v6116, 64
    %v8077 = vpop.permute.xlu0 %8076
    %8078 = vrot.lane.b32.xlu0 %v6117, 64
    %v8079 = vpop.permute.xlu0 %8078
    %8080 = vrot.lane.b32.xlu0 %v6118, 64
    %v8081 = vpop.permute.xlu0 %8080
    %8082 = vrot.lane.b32.xlu0 %v6119, 64
    %v8083 = vpop.permute.xlu0 %8082
    %8084 = vrot.lane.b32.xlu0 %v6120, 64
    %v8085 = vpop.permute.xlu0 %8084
    %8086 = vrot.lane.b32.xlu0 %v6121, 64
    %v8087 = vpop.permute.xlu0 %8086
    %8088 = vrot.lane.b32.xlu0 %v6122, 64
    %v8089 = vpop.permute.xlu0 %8088
    %8090 = vrot.lane.b32.xlu0 %v6123, 64
    %v8091 = vpop.permute.xlu0 %8090
    %8092 = vrot.lane.b32.xlu0 %v6124, 64
    %v8093 = vpop.permute.xlu0 %8092
    %8094 = vrot.lane.b32.xlu0 %v6125, 64
    %v8095 = vpop.permute.xlu0 %8094
    %8096 = vrot.lane.b32.xlu0 %v6126, 64
    %v8097 = vpop.permute.xlu0 %8096
    %8098 = vrot.lane.b32.xlu0 %v6127, 64
    %v8099 = vpop.permute.xlu0 %8098
    %8100 = vrot.lane.b32.xlu0 %v6128, 64
    %v8101 = vpop.permute.xlu0 %8100
    %8102 = vrot.lane.b32.xlu0 %v6129, 64
    %v8103 = vpop.permute.xlu0 %8102
    %8104 = vrot.lane.b32.xlu0 %v6130, 64
    %v8105 = vpop.permute.xlu0 %8104
    %8106 = vrot.lane.b32.xlu0 %v6131, 64
    %v8107 = vpop.permute.xlu0 %8106
    %8108 = vrot.lane.b32.xlu0 %v6132, 64
    %v8109 = vpop.permute.xlu0 %8108
    %8110 = vrot.lane.b32.xlu0 %v6133, 64
    %v8111 = vpop.permute.xlu0 %8110
    %8112 = vrot.lane.b32.xlu0 %v6134, 64
    %v8113 = vpop.permute.xlu0 %8112
    %8114 = vrot.lane.b32.xlu0 %v6135, 64
    %v8115 = vpop.permute.xlu0 %8114
    %8116 = vrot.lane.b32.xlu0 %v6136, 64
    %v8117 = vpop.permute.xlu0 %8116
    %8118 = vrot.lane.b32.xlu0 %v6137, 64
    %v8119 = vpop.permute.xlu0 %8118
    %8120 = vrot.lane.b32.xlu0 %v6138, 64
    %v8121 = vpop.permute.xlu0 %8120
    %8122 = vrot.lane.b32.xlu0 %v6139, 64
    %v8123 = vpop.permute.xlu0 %8122
    %v8188 = vsel %vm644, %v5564, %v6205
    %v8189 = vsel %vm644, %v5565, %v6207
    %v8190 = vsel %vm644, %v5566, %v6209
    %v8191 = vsel %vm644, %v5567, %v6211
    %v8192 = vsel %vm644, %v5568, %v6213
    %v8193 = vsel %vm644, %v5569, %v6215
    %v8194 = vsel %vm644, %v5570, %v6217
    %v8195 = vsel %vm644, %v5571, %v6219
    %v8196 = vsel %vm644, %v5572, %v6221
    %v8197 = vsel %vm644, %v5573, %v6223
    %v8198 = vsel %vm644, %v5574, %v6225
    %v8199 = vsel %vm644, %v5575, %v6227
    %v8200 = vsel %vm644, %v5576, %v6229
    %v8201 = vsel %vm644, %v5577, %v6231
    %v8202 = vsel %vm644, %v5578, %v6233
    %v8203 = vsel %vm644, %v5579, %v6235
    %v8204 = vsel %vm644, %v5580, %v6237
    %v8205 = vsel %vm644, %v5581, %v6239
    %v8206 = vsel %vm644, %v5582, %v6241
    %v8207 = vsel %vm644, %v5583, %v6243
    %v8208 = vsel %vm644, %v5584, %v6245
    %v8209 = vsel %vm644, %v5585, %v6247
    %v8210 = vsel %vm644, %v5586, %v6249
    %v8211 = vsel %vm644, %v5587, %v6251
    %v8212 = vsel %vm644, %v5588, %v6253
    %v8213 = vsel %vm644, %v5589, %v6255
    %v8214 = vsel %vm644, %v5590, %v6257
    %v8215 = vsel %vm644, %v5591, %v6259
    %v8216 = vsel %vm644, %v5592, %v6261
    %v8217 = vsel %vm644, %v5593, %v6263
    %v8218 = vsel %vm644, %v5594, %v6265
    %v8219 = vsel %vm644, %v5595, %v6267
    %v8220 = vsel %vm644, %v5596, %v6269
    %v8221 = vsel %vm644, %v5597, %v6271
    %v8222 = vsel %vm644, %v5598, %v6273
    %v8223 = vsel %vm644, %v5599, %v6275
    %v8224 = vsel %vm644, %v5600, %v6277
    %v8225 = vsel %vm644, %v5601, %v6279
    %v8226 = vsel %vm644, %v5602, %v6281
    %v8227 = vsel %vm644, %v5603, %v6283
    %v8228 = vsel %vm644, %v5604, %v6285
    %v8229 = vsel %vm644, %v5605, %v6287
    %v8230 = vsel %vm644, %v5606, %v6289
    %v8231 = vsel %vm644, %v5607, %v6291
    %v8232 = vsel %vm644, %v5608, %v6293
    %v8233 = vsel %vm644, %v5609, %v6295
    %v8234 = vsel %vm644, %v5610, %v6297
    %v8235 = vsel %vm644, %v5611, %v6299
    %v8236 = vsel %vm644, %v5612, %v6301
    %v8237 = vsel %vm644, %v5613, %v6303
    %v8238 = vsel %vm644, %v5614, %v6305
    %v8239 = vsel %vm644, %v5615, %v6307
    %v8240 = vsel %vm644, %v5616, %v6309
    %v8241 = vsel %vm644, %v5617, %v6311
    %v8242 = vsel %vm644, %v5618, %v6313
    %v8243 = vsel %vm644, %v5619, %v6315
    %v8244 = vsel %vm644, %v5620, %v6317
    %v8245 = vsel %vm644, %v5621, %v6319
    %v8246 = vsel %vm644, %v5622, %v6321
    %v8247 = vsel %vm644, %v5623, %v6323
    %v8248 = vsel %vm644, %v5624, %v6325
    %v8249 = vsel %vm644, %v5625, %v6327
    %v8250 = vsel %vm644, %v5626, %v6329
    %v8251 = vsel %vm644, %v5627, %v6331
    %v8252 = vsel %vm3764, %v8188, %v6461
    %v8253 = vsel %vm3764, %v8189, %v6463
    %v8254 = vsel %vm3764, %v8190, %v6465
    %v8255 = vsel %vm3764, %v8191, %v6467
    %v8256 = vsel %vm3764, %v8192, %v6469
    %v8257 = vsel %vm3764, %v8193, %v6471
    %v8258 = vsel %vm3764, %v8194, %v6473
    %v8259 = vsel %vm3764, %v8195, %v6475
    %v8260 = vsel %vm3764, %v8196, %v6477
    %v8261 = vsel %vm3764, %v8197, %v6479
    %v8262 = vsel %vm3764, %v8198, %v6481
    %v8263 = vsel %vm3764, %v8199, %v6483
    %v8264 = vsel %vm3764, %v8200, %v6485
    %v8265 = vsel %vm3764, %v8201, %v6487
    %v8266 = vsel %vm3764, %v8202, %v6489
    %v8267 = vsel %vm3764, %v8203, %v6491
    %v8268 = vsel %vm3764, %v8204, %v6493
    %v8269 = vsel %vm3764, %v8205, %v6495
    %v8270 = vsel %vm3764, %v8206, %v6497
    %v8271 = vsel %vm3764, %v8207, %v6499
    %v8272 = vsel %vm3764, %v8208, %v6501
    %v8273 = vsel %vm3764, %v8209, %v6503
    %v8274 = vsel %vm3764, %v8210, %v6505
    %v8275 = vsel %vm3764, %v8211, %v6507
    %v8276 = vsel %vm3764, %v8212, %v6509
    %v8277 = vsel %vm3764, %v8213, %v6511
    %v8278 = vsel %vm3764, %v8214, %v6513
    %v8279 = vsel %vm3764, %v8215, %v6515
    %v8280 = vsel %vm3764, %v8216, %v6517
    %v8281 = vsel %vm3764, %v8217, %v6519
    %v8282 = vsel %vm3764, %v8218, %v6521
    %v8283 = vsel %vm3764, %v8219, %v6523
    %v8284 = vsel %vm3764, %v8220, %v6525
    %v8285 = vsel %vm3764, %v8221, %v6527
    %v8286 = vsel %vm3764, %v8222, %v6529
    %v8287 = vsel %vm3764, %v8223, %v6531
    %v8288 = vsel %vm3764, %v8224, %v6533
    %v8289 = vsel %vm3764, %v8225, %v6535
    %v8290 = vsel %vm3764, %v8226, %v6537
    %v8291 = vsel %vm3764, %v8227, %v6539
    %v8292 = vsel %vm3764, %v8228, %v6541
    %v8293 = vsel %vm3764, %v8229, %v6543
    %v8294 = vsel %vm3764, %v8230, %v6545
    %v8295 = vsel %vm3764, %v8231, %v6547
    %v8296 = vsel %vm3764, %v8232, %v6549
    %v8297 = vsel %vm3764, %v8233, %v6551
    %v8298 = vsel %vm3764, %v8234, %v6553
    %v8299 = vsel %vm3764, %v8235, %v6555
    %v8300 = vsel %vm3764, %v8236, %v6557
    %v8301 = vsel %vm3764, %v8237, %v6559
    %v8302 = vsel %vm3764, %v8238, %v6561
    %v8303 = vsel %vm3764, %v8239, %v6563
    %v8304 = vsel %vm3764, %v8240, %v6565
    %v8305 = vsel %vm3764, %v8241, %v6567
    %v8306 = vsel %vm3764, %v8242, %v6569
    %v8307 = vsel %vm3764, %v8243, %v6571
    %v8308 = vsel %vm3764, %v8244, %v6573
    %v8309 = vsel %vm3764, %v8245, %v6575
    %v8310 = vsel %vm3764, %v8246, %v6577
    %v8311 = vsel %vm3764, %v8247, %v6579
    %v8312 = vsel %vm3764, %v8248, %v6581
    %v8313 = vsel %vm3764, %v8249, %v6583
    %v8314 = vsel %vm3764, %v8250, %v6585
    %v8315 = vsel %vm3764, %v8251, %v6587
    %v8316 = vsel %vm3829, %v8252, %v6717
    %v8317 = vsel %vm3829, %v8253, %v6719
    %v8318 = vsel %vm3829, %v8254, %v6721
    %v8319 = vsel %vm3829, %v8255, %v6723
    %v8320 = vsel %vm3829, %v8256, %v6725
    %v8321 = vsel %vm3829, %v8257, %v6727
    %v8322 = vsel %vm3829, %v8258, %v6729
    %v8323 = vsel %vm3829, %v8259, %v6731
    %v8324 = vsel %vm3829, %v8260, %v6733
    %v8325 = vsel %vm3829, %v8261, %v6735
    %v8326 = vsel %vm3829, %v8262, %v6737
    %v8327 = vsel %vm3829, %v8263, %v6739
    %v8328 = vsel %vm3829, %v8264, %v6741
    %v8329 = vsel %vm3829, %v8265, %v6743
    %v8330 = vsel %vm3829, %v8266, %v6745
    %v8331 = vsel %vm3829, %v8267, %v6747
    %v8332 = vsel %vm3829, %v8268, %v6749
    %v8333 = vsel %vm3829, %v8269, %v6751
    %v8334 = vsel %vm3829, %v8270, %v6753
    %v8335 = vsel %vm3829, %v8271, %v6755
    %v8336 = vsel %vm3829, %v8272, %v6757
    %v8337 = vsel %vm3829, %v8273, %v6759
    %v8338 = vsel %vm3829, %v8274, %v6761
    %v8339 = vsel %vm3829, %v8275, %v6763
    %v8340 = vsel %vm3829, %v8276, %v6765
    %v8341 = vsel %vm3829, %v8277, %v6767
    %v8342 = vsel %vm3829, %v8278, %v6769
    %v8343 = vsel %vm3829, %v8279, %v6771
    %v8344 = vsel %vm3829, %v8280, %v6773
    %v8345 = vsel %vm3829, %v8281, %v6775
    %v8346 = vsel %vm3829, %v8282, %v6777
    %v8347 = vsel %vm3829, %v8283, %v6779
    %v8348 = vsel %vm3829, %v8284, %v6781
    %v8349 = vsel %vm3829, %v8285, %v6783
    %v8350 = vsel %vm3829, %v8286, %v6785
    %v8351 = vsel %vm3829, %v8287, %v6787
    %v8352 = vsel %vm3829, %v8288, %v6789
    %v8353 = vsel %vm3829, %v8289, %v6791
    %v8354 = vsel %vm3829, %v8290, %v6793
    %v8355 = vsel %vm3829, %v8291, %v6795
    %v8356 = vsel %vm3829, %v8292, %v6797
    %v8357 = vsel %vm3829, %v8293, %v6799
    %v8358 = vsel %vm3829, %v8294, %v6801
    %v8359 = vsel %vm3829, %v8295, %v6803
    %v8360 = vsel %vm3829, %v8296, %v6805
    %v8361 = vsel %vm3829, %v8297, %v6807
    %v8362 = vsel %vm3829, %v8298, %v6809
    %v8363 = vsel %vm3829, %v8299, %v6811
    %v8364 = vsel %vm3829, %v8300, %v6813
    %v8365 = vsel %vm3829, %v8301, %v6815
    %v8366 = vsel %vm3829, %v8302, %v6817
    %v8367 = vsel %vm3829, %v8303, %v6819
    %v8368 = vsel %vm3829, %v8304, %v6821
    %v8369 = vsel %vm3829, %v8305, %v6823
    %v8370 = vsel %vm3829, %v8306, %v6825
    %v8371 = vsel %vm3829, %v8307, %v6827
    %v8372 = vsel %vm3829, %v8308, %v6829
    %v8373 = vsel %vm3829, %v8309, %v6831
    %v8374 = vsel %vm3829, %v8310, %v6833
    %v8375 = vsel %vm3829, %v8311, %v6835
    %v8376 = vsel %vm3829, %v8312, %v6837
    %v8377 = vsel %vm3829, %v8313, %v6839
    %v8378 = vsel %vm3829, %v8314, %v6841
    %v8379 = vsel %vm3829, %v8315, %v6843
    %v8380 = vsel %vm3894, %v8316, %v6973
    %v8381 = vsel %vm3894, %v8317, %v6975
    %v8382 = vsel %vm3894, %v8318, %v6977
    %v8383 = vsel %vm3894, %v8319, %v6979
    %v8384 = vsel %vm3894, %v8320, %v6981
    %v8385 = vsel %vm3894, %v8321, %v6983
    %v8386 = vsel %vm3894, %v8322, %v6985
    %v8387 = vsel %vm3894, %v8323, %v6987
    %v8388 = vsel %vm3894, %v8324, %v6989
    %v8389 = vsel %vm3894, %v8325, %v6991
    %v8390 = vsel %vm3894, %v8326, %v6993
    %v8391 = vsel %vm3894, %v8327, %v6995
    %v8392 = vsel %vm3894, %v8328, %v6997
    %v8393 = vsel %vm3894, %v8329, %v6999
    %v8394 = vsel %vm3894, %v8330, %v7001
    %v8395 = vsel %vm3894, %v8331, %v7003
    %v8396 = vsel %vm3894, %v8332, %v7005
    %v8397 = vsel %vm3894, %v8333, %v7007
    %v8398 = vsel %vm3894, %v8334, %v7009
    %v8399 = vsel %vm3894, %v8335, %v7011
    %v8400 = vsel %vm3894, %v8336, %v7013
    %v8401 = vsel %vm3894, %v8337, %v7015
    %v8402 = vsel %vm3894, %v8338, %v7017
    %v8403 = vsel %vm3894, %v8339, %v7019
    %v8404 = vsel %vm3894, %v8340, %v7021
    %v8405 = vsel %vm3894, %v8341, %v7023
    %v8406 = vsel %vm3894, %v8342, %v7025
    %v8407 = vsel %vm3894, %v8343, %v7027
    %v8408 = vsel %vm3894, %v8344, %v7029
    %v8409 = vsel %vm3894, %v8345, %v7031
    %v8410 = vsel %vm3894, %v8346, %v7033
    %v8411 = vsel %vm3894, %v8347, %v7035
    %v8412 = vsel %vm3894, %v8348, %v7037
    %v8413 = vsel %vm3894, %v8349, %v7039
    %v8414 = vsel %vm3894, %v8350, %v7041
    %v8415 = vsel %vm3894, %v8351, %v7043
    %v8416 = vsel %vm3894, %v8352, %v7045
    %v8417 = vsel %vm3894, %v8353, %v7047
    %v8418 = vsel %vm3894, %v8354, %v7049
    %v8419 = vsel %vm3894, %v8355, %v7051
    %v8420 = vsel %vm3894, %v8356, %v7053
    %v8421 = vsel %vm3894, %v8357, %v7055
    %v8422 = vsel %vm3894, %v8358, %v7057
    %v8423 = vsel %vm3894, %v8359, %v7059
    %v8424 = vsel %vm3894, %v8360, %v7061
    %v8425 = vsel %vm3894, %v8361, %v7063
    %v8426 = vsel %vm3894, %v8362, %v7065
    %v8427 = vsel %vm3894, %v8363, %v7067
    %v8428 = vsel %vm3894, %v8364, %v7069
    %v8429 = vsel %vm3894, %v8365, %v7071
    %v8430 = vsel %vm3894, %v8366, %v7073
    %v8431 = vsel %vm3894, %v8367, %v7075
    %v8432 = vsel %vm3894, %v8368, %v7077
    %v8433 = vsel %vm3894, %v8369, %v7079
    %v8434 = vsel %vm3894, %v8370, %v7081
    %v8435 = vsel %vm3894, %v8371, %v7083
    %v8436 = vsel %vm3894, %v8372, %v7085
    %v8437 = vsel %vm3894, %v8373, %v7087
    %v8438 = vsel %vm3894, %v8374, %v7089
    %v8439 = vsel %vm3894, %v8375, %v7091
    %v8440 = vsel %vm3894, %v8376, %v7093
    %v8441 = vsel %vm3894, %v8377, %v7095
    %v8442 = vsel %vm3894, %v8378, %v7097
    %v8443 = vsel %vm3894, %v8379, %v7099
    %v8444 = vsel %vm3959, %v8380, %v7229
    %v8445 = vsel %vm3959, %v8381, %v7231
    %v8446 = vsel %vm3959, %v8382, %v7233
    %v8447 = vsel %vm3959, %v8383, %v7235
    %v8448 = vsel %vm3959, %v8384, %v7237
    %v8449 = vsel %vm3959, %v8385, %v7239
    %v8450 = vsel %vm3959, %v8386, %v7241
    %v8451 = vsel %vm3959, %v8387, %v7243
    %v8452 = vsel %vm3959, %v8388, %v7245
    %v8453 = vsel %vm3959, %v8389, %v7247
    %v8454 = vsel %vm3959, %v8390, %v7249
    %v8455 = vsel %vm3959, %v8391, %v7251
    %v8456 = vsel %vm3959, %v8392, %v7253
    %v8457 = vsel %vm3959, %v8393, %v7255
    %v8458 = vsel %vm3959, %v8394, %v7257
    %v8459 = vsel %vm3959, %v8395, %v7259
    %v8460 = vsel %vm3959, %v8396, %v7261
    %v8461 = vsel %vm3959, %v8397, %v7263
    %v8462 = vsel %vm3959, %v8398, %v7265
    %v8463 = vsel %vm3959, %v8399, %v7267
    %v8464 = vsel %vm3959, %v8400, %v7269
    %v8465 = vsel %vm3959, %v8401, %v7271
    %v8466 = vsel %vm3959, %v8402, %v7273
    %v8467 = vsel %vm3959, %v8403, %v7275
    %v8468 = vsel %vm3959, %v8404, %v7277
    %v8469 = vsel %vm3959, %v8405, %v7279
    %v8470 = vsel %vm3959, %v8406, %v7281
    %v8471 = vsel %vm3959, %v8407, %v7283
    %v8472 = vsel %vm3959, %v8408, %v7285
    %v8473 = vsel %vm3959, %v8409, %v7287
    %v8474 = vsel %vm3959, %v8410, %v7289
    %v8475 = vsel %vm3959, %v8411, %v7291
    %v8476 = vsel %vm3959, %v8412, %v7293
    %v8477 = vsel %vm3959, %v8413, %v7295
    %v8478 = vsel %vm3959, %v8414, %v7297
    %v8479 = vsel %vm3959, %v8415, %v7299
    %v8480 = vsel %vm3959, %v8416, %v7301
    %v8481 = vsel %vm3959, %v8417, %v7303
    %v8482 = vsel %vm3959, %v8418, %v7305
    %v8483 = vsel %vm3959, %v8419, %v7307
    %v8484 = vsel %vm3959, %v8420, %v7309
    %v8485 = vsel %vm3959, %v8421, %v7311
    %v8486 = vsel %vm3959, %v8422, %v7313
    %v8487 = vsel %vm3959, %v8423, %v7315
    %v8488 = vsel %vm3959, %v8424, %v7317
    %v8489 = vsel %vm3959, %v8425, %v7319
    %v8490 = vsel %vm3959, %v8426, %v7321
    %v8491 = vsel %vm3959, %v8427, %v7323
    %v8492 = vsel %vm3959, %v8428, %v7325
    %v8493 = vsel %vm3959, %v8429, %v7327
    %v8494 = vsel %vm3959, %v8430, %v7329
    %v8495 = vsel %vm3959, %v8431, %v7331
    %v8496 = vsel %vm3959, %v8432, %v7333
    %v8497 = vsel %vm3959, %v8433, %v7335
    %v8498 = vsel %vm3959, %v8434, %v7337
    %v8499 = vsel %vm3959, %v8435, %v7339
    %v8500 = vsel %vm3959, %v8436, %v7341
    %v8501 = vsel %vm3959, %v8437, %v7343
    %v8502 = vsel %vm3959, %v8438, %v7345
    %v8503 = vsel %vm3959, %v8439, %v7347
    %v8504 = vsel %vm3959, %v8440, %v7349
    %v8505 = vsel %vm3959, %v8441, %v7351
    %v8506 = vsel %vm3959, %v8442, %v7353
    %v8507 = vsel %vm3959, %v8443, %v7355
    %v8508 = vsel %vm4024, %v8444, %v7485
    %v8509 = vsel %vm4024, %v8445, %v7487
    %v8510 = vsel %vm4024, %v8446, %v7489
    %v8511 = vsel %vm4024, %v8447, %v7491
    %v8512 = vsel %vm4024, %v8448, %v7493
    %v8513 = vsel %vm4024, %v8449, %v7495
    %v8514 = vsel %vm4024, %v8450, %v7497
    %v8515 = vsel %vm4024, %v8451, %v7499
    %v8516 = vsel %vm4024, %v8452, %v7501
    %v8517 = vsel %vm4024, %v8453, %v7503
    %v8518 = vsel %vm4024, %v8454, %v7505
    %v8519 = vsel %vm4024, %v8455, %v7507
    %v8520 = vsel %vm4024, %v8456, %v7509
    %v8521 = vsel %vm4024, %v8457, %v7511
    %v8522 = vsel %vm4024, %v8458, %v7513
    %v8523 = vsel %vm4024, %v8459, %v7515
    %v8524 = vsel %vm4024, %v8460, %v7517
    %v8525 = vsel %vm4024, %v8461, %v7519
    %v8526 = vsel %vm4024, %v8462, %v7521
    %v8527 = vsel %vm4024, %v8463, %v7523
    %v8528 = vsel %vm4024, %v8464, %v7525
    %v8529 = vsel %vm4024, %v8465, %v7527
    %v8530 = vsel %vm4024, %v8466, %v7529
    %v8531 = vsel %vm4024, %v8467, %v7531
    %v8532 = vsel %vm4024, %v8468, %v7533
    %v8533 = vsel %vm4024, %v8469, %v7535
    %v8534 = vsel %vm4024, %v8470, %v7537
    %v8535 = vsel %vm4024, %v8471, %v7539
    %v8536 = vsel %vm4024, %v8472, %v7541
    %v8537 = vsel %vm4024, %v8473, %v7543
    %v8538 = vsel %vm4024, %v8474, %v7545
    %v8539 = vsel %vm4024, %v8475, %v7547
    %v8540 = vsel %vm4024, %v8476, %v7549
    %v8541 = vsel %vm4024, %v8477, %v7551
    %v8542 = vsel %vm4024, %v8478, %v7553
    %v8543 = vsel %vm4024, %v8479, %v7555
    %v8544 = vsel %vm4024, %v8480, %v7557
    %v8545 = vsel %vm4024, %v8481, %v7559
    %v8546 = vsel %vm4024, %v8482, %v7561
    %v8547 = vsel %vm4024, %v8483, %v7563
    %v8548 = vsel %vm4024, %v8484, %v7565
    %v8549 = vsel %vm4024, %v8485, %v7567
    %v8550 = vsel %vm4024, %v8486, %v7569
    %v8551 = vsel %vm4024, %v8487, %v7571
    %v8552 = vsel %vm4024, %v8488, %v7573
    %v8553 = vsel %vm4024, %v8489, %v7575
    %v8554 = vsel %vm4024, %v8490, %v7577
    %v8555 = vsel %vm4024, %v8491, %v7579
    %v8556 = vsel %vm4024, %v8492, %v7581
    %v8557 = vsel %vm4024, %v8493, %v7583
    %v8558 = vsel %vm4024, %v8494, %v7585
    %v8559 = vsel %vm4024, %v8495, %v7587
    %v8560 = vsel %vm4024, %v8496, %v7589
    %v8561 = vsel %vm4024, %v8497, %v7591
    %v8562 = vsel %vm4024, %v8498, %v7593
    %v8563 = vsel %vm4024, %v8499, %v7595
    %v8564 = vsel %vm4024, %v8500, %v7597
    %v8565 = vsel %vm4024, %v8501, %v7599
    %v8566 = vsel %vm4024, %v8502, %v7601
    %v8567 = vsel %vm4024, %v8503, %v7603
    %v8568 = vsel %vm4024, %v8504, %v7605
    %v8569 = vsel %vm4024, %v8505, %v7607
    %v8570 = vsel %vm4024, %v8506, %v7609
    %v8571 = vsel %vm4024, %v8507, %v7611
    %v8572 = vsel %vm4089, %v8508, %v7741
    %v8573 = vsel %vm4089, %v8509, %v7743
    %v8574 = vsel %vm4089, %v8510, %v7745
    %v8575 = vsel %vm4089, %v8511, %v7747
    %v8576 = vsel %vm4089, %v8512, %v7749
    %v8577 = vsel %vm4089, %v8513, %v7751
    %v8578 = vsel %vm4089, %v8514, %v7753
    %v8579 = vsel %vm4089, %v8515, %v7755
    %v8580 = vsel %vm4089, %v8516, %v7757
    %v8581 = vsel %vm4089, %v8517, %v7759
    %v8582 = vsel %vm4089, %v8518, %v7761
    %v8583 = vsel %vm4089, %v8519, %v7763
    %v8584 = vsel %vm4089, %v8520, %v7765
    %v8585 = vsel %vm4089, %v8521, %v7767
    %v8586 = vsel %vm4089, %v8522, %v7769
    %v8587 = vsel %vm4089, %v8523, %v7771
    %v8588 = vsel %vm4089, %v8524, %v7773
    %v8589 = vsel %vm4089, %v8525, %v7775
    %v8590 = vsel %vm4089, %v8526, %v7777
    %v8591 = vsel %vm4089, %v8527, %v7779
    %v8592 = vsel %vm4089, %v8528, %v7781
    %v8593 = vsel %vm4089, %v8529, %v7783
    %v8594 = vsel %vm4089, %v8530, %v7785
    %v8595 = vsel %vm4089, %v8531, %v7787
    %v8596 = vsel %vm4089, %v8532, %v7789
    %v8597 = vsel %vm4089, %v8533, %v7791
    %v8598 = vsel %vm4089, %v8534, %v7793
    %v8599 = vsel %vm4089, %v8535, %v7795
    %v8600 = vsel %vm4089, %v8536, %v7797
    %v8601 = vsel %vm4089, %v8537, %v7799
    %v8602 = vsel %vm4089, %v8538, %v7801
    %v8603 = vsel %vm4089, %v8539, %v7803
    %v8604 = vsel %vm4089, %v8540, %v7805
    %v8605 = vsel %vm4089, %v8541, %v7807
    %v8606 = vsel %vm4089, %v8542, %v7809
    %v8607 = vsel %vm4089, %v8543, %v7811
    %v8608 = vsel %vm4089, %v8544, %v7813
    %v8609 = vsel %vm4089, %v8545, %v7815
    %v8610 = vsel %vm4089, %v8546, %v7817
    %v8611 = vsel %vm4089, %v8547, %v7819
    %v8612 = vsel %vm4089, %v8548, %v7821
    %v8613 = vsel %vm4089, %v8549, %v7823
    %v8614 = vsel %vm4089, %v8550, %v7825
    %v8615 = vsel %vm4089, %v8551, %v7827
    %v8616 = vsel %vm4089, %v8552, %v7829
    %v8617 = vsel %vm4089, %v8553, %v7831
    %v8618 = vsel %vm4089, %v8554, %v7833
    %v8619 = vsel %vm4089, %v8555, %v7835
    %v8620 = vsel %vm4089, %v8556, %v7837
    %v8621 = vsel %vm4089, %v8557, %v7839
    %v8622 = vsel %vm4089, %v8558, %v7841
    %v8623 = vsel %vm4089, %v8559, %v7843
    %v8624 = vsel %vm4089, %v8560, %v7845
    %v8625 = vsel %vm4089, %v8561, %v7847
    %v8626 = vsel %vm4089, %v8562, %v7849
    %v8627 = vsel %vm4089, %v8563, %v7851
    %v8628 = vsel %vm4089, %v8564, %v7853
    %v8629 = vsel %vm4089, %v8565, %v7855
    %v8630 = vsel %vm4089, %v8566, %v7857
    %v8631 = vsel %vm4089, %v8567, %v7859
    %v8632 = vsel %vm4089, %v8568, %v7861
    %v8633 = vsel %vm4089, %v8569, %v7863
    %v8634 = vsel %vm4089, %v8570, %v7865
    %v8635 = vsel %vm4089, %v8571, %v7867
    %v8636 = vsel %vm4154, %v8572, %v7997
    %v8637 = vsel %vm4154, %v8573, %v7999
    %v8638 = vsel %vm4154, %v8574, %v8001
    %v8639 = vsel %vm4154, %v8575, %v8003
    %v8640 = vsel %vm4154, %v8576, %v8005
    %v8641 = vsel %vm4154, %v8577, %v8007
    %v8642 = vsel %vm4154, %v8578, %v8009
    %v8643 = vsel %vm4154, %v8579, %v8011
    %v8644 = vsel %vm4154, %v8580, %v8013
    %v8645 = vsel %vm4154, %v8581, %v8015
    %v8646 = vsel %vm4154, %v8582, %v8017
    %v8647 = vsel %vm4154, %v8583, %v8019
    %v8648 = vsel %vm4154, %v8584, %v8021
    %v8649 = vsel %vm4154, %v8585, %v8023
    %v8650 = vsel %vm4154, %v8586, %v8025
    %v8651 = vsel %vm4154, %v8587, %v8027
    %v8652 = vsel %vm4154, %v8588, %v8029
    %v8653 = vsel %vm4154, %v8589, %v8031
    %v8654 = vsel %vm4154, %v8590, %v8033
    %v8655 = vsel %vm4154, %v8591, %v8035
    %v8656 = vsel %vm4154, %v8592, %v8037
    %v8657 = vsel %vm4154, %v8593, %v8039
    %v8658 = vsel %vm4154, %v8594, %v8041
    %v8659 = vsel %vm4154, %v8595, %v8043
    %v8660 = vsel %vm4154, %v8596, %v8045
    %v8661 = vsel %vm4154, %v8597, %v8047
    %v8662 = vsel %vm4154, %v8598, %v8049
    %v8663 = vsel %vm4154, %v8599, %v8051
    %v8664 = vsel %vm4154, %v8600, %v8053
    %v8665 = vsel %vm4154, %v8601, %v8055
    %v8666 = vsel %vm4154, %v8602, %v8057
    %v8667 = vsel %vm4154, %v8603, %v8059
    %v8668 = vsel %vm4154, %v8604, %v8061
    %v8669 = vsel %vm4154, %v8605, %v8063
    %v8670 = vsel %vm4154, %v8606, %v8065
    %v8671 = vsel %vm4154, %v8607, %v8067
    %v8672 = vsel %vm4154, %v8608, %v8069
    %v8673 = vsel %vm4154, %v8609, %v8071
    %v8674 = vsel %vm4154, %v8610, %v8073
    %v8675 = vsel %vm4154, %v8611, %v8075
    %v8676 = vsel %vm4154, %v8612, %v8077
    %v8677 = vsel %vm4154, %v8613, %v8079
    %v8678 = vsel %vm4154, %v8614, %v8081
    %v8679 = vsel %vm4154, %v8615, %v8083
    %v8680 = vsel %vm4154, %v8616, %v8085
    %v8681 = vsel %vm4154, %v8617, %v8087
    %v8682 = vsel %vm4154, %v8618, %v8089
    %v8683 = vsel %vm4154, %v8619, %v8091
    %v8684 = vsel %vm4154, %v8620, %v8093
    %v8685 = vsel %vm4154, %v8621, %v8095
    %v8686 = vsel %vm4154, %v8622, %v8097
    %v8687 = vsel %vm4154, %v8623, %v8099
    %v8688 = vsel %vm4154, %v8624, %v8101
    %v8689 = vsel %vm4154, %v8625, %v8103
    %v8690 = vsel %vm4154, %v8626, %v8105
    %v8691 = vsel %vm4154, %v8627, %v8107
    %v8692 = vsel %vm4154, %v8628, %v8109
    %v8693 = vsel %vm4154, %v8629, %v8111
    %v8694 = vsel %vm4154, %v8630, %v8113
    %v8695 = vsel %vm4154, %v8631, %v8115
    %v8696 = vsel %vm4154, %v8632, %v8117
    %v8697 = vsel %vm4154, %v8633, %v8119
    %v8698 = vsel %vm4154, %v8634, %v8121
    %v8699 = vsel %vm4154, %v8635, %v8123
    %v8700 = vpack.c.bf16 %v8637, %v8636
    %v8701 = vpack.c.bf16 %v8639, %v8638
    %v8702 = vpack.c.bf16 %v8641, %v8640
    %v8703 = vpack.c.bf16 %v8643, %v8642
    %v8704 = vpack.c.bf16 %v8645, %v8644
    %v8705 = vpack.c.bf16 %v8647, %v8646
    %v8706 = vpack.c.bf16 %v8649, %v8648
    %v8707 = vpack.c.bf16 %v8651, %v8650
    %v8708 = vpack.c.bf16 %v8653, %v8652
    %v8709 = vpack.c.bf16 %v8655, %v8654
    %v8710 = vpack.c.bf16 %v8657, %v8656
    %v8711 = vpack.c.bf16 %v8659, %v8658
    %v8712 = vpack.c.bf16 %v8661, %v8660
    %v8713 = vpack.c.bf16 %v8663, %v8662
    %v8714 = vpack.c.bf16 %v8665, %v8664
    %v8715 = vpack.c.bf16 %v8667, %v8666
    %v8716 = vpack.c.bf16 %v8669, %v8668
    %v8717 = vpack.c.bf16 %v8671, %v8670
    %v8718 = vpack.c.bf16 %v8673, %v8672
    %v8719 = vpack.c.bf16 %v8675, %v8674
    %v8720 = vpack.c.bf16 %v8677, %v8676
    %v8721 = vpack.c.bf16 %v8679, %v8678
    %v8722 = vpack.c.bf16 %v8681, %v8680
    %v8723 = vpack.c.bf16 %v8683, %v8682
    %v8724 = vpack.c.bf16 %v8685, %v8684
    %v8725 = vpack.c.bf16 %v8687, %v8686
    %v8726 = vpack.c.bf16 %v8689, %v8688
    %v8727 = vpack.c.bf16 %v8691, %v8690
    %v8728 = vpack.c.bf16 %v8693, %v8692
    %v8729 = vpack.c.bf16 %v8695, %v8694
    %v8730 = vpack.c.bf16 %v8697, %v8696
    %v8731 = vpack.c.bf16 %v8699, %v8698
    %v8732 = vld [vmem:[%s2] sm:$0xf]
    %v8733 = vld [vmem:[%s2 + $0x4] sm:$0xf]
    %v8734 = vld [vmem:[%s2 + $0x8] sm:$0xf]
    %v8735 = vld [vmem:[%s2 + $0xc] sm:$0xf]
    %v8736 = vld [vmem:[%s2 + $0x10] sm:$0xf]
    %v8737 = vld [vmem:[%s2 + $0x14] sm:$0xf]
    %v8738 = vld [vmem:[%s2 + $0x18] sm:$0xf]
    %v8739 = vld [vmem:[%s2 + $0x1c] sm:$0xf]
    %v8740 = vld [vmem:[%s2 + $0x20] sm:$0xf]
    %v8741 = vld [vmem:[%s5] sm:$0x1]
    %v8743 = vlaneseq
    %v8744 = vshrl.u32 %v8743, 7
    %v8745 = vsub.s32 0, %v8744
    %v8746 = vrot.slane %v8741, %v8745
    %v8757 = vunpack.c.l.b16 %v8732
    %v8758 = vunpack.c.l.b16 %v8733
    %v8759 = vunpack.c.l.b16 %v8734
    %v8760 = vunpack.c.l.b16 %v8735
    %v8761 = vunpack.c.l.b16 %v8736
    %v8762 = vunpack.c.l.b16 %v8737
    %v8763 = vunpack.c.l.b16 %v8738
    %v8764 = vunpack.c.l.b16 %v8739
    %v8765 = vunpack.c.l.b16 %v8740
    %v8766 = vpack.c.b16 %v8758, %v8757
    %v8767 = vpack.c.b16 %v8760, %v8759
    %v8768 = vpack.c.b16 %v8762, %v8761
    %v8769 = vpack.c.b16 %v8764, %v8763
    %v8770 = vpack.c.b16 %v8765, %v8765
    %v8776 = vsel %vm4294, %v8700, 0
    %v8779 = vsel %vm4294, %v8701, 0
    %v8782 = vsel %vm4294, %v8702, 0
    %v8785 = vsel %vm4294, %v8703, 0
    %v8788 = vsel %vm4294, %v8704, 0
    %v8791 = vsel %vm4294, %v8705, 0
    %v8794 = vsel %vm4294, %v8706, 0
    %v8797 = vsel %vm4294, %v8707, 0
    %v8800 = vsel %vm4294, %v8708, 0
    %v8803 = vsel %vm4294, %v8709, 0
    %v8806 = vsel %vm4294, %v8710, 0
    %v8809 = vsel %vm4294, %v8711, 0
    %v8812 = vsel %vm4294, %v8712, 0
    %v8815 = vsel %vm4294, %v8713, 0
    %v8818 = vsel %vm4294, %v8714, 0
    %v8821 = vsel %vm4294, %v8715, 0
    %v8824 = vsel %vm4294, %v8716, 0
    %v8827 = vsel %vm4294, %v8717, 0
    %v8830 = vsel %vm4294, %v8718, 0
    %v8833 = vsel %vm4294, %v8719, 0
    %v8836 = vsel %vm4294, %v8720, 0
    %v8839 = vsel %vm4294, %v8721, 0
    %v8842 = vsel %vm4294, %v8722, 0
    %v8845 = vsel %vm4294, %v8723, 0
    %v8848 = vsel %vm4294, %v8724, 0
    %v8851 = vsel %vm4294, %v8725, 0
    %v8854 = vsel %vm4294, %v8726, 0
    %v8857 = vsel %vm4294, %v8727, 0
    %v8860 = vsel %vm4294, %v8728, 0
    %v8863 = vsel %vm4294, %v8729, 0
    %v8866 = vsel %vm4294, %v8730, 0
    %v8869 = vsel %vm4294, %v8731, 0
    %v8872 = vsel %vm4391, %v8770, 0
    %8874 = vmatprep.subr.bf16.mxu0 0
    %8875 = vmatpush1.bf16.msra.mxu0 %v8766
    %8876 = vmatprep.subr.bf16.mxu0 0
    %8877 = vmatpush1.bf16.msra.mxu0 %v8767
    %8878 = vmatprep.subr.bf16.mxu0 0
    %8879 = vmatpush1.bf16.msra.mxu0 %v8768
    %8880 = vmatprep.subr.bf16.mxu0 0
    %8881 = vmatpush1.bf16.msra.mxu0 %v8769
    %8882 = vmatprep.subr.bf16.mxu0 0
    %8883 = vmatpush1.bf16.msra.mxu0 %v8872
    %8884 = vmatprep.subr.bf16.mxu0 0
    %8885 = vmatpush1.bf16.msra.mxu0 0
    %8886 = vmatprep.subr.bf16.mxu0 0
    %8887 = vmatpush1.bf16.msra.mxu0 0
    %8888 = vmatprep.subr.bf16.mxu0 0
    %8889 = vmatpush1.bf16.msra.mxu0 0
    %8890 = vmatprep.subr.bf16.mxu0 0
    %8891 = vmatpush1.bf16.msra.mxu0 0
    %8892 = vmatprep.subr.bf16.mxu0 0
    %8893 = vmatpush1.bf16.msra.mxu0 0
    %8894 = vmatprep.subr.bf16.mxu0 0
    %8895 = vmatpush1.bf16.msra.mxu0 0
    %8896 = vmatprep.subr.bf16.mxu0 0
    %8897 = vmatpush1.bf16.msra.mxu0 0
    %8898 = vmatprep.subr.bf16.mxu0 0
    %8899 = vmatpush1.bf16.msra.mxu0 0
    %8900 = vmatprep.subr.bf16.mxu0 0
    %8901 = vmatpush1.bf16.msra.mxu0 0
    %8902 = vmatprep.subr.bf16.mxu0 0
    %8903 = vmatpush1.bf16.msra.mxu0 0
    %8904 = vmatprep.subr.bf16.mxu0 0
    %8905 = vmatpush1.bf16.msra.mxu0 0
    %8906 = vmatprep.mubr.bf16.mxu0 0
    %8907 = vmatmul.mubr.bf16.gmra.mrb[0].mxu0 %v8776
    %v8908 = vpop.f32.mrb[0].mxu0
    %v8909 = vadd.f32 %v8746, %v8908
    %v8910 = vpop.f32.mrb[0].mxu0
    %v8911 = vpop.f32.mrb[0].mxu0
    %v8912 = vadd.f32 %v8746, %v8911
    %v8913 = vpop.f32.mrb[0].mxu0
    %8914 = vmatprep.mubr.bf16.mxu0 0
    %8915 = vmatmul.mubr.bf16.gmra.mrb[0].mxu0 %v8779
    %v8916 = vpop.f32.mrb[0].mxu0
    %v8917 = vadd.f32 %v8746, %v8916
    %v8918 = vpop.f32.mrb[0].mxu0
    %v8919 = vpop.f32.mrb[0].mxu0
    %v8920 = vadd.f32 %v8746, %v8919
    %v8921 = vpop.f32.mrb[0].mxu0
    %8922 = vmatprep.mubr.bf16.mxu0 0
    %8923 = vmatmul.mubr.bf16.gmra.mrb[0].mxu0 %v8782
    %v8924 = vpop.f32.mrb[0].mxu0
    %v8925 = vadd.f32 %v8746, %v8924
    %v8926 = vpop.f32.mrb[0].mxu0
    %v8927 = vpop.f32.mrb[0].mxu0
    %v8928 = vadd.f32 %v8746, %v8927
    %v8929 = vpop.f32.mrb[0].mxu0
    %8930 = vmatprep.mubr.bf16.mxu0 0
    %8931 = vmatmul.mubr.bf16.gmra.mrb[0].mxu0 %v8785
    %v8932 = vpop.f32.mrb[0].mxu0
    %v8933 = vadd.f32 %v8746, %v8932
    %v8934 = vpop.f32.mrb[0].mxu0
    %v8935 = vpop.f32.mrb[0].mxu0
    %v8936 = vadd.f32 %v8746, %v8935
    %v8937 = vpop.f32.mrb[0].mxu0
    %8938 = vmatprep.mubr.bf16.mxu0 0
    %8939 = vmatmul.mubr.bf16.gmra.mrb[0].mxu0 %v8788
    %v8940 = vpop.f32.mrb[0].mxu0
    %v8941 = vadd.f32 %v8746, %v8940
    %v8942 = vpop.f32.mrb[0].mxu0
    %v8943 = vpop.f32.mrb[0].mxu0
    %v8944 = vadd.f32 %v8746, %v8943
    %v8945 = vpop.f32.mrb[0].mxu0
    %8946 = vmatprep.mubr.bf16.mxu0 0
    %8947 = vmatmul.mubr.bf16.gmra.mrb[0].mxu0 %v8791
    %v8948 = vpop.f32.mrb[0].mxu0
    %v8949 = vadd.f32 %v8746, %v8948
    %v8950 = vpop.f32.mrb[0].mxu0
    %v8951 = vpop.f32.mrb[0].mxu0
    %v8952 = vadd.f32 %v8746, %v8951
    %v8953 = vpop.f32.mrb[0].mxu0
    %8954 = vmatprep.mubr.bf16.mxu0 0
    %8955 = vmatmul.mubr.bf16.gmra.mrb[0].mxu0 %v8794
    %v8956 = vpop.f32.mrb[0].mxu0
    %v8957 = vadd.f32 %v8746, %v8956
    %v8958 = vpop.f32.mrb[0].mxu0
    %v8959 = vpop.f32.mrb[0].mxu0
    %v8960 = vadd.f32 %v8746, %v8959
    %v8961 = vpop.f32.mrb[0].mxu0
    %8962 = vmatprep.mubr.bf16.mxu0 0
    %8963 = vmatmul.mubr.bf16.gmra.mrb[0].mxu0 %v8797
    %v8964 = vpop.f32.mrb[0].mxu0
    %v8965 = vadd.f32 %v8746, %v8964
    %v8966 = vpop.f32.mrb[0].mxu0
    %v8967 = vpop.f32.mrb[0].mxu0
    %v8968 = vadd.f32 %v8746, %v8967
    %v8969 = vpop.f32.mrb[0].mxu0
    %8970 = vmatprep.mubr.bf16.mxu0 0
    %8971 = vmatmul.mubr.bf16.gmra.mrb[0].mxu0 %v8800
    %v8972 = vpop.f32.mrb[0].mxu0
    %v8973 = vadd.f32 %v8746, %v8972
    %v8974 = vpop.f32.mrb[0].mxu0
    %v8975 = vpop.f32.mrb[0].mxu0
    %v8976 = vadd.f32 %v8746, %v8975
    %v8977 = vpop.f32.mrb[0].mxu0
    %8978 = vmatprep.mubr.bf16.mxu0 0
    %8979 = vmatmul.mubr.bf16.gmra.mrb[0].mxu0 %v8803
    %v8980 = vpop.f32.mrb[0].mxu0
    %v8981 = vadd.f32 %v8746, %v8980
    %v8982 = vpop.f32.mrb[0].mxu0
    %v8983 = vpop.f32.mrb[0].mxu0
    %v8984 = vadd.f32 %v8746, %v8983
    %v8985 = vpop.f32.mrb[0].mxu0
    %8986 = vmatprep.mubr.bf16.mxu0 0
    %8987 = vmatmul.mubr.bf16.gmra.mrb[0].mxu0 %v8806
    %v8988 = vpop.f32.mrb[0].mxu0
    %v8989 = vadd.f32 %v8746, %v8988
    %v8990 = vpop.f32.mrb[0].mxu0
    %v8991 = vpop.f32.mrb[0].mxu0
    %v8992 = vadd.f32 %v8746, %v8991
    %v8993 = vpop.f32.mrb[0].mxu0
    %8994 = vmatprep.mubr.bf16.mxu0 0
    %8995 = vmatmul.mubr.bf16.gmra.mrb[0].mxu0 %v8809
    %v8996 = vpop.f32.mrb[0].mxu0
    %v8997 = vadd.f32 %v8746, %v8996
    %v8998 = vpop.f32.mrb[0].mxu0
    %v8999 = vpop.f32.mrb[0].mxu0
    %v9000 = vadd.f32 %v8746, %v8999
    %v9001 = vpop.f32.mrb[0].mxu0
    %9002 = vmatprep.mubr.bf16.mxu0 0
    %9003 = vmatmul.mubr.bf16.gmra.mrb[0].mxu0 %v8812
    %v9004 = vpop.f32.mrb[0].mxu0
    %v9005 = vadd.f32 %v8746, %v9004
    %v9006 = vpop.f32.mrb[0].mxu0
    %v9007 = vpop.f32.mrb[0].mxu0
    %v9008 = vadd.f32 %v8746, %v9007
    %v9009 = vpop.f32.mrb[0].mxu0
    %9010 = vmatprep.mubr.bf16.mxu0 0
    %9011 = vmatmul.mubr.bf16.gmra.mrb[0].mxu0 %v8815
    %v9012 = vpop.f32.mrb[0].mxu0
    %v9013 = vadd.f32 %v8746, %v9012
    %v9014 = vpop.f32.mrb[0].mxu0
    %v9015 = vpop.f32.mrb[0].mxu0
    %v9016 = vadd.f32 %v8746, %v9015
    %v9017 = vpop.f32.mrb[0].mxu0
    %9018 = vmatprep.mubr.bf16.mxu0 0
    %9019 = vmatmul.mubr.bf16.gmra.mrb[0].mxu0 %v8818
    %v9020 = vpop.f32.mrb[0].mxu0
    %v9021 = vadd.f32 %v8746, %v9020
    %v9022 = vpop.f32.mrb[0].mxu0
    %v9023 = vpop.f32.mrb[0].mxu0
    %v9024 = vadd.f32 %v8746, %v9023
    %v9025 = vpop.f32.mrb[0].mxu0
    %9026 = vmatprep.mubr.bf16.mxu0 0
    %9027 = vmatmul.mubr.bf16.gmra.mrb[0].mxu0 %v8821
    %v9028 = vpop.f32.mrb[0].mxu0
    %v9029 = vadd.f32 %v8746, %v9028
    %v9030 = vpop.f32.mrb[0].mxu0
    %v9031 = vpop.f32.mrb[0].mxu0
    %v9032 = vadd.f32 %v8746, %v9031
    %v9033 = vpop.f32.mrb[0].mxu0
    %9034 = vmatprep.mubr.bf16.mxu0 0
    %9035 = vmatmul.mubr.bf16.gmra.mrb[0].mxu0 %v8824
    %v9036 = vpop.f32.mrb[0].mxu0
    %v9037 = vadd.f32 %v8746, %v9036
    %v9038 = vpop.f32.mrb[0].mxu0
    %v9039 = vpop.f32.mrb[0].mxu0
    %v9040 = vadd.f32 %v8746, %v9039
    %v9041 = vpop.f32.mrb[0].mxu0
    %9042 = vmatprep.mubr.bf16.mxu0 0
    %9043 = vmatmul.mubr.bf16.gmra.mrb[0].mxu0 %v8827
    %v9044 = vpop.f32.mrb[0].mxu0
    %v9045 = vadd.f32 %v8746, %v9044
    %v9046 = vpop.f32.mrb[0].mxu0
    %v9047 = vpop.f32.mrb[0].mxu0
    %v9048 = vadd.f32 %v8746, %v9047
    %v9049 = vpop.f32.mrb[0].mxu0
    %9050 = vmatprep.mubr.bf16.mxu0 0
    %9051 = vmatmul.mubr.bf16.gmra.mrb[0].mxu0 %v8830
    %v9052 = vpop.f32.mrb[0].mxu0
    %v9053 = vadd.f32 %v8746, %v9052
    %v9054 = vpop.f32.mrb[0].mxu0
    %v9055 = vpop.f32.mrb[0].mxu0
    %v9056 = vadd.f32 %v8746, %v9055
    %v9057 = vpop.f32.mrb[0].mxu0
    %9058 = vmatprep.mubr.bf16.mxu0 0
    %9059 = vmatmul.mubr.bf16.gmra.mrb[0].mxu0 %v8833
    %v9060 = vpop.f32.mrb[0].mxu0
    %v9061 = vadd.f32 %v8746, %v9060
    %v9062 = vpop.f32.mrb[0].mxu0
    %v9063 = vpop.f32.mrb[0].mxu0
    %v9064 = vadd.f32 %v8746, %v9063
    %v9065 = vpop.f32.mrb[0].mxu0
    %9066 = vmatprep.mubr.bf16.mxu0 0
    %9067 = vmatmul.mubr.bf16.gmra.mrb[0].mxu0 %v8836
    %v9068 = vpop.f32.mrb[0].mxu0
    %v9069 = vadd.f32 %v8746, %v9068
    %v9070 = vpop.f32.mrb[0].mxu0
    %v9071 = vpop.f32.mrb[0].mxu0
    %v9072 = vadd.f32 %v8746, %v9071
    %v9073 = vpop.f32.mrb[0].mxu0
    %9074 = vmatprep.mubr.bf16.mxu0 0
    %9075 = vmatmul.mubr.bf16.gmra.mrb[0].mxu0 %v8839
    %v9076 = vpop.f32.mrb[0].mxu0
    %v9077 = vadd.f32 %v8746, %v9076
    %v9078 = vpop.f32.mrb[0].mxu0
    %v9079 = vpop.f32.mrb[0].mxu0
    %v9080 = vadd.f32 %v8746, %v9079
    %v9081 = vpop.f32.mrb[0].mxu0
    %9082 = vmatprep.mubr.bf16.mxu0 0
    %9083 = vmatmul.mubr.bf16.gmra.mrb[0].mxu0 %v8842
    %v9084 = vpop.f32.mrb[0].mxu0
    %v9085 = vadd.f32 %v8746, %v9084
    %v9086 = vpop.f32.mrb[0].mxu0
    %v9087 = vpop.f32.mrb[0].mxu0
    %v9088 = vadd.f32 %v8746, %v9087
    %v9089 = vpop.f32.mrb[0].mxu0
    %9090 = vmatprep.mubr.bf16.mxu0 0
    %9091 = vmatmul.mubr.bf16.gmra.mrb[0].mxu0 %v8845
    %v9092 = vpop.f32.mrb[0].mxu0
    %v9093 = vadd.f32 %v8746, %v9092
    %v9094 = vpop.f32.mrb[0].mxu0
    %v9095 = vpop.f32.mrb[0].mxu0
    %v9096 = vadd.f32 %v8746, %v9095
    %v9097 = vpop.f32.mrb[0].mxu0
    %9098 = vmatprep.mubr.bf16.mxu0 0
    %9099 = vmatmul.mubr.bf16.gmra.mrb[0].mxu0 %v8848
    %v9100 = vpop.f32.mrb[0].mxu0
    %v9101 = vadd.f32 %v8746, %v9100
    %v9102 = vpop.f32.mrb[0].mxu0
    %v9103 = vpop.f32.mrb[0].mxu0
    %v9104 = vadd.f32 %v8746, %v9103
    %v9105 = vpop.f32.mrb[0].mxu0
    %9106 = vmatprep.mubr.bf16.mxu0 0
    %9107 = vmatmul.mubr.bf16.gmra.mrb[0].mxu0 %v8851
    %v9108 = vpop.f32.mrb[0].mxu0
    %v9109 = vadd.f32 %v8746, %v9108
    %v9110 = vpop.f32.mrb[0].mxu0
    %v9111 = vpop.f32.mrb[0].mxu0
    %v9112 = vadd.f32 %v8746, %v9111
    %v9113 = vpop.f32.mrb[0].mxu0
    %9114 = vmatprep.mubr.bf16.mxu0 0
    %9115 = vmatmul.mubr.bf16.gmra.mrb[0].mxu0 %v8854
    %v9116 = vpop.f32.mrb[0].mxu0
    %v9117 = vadd.f32 %v8746, %v9116
    %v9118 = vpop.f32.mrb[0].mxu0
    %v9119 = vpop.f32.mrb[0].mxu0
    %v9120 = vadd.f32 %v8746, %v9119
    %v9121 = vpop.f32.mrb[0].mxu0
    %9122 = vmatprep.mubr.bf16.mxu0 0
    %9123 = vmatmul.mubr.bf16.gmra.mrb[0].mxu0 %v8857
    %v9124 = vpop.f32.mrb[0].mxu0
    %v9125 = vadd.f32 %v8746, %v9124
    %v9126 = vpop.f32.mrb[0].mxu0
    %v9127 = vpop.f32.mrb[0].mxu0
    %v9128 = vadd.f32 %v8746, %v9127
    %v9129 = vpop.f32.mrb[0].mxu0
    %9130 = vmatprep.mubr.bf16.mxu0 0
    %9131 = vmatmul.mubr.bf16.gmra.mrb[0].mxu0 %v8860
    %v9132 = vpop.f32.mrb[0].mxu0
    %v9133 = vadd.f32 %v8746, %v9132
    %v9134 = vpop.f32.mrb[0].mxu0
    %v9135 = vpop.f32.mrb[0].mxu0
    %v9136 = vadd.f32 %v8746, %v9135
    %v9137 = vpop.f32.mrb[0].mxu0
    %9138 = vmatprep.mubr.bf16.mxu0 0
    %9139 = vmatmul.mubr.bf16.gmra.mrb[0].mxu0 %v8863
    %v9140 = vpop.f32.mrb[0].mxu0
    %v9141 = vadd.f32 %v8746, %v9140
    %v9142 = vpop.f32.mrb[0].mxu0
    %v9143 = vpop.f32.mrb[0].mxu0
    %v9144 = vadd.f32 %v8746, %v9143
    %v9145 = vpop.f32.mrb[0].mxu0
    %9146 = vmatprep.mubr.bf16.mxu0 0
    %9147 = vmatmul.mubr.bf16.gmra.mrb[0].mxu0 %v8866
    %v9148 = vpop.f32.mrb[0].mxu0
    %v9149 = vadd.f32 %v8746, %v9148
    %v9150 = vpop.f32.mrb[0].mxu0
    %v9151 = vpop.f32.mrb[0].mxu0
    %v9152 = vadd.f32 %v8746, %v9151
    %v9153 = vpop.f32.mrb[0].mxu0
    %9154 = vmatprep.mubr.bf16.mxu0 0
    %9155 = vmatmul.mubr.bf16.gmra.mrb[0].mxu0 %v8869
    %v9156 = vpop.f32.mrb[0].mxu0
    %v9157 = vadd.f32 %v8746, %v9156
    %v9158 = vpop.f32.mrb[0].mxu0
    %v9159 = vpop.f32.mrb[0].mxu0
    %v9160 = vadd.f32 %v8746, %v9159
    %v9161 = vpop.f32.mrb[0].mxu0
    %9162 = vdwg.mxu0
    %v9163 = vmul.f32 %v4684, 0.2
    %v9164 = vmul.f32 %v4685, 0.2
    %v9165 = vmul.f32 %v4686, 0.2
    %v9166 = vmul.f32 %v4687, 0.2
    %v9167 = vmul.f32 %v4688, 0.2
    %v9168 = vmul.f32 %v4689, 0.2
    %v9169 = vmul.f32 %v4690, 0.2
    %v9170 = vmul.f32 %v4691, 0.2
    %v9171 = vmul.f32 %v4692, 0.2
    %v9172 = vmul.f32 %v4693, 0.2
    %v9173 = vmul.f32 %v4694, 0.2
    %v9174 = vmul.f32 %v4695, 0.2
    %v9175 = vmul.f32 %v4696, 0.2
    %v9176 = vmul.f32 %v4697, 0.2
    %v9177 = vmul.f32 %v4698, 0.2
    %v9178 = vmul.f32 %v4699, 0.2
    %v9179 = vmul.f32 %v4700, 0.2
    %v9180 = vmul.f32 %v4701, 0.2
    %v9181 = vmul.f32 %v4702, 0.2
    %v9182 = vmul.f32 %v4703, 0.2
    %v9183 = vmul.f32 %v4704, 0.2
    %v9184 = vmul.f32 %v4705, 0.2
    %v9185 = vmul.f32 %v4706, 0.2
    %v9186 = vmul.f32 %v4707, 0.2
    %v9187 = vmul.f32 %v4708, 0.2
    %v9188 = vmul.f32 %v4709, 0.2
    %v9189 = vmul.f32 %v4710, 0.2
    %v9190 = vmul.f32 %v4711, 0.2
    %v9191 = vmul.f32 %v4712, 0.2
    %v9192 = vmul.f32 %v4713, 0.2
    %v9193 = vmul.f32 %v4714, 0.2
    %v9194 = vmul.f32 %v4715, 0.2
    %v9195 = vmul.f32 %v4716, 0.2
    %v9196 = vmul.f32 %v4717, 0.2
    %v9197 = vmul.f32 %v4718, 0.2
    %v9198 = vmul.f32 %v4719, 0.2
    %v9199 = vmul.f32 %v4720, 0.2
    %v9200 = vmul.f32 %v4721, 0.2
    %v9201 = vmul.f32 %v4722, 0.2
    %v9202 = vmul.f32 %v4723, 0.2
    %v9203 = vmul.f32 %v4724, 0.2
    %v9204 = vmul.f32 %v4725, 0.2
    %v9205 = vmul.f32 %v4726, 0.2
    %v9206 = vmul.f32 %v4727, 0.2
    %v9207 = vmul.f32 %v4728, 0.2
    %v9208 = vmul.f32 %v4729, 0.2
    %v9209 = vmul.f32 %v4730, 0.2
    %v9210 = vmul.f32 %v4731, 0.2
    %v9211 = vmul.f32 %v4732, 0.2
    %v9212 = vmul.f32 %v4733, 0.2
    %v9213 = vmul.f32 %v4734, 0.2
    %v9214 = vmul.f32 %v4735, 0.2
    %v9215 = vmul.f32 %v4736, 0.2
    %v9216 = vmul.f32 %v4737, 0.2
    %v9217 = vmul.f32 %v4738, 0.2
    %v9218 = vmul.f32 %v4739, 0.2
    %v9219 = vmul.f32 %v4740, 0.2
    %v9220 = vmul.f32 %v4741, 0.2
    %v9221 = vmul.f32 %v4742, 0.2
    %v9222 = vmul.f32 %v4743, 0.2
    %v9223 = vmul.f32 %v4744, 0.2
    %v9224 = vmul.f32 %v4745, 0.2
    %v9225 = vmul.f32 %v4746, 0.2
    %v9226 = vmul.f32 %v4747, 0.2
    %v9227 = vadd.f32 %v9163, %v8909
    %v9228 = vadd.f32 %v9164, %v8912
    %v9229 = vadd.f32 %v9165, %v8917
    %v9230 = vadd.f32 %v9166, %v8920
    %v9231 = vadd.f32 %v9167, %v8925
    %v9232 = vadd.f32 %v9168, %v8928
    %v9233 = vadd.f32 %v9169, %v8933
    %v9234 = vadd.f32 %v9170, %v8936
    %v9235 = vadd.f32 %v9171, %v8941
    %v9236 = vadd.f32 %v9172, %v8944
    %v9237 = vadd.f32 %v9173, %v8949
    %v9238 = vadd.f32 %v9174, %v8952
    %v9239 = vadd.f32 %v9175, %v8957
    %v9240 = vadd.f32 %v9176, %v8960
    %v9241 = vadd.f32 %v9177, %v8965
    %v9242 = vadd.f32 %v9178, %v8968
    %v9243 = vadd.f32 %v9179, %v8973
    %v9244 = vadd.f32 %v9180, %v8976
    %v9245 = vadd.f32 %v9181, %v8981
    %v9246 = vadd.f32 %v9182, %v8984
    %v9247 = vadd.f32 %v9183, %v8989
    %v9248 = vadd.f32 %v9184, %v8992
    %v9249 = vadd.f32 %v9185, %v8997
    %v9250 = vadd.f32 %v9186, %v9000
    %v9251 = vadd.f32 %v9187, %v9005
    %v9252 = vadd.f32 %v9188, %v9008
    %v9253 = vadd.f32 %v9189, %v9013
    %v9254 = vadd.f32 %v9190, %v9016
    %v9255 = vadd.f32 %v9191, %v9021
    %v9256 = vadd.f32 %v9192, %v9024
    %v9257 = vadd.f32 %v9193, %v9029
    %v9258 = vadd.f32 %v9194, %v9032
    %v9259 = vadd.f32 %v9195, %v9037
    %v9260 = vadd.f32 %v9196, %v9040
    %v9261 = vadd.f32 %v9197, %v9045
    %v9262 = vadd.f32 %v9198, %v9048
    %v9263 = vadd.f32 %v9199, %v9053
    %v9264 = vadd.f32 %v9200, %v9056
    %v9265 = vadd.f32 %v9201, %v9061
    %v9266 = vadd.f32 %v9202, %v9064
    %v9267 = vadd.f32 %v9203, %v9069
    %v9268 = vadd.f32 %v9204, %v9072
    %v9269 = vadd.f32 %v9205, %v9077
    %v9270 = vadd.f32 %v9206, %v9080
    %v9271 = vadd.f32 %v9207, %v9085
    %v9272 = vadd.f32 %v9208, %v9088
    %v9273 = vadd.f32 %v9209, %v9093
    %v9274 = vadd.f32 %v9210, %v9096
    %v9275 = vadd.f32 %v9211, %v9101
    %v9276 = vadd.f32 %v9212, %v9104
    %v9277 = vadd.f32 %v9213, %v9109
    %v9278 = vadd.f32 %v9214, %v9112
    %v9279 = vadd.f32 %v9215, %v9117
    %v9280 = vadd.f32 %v9216, %v9120
    %v9281 = vadd.f32 %v9217, %v9125
    %v9282 = vadd.f32 %v9218, %v9128
    %v9283 = vadd.f32 %v9219, %v9133
    %v9284 = vadd.f32 %v9220, %v9136
    %v9285 = vadd.f32 %v9221, %v9141
    %v9286 = vadd.f32 %v9222, %v9144
    %v9287 = vadd.f32 %v9223, %v9149
    %v9288 = vadd.f32 %v9224, %v9152
    %v9289 = vadd.f32 %v9225, %v9157
    %v9290 = vadd.f32 %v9226, %v9160
    %v9291 = vsub.f32 %v9227, %v4876
    %v9292 = vsub.f32 %v9228, %v4877
    %v9293 = vsub.f32 %v9229, %v4878
    %v9294 = vsub.f32 %v9230, %v4879
    %v9295 = vsub.f32 %v9231, %v4880
    %v9296 = vsub.f32 %v9232, %v4881
    %v9297 = vsub.f32 %v9233, %v4882
    %v9298 = vsub.f32 %v9234, %v4883
    %v9299 = vsub.f32 %v9235, %v4884
    %v9300 = vsub.f32 %v9236, %v4885
    %v9301 = vsub.f32 %v9237, %v4886
    %v9302 = vsub.f32 %v9238, %v4887
    %v9303 = vsub.f32 %v9239, %v4888
    %v9304 = vsub.f32 %v9240, %v4889
    %v9305 = vsub.f32 %v9241, %v4890
    %v9306 = vsub.f32 %v9242, %v4891
    %v9307 = vsub.f32 %v9243, %v4892
    %v9308 = vsub.f32 %v9244, %v4893
    %v9309 = vsub.f32 %v9245, %v4894
    %v9310 = vsub.f32 %v9246, %v4895
    %v9311 = vsub.f32 %v9247, %v4896
    %v9312 = vsub.f32 %v9248, %v4897
    %v9313 = vsub.f32 %v9249, %v4898
    %v9314 = vsub.f32 %v9250, %v4899
    %v9315 = vsub.f32 %v9251, %v4900
    %v9316 = vsub.f32 %v9252, %v4901
    %v9317 = vsub.f32 %v9253, %v4902
    %v9318 = vsub.f32 %v9254, %v4903
    %v9319 = vsub.f32 %v9255, %v4904
    %v9320 = vsub.f32 %v9256, %v4905
    %v9321 = vsub.f32 %v9257, %v4906
    %v9322 = vsub.f32 %v9258, %v4907
    %v9323 = vsub.f32 %v9259, %v4908
    %v9324 = vsub.f32 %v9260, %v4909
    %v9325 = vsub.f32 %v9261, %v4910
    %v9326 = vsub.f32 %v9262, %v4911
    %v9327 = vsub.f32 %v9263, %v4912
    %v9328 = vsub.f32 %v9264, %v4913
    %v9329 = vsub.f32 %v9265, %v4914
    %v9330 = vsub.f32 %v9266, %v4915
    %v9331 = vsub.f32 %v9267, %v4916
    %v9332 = vsub.f32 %v9268, %v4917
    %v9333 = vsub.f32 %v9269, %v4918
    %v9334 = vsub.f32 %v9270, %v4919
    %v9335 = vsub.f32 %v9271, %v4920
    %v9336 = vsub.f32 %v9272, %v4921
    %v9337 = vsub.f32 %v9273, %v4922
    %v9338 = vsub.f32 %v9274, %v4923
    %v9339 = vsub.f32 %v9275, %v4924
    %v9340 = vsub.f32 %v9276, %v4925
    %v9341 = vsub.f32 %v9277, %v4926
    %v9342 = vsub.f32 %v9278, %v4927
    %v9343 = vsub.f32 %v9279, %v4928
    %v9344 = vsub.f32 %v9280, %v4929
    %v9345 = vsub.f32 %v9281, %v4930
    %v9346 = vsub.f32 %v9282, %v4931
    %v9347 = vsub.f32 %v9283, %v4932
    %v9348 = vsub.f32 %v9284, %v4933
    %v9349 = vsub.f32 %v9285, %v4934
    %v9350 = vsub.f32 %v9286, %v4935
    %v9351 = vsub.f32 %v9287, %v4936
    %v9352 = vsub.f32 %v9288, %v4937
    %v9353 = vsub.f32 %v9289, %v4938
    %v9354 = vsub.f32 %v9290, %v4939
    %vm9355 = vcmp.gt.f32.partialorder %v9291, 1.0
    %vm9356 = vcmp.gt.f32.partialorder %v9292, 1.0
    %vm9357 = vcmp.gt.f32.partialorder %v9293, 1.0
    %vm9358 = vcmp.gt.f32.partialorder %v9294, 1.0
    %vm9359 = vcmp.gt.f32.partialorder %v9295, 1.0
    %vm9360 = vcmp.gt.f32.partialorder %v9296, 1.0
    %vm9361 = vcmp.gt.f32.partialorder %v9297, 1.0
    %vm9362 = vcmp.gt.f32.partialorder %v9298, 1.0
    %vm9363 = vcmp.gt.f32.partialorder %v9299, 1.0
    %vm9364 = vcmp.gt.f32.partialorder %v9300, 1.0
    %vm9365 = vcmp.gt.f32.partialorder %v9301, 1.0
    %vm9366 = vcmp.gt.f32.partialorder %v9302, 1.0
    %vm9367 = vcmp.gt.f32.partialorder %v9303, 1.0
    %vm9368 = vcmp.gt.f32.partialorder %v9304, 1.0
    %vm9369 = vcmp.gt.f32.partialorder %v9305, 1.0
    %vm9370 = vcmp.gt.f32.partialorder %v9306, 1.0
    %vm9371 = vcmp.gt.f32.partialorder %v9307, 1.0
    %vm9372 = vcmp.gt.f32.partialorder %v9308, 1.0
    %vm9373 = vcmp.gt.f32.partialorder %v9309, 1.0
    %vm9374 = vcmp.gt.f32.partialorder %v9310, 1.0
    %vm9375 = vcmp.gt.f32.partialorder %v9311, 1.0
    %vm9376 = vcmp.gt.f32.partialorder %v9312, 1.0
    %vm9377 = vcmp.gt.f32.partialorder %v9313, 1.0
    %vm9378 = vcmp.gt.f32.partialorder %v9314, 1.0
    %vm9379 = vcmp.gt.f32.partialorder %v9315, 1.0
    %vm9380 = vcmp.gt.f32.partialorder %v9316, 1.0
    %vm9381 = vcmp.gt.f32.partialorder %v9317, 1.0
    %vm9382 = vcmp.gt.f32.partialorder %v9318, 1.0
    %vm9383 = vcmp.gt.f32.partialorder %v9319, 1.0
    %vm9384 = vcmp.gt.f32.partialorder %v9320, 1.0
    %vm9385 = vcmp.gt.f32.partialorder %v9321, 1.0
    %vm9386 = vcmp.gt.f32.partialorder %v9322, 1.0
    %vm9387 = vcmp.gt.f32.partialorder %v9323, 1.0
    %vm9388 = vcmp.gt.f32.partialorder %v9324, 1.0
    %vm9389 = vcmp.gt.f32.partialorder %v9325, 1.0
    %vm9390 = vcmp.gt.f32.partialorder %v9326, 1.0
    %vm9391 = vcmp.gt.f32.partialorder %v9327, 1.0
    %vm9392 = vcmp.gt.f32.partialorder %v9328, 1.0
    %vm9393 = vcmp.gt.f32.partialorder %v9329, 1.0
    %vm9394 = vcmp.gt.f32.partialorder %v9330, 1.0
    %vm9395 = vcmp.gt.f32.partialorder %v9331, 1.0
    %vm9396 = vcmp.gt.f32.partialorder %v9332, 1.0
    %vm9397 = vcmp.gt.f32.partialorder %v9333, 1.0
    %vm9398 = vcmp.gt.f32.partialorder %v9334, 1.0
    %vm9399 = vcmp.gt.f32.partialorder %v9335, 1.0
    %vm9400 = vcmp.gt.f32.partialorder %v9336, 1.0
    %vm9401 = vcmp.gt.f32.partialorder %v9337, 1.0
    %vm9402 = vcmp.gt.f32.partialorder %v9338, 1.0
    %vm9403 = vcmp.gt.f32.partialorder %v9339, 1.0
    %vm9404 = vcmp.gt.f32.partialorder %v9340, 1.0
    %vm9405 = vcmp.gt.f32.partialorder %v9341, 1.0
    %vm9406 = vcmp.gt.f32.partialorder %v9342, 1.0
    %vm9407 = vcmp.gt.f32.partialorder %v9343, 1.0
    %vm9408 = vcmp.gt.f32.partialorder %v9344, 1.0
    %vm9409 = vcmp.gt.f32.partialorder %v9345, 1.0
    %vm9410 = vcmp.gt.f32.partialorder %v9346, 1.0
    %vm9411 = vcmp.gt.f32.partialorder %v9347, 1.0
    %vm9412 = vcmp.gt.f32.partialorder %v9348, 1.0
    %vm9413 = vcmp.gt.f32.partialorder %v9349, 1.0
    %vm9414 = vcmp.gt.f32.partialorder %v9350, 1.0
    %vm9415 = vcmp.gt.f32.partialorder %v9351, 1.0
    %vm9416 = vcmp.gt.f32.partialorder %v9352, 1.0
    %vm9417 = vcmp.gt.f32.partialorder %v9353, 1.0
    %vm9418 = vcmp.gt.f32.partialorder %v9354, 1.0
    %v9419 = vsel %vm9355, 1, 0
    %v9420 = vsel %vm9356, 1, 0
    %v9421 = vsel %vm9357, 1, 0
    %v9422 = vsel %vm9358, 1, 0
    %v9423 = vsel %vm9359, 1, 0
    %v9424 = vsel %vm9360, 1, 0
    %v9425 = vsel %vm9361, 1, 0
    %v9426 = vsel %vm9362, 1, 0
    %v9427 = vsel %vm9363, 1, 0
    %v9428 = vsel %vm9364, 1, 0
    %v9429 = vsel %vm9365, 1, 0
    %v9430 = vsel %vm9366, 1, 0
    %v9431 = vsel %vm9367, 1, 0
    %v9432 = vsel %vm9368, 1, 0
    %v9433 = vsel %vm9369, 1, 0
    %v9434 = vsel %vm9370, 1, 0
    %v9435 = vsel %vm9371, 1, 0
    %v9436 = vsel %vm9372, 1, 0
    %v9437 = vsel %vm9373, 1, 0
    %v9438 = vsel %vm9374, 1, 0
    %v9439 = vsel %vm9375, 1, 0
    %v9440 = vsel %vm9376, 1, 0
    %v9441 = vsel %vm9377, 1, 0
    %v9442 = vsel %vm9378, 1, 0
    %v9443 = vsel %vm9379, 1, 0
    %v9444 = vsel %vm9380, 1, 0
    %v9445 = vsel %vm9381, 1, 0
    %v9446 = vsel %vm9382, 1, 0
    %v9447 = vsel %vm9383, 1, 0
    %v9448 = vsel %vm9384, 1, 0
    %v9449 = vsel %vm9385, 1, 0
    %v9450 = vsel %vm9386, 1, 0
    %v9451 = vsel %vm9387, 1, 0
    %v9452 = vsel %vm9388, 1, 0
    %v9453 = vsel %vm9389, 1, 0
    %v9454 = vsel %vm9390, 1, 0
    %v9455 = vsel %vm9391, 1, 0
    %v9456 = vsel %vm9392, 1, 0
    %v9457 = vsel %vm9393, 1, 0
    %v9458 = vsel %vm9394, 1, 0
    %v9459 = vsel %vm9395, 1, 0
    %v9460 = vsel %vm9396, 1, 0
    %v9461 = vsel %vm9397, 1, 0
    %v9462 = vsel %vm9398, 1, 0
    %v9463 = vsel %vm9399, 1, 0
    %v9464 = vsel %vm9400, 1, 0
    %v9465 = vsel %vm9401, 1, 0
    %v9466 = vsel %vm9402, 1, 0
    %v9467 = vsel %vm9403, 1, 0
    %v9468 = vsel %vm9404, 1, 0
    %v9469 = vsel %vm9405, 1, 0
    %v9470 = vsel %vm9406, 1, 0
    %v9471 = vsel %vm9407, 1, 0
    %v9472 = vsel %vm9408, 1, 0
    %v9473 = vsel %vm9409, 1, 0
    %v9474 = vsel %vm9410, 1, 0
    %v9475 = vsel %vm9411, 1, 0
    %v9476 = vsel %vm9412, 1, 0
    %v9477 = vsel %vm9413, 1, 0
    %v9478 = vsel %vm9414, 1, 0
    %v9479 = vsel %vm9415, 1, 0
    %v9480 = vsel %vm9416, 1, 0
    %v9481 = vsel %vm9417, 1, 0
    %v9482 = vsel %vm9418, 1, 0
    %v9483 = vcvt.s32.f32 %v9419
    %v9484 = vcvt.s32.f32 %v9420
    %v9485 = vcvt.s32.f32 %v9421
    %v9486 = vcvt.s32.f32 %v9422
    %v9487 = vcvt.s32.f32 %v9423
    %v9488 = vcvt.s32.f32 %v9424
    %v9489 = vcvt.s32.f32 %v9425
    %v9490 = vcvt.s32.f32 %v9426
    %v9491 = vcvt.s32.f32 %v9427
    %v9492 = vcvt.s32.f32 %v9428
    %v9493 = vcvt.s32.f32 %v9429
    %v9494 = vcvt.s32.f32 %v9430
    %v9495 = vcvt.s32.f32 %v9431
    %v9496 = vcvt.s32.f32 %v9432
    %v9497 = vcvt.s32.f32 %v9433
    %v9498 = vcvt.s32.f32 %v9434
    %v9499 = vcvt.s32.f32 %v9435
    %v9500 = vcvt.s32.f32 %v9436
    %v9501 = vcvt.s32.f32 %v9437
    %v9502 = vcvt.s32.f32 %v9438
    %v9503 = vcvt.s32.f32 %v9439
    %v9504 = vcvt.s32.f32 %v9440
    %v9505 = vcvt.s32.f32 %v9441
    %v9506 = vcvt.s32.f32 %v9442
    %v9507 = vcvt.s32.f32 %v9443
    %v9508 = vcvt.s32.f32 %v9444
    %v9509 = vcvt.s32.f32 %v9445
    %v9510 = vcvt.s32.f32 %v9446
    %v9511 = vcvt.s32.f32 %v9447
    %v9512 = vcvt.s32.f32 %v9448
    %v9513 = vcvt.s32.f32 %v9449
    %v9514 = vcvt.s32.f32 %v9450
    %v9515 = vcvt.s32.f32 %v9451
    %v9516 = vcvt.s32.f32 %v9452
    %v9517 = vcvt.s32.f32 %v9453
    %v9518 = vcvt.s32.f32 %v9454
    %v9519 = vcvt.s32.f32 %v9455
    %v9520 = vcvt.s32.f32 %v9456
    %v9521 = vcvt.s32.f32 %v9457
    %v9522 = vcvt.s32.f32 %v9458
    %v9523 = vcvt.s32.f32 %v9459
    %v9524 = vcvt.s32.f32 %v9460
    %v9525 = vcvt.s32.f32 %v9461
    %v9526 = vcvt.s32.f32 %v9462
    %v9527 = vcvt.s32.f32 %v9463
    %v9528 = vcvt.s32.f32 %v9464
    %v9529 = vcvt.s32.f32 %v9465
    %v9530 = vcvt.s32.f32 %v9466
    %v9531 = vcvt.s32.f32 %v9467
    %v9532 = vcvt.s32.f32 %v9468
    %v9533 = vcvt.s32.f32 %v9469
    %v9534 = vcvt.s32.f32 %v9470
    %v9535 = vcvt.s32.f32 %v9471
    %v9536 = vcvt.s32.f32 %v9472
    %v9537 = vcvt.s32.f32 %v9473
    %v9538 = vcvt.s32.f32 %v9474
    %v9539 = vcvt.s32.f32 %v9475
    %v9540 = vcvt.s32.f32 %v9476
    %v9541 = vcvt.s32.f32 %v9477
    %v9542 = vcvt.s32.f32 %v9478
    %v9543 = vcvt.s32.f32 %v9479
    %v9544 = vcvt.s32.f32 %v9480
    %v9545 = vcvt.s32.f32 %v9481
    %v9546 = vcvt.s32.f32 %v9482
    %v9547 = vadd.f32 %v9483, %v9484
    %v9548 = vadd.f32 %v9547, %v9485
    %v9549 = vadd.f32 %v9548, %v9486
    %v9550 = vadd.f32 %v9549, %v9487
    %v9551 = vadd.f32 %v9550, %v9488
    %v9552 = vadd.f32 %v9551, %v9489
    %v9553 = vadd.f32 %v9552, %v9490
    %v9554 = vadd.f32 %v9553, %v9491
    %v9555 = vadd.f32 %v9554, %v9492
    %v9556 = vadd.f32 %v9555, %v9493
    %v9557 = vadd.f32 %v9556, %v9494
    %v9558 = vadd.f32 %v9557, %v9495
    %v9559 = vadd.f32 %v9558, %v9496
    %v9560 = vadd.f32 %v9559, %v9497
    %v9561 = vadd.f32 %v9560, %v9498
    %v9562 = vadd.f32 %v9561, %v9499
    %v9563 = vadd.f32 %v9562, %v9500
    %v9564 = vadd.f32 %v9563, %v9501
    %v9565 = vadd.f32 %v9564, %v9502
    %v9566 = vadd.f32 %v9565, %v9503
    %v9567 = vadd.f32 %v9566, %v9504
    %v9568 = vadd.f32 %v9567, %v9505
    %v9569 = vadd.f32 %v9568, %v9506
    %v9570 = vadd.f32 %v9569, %v9507
    %v9571 = vadd.f32 %v9570, %v9508
    %v9572 = vadd.f32 %v9571, %v9509
    %v9573 = vadd.f32 %v9572, %v9510
    %v9574 = vadd.f32 %v9573, %v9511
    %v9575 = vadd.f32 %v9574, %v9512
    %v9576 = vadd.f32 %v9575, %v9513
    %v9577 = vadd.f32 %v9576, %v9514
    %v9578 = vrot.slane %v9577, 4
    %v9579 = vadd.f32 %v9577, %v9578
    %v9580 = vrot.slane %v9579, 2
    %v9581 = vadd.f32 %v9579, %v9580
    %v9582 = vrot.slane %v9581, 1
    %v9583 = vadd.f32 %v9581, %v9582
    %v9584 = vadd.f32 %v9515, %v9516
    %v9585 = vadd.f32 %v9584, %v9517
    %v9586 = vadd.f32 %v9585, %v9518
    %v9587 = vadd.f32 %v9586, %v9519
    %v9588 = vadd.f32 %v9587, %v9520
    %v9589 = vadd.f32 %v9588, %v9521
    %v9590 = vadd.f32 %v9589, %v9522
    %v9591 = vadd.f32 %v9590, %v9523
    %v9592 = vadd.f32 %v9591, %v9524
    %v9593 = vadd.f32 %v9592, %v9525
    %v9594 = vadd.f32 %v9593, %v9526
    %v9595 = vadd.f32 %v9594, %v9527
    %v9596 = vadd.f32 %v9595, %v9528
    %v9597 = vadd.f32 %v9596, %v9529
    %v9598 = vadd.f32 %v9597, %v9530
    %v9599 = vadd.f32 %v9598, %v9531
    %v9600 = vadd.f32 %v9599, %v9532
    %v9601 = vadd.f32 %v9600, %v9533
    %v9602 = vadd.f32 %v9601, %v9534
    %v9603 = vadd.f32 %v9602, %v9535
    %v9604 = vadd.f32 %v9603, %v9536
    %v9605 = vadd.f32 %v9604, %v9537
    %v9606 = vadd.f32 %v9605, %v9538
    %v9607 = vadd.f32 %v9606, %v9539
    %v9608 = vadd.f32 %v9607, %v9540
    %v9609 = vadd.f32 %v9608, %v9541
    %v9610 = vadd.f32 %v9609, %v9542
    %v9611 = vadd.f32 %v9610, %v9543
    %v9612 = vadd.f32 %v9611, %v9544
    %v9613 = vadd.f32 %v9612, %v9545
    %v9614 = vadd.f32 %v9613, %v9546
    %v9615 = vrot.slane %v9614, 4
    %v9616 = vadd.f32 %v9614, %v9615
    %v9617 = vrot.slane %v9616, 2
    %v9618 = vadd.f32 %v9616, %v9617
    %v9619 = vrot.slane %v9618, 1
    %v9620 = vadd.f32 %v9618, %v9619
    %v9621 = vmul.f32 %v9583, %v5014
    %v9622 = vmul.f32 %v9620, %v5014
    %v9623 = vld [vmem:[%s3] sm:$0xff]
    %v9624 = vld [vmem:[%s3 + $0x8] sm:$0xff]
    %v9625 = vld [vmem:[%s3 + $0x10] sm:$0xff]
    %v9626 = vld [vmem:[%s3 + $0x18] sm:$0xff]
    %v9627 = vld [vmem:[%s3 + $0x20] sm:$0xff]
    %v9628 = vld [vmem:[%s3 + $0x28] sm:$0xff]
    %v9629 = vld [vmem:[%s3 + $0x30] sm:$0xff]
    %v9630 = vld [vmem:[%s3 + $0x38] sm:$0xff]
    %v9631 = vld [vmem:[%s3 + $0x40] sm:$0xff]
    %v9632 = vld [vmem:[%s3 + $0x48] sm:$0xff]
    %v9633 = vld [vmem:[%s3 + $0x50] sm:$0xff]
    %v9634 = vld [vmem:[%s3 + $0x58] sm:$0xff]
    %v9635 = vld [vmem:[%s3 + $0x60] sm:$0xff]
    %v9636 = vld [vmem:[%s3 + $0x68] sm:$0xff]
    %v9637 = vld [vmem:[%s3 + $0x70] sm:$0xff]
    %v9638 = vld [vmem:[%s3 + $0x78] sm:$0xff]
    %v9639 = vld [vmem:[%s6] sm:$0x1]
    %v9641 = vlaneseq
    %v9642 = vshrl.u32 %v9641, 7
    %v9643 = vsub.s32 0, %v9642
    %v9644 = vrot.slane %v9639, %v9643
    %v9648 = vsel %vm5042, %v9622, %v9621
    %9650 = vmatprep.subr.mxu0 0.0
    %9651 = vmatpush1.msra.mxu0 %v9623
    %9652 = vmatprep.subr.mxu0 0.0
    %9653 = vmatpush1.msra.mxu0 %v9624
    %9654 = vmatprep.subr.mxu0 0.0
    %9655 = vmatpush1.msra.mxu0 %v9625
    %9656 = vmatprep.subr.mxu0 0.0
    %9657 = vmatpush1.msra.mxu0 %v9626
    %9658 = vmatprep.subr.mxu0 0.0
    %9659 = vmatpush1.msra.mxu0 %v9627
    %9660 = vmatprep.subr.mxu0 0.0
    %9661 = vmatpush1.msra.mxu0 %v9628
    %9662 = vmatprep.subr.mxu0 0.0
    %9663 = vmatpush1.msra.mxu0 %v9629
    %9664 = vmatprep.subr.mxu0 0.0
    %9665 = vmatpush1.msra.mxu0 %v9630
    %9666 = vmatprep.subr.mxu0 0.0
    %9667 = vmatpush1.msra.mxu0 %v9631
    %9668 = vmatprep.subr.mxu0 0.0
    %9669 = vmatpush1.msra.mxu0 %v9632
    %9670 = vmatprep.subr.mxu0 0.0
    %9671 = vmatpush1.msra.mxu0 %v9633
    %9672 = vmatprep.subr.mxu0 0.0
    %9673 = vmatpush1.msra.mxu0 %v9634
    %9674 = vmatprep.subr.mxu0 0.0
    %9675 = vmatpush1.msra.mxu0 %v9635
    %9676 = vmatprep.subr.mxu0 0.0
    %9677 = vmatpush1.msra.mxu0 %v9636
    %9678 = vmatprep.subr.mxu0 0.0
    %9679 = vmatpush1.msra.mxu0 %v9637
    %9680 = vmatprep.subr.mxu0 0.0
    %9681 = vmatpush1.msra.mxu0 %v9638
    %9682 = vmatprep.subr.mxu0 0.0
    %9683 = vmatpush1.msra.mxu0 0.0
    %9684 = vmatprep.subr.mxu0 0.0
    %9685 = vmatpush1.msra.mxu0 0.0
    %9686 = vmatprep.subr.mxu0 0.0
    %9687 = vmatpush1.msra.mxu0 0.0
    %9688 = vmatprep.subr.mxu0 0.0
    %9689 = vmatpush1.msra.mxu0 0.0
    %9690 = vmatprep.subr.mxu0 0.0
    %9691 = vmatpush1.msra.mxu0 0.0
    %9692 = vmatprep.subr.mxu0 0.0
    %9693 = vmatpush1.msra.mxu0 0.0
    %9694 = vmatprep.subr.mxu0 0.0
    %9695 = vmatpush1.msra.mxu0 0.0
    %9696 = vmatprep.subr.mxu0 0.0
    %9697 = vmatpush1.msra.mxu0 0.0
    %9698 = vmatprep.subr.mxu0 0.0
    %9699 = vmatpush1.msra.mxu0 0.0
    %9700 = vmatprep.subr.mxu0 0.0
    %9701 = vmatpush1.msra.mxu0 0.0
    %9702 = vmatprep.subr.mxu0 0.0
    %9703 = vmatpush1.msra.mxu0 0.0
    %9704 = vmatprep.subr.mxu0 0.0
    %9705 = vmatpush1.msra.mxu0 0.0
    %9706 = vmatprep.subr.mxu0 0.0
    %9707 = vmatpush1.msra.mxu0 0.0
    %9708 = vmatprep.subr.mxu0 0.0
    %9709 = vmatpush1.msra.mxu0 0.0
    %9710 = vmatprep.subr.mxu0 0.0
    %9711 = vmatpush1.msra.mxu0 0.0
    %9712 = vmatprep.subr.mxu0 0.0
    %9713 = vmatpush1.msra.mxu0 0.0
    %9714 = vmatprep.mubr.f32.mxu0 0.0
    %9715 = vmatmul.mubr.f32.gmra.mrb[0].mxu0 %v9648
    %v9716 = vpop.f32.mrb[0].mxu0
    %v9717 = vadd.f32 %v9644, %v9716
    %v9718 = vpop.f32.mrb[0].mxu0
    %9719 = vdwg.mxu0
    %s9720 = scalar_lea.vmem [#allocation3], 2
    %9721 = vst [vmem:[%s9720] sm:$0x3] %v9717
    // Predicated region
    $region30: #{module_snn_forward.1} parent=1 // pred_check
      _
    $region31: #{module_snn_forward.1} parent=1 // pred_check_branch
      %9723 = sbr.rel (0) target = $region33
    $region32: #{module_snn_forward.1} parent=1 // pred_region
      %s9725 = ssub.s32 64, 64
      %9726 = vsyncadd [#allocation4], %s9725
      %s9727 = sshll.u32 [#allocation3], 4
      %s9728 = int_to_ptr.vmem [resolvable:$true] %s9727
      %9733 = dma.vmem_to_hbm [thread:$0]  %s9728, 64, %s7, [#allocation4], 32, 32, 2
    $region33: #{module_snn_forward.1} parent=1 // pred_fallthru
      _
    // Predicated region
    $region34: #{module_snn_forward.1} parent=1 // pred_check
      _
    $region35: #{module_snn_forward.1} parent=1 // pred_check_branch
      %9735 = sbr.rel (0) target = $region37
    $region36: #{module_snn_forward.1} parent=1 // pred_region
      %9736 = dma.done [#allocation4], 64
    $region37: #{module_snn_forward.1} parent=1 // pred_fallthru
      _
    %9737 = vsyncpa [#allocation4], 1

</llo_original>
